<compile_context>
chip_gen: v5e
topology: v5e:2x2
jax: 0.10.0
libtpu: 0.0.40
codegen_flags: <defaults>
</compile_context>

<pallas_src>
from functools import partial

import jax
import jax.numpy as jnp
from jax.experimental import pallas as pl
from jax.experimental.pallas import tpu as pltpu


# ------------------------------ Pallas kernel ------------------------------ #
def _conv_block(x, sh_ref, g_ref, b_ref):
    """One Conv2d+ReLU on an (Hp_in, C*W) bf16 activation.

    sh_ref : (KH, OHp, Hp_in) bf16   one-hot row-gather matrices (H im2col)
    g_ref  : (KH, C*W, NCOL)  bf16   expanded weights (W im2col + C contraction)
    b_ref  : (1, NCOL) f32           bias, already repeated along OW
    returns: (OHp, NCOL) f32         relu(conv + bias); rows >= OH are padding.
    """
    n_kh, ohp, _ = sh_ref.shape
    n_out = g_ref.shape[-1]
    acc = jnp.zeros((ohp, n_out), jnp.float32)
    for dk in range(n_kh):                                     # unrolled, <= 8 iters
        # Exact row gather (one-hot) -> (OHp, C*W), then MXU conv contraction.
        rows = jnp.dot(sh_ref[dk], x, preferred_element_type=jnp.float32)
        rows = rows.astype(jnp.bfloat16)
        acc = acc + jnp.dot(rows, g_ref[dk],
                            preferred_element_type=jnp.float32)
    return jnp.maximum(acc + b_ref[...], 0.0)                  # f32 epilogue


def _encoder_kernel(x_ref, sh1, g1, b1, sh2, g2, b2, sh3, g3, b3, o_ref):
    x = x_ref[0]                                               # (H, C*W) bf16
    h = _conv_block(x, sh1, g1, b1).astype(jnp.bfloat16)       # (OHp1, 16*OW1)
    h = _conv_block(h, sh2, g2, b2).astype(jnp.bfloat16)       # (OHp2, 32*OW2)
    h = _conv_block(h, sh3, g3, b3)                            # (OHp3, NCOL3) f32
    o_ref[0] = h                                               # full-lane store


# ---------------------------- weight pre-packing --------------------------- #
_STRIDES = (4, 2, 2)   # Conv2d strides of the module (k=8,s=4), (k=4,s=2), (k=4,s=2)


def pack_params(params, input_hw=(84, 84)):
    """Pre-pack conv weights into the kernel's matmul form (run once)."""
    h, w = input_hw
    hp = h                                 # current (padded) activation row count
    packed = {}
    geom = []
    names = ("1", "2", "3")
    for li, (name, stride) in enumerate(zip(names, _STRIDES)):
        wgt = params["w" + name]
        bias = params["b" + name]
        oc, c, kh_sz, kw_sz = wgt.shape
        oh = (h - kh_sz) // stride + 1
        ow = (w - kw_sz) // stride + 1
        ohp = ((oh + 7) // 8) * 8          # pad output rows to a sublane multiple

        # H-axis im2col as one-hot row-gather matrices: (KH, OHp, Hp_in).
        oh_i = jnp.arange(ohp)[:, None]
        h_i = jnp.arange(hp)[None, :]
        sh = jnp.stack(
            [((h_i == oh_i * stride + dk) & (oh_i < oh)) for dk in range(kh_sz)], 0)
        packed["sh" + name] = sh.astype(jnp.bfloat16)

        # W-axis im2col + channel contraction folded into expanded weights:
        # G[kh, c*W + w, oc*OW + ow] = wgt[oc, c, kh, w - ow*stride] (if in range).
        w_i = jnp.arange(w)[:, None]
        ow_i = jnp.arange(ow)[None, :]
        kw_i = w_i - ow_i * stride                               # (W, OW)
        valid = (kw_i >= 0) & (kw_i < kw_sz)
        wg = wgt[:, :, :, jnp.clip(kw_i, 0, kw_sz - 1)]          # (OC, C, KH, W, OW)
        wg = jnp.where(valid[None, None, None], wg, 0.0)
        g = jnp.transpose(wg, (2, 1, 3, 0, 4)).reshape(kh_sz, c * w, oc * ow)

        # Bias repeated along OW so it broadcasts over the (OHp, NCOL) tile.
        b = jnp.repeat(bias, ow)[None, :]

        n_cols = oc * ow
        n_cols_p = n_cols
        if li == len(_STRIDES) - 1:
            # Pad the final layer's output columns to a full 128-lane width so
            # the kernel's only store is an unmasked, lane-dense vst.  The
            # padded columns compute relu(0 + 0) = 0 and are sliced away.
            n_cols_p = max(((n_cols + 127) // 128) * 128, 128)
            g = jnp.pad(g, ((0, 0), (0, 0), (0, n_cols_p - n_cols)))
            b = jnp.pad(b, ((0, 0), (0, n_cols_p - n_cols)))

        packed["g" + name] = g.astype(jnp.bfloat16)
        packed["b" + name] = b.astype(jnp.float32)

        geom.append((oh, ow, ohp, oc, n_cols_p))
        h, w, hp = oh, ow, ohp
    return packed, tuple(geom)


# ------------------------------ module forward ----------------------------- #
@partial(jax.jit, static_argnums=(2,))
def breakout_img_encoder(x, packed, geom):
    n, c, h, w = x.shape
    oh3, ow3, ohp3, oc3, ncols3 = geom[-1]

    # NCHW -> (N, H, C*W) (single small XLA transpose; everything else is fused).
    x_hcw = jnp.transpose(x, (0, 2, 1, 3)).reshape(n, h, c * w).astype(jnp.bfloat16)

    # Advisory cost estimate for XLA's scheduler.
    flops = 0
    for name in ("1", "2", "3"):
        n_kh, ohp, hp_cols = packed["sh" + name].shape
        _, cw, ocow = packed["g" + name].shape
        flops += 2 * n_kh * ohp * hp_cols * cw + 2 * n_kh * ohp * cw * ocow
    flops *= n
    bytes_accessed = (x_hcw.size * 2
                      + sum(v.size * v.dtype.itemsize for v in packed.values())
                      + n * ohp3 * ncols3 * 4)

    def _const_spec(arr):
        zeros = (0,) * arr.ndim
        return pl.BlockSpec(arr.shape, lambda i, _z=zeros: _z)

    args = (x_hcw,
            packed["sh1"], packed["g1"], packed["b1"],
            packed["sh2"], packed["g2"], packed["b2"],
            packed["sh3"], packed["g3"], packed["b3"])

    out = pl.pallas_call(
        _encoder_kernel,
        out_shape=jax.ShapeDtypeStruct((n, ohp3, ncols3), jnp.float32),
        grid=(n,),
        in_specs=[pl.BlockSpec((1, h, c * w), lambda i: (i, 0, 0))]
                 + [_const_spec(a) for a in args[1:]],
        out_specs=pl.BlockSpec((1, ohp3, ncols3), lambda i: (i, 0, 0)),
        compiler_params=pltpu.CompilerParams(
            dimension_semantics=("parallel",),          # megacore-shard the batch
            vmem_limit_bytes=32 * 1024 * 1024),
        cost_estimate=pl.CostEstimate(flops=int(flops), transcendentals=0,
                                      bytes_accessed=int(bytes_accessed)),
    )(*args)

    # Drop row/lane padding and emit PyTorch's channel-major nn.Flatten order.
    feat = out[:, :oh3, :oc3 * ow3].reshape(n, oh3, oc3, ow3)
    return jnp.transpose(feat, (0, 2, 1, 3)).reshape(n, oc3 * oh3 * ow3)


# --------------------------------- params ---------------------------------- #
def init_params(key, input_channels=4):
    ks = jax.random.split(key, 6)

    def u(k, shape, fan_in):
        bound = 1.0 / jnp.sqrt(float(fan_in))
        return jax.random.uniform(k, shape, jnp.float32, -bound, bound)

    return dict(
        w1=u(ks[0], (16, input_channels, 8, 8), input_channels * 8 * 8),
        b1=u(ks[1], (16,), input_channels * 8 * 8),
        w2=u(ks[2], (32, 16, 4, 4), 16 * 4 * 4),
        b2=u(ks[3], (32,), 16 * 4 * 4),
        w3=u(ks[4], (16, 32, 4, 4), 32 * 4 * 4),
        b3=u(ks[5], (16,), 32 * 4 * 4),
    )


# -------------------------------- reference -------------------------------- #
def _ref_forward(x, p):
    def conv(x, w, b, s):
        y = jax.lax.conv_general_dilated(
            x, w, (s, s), "VALID", dimension_numbers=("NCHW", "OIHW", "NCHW"))
        return jax.nn.relu(y + b[None, :, None, None])

    h = conv(x, p["w1"], p["b1"], 4)
    h = conv(h, p["w2"], p["b2"], 2)
    h = conv(h, p["w3"], p["b3"], 2)
    return h.reshape(h.shape[0], -1)


if __name__ == "__main__":
    key = jax.random.PRNGKey(0)
    k_param, k_x = jax.random.split(key)
    params = init_params(k_param, input_channels=4)

    # Standard Breakout frame stack: batch=2, 4 channels, 84x84 (the smallest
    # spatial size consistent with this conv stack's kernels/strides).
    x = jax.random.normal(k_x, (2, 4, 84, 84), dtype=jnp.float32)

    packed, geom = pack_params(params, input_hw=(84, 84))

    out = jax.block_until_ready(breakout_img_encoder(x, packed, geom))
    ref = jax.block_until_ready(_ref_forward(x, params))

    assert out.shape == (2, 16 * 3 * 3), out.shape
    max_err = float(jnp.max(jnp.abs(out - ref)))
    # bf16 MXU inputs with f32 accumulation -> loosened tolerance.
    assert jnp.allclose(out, ref, atol=5e-2, rtol=5e-2), max_err
    print("KERNEL_OK")
</pallas_src>

<mosaic_0001>
module attributes {stable_mosaic.version = 11 : i64} {
  func.func @_encoder_kernel(%arg0: i32, %arg1: memref<1x84x336xbf16, #tpu.memory_space<vmem>>, %arg2: memref<8x24x84xbf16, #tpu.memory_space<vmem>>, %arg3: memref<8x336x320xbf16, #tpu.memory_space<vmem>>, %arg4: memref<1x320xf32, #tpu.memory_space<vmem>>, %arg5: memref<4x16x24xbf16, #tpu.memory_space<vmem>>, %arg6: memref<4x320x288xbf16, #tpu.memory_space<vmem>>, %arg7: memref<1x288xf32, #tpu.memory_space<vmem>>, %arg8: memref<4x8x16xbf16, #tpu.memory_space<vmem>>, %arg9: memref<4x288x128xbf16, #tpu.memory_space<vmem>>, %arg10: memref<1x128xf32, #tpu.memory_space<vmem>>, %arg11: memref<1x8x128xf32, #tpu.memory_space<vmem>>) attributes {dimension_semantics = [#tpu.dimension_semantics<parallel>], iteration_bounds = array<i64: 2>, scalar_prefetch = 0 : i64, scratch_operands = 0 : i64, tpu.core_type = #tpu.core_type<tc>, window_params = [{transform_indices = @transform_0, window_bounds = array<i64: 1, 84, 336>}, {pipeline_mode = #tpu.pipeline_mode<synchronous>, transform_indices = @transform_1, window_bounds = array<i64: 8, 24, 84>}, {pipeline_mode = #tpu.pipeline_mode<synchronous>, transform_indices = @transform_2, window_bounds = array<i64: 8, 336, 320>}, {pipeline_mode = #tpu.pipeline_mode<synchronous>, transform_indices = @transform_3, window_bounds = array<i64: 1, 320>}, {pipeline_mode = #tpu.pipeline_mode<synchronous>, transform_indices = @transform_4, window_bounds = array<i64: 4, 16, 24>}, {pipeline_mode = #tpu.pipeline_mode<synchronous>, transform_indices = @transform_5, window_bounds = array<i64: 4, 320, 288>}, {pipeline_mode = #tpu.pipeline_mode<synchronous>, transform_indices = @transform_6, window_bounds = array<i64: 1, 288>}, {pipeline_mode = #tpu.pipeline_mode<synchronous>, transform_indices = @transform_7, window_bounds = array<i64: 4, 8, 16>}, {pipeline_mode = #tpu.pipeline_mode<synchronous>, transform_indices = @transform_8, window_bounds = array<i64: 4, 288, 128>}, {pipeline_mode = #tpu.pipeline_mode<synchronous>, transform_indices = @transform_9, window_bounds = array<i64: 1, 128>}, {transform_indices = @transform_10, window_bounds = array<i64: 1, 8, 128>}]} {
    %c0 = arith.constant 0 : index
    %c0_0 = arith.constant 0 : index
    %c0_1 = arith.constant 0 : index
    %0 = vector.load %arg1[%c0, %c0_0, %c0_1] : memref<1x84x336xbf16, #tpu.memory_space<vmem>>, vector<1x84x336xbf16>
    %1 = vector.shape_cast %0 : vector<1x84x336xbf16> to vector<84x336xbf16>
    %cst = arith.constant 0.000000e+00 : f32
    %2 = vector.broadcast %cst : f32 to vector<24x320xf32>
    %c0_2 = arith.constant 0 : index
    %c0_3 = arith.constant 0 : index
    %c0_4 = arith.constant 0 : index
    %3 = vector.load %arg2[%c0_2, %c0_3, %c0_4] : memref<8x24x84xbf16, #tpu.memory_space<vmem>>, vector<1x24x84xbf16>
    %4 = vector.shape_cast %3 : vector<1x24x84xbf16> to vector<24x84xbf16>
    %cst_5 = arith.constant dense<0.000000e+00> : vector<24x336xf32>
    %5 = tpu.matmul %4, %1, %cst_5 {dimension_numbers = #tpu.dot_dimension_numbers<[1], [0], [0], [1], [0, 0, 1, 1], [], []>} : vector<24x84xbf16>, vector<84x336xbf16>, vector<24x336xf32> -> vector<24x336xf32>
    %6 = arith.truncf %5 : vector<24x336xf32> to vector<24x336xbf16>
    %c0_6 = arith.constant 0 : index
    %c0_7 = arith.constant 0 : index
    %c0_8 = arith.constant 0 : index
    %7 = vector.load %arg3[%c0_6, %c0_7, %c0_8] : memref<8x336x320xbf16, #tpu.memory_space<vmem>>, vector<1x336x320xbf16>
    %8 = vector.shape_cast %7 : vector<1x336x320xbf16> to vector<336x320xbf16>
    %cst_9 = arith.constant dense<0.000000e+00> : vector<24x320xf32>
    %9 = tpu.matmul %6, %8, %cst_9 {dimension_numbers = #tpu.dot_dimension_numbers<[1], [0], [0], [1], [0, 0, 1, 1], [], []>} : vector<24x336xbf16>, vector<336x320xbf16>, vector<24x320xf32> -> vector<24x320xf32>
    %10 = arith.addf %2, %9 : vector<24x320xf32>
    %c1 = arith.constant 1 : index
    %c0_10 = arith.constant 0 : index
    %c0_11 = arith.constant 0 : index
    %11 = vector.load %arg2[%c1, %c0_10, %c0_11] : memref<8x24x84xbf16, #tpu.memory_space<vmem>>, vector<1x24x84xbf16>
    %12 = vector.shape_cast %11 : vector<1x24x84xbf16> to vector<24x84xbf16>
    %cst_12 = arith.constant dense<0.000000e+00> : vector<24x336xf32>
    %13 = tpu.matmul %12, %1, %cst_12 {dimension_numbers = #tpu.dot_dimension_numbers<[1], [0], [0], [1], [0, 0, 1, 1], [], []>} : vector<24x84xbf16>, vector<84x336xbf16>, vector<24x336xf32> -> vector<24x336xf32>
    %14 = arith.truncf %13 : vector<24x336xf32> to vector<24x336xbf16>
    %c1_13 = arith.constant 1 : index
    %c0_14 = arith.constant 0 : index
    %c0_15 = arith.constant 0 : index
    %15 = vector.load %arg3[%c1_13, %c0_14, %c0_15] : memref<8x336x320xbf16, #tpu.memory_space<vmem>>, vector<1x336x320xbf16>
    %16 = vector.shape_cast %15 : vector<1x336x320xbf16> to vector<336x320xbf16>
    %cst_16 = arith.constant dense<0.000000e+00> : vector<24x320xf32>
    %17 = tpu.matmul %14, %16, %cst_16 {dimension_numbers = #tpu.dot_dimension_numbers<[1], [0], [0], [1], [0, 0, 1, 1], [], []>} : vector<24x336xbf16>, vector<336x320xbf16>, vector<24x320xf32> -> vector<24x320xf32>
    %18 = arith.addf %10, %17 : vector<24x320xf32>
    %c2 = arith.constant 2 : index
    %c0_17 = arith.constant 0 : index
    %c0_18 = arith.constant 0 : index
    %19 = vector.load %arg2[%c2, %c0_17, %c0_18] : memref<8x24x84xbf16, #tpu.memory_space<vmem>>, vector<1x24x84xbf16>
    %20 = vector.shape_cast %19 : vector<1x24x84xbf16> to vector<24x84xbf16>
    %cst_19 = arith.constant dense<0.000000e+00> : vector<24x336xf32>
    %21 = tpu.matmul %20, %1, %cst_19 {dimension_numbers = #tpu.dot_dimension_numbers<[1], [0], [0], [1], [0, 0, 1, 1], [], []>} : vector<24x84xbf16>, vector<84x336xbf16>, vector<24x336xf32> -> vector<24x336xf32>
    %22 = arith.truncf %21 : vector<24x336xf32> to vector<24x336xbf16>
    %c2_20 = arith.constant 2 : index
    %c0_21 = arith.constant 0 : index
    %c0_22 = arith.constant 0 : index
    %23 = vector.load %arg3[%c2_20, %c0_21, %c0_22] : memref<8x336x320xbf16, #tpu.memory_space<vmem>>, vector<1x336x320xbf16>
    %24 = vector.shape_cast %23 : vector<1x336x320xbf16> to vector<336x320xbf16>
    %cst_23 = arith.constant dense<0.000000e+00> : vector<24x320xf32>
    %25 = tpu.matmul %22, %24, %cst_23 {dimension_numbers = #tpu.dot_dimension_numbers<[1], [0], [0], [1], [0, 0, 1, 1], [], []>} : vector<24x336xbf16>, vector<336x320xbf16>, vector<24x320xf32> -> vector<24x320xf32>
    %26 = arith.addf %18, %25 : vector<24x320xf32>
    %c3 = arith.constant 3 : index
    %c0_24 = arith.constant 0 : index
    %c0_25 = arith.constant 0 : index
    %27 = vector.load %arg2[%c3, %c0_24, %c0_25] : memref<8x24x84xbf16, #tpu.memory_space<vmem>>, vector<1x24x84xbf16>
    %28 = vector.shape_cast %27 : vector<1x24x84xbf16> to vector<24x84xbf16>
    %cst_26 = arith.constant dense<0.000000e+00> : vector<24x336xf32>
    %29 = tpu.matmul %28, %1, %cst_26 {dimension_numbers = #tpu.dot_dimension_numbers<[1], [0], [0], [1], [0, 0, 1, 1], [], []>} : vector<24x84xbf16>, vector<84x336xbf16>, vector<24x336xf32> -> vector<24x336xf32>
    %30 = arith.truncf %29 : vector<24x336xf32> to vector<24x336xbf16>
    %c3_27 = arith.constant 3 : index
    %c0_28 = arith.constant 0 : index
    %c0_29 = arith.constant 0 : index
    %31 = vector.load %arg3[%c3_27, %c0_28, %c0_29] : memref<8x336x320xbf16, #tpu.memory_space<vmem>>, vector<1x336x320xbf16>
    %32 = vector.shape_cast %31 : vector<1x336x320xbf16> to vector<336x320xbf16>
    %cst_30 = arith.constant dense<0.000000e+00> : vector<24x320xf32>
    %33 = tpu.matmul %30, %32, %cst_30 {dimension_numbers = #tpu.dot_dimension_numbers<[1], [0], [0], [1], [0, 0, 1, 1], [], []>} : vector<24x336xbf16>, vector<336x320xbf16>, vector<24x320xf32> -> vector<24x320xf32>
    %34 = arith.addf %26, %33 : vector<24x320xf32>
    %c4 = arith.constant 4 : index
    %c0_31 = arith.constant 0 : index
    %c0_32 = arith.constant 0 : index
    %35 = vector.load %arg2[%c4, %c0_31, %c0_32] : memref<8x24x84xbf16, #tpu.memory_space<vmem>>, vector<1x24x84xbf16>
    %36 = vector.shape_cast %35 : vector<1x24x84xbf16> to vector<24x84xbf16>
    %cst_33 = arith.constant dense<0.000000e+00> : vector<24x336xf32>
    %37 = tpu.matmul %36, %1, %cst_33 {dimension_numbers = #tpu.dot_dimension_numbers<[1], [0], [0], [1], [0, 0, 1, 1], [], []>} : vector<24x84xbf16>, vector<84x336xbf16>, vector<24x336xf32> -> vector<24x336xf32>
    %38 = arith.truncf %37 : vector<24x336xf32> to vector<24x336xbf16>
    %c4_34 = arith.constant 4 : index
    %c0_35 = arith.constant 0 : index
    %c0_36 = arith.constant 0 : index
    %39 = vector.load %arg3[%c4_34, %c0_35, %c0_36] : memref<8x336x320xbf16, #tpu.memory_space<vmem>>, vector<1x336x320xbf16>
    %40 = vector.shape_cast %39 : vector<1x336x320xbf16> to vector<336x320xbf16>
    %cst_37 = arith.constant dense<0.000000e+00> : vector<24x320xf32>
    %41 = tpu.matmul %38, %40, %cst_37 {dimension_numbers = #tpu.dot_dimension_numbers<[1], [0], [0], [1], [0, 0, 1, 1], [], []>} : vector<24x336xbf16>, vector<336x320xbf16>, vector<24x320xf32> -> vector<24x320xf32>
    %42 = arith.addf %34, %41 : vector<24x320xf32>
    %c5 = arith.constant 5 : index
    %c0_38 = arith.constant 0 : index
    %c0_39 = arith.constant 0 : index
    %43 = vector.load %arg2[%c5, %c0_38, %c0_39] : memref<8x24x84xbf16, #tpu.memory_space<vmem>>, vector<1x24x84xbf16>
    %44 = vector.shape_cast %43 : vector<1x24x84xbf16> to vector<24x84xbf16>
    %cst_40 = arith.constant dense<0.000000e+00> : vector<24x336xf32>
    %45 = tpu.matmul %44, %1, %cst_40 {dimension_numbers = #tpu.dot_dimension_numbers<[1], [0], [0], [1], [0, 0, 1, 1], [], []>} : vector<24x84xbf16>, vector<84x336xbf16>, vector<24x336xf32> -> vector<24x336xf32>
    %46 = arith.truncf %45 : vector<24x336xf32> to vector<24x336xbf16>
    %c5_41 = arith.constant 5 : index
    %c0_42 = arith.constant 0 : index
    %c0_43 = arith.constant 0 : index
    %47 = vector.load %arg3[%c5_41, %c0_42, %c0_43] : memref<8x336x320xbf16, #tpu.memory_space<vmem>>, vector<1x336x320xbf16>
    %48 = vector.shape_cast %47 : vector<1x336x320xbf16> to vector<336x320xbf16>
    %cst_44 = arith.constant dense<0.000000e+00> : vector<24x320xf32>
    %49 = tpu.matmul %46, %48, %cst_44 {dimension_numbers = #tpu.dot_dimension_numbers<[1], [0], [0], [1], [0, 0, 1, 1], [], []>} : vector<24x336xbf16>, vector<336x320xbf16>, vector<24x320xf32> -> vector<24x320xf32>
    %50 = arith.addf %42, %49 : vector<24x320xf32>
    %c6 = arith.constant 6 : index
    %c0_45 = arith.constant 0 : index
    %c0_46 = arith.constant 0 : index
    %51 = vector.load %arg2[%c6, %c0_45, %c0_46] : memref<8x24x84xbf16, #tpu.memory_space<vmem>>, vector<1x24x84xbf16>
    %52 = vector.shape_cast %51 : vector<1x24x84xbf16> to vector<24x84xbf16>
    %cst_47 = arith.constant dense<0.000000e+00> : vector<24x336xf32>
    %53 = tpu.matmul %52, %1, %cst_47 {dimension_numbers = #tpu.dot_dimension_numbers<[1], [0], [0], [1], [0, 0, 1, 1], [], []>} : vector<24x84xbf16>, vector<84x336xbf16>, vector<24x336xf32> -> vector<24x336xf32>
    %54 = arith.truncf %53 : vector<24x336xf32> to vector<24x336xbf16>
    %c6_48 = arith.constant 6 : index
    %c0_49 = arith.constant 0 : index
    %c0_50 = arith.constant 0 : index
    %55 = vector.load %arg3[%c6_48, %c0_49, %c0_50] : memref<8x336x320xbf16, #tpu.memory_space<vmem>>, vector<1x336x320xbf16>
    %56 = vector.shape_cast %55 : vector<1x336x320xbf16> to vector<336x320xbf16>
    %cst_51 = arith.constant dense<0.000000e+00> : vector<24x320xf32>
    %57 = tpu.matmul %54, %56, %cst_51 {dimension_numbers = #tpu.dot_dimension_numbers<[1], [0], [0], [1], [0, 0, 1, 1], [], []>} : vector<24x336xbf16>, vector<336x320xbf16>, vector<24x320xf32> -> vector<24x320xf32>
    %58 = arith.addf %50, %57 : vector<24x320xf32>
    %c7 = arith.constant 7 : index
    %c0_52 = arith.constant 0 : index
    %c0_53 = arith.constant 0 : index
    %59 = vector.load %arg2[%c7, %c0_52, %c0_53] : memref<8x24x84xbf16, #tpu.memory_space<vmem>>, vector<1x24x84xbf16>
    %60 = vector.shape_cast %59 : vector<1x24x84xbf16> to vector<24x84xbf16>
    %cst_54 = arith.constant dense<0.000000e+00> : vector<24x336xf32>
    %61 = tpu.matmul %60, %1, %cst_54 {dimension_numbers = #tpu.dot_dimension_numbers<[1], [0], [0], [1], [0, 0, 1, 1], [], []>} : vector<24x84xbf16>, vector<84x336xbf16>, vector<24x336xf32> -> vector<24x336xf32>
    %62 = arith.truncf %61 : vector<24x336xf32> to vector<24x336xbf16>
    %c7_55 = arith.constant 7 : index
    %c0_56 = arith.constant 0 : index
    %c0_57 = arith.constant 0 : index
    %63 = vector.load %arg3[%c7_55, %c0_56, %c0_57] : memref<8x336x320xbf16, #tpu.memory_space<vmem>>, vector<1x336x320xbf16>
    %64 = vector.shape_cast %63 : vector<1x336x320xbf16> to vector<336x320xbf16>
    %cst_58 = arith.constant dense<0.000000e+00> : vector<24x320xf32>
    %65 = tpu.matmul %62, %64, %cst_58 {dimension_numbers = #tpu.dot_dimension_numbers<[1], [0], [0], [1], [0, 0, 1, 1], [], []>} : vector<24x336xbf16>, vector<336x320xbf16>, vector<24x320xf32> -> vector<24x320xf32>
    %66 = arith.addf %58, %65 : vector<24x320xf32>
    %c0_59 = arith.constant 0 : index
    %c0_60 = arith.constant 0 : index
    %67 = vector.load %arg4[%c0_59, %c0_60] : memref<1x320xf32, #tpu.memory_space<vmem>>, vector<1x320xf32>
    %68 = vector.broadcast %67 : vector<1x320xf32> to vector<24x320xf32>
    %69 = arith.addf %66, %68 : vector<24x320xf32>
    %cst_61 = arith.constant 0.000000e+00 : f32
    %70 = vector.broadcast %cst_61 : f32 to vector<24x320xf32>
    %71 = arith.maximumf %69, %70 : vector<24x320xf32>
    %72 = arith.truncf %71 : vector<24x320xf32> to vector<24x320xbf16>
    %cst_62 = arith.constant 0.000000e+00 : f32
    %73 = vector.broadcast %cst_62 : f32 to vector<16x288xf32>
    %c0_63 = arith.constant 0 : index
    %c0_64 = arith.constant 0 : index
    %c0_65 = arith.constant 0 : index
    %74 = vector.load %arg5[%c0_63, %c0_64, %c0_65] : memref<4x16x24xbf16, #tpu.memory_space<vmem>>, vector<1x16x24xbf16>
    %75 = vector.shape_cast %74 : vector<1x16x24xbf16> to vector<16x24xbf16>
    %cst_66 = arith.constant dense<0.000000e+00> : vector<16x320xf32>
    %76 = tpu.matmul %75, %72, %cst_66 {dimension_numbers = #tpu.dot_dimension_numbers<[1], [0], [0], [1], [0, 0, 1, 1], [], []>} : vector<16x24xbf16>, vector<24x320xbf16>, vector<16x320xf32> -> vector<16x320xf32>
    %77 = arith.truncf %76 : vector<16x320xf32> to vector<16x320xbf16>
    %c0_67 = arith.constant 0 : index
    %c0_68 = arith.constant 0 : index
    %c0_69 = arith.constant 0 : index
    %78 = vector.load %arg6[%c0_67, %c0_68, %c0_69] : memref<4x320x288xbf16, #tpu.memory_space<vmem>>, vector<1x320x288xbf16>
    %79 = vector.shape_cast %78 : vector<1x320x288xbf16> to vector<320x288xbf16>
    %cst_70 = arith.constant dense<0.000000e+00> : vector<16x288xf32>
    %80 = tpu.matmul %77, %79, %cst_70 {dimension_numbers = #tpu.dot_dimension_numbers<[1], [0], [0], [1], [0, 0, 1, 1], [], []>} : vector<16x320xbf16>, vector<320x288xbf16>, vector<16x288xf32> -> vector<16x288xf32>
    %81 = arith.addf %73, %80 : vector<16x288xf32>
    %c1_71 = arith.constant 1 : index
    %c0_72 = arith.constant 0 : index
    %c0_73 = arith.constant 0 : index
    %82 = vector.load %arg5[%c1_71, %c0_72, %c0_73] : memref<4x16x24xbf16, #tpu.memory_space<vmem>>, vector<1x16x24xbf16>
    %83 = vector.shape_cast %82 : vector<1x16x24xbf16> to vector<16x24xbf16>
    %cst_74 = arith.constant dense<0.000000e+00> : vector<16x320xf32>
    %84 = tpu.matmul %83, %72, %cst_74 {dimension_numbers = #tpu.dot_dimension_numbers<[1], [0], [0], [1], [0, 0, 1, 1], [], []>} : vector<16x24xbf16>, vector<24x320xbf16>, vector<16x320xf32> -> vector<16x320xf32>
    %85 = arith.truncf %84 : vector<16x320xf32> to vector<16x320xbf16>
    %c1_75 = arith.constant 1 : index
    %c0_76 = arith.constant 0 : index
    %c0_77 = arith.constant 0 : index
    %86 = vector.load %arg6[%c1_75, %c0_76, %c0_77] : memref<4x320x288xbf16, #tpu.memory_space<vmem>>, vector<1x320x288xbf16>
    %87 = vector.shape_cast %86 : vector<1x320x288xbf16> to vector<320x288xbf16>
    %cst_78 = arith.constant dense<0.000000e+00> : vector<16x288xf32>
    %88 = tpu.matmul %85, %87, %cst_78 {dimension_numbers = #tpu.dot_dimension_numbers<[1], [0], [0], [1], [0, 0, 1, 1], [], []>} : vector<16x320xbf16>, vector<320x288xbf16>, vector<16x288xf32> -> vector<16x288xf32>
    %89 = arith.addf %81, %88 : vector<16x288xf32>
    %c2_79 = arith.constant 2 : index
    %c0_80 = arith.constant 0 : index
    %c0_81 = arith.constant 0 : index
    %90 = vector.load %arg5[%c2_79, %c0_80, %c0_81] : memref<4x16x24xbf16, #tpu.memory_space<vmem>>, vector<1x16x24xbf16>
    %91 = vector.shape_cast %90 : vector<1x16x24xbf16> to vector<16x24xbf16>
    %cst_82 = arith.constant dense<0.000000e+00> : vector<16x320xf32>
    %92 = tpu.matmul %91, %72, %cst_82 {dimension_numbers = #tpu.dot_dimension_numbers<[1], [0], [0], [1], [0, 0, 1, 1], [], []>} : vector<16x24xbf16>, vector<24x320xbf16>, vector<16x320xf32> -> vector<16x320xf32>
    %93 = arith.truncf %92 : vector<16x320xf32> to vector<16x320xbf16>
    %c2_83 = arith.constant 2 : index
    %c0_84 = arith.constant 0 : index
    %c0_85 = arith.constant 0 : index
    %94 = vector.load %arg6[%c2_83, %c0_84, %c0_85] : memref<4x320x288xbf16, #tpu.memory_space<vmem>>, vector<1x320x288xbf16>
    %95 = vector.shape_cast %94 : vector<1x320x288xbf16> to vector<320x288xbf16>
    %cst_86 = arith.constant dense<0.000000e+00> : vector<16x288xf32>
    %96 = tpu.matmul %93, %95, %cst_86 {dimension_numbers = #tpu.dot_dimension_numbers<[1], [0], [0], [1], [0, 0, 1, 1], [], []>} : vector<16x320xbf16>, vector<320x288xbf16>, vector<16x288xf32> -> vector<16x288xf32>
    %97 = arith.addf %89, %96 : vector<16x288xf32>
    %c3_87 = arith.constant 3 : index
    %c0_88 = arith.constant 0 : index
    %c0_89 = arith.constant 0 : index
    %98 = vector.load %arg5[%c3_87, %c0_88, %c0_89] : memref<4x16x24xbf16, #tpu.memory_space<vmem>>, vector<1x16x24xbf16>
    %99 = vector.shape_cast %98 : vector<1x16x24xbf16> to vector<16x24xbf16>
    %cst_90 = arith.constant dense<0.000000e+00> : vector<16x320xf32>
    %100 = tpu.matmul %99, %72, %cst_90 {dimension_numbers = #tpu.dot_dimension_numbers<[1], [0], [0], [1], [0, 0, 1, 1], [], []>} : vector<16x24xbf16>, vector<24x320xbf16>, vector<16x320xf32> -> vector<16x320xf32>
    %101 = arith.truncf %100 : vector<16x320xf32> to vector<16x320xbf16>
    %c3_91 = arith.constant 3 : index
    %c0_92 = arith.constant 0 : index
    %c0_93 = arith.constant 0 : index
    %102 = vector.load %arg6[%c3_91, %c0_92, %c0_93] : memref<4x320x288xbf16, #tpu.memory_space<vmem>>, vector<1x320x288xbf16>
    %103 = vector.shape_cast %102 : vector<1x320x288xbf16> to vector<320x288xbf16>
    %cst_94 = arith.constant dense<0.000000e+00> : vector<16x288xf32>
    %104 = tpu.matmul %101, %103, %cst_94 {dimension_numbers = #tpu.dot_dimension_numbers<[1], [0], [0], [1], [0, 0, 1, 1], [], []>} : vector<16x320xbf16>, vector<320x288xbf16>, vector<16x288xf32> -> vector<16x288xf32>
    %105 = arith.addf %97, %104 : vector<16x288xf32>
    %c0_95 = arith.constant 0 : index
    %c0_96 = arith.constant 0 : index
    %106 = vector.load %arg7[%c0_95, %c0_96] : memref<1x288xf32, #tpu.memory_space<vmem>>, vector<1x288xf32>
    %107 = vector.broadcast %106 : vector<1x288xf32> to vector<16x288xf32>
    %108 = arith.addf %105, %107 : vector<16x288xf32>
    %cst_97 = arith.constant 0.000000e+00 : f32
    %109 = vector.broadcast %cst_97 : f32 to vector<16x288xf32>
    %110 = arith.maximumf %108, %109 : vector<16x288xf32>
    %111 = arith.truncf %110 : vector<16x288xf32> to vector<16x288xbf16>
    %cst_98 = arith.constant 0.000000e+00 : f32
    %112 = vector.broadcast %cst_98 : f32 to vector<8x128xf32>
    %c0_99 = arith.constant 0 : index
    %c0_100 = arith.constant 0 : index
    %c0_101 = arith.constant 0 : index
    %113 = vector.load %arg8[%c0_99, %c0_100, %c0_101] : memref<4x8x16xbf16, #tpu.memory_space<vmem>>, vector<1x8x16xbf16>
    %114 = vector.shape_cast %113 : vector<1x8x16xbf16> to vector<8x16xbf16>
    %cst_102 = arith.constant dense<0.000000e+00> : vector<8x288xf32>
    %115 = tpu.matmul %114, %111, %cst_102 {dimension_numbers = #tpu.dot_dimension_numbers<[1], [0], [0], [1], [0, 0, 1, 1], [], []>} : vector<8x16xbf16>, vector<16x288xbf16>, vector<8x288xf32> -> vector<8x288xf32>
    %116 = arith.truncf %115 : vector<8x288xf32> to vector<8x288xbf16>
    %c0_103 = arith.constant 0 : index
    %c0_104 = arith.constant 0 : index
    %c0_105 = arith.constant 0 : index
    %117 = vector.load %arg9[%c0_103, %c0_104, %c0_105] : memref<4x288x128xbf16, #tpu.memory_space<vmem>>, vector<1x288x128xbf16>
    %118 = vector.shape_cast %117 : vector<1x288x128xbf16> to vector<288x128xbf16>
    %cst_106 = arith.constant dense<0.000000e+00> : vector<8x128xf32>
    %119 = tpu.matmul %116, %118, %cst_106 {dimension_numbers = #tpu.dot_dimension_numbers<[1], [0], [0], [1], [0, 0, 1, 1], [], []>} : vector<8x288xbf16>, vector<288x128xbf16>, vector<8x128xf32> -> vector<8x128xf32>
    %120 = arith.addf %112, %119 : vector<8x128xf32>
    %c1_107 = arith.constant 1 : index
    %c0_108 = arith.constant 0 : index
    %c0_109 = arith.constant 0 : index
    %121 = vector.load %arg8[%c1_107, %c0_108, %c0_109] : memref<4x8x16xbf16, #tpu.memory_space<vmem>>, vector<1x8x16xbf16>
    %122 = vector.shape_cast %121 : vector<1x8x16xbf16> to vector<8x16xbf16>
    %cst_110 = arith.constant dense<0.000000e+00> : vector<8x288xf32>
    %123 = tpu.matmul %122, %111, %cst_110 {dimension_numbers = #tpu.dot_dimension_numbers<[1], [0], [0], [1], [0, 0, 1, 1], [], []>} : vector<8x16xbf16>, vector<16x288xbf16>, vector<8x288xf32> -> vector<8x288xf32>
    %124 = arith.truncf %123 : vector<8x288xf32> to vector<8x288xbf16>
    %c1_111 = arith.constant 1 : index
    %c0_112 = arith.constant 0 : index
    %c0_113 = arith.constant 0 : index
    %125 = vector.load %arg9[%c1_111, %c0_112, %c0_113] : memref<4x288x128xbf16, #tpu.memory_space<vmem>>, vector<1x288x128xbf16>
    %126 = vector.shape_cast %125 : vector<1x288x128xbf16> to vector<288x128xbf16>
    %cst_114 = arith.constant dense<0.000000e+00> : vector<8x128xf32>
    %127 = tpu.matmul %124, %126, %cst_114 {dimension_numbers = #tpu.dot_dimension_numbers<[1], [0], [0], [1], [0, 0, 1, 1], [], []>} : vector<8x288xbf16>, vector<288x128xbf16>, vector<8x128xf32> -> vector<8x128xf32>
    %128 = arith.addf %120, %127 : vector<8x128xf32>
    %c2_115 = arith.constant 2 : index
    %c0_116 = arith.constant 0 : index
    %c0_117 = arith.constant 0 : index
    %129 = vector.load %arg8[%c2_115, %c0_116, %c0_117] : memref<4x8x16xbf16, #tpu.memory_space<vmem>>, vector<1x8x16xbf16>
    %130 = vector.shape_cast %129 : vector<1x8x16xbf16> to vector<8x16xbf16>
    %cst_118 = arith.constant dense<0.000000e+00> : vector<8x288xf32>
    %131 = tpu.matmul %130, %111, %cst_118 {dimension_numbers = #tpu.dot_dimension_numbers<[1], [0], [0], [1], [0, 0, 1, 1], [], []>} : vector<8x16xbf16>, vector<16x288xbf16>, vector<8x288xf32> -> vector<8x288xf32>
    %132 = arith.truncf %131 : vector<8x288xf32> to vector<8x288xbf16>
    %c2_119 = arith.constant 2 : index
    %c0_120 = arith.constant 0 : index
    %c0_121 = arith.constant 0 : index
    %133 = vector.load %arg9[%c2_119, %c0_120, %c0_121] : memref<4x288x128xbf16, #tpu.memory_space<vmem>>, vector<1x288x128xbf16>
    %134 = vector.shape_cast %133 : vector<1x288x128xbf16> to vector<288x128xbf16>
    %cst_122 = arith.constant dense<0.000000e+00> : vector<8x128xf32>
    %135 = tpu.matmul %132, %134, %cst_122 {dimension_numbers = #tpu.dot_dimension_numbers<[1], [0], [0], [1], [0, 0, 1, 1], [], []>} : vector<8x288xbf16>, vector<288x128xbf16>, vector<8x128xf32> -> vector<8x128xf32>
    %136 = arith.addf %128, %135 : vector<8x128xf32>
    %c3_123 = arith.constant 3 : index
    %c0_124 = arith.constant 0 : index
    %c0_125 = arith.constant 0 : index
    %137 = vector.load %arg8[%c3_123, %c0_124, %c0_125] : memref<4x8x16xbf16, #tpu.memory_space<vmem>>, vector<1x8x16xbf16>
    %138 = vector.shape_cast %137 : vector<1x8x16xbf16> to vector<8x16xbf16>
    %cst_126 = arith.constant dense<0.000000e+00> : vector<8x288xf32>
    %139 = tpu.matmul %138, %111, %cst_126 {dimension_numbers = #tpu.dot_dimension_numbers<[1], [0], [0], [1], [0, 0, 1, 1], [], []>} : vector<8x16xbf16>, vector<16x288xbf16>, vector<8x288xf32> -> vector<8x288xf32>
    %140 = arith.truncf %139 : vector<8x288xf32> to vector<8x288xbf16>
    %c3_127 = arith.constant 3 : index
    %c0_128 = arith.constant 0 : index
    %c0_129 = arith.constant 0 : index
    %141 = vector.load %arg9[%c3_127, %c0_128, %c0_129] : memref<4x288x128xbf16, #tpu.memory_space<vmem>>, vector<1x288x128xbf16>
    %142 = vector.shape_cast %141 : vector<1x288x128xbf16> to vector<288x128xbf16>
    %cst_130 = arith.constant dense<0.000000e+00> : vector<8x128xf32>
    %143 = tpu.matmul %140, %142, %cst_130 {dimension_numbers = #tpu.dot_dimension_numbers<[1], [0], [0], [1], [0, 0, 1, 1], [], []>} : vector<8x288xbf16>, vector<288x128xbf16>, vector<8x128xf32> -> vector<8x128xf32>
    %144 = arith.addf %136, %143 : vector<8x128xf32>
    %c0_131 = arith.constant 0 : index
    %c0_132 = arith.constant 0 : index
    %145 = vector.load %arg10[%c0_131, %c0_132] : memref<1x128xf32, #tpu.memory_space<vmem>>, vector<1x128xf32>
    %146 = vector.broadcast %145 : vector<1x128xf32> to vector<8x128xf32>
    %147 = arith.addf %144, %146 : vector<8x128xf32>
    %cst_133 = arith.constant 0.000000e+00 : f32
    %148 = vector.broadcast %cst_133 : f32 to vector<8x128xf32>
    %149 = arith.maximumf %147, %148 : vector<8x128xf32>
    %c0_134 = arith.constant 0 : index
    %c0_135 = arith.constant 0 : index
    %c0_136 = arith.constant 0 : index
    %150 = vector.load %arg11[%c0_134, %c0_135, %c0_136] : memref<1x8x128xf32, #tpu.memory_space<vmem>>, vector<1x8x128xf32>
    %151 = vector.shape_cast %150 : vector<1x8x128xf32> to vector<8x128xf32>
    %152 = vector.shape_cast %149 : vector<8x128xf32> to vector<1x8x128xf32>
    tpu.vector_store %arg11[%c0_134, %c0_135, %c0_136], %152 {strides = array<i32>} : memref<1x8x128xf32, #tpu.memory_space<vmem>>, vector<1x8x128xf32>,
    return
  }
  func.func @transform_0(%arg0: i32) -> (i32, i32, i32) {
    %c0_i32 = arith.constant 0 : i32
    %c0_i32_0 = arith.constant 0 : i32
    %c0_i32_1 = arith.constant 0 : i32
    return %arg0, %c0_i32, %c0_i32_0 : i32, i32, i32
  }
  func.func @transform_1(%arg0: i32) -> (i32, i32, i32) {
    %c0_i32 = arith.constant 0 : i32
    %c0_i32_0 = arith.constant 0 : i32
    %c0_i32_1 = arith.constant 0 : i32
    %c0_i32_2 = arith.constant 0 : i32
    return %c0_i32, %c0_i32_0, %c0_i32_1 : i32, i32, i32
  }
  func.func @transform_2(%arg0: i32) -> (i32, i32, i32) {
    %c0_i32 = arith.constant 0 : i32
    %c0_i32_0 = arith.constant 0 : i32
    %c0_i32_1 = arith.constant 0 : i32
    %c0_i32_2 = arith.constant 0 : i32
    return %c0_i32, %c0_i32_0, %c0_i32_1 : i32, i32, i32
  }
  func.func @transform_3(%arg0: i32) -> (i32, i32) {
    %c0_i32 = arith.constant 0 : i32
    %c0_i32_0 = arith.constant 0 : i32
    %c0_i32_1 = arith.constant 0 : i32
    return %c0_i32, %c0_i32_0 : i32, i32
  }
  func.func @transform_4(%arg0: i32) -> (i32, i32, i32) {
    %c0_i32 = arith.constant 0 : i32
    %c0_i32_0 = arith.constant 0 : i32
    %c0_i32_1 = arith.constant 0 : i32
    %c0_i32_2 = arith.constant 0 : i32
    return %c0_i32, %c0_i32_0, %c0_i32_1 : i32, i32, i32
  }
  func.func @transform_5(%arg0: i32) -> (i32, i32, i32) {
    %c0_i32 = arith.constant 0 : i32
    %c0_i32_0 = arith.constant 0 : i32
    %c0_i32_1 = arith.constant 0 : i32
    %c0_i32_2 = arith.constant 0 : i32
    return %c0_i32, %c0_i32_0, %c0_i32_1 : i32, i32, i32
  }
  func.func @transform_6(%arg0: i32) -> (i32, i32) {
    %c0_i32 = arith.constant 0 : i32
    %c0_i32_0 = arith.constant 0 : i32
    %c0_i32_1 = arith.constant 0 : i32
    return %c0_i32, %c0_i32_0 : i32, i32
  }
  func.func @transform_7(%arg0: i32) -> (i32, i32, i32) {
    %c0_i32 = arith.constant 0 : i32
    %c0_i32_0 = arith.constant 0 : i32
    %c0_i32_1 = arith.constant 0 : i32
    %c0_i32_2 = arith.constant 0 : i32
    return %c0_i32, %c0_i32_0, %c0_i32_1 : i32, i32, i32
  }
  func.func @transform_8(%arg0: i32) -> (i32, i32, i32) {
    %c0_i32 = arith.constant 0 : i32
    %c0_i32_0 = arith.constant 0 : i32
    %c0_i32_1 = arith.constant 0 : i32
    %c0_i32_2 = arith.constant 0 : i32
    return %c0_i32, %c0_i32_0, %c0_i32_1 : i32, i32, i32
  }
  func.func @transform_9(%arg0: i32) -> (i32, i32) {
    %c0_i32 = arith.constant 0 : i32
    %c0_i32_0 = arith.constant 0 : i32
    %c0_i32_1 = arith.constant 0 : i32
    return %c0_i32, %c0_i32_0 : i32, i32
  }
  func.func @transform_10(%arg0: i32) -> (i32, i32, i32) {
    %c0_i32 = arith.constant 0 : i32
    %c0_i32_0 = arith.constant 0 : i32
    %c0_i32_1 = arith.constant 0 : i32
    return %arg0, %c0_i32, %c0_i32_0 : i32, i32, i32
  }
}

</mosaic_0001>

<llo_original>
// kernel: breakout_img_encoder.1
$region0: #{breakout_img_encoder.1}
  #allocation0 [shape = 'u32[]', space=smem, size = 0x4, offset = 0x4, fixed_abs, tag = 'smem constant byte address 0x4 - core index']
  #allocation1 [shape = 'u32[72,128]{1,0:T(1,128)}', space=vmem, size = 0x9000, scoped, tag = 'internal scratch']
  %s0 = inlined_call_operand.vmem [shape: bf16[2,84,336], index: 0, kind: input, shape index: {}]
  %s1 = inlined_call_operand.vmem [shape: bf16[8,24,84], index: 1, kind: input, shape index: {}]
  %s2 = inlined_call_operand.vmem [shape: bf16[8,336,320], index: 2, kind: input, shape index: {}]
  %s3 = inlined_call_operand.vmem [shape: f32[1,320], index: 3, kind: input, shape index: {}]
  %s4 = inlined_call_operand.vmem [shape: bf16[4,16,24], index: 4, kind: input, shape index: {}]
  %s5 = inlined_call_operand.vmem [shape: bf16[4,320,288], index: 5, kind: input, shape index: {}]
  %s6 = inlined_call_operand.vmem [shape: f32[1,288], index: 6, kind: input, shape index: {}]
  %s7 = inlined_call_operand.vmem [shape: bf16[4,8,16], index: 7, kind: input, shape index: {}]
  %s8 = inlined_call_operand.vmem [shape: bf16[4,288,128], index: 8, kind: input, shape index: {}]
  %s9 = inlined_call_operand.vmem [shape: f32[1,128], index: 9, kind: input, shape index: {}]
  %s10 = inlined_call_operand.vmem [shape: f32[2,8,128], index: 10, kind: output, shape index: {}]
  %s11 = sld [smem:[#allocation0]]
  $region73: #{breakout_img_encoder.1} parent=0
    _
  %s13 = ssub.s32 1, %s11
  %s14 = scalar_select 0, %s13, %s11
  loop: start=0, step=1, limit=4
  $region2: #{breakout_img_encoder.1} parent=0 // loop_pre_header
    _
  $region3: #{breakout_img_encoder.1} parent=0 // loop_header
    %s16 = sphi 0, %s20
    %p17 = scmp.ge.s32.totalorder %s16, 4
    %s26 = sphi 0, %s28
    %s29 = sphi 0, %s26
    %s30 = sphi 0, %s29
    %s46 = sphi 0, %s30
    %s50 = sphi 0, %s50
    %s52 = sphi 0, %s50
    %s53 = sphi 0, %s52
    %s67 = sphi 0, %s53
    %s71 = sphi 0, %s71
    %s73 = sphi 0, %s71
    %s74 = sphi 0, %s73
    %s88 = sphi 0, %s74
    %s92 = sphi 0, %s92
    %s94 = sphi 0, %s92
    %s95 = sphi 0, %s94
    %s109 = sphi 0, %s95
    %s113 = sphi 0, %s113
    %s115 = sphi 0, %s113
    %s116 = sphi 0, %s115
    %s130 = sphi 0, %s116
    %s134 = sphi 0, %s134
    %s136 = sphi 0, %s134
    %s137 = sphi 0, %s136
    %s151 = sphi 0, %s137
    %s155 = sphi 0, %s155
    %s157 = sphi 0, %s155
    %s158 = sphi 0, %s157
    %s172 = sphi 0, %s158
    %s176 = sphi 0, %s176
    %s178 = sphi 0, %s176
    %s179 = sphi 0, %s178
    %s193 = sphi 0, %s179
    %s197 = sphi 0, %s197
    %s199 = sphi 0, %s197
    %s200 = sphi 0, %s199
    %s214 = sphi 0, %s200
    %s218 = sphi 0, %s218
    %s220 = sphi 0, %s218
    %s221 = sphi 0, %s220
    %s235 = sphi 0, %s221
    %s241 = sphi 0, %s243
    %s244 = sphi 0, %s241
    %s245 = sphi 0, %s244
    %s261 = sphi 0, %s245
  $region4: #{breakout_img_encoder.1} parent=0 // loop_header_branch
    %19 = sbr.rel (%p17) target = $region8
  $region5: #{breakout_img_encoder.1} parent=0 // loop_body
    %s21 = ssub.s32 %s16, 1
    %s22 = ssub.s32 %s16, 2
    %s23 = sadd.s32 %s16, 1
    %s24 = ssub.s32 %s16, %s23
    %p25 = scmp.eq.s32.totalorder %s24, 0
    %s27 = sadd.s32 %s26, 1
    %s28 = scalar_select %p25, %s26, %s27
    %p31 = pneg %p25
    %p32 = scmp.eq.s32.totalorder %s16, 1
    %p33 = por %p31, %p32
    %p34 = scmp.ne.s32.totalorder %s26, %s29
    %p35 = scmp.eq.s32.totalorder %s16, 0
    %p36 = por %p34, %p35
    %p37 = scmp.ne.s32.totalorder %s26, %s29
    %p38 = scmp.eq.s32.totalorder %s21, 1
    %p39 = por %p37, %p38
    %p40 = scmp.ne.s32.totalorder %s29, %s30
    %p41 = scmp.eq.s32.totalorder %s21, 0
    %p42 = por %p40, %p41
    %p43 = scmp.ne.s32.totalorder %s29, %s30
    %p44 = scmp.eq.s32.totalorder %s22, 1
    %p45 = por %p43, %p44
    %p47 = scmp.ne.s32.totalorder %s30, %s46
    %p48 = scmp.eq.s32.totalorder %s22, 0
    %p49 = por %p47, %p48
    %s51 = sadd.s32 %s50, 1
    %p54 = scmp.eq.s32.totalorder %s16, 1
    %p55 = scmp.ne.s32.totalorder %s50, %s52
    %p56 = scmp.eq.s32.totalorder %s16, 0
    %p57 = por %p55, %p56
    %p58 = scmp.ne.s32.totalorder %s50, %s52
    %p59 = scmp.eq.s32.totalorder %s21, 1
    %p60 = por %p58, %p59
    %p61 = scmp.ne.s32.totalorder %s52, %s53
    %p62 = scmp.eq.s32.totalorder %s21, 0
    %p63 = por %p61, %p62
    %p64 = scmp.ne.s32.totalorder %s52, %s53
    %p65 = scmp.eq.s32.totalorder %s22, 1
    %p66 = por %p64, %p65
    %p68 = scmp.ne.s32.totalorder %s53, %s67
    %p69 = scmp.eq.s32.totalorder %s22, 0
    %p70 = por %p68, %p69
    %s72 = sadd.s32 %s71, 1
    %p75 = scmp.eq.s32.totalorder %s16, 1
    %p76 = scmp.ne.s32.totalorder %s71, %s73
    %p77 = scmp.eq.s32.totalorder %s16, 0
    %p78 = por %p76, %p77
    %p79 = scmp.ne.s32.totalorder %s71, %s73
    %p80 = scmp.eq.s32.totalorder %s21, 1
    %p81 = por %p79, %p80
    %p82 = scmp.ne.s32.totalorder %s73, %s74
    %p83 = scmp.eq.s32.totalorder %s21, 0
    %p84 = por %p82, %p83
    %p85 = scmp.ne.s32.totalorder %s73, %s74
    %p86 = scmp.eq.s32.totalorder %s22, 1
    %p87 = por %p85, %p86
    %p89 = scmp.ne.s32.totalorder %s74, %s88
    %p90 = scmp.eq.s32.totalorder %s22, 0
    %p91 = por %p89, %p90
    %s93 = sadd.s32 %s92, 1
    %p96 = scmp.eq.s32.totalorder %s16, 1
    %p97 = scmp.ne.s32.totalorder %s92, %s94
    %p98 = scmp.eq.s32.totalorder %s16, 0
    %p99 = por %p97, %p98
    %p100 = scmp.ne.s32.totalorder %s92, %s94
    %p101 = scmp.eq.s32.totalorder %s21, 1
    %p102 = por %p100, %p101
    %p103 = scmp.ne.s32.totalorder %s94, %s95
    %p104 = scmp.eq.s32.totalorder %s21, 0
    %p105 = por %p103, %p104
    %p106 = scmp.ne.s32.totalorder %s94, %s95
    %p107 = scmp.eq.s32.totalorder %s22, 1
    %p108 = por %p106, %p107
    %p110 = scmp.ne.s32.totalorder %s95, %s109
    %p111 = scmp.eq.s32.totalorder %s22, 0
    %p112 = por %p110, %p111
    %s114 = sadd.s32 %s113, 1
    %p117 = scmp.eq.s32.totalorder %s16, 1
    %p118 = scmp.ne.s32.totalorder %s113, %s115
    %p119 = scmp.eq.s32.totalorder %s16, 0
    %p120 = por %p118, %p119
    %p121 = scmp.ne.s32.totalorder %s113, %s115
    %p122 = scmp.eq.s32.totalorder %s21, 1
    %p123 = por %p121, %p122
    %p124 = scmp.ne.s32.totalorder %s115, %s116
    %p125 = scmp.eq.s32.totalorder %s21, 0
    %p126 = por %p124, %p125
    %p127 = scmp.ne.s32.totalorder %s115, %s116
    %p128 = scmp.eq.s32.totalorder %s22, 1
    %p129 = por %p127, %p128
    %p131 = scmp.ne.s32.totalorder %s116, %s130
    %p132 = scmp.eq.s32.totalorder %s22, 0
    %p133 = por %p131, %p132
    %s135 = sadd.s32 %s134, 1
    %p138 = scmp.eq.s32.totalorder %s16, 1
    %p139 = scmp.ne.s32.totalorder %s134, %s136
    %p140 = scmp.eq.s32.totalorder %s16, 0
    %p141 = por %p139, %p140
    %p142 = scmp.ne.s32.totalorder %s134, %s136
    %p143 = scmp.eq.s32.totalorder %s21, 1
    %p144 = por %p142, %p143
    %p145 = scmp.ne.s32.totalorder %s136, %s137
    %p146 = scmp.eq.s32.totalorder %s21, 0
    %p147 = por %p145, %p146
    %p148 = scmp.ne.s32.totalorder %s136, %s137
    %p149 = scmp.eq.s32.totalorder %s22, 1
    %p150 = por %p148, %p149
    %p152 = scmp.ne.s32.totalorder %s137, %s151
    %p153 = scmp.eq.s32.totalorder %s22, 0
    %p154 = por %p152, %p153
    %s156 = sadd.s32 %s155, 1
    %p159 = scmp.eq.s32.totalorder %s16, 1
    %p160 = scmp.ne.s32.totalorder %s155, %s157
    %p161 = scmp.eq.s32.totalorder %s16, 0
    %p162 = por %p160, %p161
    %p163 = scmp.ne.s32.totalorder %s155, %s157
    %p164 = scmp.eq.s32.totalorder %s21, 1
    %p165 = por %p163, %p164
    %p166 = scmp.ne.s32.totalorder %s157, %s158
    %p167 = scmp.eq.s32.totalorder %s21, 0
    %p168 = por %p166, %p167
    %p169 = scmp.ne.s32.totalorder %s157, %s158
    %p170 = scmp.eq.s32.totalorder %s22, 1
    %p171 = por %p169, %p170
    %p173 = scmp.ne.s32.totalorder %s158, %s172
    %p174 = scmp.eq.s32.totalorder %s22, 0
    %p175 = por %p173, %p174
    %s177 = sadd.s32 %s176, 1
    %p180 = scmp.eq.s32.totalorder %s16, 1
    %p181 = scmp.ne.s32.totalorder %s176, %s178
    %p182 = scmp.eq.s32.totalorder %s16, 0
    %p183 = por %p181, %p182
    %p184 = scmp.ne.s32.totalorder %s176, %s178
    %p185 = scmp.eq.s32.totalorder %s21, 1
    %p186 = por %p184, %p185
    %p187 = scmp.ne.s32.totalorder %s178, %s179
    %p188 = scmp.eq.s32.totalorder %s21, 0
    %p189 = por %p187, %p188
    %p190 = scmp.ne.s32.totalorder %s178, %s179
    %p191 = scmp.eq.s32.totalorder %s22, 1
    %p192 = por %p190, %p191
    %p194 = scmp.ne.s32.totalorder %s179, %s193
    %p195 = scmp.eq.s32.totalorder %s22, 0
    %p196 = por %p194, %p195
    %s198 = sadd.s32 %s197, 1
    %p201 = scmp.eq.s32.totalorder %s16, 1
    %p202 = scmp.ne.s32.totalorder %s197, %s199
    %p203 = scmp.eq.s32.totalorder %s16, 0
    %p204 = por %p202, %p203
    %p205 = scmp.ne.s32.totalorder %s197, %s199
    %p206 = scmp.eq.s32.totalorder %s21, 1
    %p207 = por %p205, %p206
    %p208 = scmp.ne.s32.totalorder %s199, %s200
    %p209 = scmp.eq.s32.totalorder %s21, 0
    %p210 = por %p208, %p209
    %p211 = scmp.ne.s32.totalorder %s199, %s200
    %p212 = scmp.eq.s32.totalorder %s22, 1
    %p213 = por %p211, %p212
    %p215 = scmp.ne.s32.totalorder %s200, %s214
    %p216 = scmp.eq.s32.totalorder %s22, 0
    %p217 = por %p215, %p216
    %s219 = sadd.s32 %s218, 1
    %p222 = scmp.eq.s32.totalorder %s16, 1
    %p223 = scmp.ne.s32.totalorder %s218, %s220
    %p224 = scmp.eq.s32.totalorder %s16, 0
    %p225 = por %p223, %p224
    %p226 = scmp.ne.s32.totalorder %s218, %s220
    %p227 = scmp.eq.s32.totalorder %s21, 1
    %p228 = por %p226, %p227
    %p229 = scmp.ne.s32.totalorder %s220, %s221
    %p230 = scmp.eq.s32.totalorder %s21, 0
    %p231 = por %p229, %p230
    %p232 = scmp.ne.s32.totalorder %s220, %s221
    %p233 = scmp.eq.s32.totalorder %s22, 1
    %p234 = por %p232, %p233
    %p236 = scmp.ne.s32.totalorder %s221, %s235
    %p237 = scmp.eq.s32.totalorder %s22, 0
    %p238 = por %p236, %p237
    %s239 = ssub.s32 %s16, %s23
    %p240 = scmp.eq.s32.totalorder %s239, 0
    %s242 = sadd.s32 %s241, 1
    %s243 = scalar_select %p240, %s241, %s242
    %p246 = pneg %p240
    %p247 = scmp.eq.s32.totalorder %s16, 1
    %p248 = por %p246, %p247
    %p249 = scmp.ne.s32.totalorder %s241, %s244
    %p250 = scmp.eq.s32.totalorder %s16, 0
    %p251 = por %p249, %p250
    %p252 = scmp.ne.s32.totalorder %s241, %s244
    %p253 = scmp.eq.s32.totalorder %s21, 1
    %p254 = por %p252, %p253
    %p255 = scmp.ne.s32.totalorder %s244, %s245
    %p256 = scmp.eq.s32.totalorder %s21, 0
    %p257 = por %p255, %p256
    %p258 = scmp.ne.s32.totalorder %s244, %s245
    %p259 = scmp.eq.s32.totalorder %s22, 1
    %p260 = por %p258, %p259
    %p262 = scmp.ne.s32.totalorder %s245, %s261
    %p263 = scmp.eq.s32.totalorder %s22, 0
    %p264 = por %p262, %p263
    %p265 = scmp.le.s32.totalorder 1, %s16
    %p266 = scmp.lt.s32.totalorder %s16, 3
    %p267 = pnand %p265, %p266
    %p268 = pneg %p267
    // Predicated region
    $region9: #{breakout_img_encoder.1} parent=5 // pred_check
      _
    $region10: #{breakout_img_encoder.1} parent=5 // pred_check_branch
      %270 = sbr.rel (%p267) target = $region12
    $region11: #{breakout_img_encoder.1} parent=5 // pred_region
      %s271 = ssub.s32 %s16, 1
      // Predicated region
      $region13: #{breakout_img_encoder.1} parent=11 // pred_check
        %p272 = pneg %p63
      $region14: #{breakout_img_encoder.1} parent=11 // pred_check_branch
        %274 = sbr.rel (%p272) target = $region16
      $region15: #{breakout_img_encoder.1} parent=11 // pred_region
        _
      $region16: #{breakout_img_encoder.1} parent=11 // pred_fallthru
        _
      // Predicated region
      $region17: #{breakout_img_encoder.1} parent=11 // pred_check
        %p275 = pneg %p84
      $region18: #{breakout_img_encoder.1} parent=11 // pred_check_branch
        %277 = sbr.rel (%p275) target = $region20
      $region19: #{breakout_img_encoder.1} parent=11 // pred_region
        _
      $region20: #{breakout_img_encoder.1} parent=11 // pred_fallthru
        _
      // Predicated region
      $region21: #{breakout_img_encoder.1} parent=11 // pred_check
        %p278 = pneg %p105
      $region22: #{breakout_img_encoder.1} parent=11 // pred_check_branch
        %280 = sbr.rel (%p278) target = $region24
      $region23: #{breakout_img_encoder.1} parent=11 // pred_region
        _
      $region24: #{breakout_img_encoder.1} parent=11 // pred_fallthru
        _
      // Predicated region
      $region25: #{breakout_img_encoder.1} parent=11 // pred_check
        %p281 = pneg %p126
      $region26: #{breakout_img_encoder.1} parent=11 // pred_check_branch
        %283 = sbr.rel (%p281) target = $region28
      $region27: #{breakout_img_encoder.1} parent=11 // pred_region
        _
      $region28: #{breakout_img_encoder.1} parent=11 // pred_fallthru
        _
      // Predicated region
      $region29: #{breakout_img_encoder.1} parent=11 // pred_check
        %p284 = pneg %p147
      $region30: #{breakout_img_encoder.1} parent=11 // pred_check_branch
        %286 = sbr.rel (%p284) target = $region32
      $region31: #{breakout_img_encoder.1} parent=11 // pred_region
        _
      $region32: #{breakout_img_encoder.1} parent=11 // pred_fallthru
        _
      // Predicated region
      $region33: #{breakout_img_encoder.1} parent=11 // pred_check
        %p287 = pneg %p168
      $region34: #{breakout_img_encoder.1} parent=11 // pred_check_branch
        %289 = sbr.rel (%p287) target = $region36
      $region35: #{breakout_img_encoder.1} parent=11 // pred_region
        _
      $region36: #{breakout_img_encoder.1} parent=11 // pred_fallthru
        _
      // Predicated region
      $region37: #{breakout_img_encoder.1} parent=11 // pred_check
        %p290 = pneg %p189
      $region38: #{breakout_img_encoder.1} parent=11 // pred_check_branch
        %292 = sbr.rel (%p290) target = $region40
      $region39: #{breakout_img_encoder.1} parent=11 // pred_region
        _
      $region40: #{breakout_img_encoder.1} parent=11 // pred_fallthru
        _
      // Predicated region
      $region41: #{breakout_img_encoder.1} parent=11 // pred_check
        %p293 = pneg %p210
      $region42: #{breakout_img_encoder.1} parent=11 // pred_check_branch
        %295 = sbr.rel (%p293) target = $region44
      $region43: #{breakout_img_encoder.1} parent=11 // pred_region
        _
      $region44: #{breakout_img_encoder.1} parent=11 // pred_fallthru
        _
      // Predicated region
      $region45: #{breakout_img_encoder.1} parent=11 // pred_check
        %p296 = pneg %p231
      $region46: #{breakout_img_encoder.1} parent=11 // pred_check_branch
        %298 = sbr.rel (%p296) target = $region48
      $region47: #{breakout_img_encoder.1} parent=11 // pred_region
        _
      $region48: #{breakout_img_encoder.1} parent=11 // pred_fallthru
        _
    $region12: #{breakout_img_encoder.1} parent=5 // pred_fallthru
      _
    %p299 = scmp.lt.s32.totalorder %s16, 2
    // Predicated region
    $region49: #{breakout_img_encoder.1} parent=5 // pred_check
      %p300 = pneg %p299
    $region50: #{breakout_img_encoder.1} parent=5 // pred_check_branch
      %302 = sbr.rel (%p300) target = $region52
    $region51: #{breakout_img_encoder.1} parent=5 // pred_region
      // Predicated region
      $region53: #{breakout_img_encoder.1} parent=51 // pred_check
        %p303 = pneg %p36
      $region54: #{breakout_img_encoder.1} parent=51 // pred_check_branch
        %305 = sbr.rel (%p303) target = $region56
      $region55: #{breakout_img_encoder.1} parent=51 // pred_region
        %p306 = scmp.lt.s32.totalorder %s16, 1
        %s307 = scalar_select %p306, %s16, 1
        %s308 = smul.addr %s307, 33
        %s309 = smul.addr %s308, 4
        %s310 = scalar_lea.vmem %s0, %s309
      $region56: #{breakout_img_encoder.1} parent=51 // pred_fallthru
        _
    $region52: #{breakout_img_encoder.1} parent=5 // pred_fallthru
      _
    %p311 = scmp.le.s32.totalorder 1, %s16
    %p312 = scmp.lt.s32.totalorder %s16, 3
    %p313 = pnand %p311, %p312
    %p314 = pneg %p313
    // Predicated region
    $region57: #{breakout_img_encoder.1} parent=5 // pred_check
      _
    $region58: #{breakout_img_encoder.1} parent=5 // pred_check_branch
      %316 = sbr.rel (%p313) target = $region60
    $region59: #{breakout_img_encoder.1} parent=5 // pred_region
      %s317 = ssub.s32 %s16, 1
      %p318 = scmp.lt.s32.totalorder %s21, 1
      %s319 = scalar_select %p318, %s21, 1
      %s320 = smul.addr %s319, 33
      %s321 = smul.addr %s320, 4
      %s322 = scalar_lea.vmem %s0, %s321
      %p323 = pneg %p42
      %p324 = pneg %p39
      %p325 = pneg %p63
      %p326 = pneg %p60
      %p327 = pneg %p84
      %p328 = pneg %p81
      %p329 = pneg %p105
      %p330 = pneg %p102
      %p331 = pneg %p126
      %p332 = pneg %p123
      %p333 = pneg %p147
      %p334 = pneg %p144
      %p335 = pneg %p168
      %p336 = pneg %p165
      %p337 = pneg %p189
      %p338 = pneg %p186
      %p339 = pneg %p210
      %p340 = pneg %p207
      %p341 = pneg %p231
      %p342 = pneg %p228
      %p343 = pneg %p257
      %p344 = pneg %p254
      %p345 = scmp.lt.s32.totalorder %s21, 1
      %s346 = scalar_select %p345, %s21, 1
      %s347 = smul.addr %s346, 8
      %s348 = scalar_lea.vmem %s10, %s347
      %p349 = scmp.lt.s32.totalorder %s21, 1
      %s350 = scalar_select %p349, %s21, 1
      %s351 = smul.addr %s350, 33
      %s352 = smul.addr %s351, 4
      %s353 = scalar_lea.vmem %s0, %s352
      %p354 = scmp.lt.s32.totalorder %s21, 1
      %s355 = scalar_select %p354, %s21, 1
      %s356 = smul.addr %s355, 8
      %s357 = scalar_lea.vmem %s10, %s356
      %v359 = vld [vmem:[%s353] sm:$0xff]
      %v360 = vld [vmem:[%s353 + $0x8] sm:$0xf]
      %v361 = vld [vmem:[%s353 + $0xc] sm:$0xff]
      %v362 = vld [vmem:[%s353 + $0x14] sm:$0xf]
      %v363 = vld [vmem:[%s353 + $0x18] sm:$0xff]
      %v364 = vld [vmem:[%s353 + $0x20] sm:$0xf]
      %v365 = vld [vmem:[%s353 + $0x24] sm:$0xff]
      %v366 = vld [vmem:[%s353 + $0x2c] sm:$0xf]
      %v367 = vld [vmem:[%s353 + $0x30] sm:$0xff]
      %v368 = vld [vmem:[%s353 + $0x38] sm:$0xf]
      %v369 = vld [vmem:[%s353 + $0x3c] sm:$0xff]
      %v370 = vld [vmem:[%s353 + $0x44] sm:$0xf]
      %v371 = vld [vmem:[%s353 + $0x48] sm:$0xff]
      %v372 = vld [vmem:[%s353 + $0x50] sm:$0xf]
      %v373 = vld [vmem:[%s353 + $0x54] sm:$0xff]
      %v374 = vld [vmem:[%s353 + $0x5c] sm:$0xf]
      %v375 = vld [vmem:[%s353 + $0x60] sm:$0xff]
      %v376 = vld [vmem:[%s353 + $0x68] sm:$0xf]
      %v377 = vld [vmem:[%s353 + $0x6c] sm:$0xff]
      %v378 = vld [vmem:[%s353 + $0x74] sm:$0xf]
      %v379 = vld [vmem:[%s353 + $0x78] sm:$0x33]
      %v380 = vld [vmem:[%s353 + $0x80] sm:$0x3]
      %v381 = vld [vmem:[%s1] sm:$0xf]
      %v382 = vld [vmem:[%s1 + $0x4] sm:$0xf]
      %v383 = vld [vmem:[%s1 + $0x8] sm:$0xf]
      %v387 = vunpack.c.l.b16 %v381
      %v388 = vunpack.c.l.b16 %v382
      %v389 = vunpack.c.l.b16 %v383
      %v390 = vpack.c.b16 %v388, %v387
      %v391 = vpack.c.b16 %v389, %v389
      %v414 = vunpack.c.l.b16 %v359
      %v415 = vunpack.c.h.b16 %v359
      %v416 = vunpack.c.l.b16 %v360
      %v417 = vunpack.c.l.b16 %v361
      %v418 = vunpack.c.h.b16 %v361
      %v419 = vunpack.c.l.b16 %v362
      %v420 = vunpack.c.l.b16 %v363
      %v421 = vunpack.c.h.b16 %v363
      %v422 = vunpack.c.l.b16 %v364
      %v423 = vunpack.c.l.b16 %v365
      %v424 = vunpack.c.h.b16 %v365
      %v425 = vunpack.c.l.b16 %v366
      %v426 = vunpack.c.l.b16 %v367
      %v427 = vunpack.c.h.b16 %v367
      %v428 = vunpack.c.l.b16 %v368
      %v429 = vunpack.c.l.b16 %v369
      %v430 = vunpack.c.h.b16 %v369
      %v431 = vunpack.c.l.b16 %v370
      %v432 = vunpack.c.l.b16 %v371
      %v433 = vunpack.c.h.b16 %v371
      %v434 = vunpack.c.l.b16 %v372
      %v435 = vunpack.c.l.b16 %v373
      %v436 = vunpack.c.h.b16 %v373
      %v437 = vunpack.c.l.b16 %v374
      %v438 = vunpack.c.l.b16 %v375
      %v439 = vunpack.c.h.b16 %v375
      %v440 = vunpack.c.l.b16 %v376
      %v441 = vunpack.c.l.b16 %v377
      %v442 = vunpack.c.h.b16 %v377
      %v443 = vunpack.c.l.b16 %v378
      %v444 = vunpack.c.l.b16 %v379
      %v445 = vunpack.c.h.b16 %v379
      %v446 = vunpack.c.l.b16 %v380
      %v447 = vpack.c.b16 %v417, %v414
      %v448 = vpack.c.b16 %v418, %v415
      %v449 = vpack.c.b16 %v419, %v416
      %v450 = vpack.c.b16 %v423, %v420
      %v451 = vpack.c.b16 %v424, %v421
      %v452 = vpack.c.b16 %v425, %v422
      %v453 = vpack.c.b16 %v429, %v426
      %v454 = vpack.c.b16 %v430, %v427
      %v455 = vpack.c.b16 %v431, %v428
      %v456 = vpack.c.b16 %v435, %v432
      %v457 = vpack.c.b16 %v436, %v433
      %v458 = vpack.c.b16 %v437, %v434
      %v459 = vpack.c.b16 %v441, %v438
      %v460 = vpack.c.b16 %v442, %v439
      %v461 = vpack.c.b16 %v443, %v440
      %v462 = vpack.c.b16 %v444, %v444
      %v463 = vpack.c.b16 %v445, %v445
      %v464 = vpack.c.b16 %v446, %v446
      %vm480 = vcmask 687104
      %v482 = vsel %vm480, %v390, 0
      %v485 = vsel %vm480, %v391, 0
      %vm487 = vcmask 1041408
      %v489 = vsel %vm487, %v462, 0
      %v492 = vsel %vm487, %v463, 0
      %v495 = vsel %vm487, %v464, 0
      %497 = vmatpush.bf16.msra.mxu0 0
      %498 = vmatpush.bf16.msra.mxu0 0
      %499 = vmatpush.bf16.msra.mxu0 %v489
      %500 = vmatpush.bf16.msra.mxu0 %v459
      %501 = vmatpush.bf16.msra.mxu0 %v456
      %502 = vmatpush.bf16.msra.mxu0 %v453
      %503 = vmatpush.bf16.msra.mxu0 %v450
      %504 = vmatpush.bf16.msra.mxu0 %v447
      %505 = vmatmul.bf16.gmra.mxu0 %v482
      %v506 = vpop.f32.mrf.mxu0
      %v507 = vadd.f32 0.0, %v506
      %v508 = vpop.f32.mrf.mxu0
      %v509 = vadd.f32 0.0, %v508
      %510 = vmatmul.bf16.gmra.mxu0 %v485
      %v511 = vpop.f32.mrf.mxu0
      %v512 = vadd.f32 0.0, %v511
      %v513 = vpop.f32.mrf.mxu0
      %514 = vdwg.mxu0
      %515 = vmatpush.bf16.msra.mxu0 0
      %516 = vmatpush.bf16.msra.mxu0 0
      %517 = vmatpush.bf16.msra.mxu0 %v492
      %518 = vmatpush.bf16.msra.mxu0 %v460
      %519 = vmatpush.bf16.msra.mxu0 %v457
      %520 = vmatpush.bf16.msra.mxu0 %v454
      %521 = vmatpush.bf16.msra.mxu0 %v451
      %522 = vmatpush.bf16.msra.mxu0 %v448
      %523 = vmatmul.bf16.gmra.mxu0 %v482
      %v524 = vpop.f32.mrf.mxu0
      %v525 = vadd.f32 0.0, %v524
      %v526 = vpop.f32.mrf.mxu0
      %v527 = vadd.f32 0.0, %v526
      %528 = vmatmul.bf16.gmra.mxu0 %v485
      %v529 = vpop.f32.mrf.mxu0
      %v530 = vadd.f32 0.0, %v529
      %v531 = vpop.f32.mrf.mxu0
      %532 = vdwg.mxu0
      %533 = vmatpush.bf16.msra.mxu0 0
      %534 = vmatpush.bf16.msra.mxu0 0
      %535 = vmatpush.bf16.msra.mxu0 %v495
      %536 = vmatpush.bf16.msra.mxu0 %v461
      %537 = vmatpush.bf16.msra.mxu0 %v458
      %538 = vmatpush.bf16.msra.mxu0 %v455
      %539 = vmatpush.bf16.msra.mxu0 %v452
      %540 = vmatpush.bf16.msra.mxu0 %v449
      %541 = vmatmul.bf16.gmra.mxu0 %v482
      %v542 = vpop.f32.mrf.mxu0
      %v543 = vadd.f32 0.0, %v542
      %v544 = vpop.f32.mrf.mxu0
      %v545 = vadd.f32 0.0, %v544
      %546 = vmatmul.bf16.gmra.mxu0 %v485
      %v547 = vpop.f32.mrf.mxu0
      %v548 = vadd.f32 0.0, %v547
      %v549 = vpop.f32.mrf.mxu0
      %550 = vdwg.mxu0
      %v551 = vpack.c.bf16 %v509, %v507
      %v552 = vpack.c.bf16 %v527, %v525
      %v553 = vpack.c.bf16 %v545, %v543
      %v554 = vpack.c.bf16 %v512, %v512
      %v555 = vpack.c.bf16 %v530, %v530
      %v556 = vpack.c.bf16 %v548, %v548
      %v557 = vld [vmem:[%s2] sm:$0xff]
      %v558 = vld [vmem:[%s2 + $0x8] sm:$0xf]
      %v559 = vld [vmem:[%s2 + $0xc] sm:$0xff]
      %v560 = vld [vmem:[%s2 + $0x14] sm:$0xf]
      %v561 = vld [vmem:[%s2 + $0x18] sm:$0xff]
      %v562 = vld [vmem:[%s2 + $0x20] sm:$0xf]
      %v563 = vld [vmem:[%s2 + $0x24] sm:$0xff]
      %v564 = vld [vmem:[%s2 + $0x2c] sm:$0xf]
      %v565 = vld [vmem:[%s2 + $0x30] sm:$0xff]
      %v566 = vld [vmem:[%s2 + $0x38] sm:$0xf]
      %v567 = vld [vmem:[%s2 + $0x3c] sm:$0xff]
      %v568 = vld [vmem:[%s2 + $0x44] sm:$0xf]
      %v569 = vld [vmem:[%s2 + $0x48] sm:$0xff]
      %v570 = vld [vmem:[%s2 + $0x50] sm:$0xf]
      %v571 = vld [vmem:[%s2 + $0x54] sm:$0xff]
      %v572 = vld [vmem:[%s2 + $0x5c] sm:$0xf]
      %v573 = vld [vmem:[%s2 + $0x60] sm:$0xff]
      %v574 = vld [vmem:[%s2 + $0x68] sm:$0xf]
      %v575 = vld [vmem:[%s2 + $0x6c] sm:$0xff]
      %v576 = vld [vmem:[%s2 + $0x74] sm:$0xf]
      %v577 = vld [vmem:[%s2 + $0x78] sm:$0xff]
      %v578 = vld [vmem:[%s2 + $0x80] sm:$0xf]
      %v579 = vld [vmem:[%s2 + $0x84] sm:$0xff]
      %v580 = vld [vmem:[%s2 + $0x8c] sm:$0xf]
      %v581 = vld [vmem:[%s2 + $0x90] sm:$0xff]
      %v582 = vld [vmem:[%s2 + $0x98] sm:$0xf]
      %v583 = vld [vmem:[%s2 + $0x9c] sm:$0xff]
      %v584 = vld [vmem:[%s2 + $0xa4] sm:$0xf]
      %v585 = vld [vmem:[%s2 + $0xa8] sm:$0xff]
      %v586 = vld [vmem:[%s2 + $0xb0] sm:$0xf]
      %v587 = vld [vmem:[%s2 + $0xb4] sm:$0xff]
      %v588 = vld [vmem:[%s2 + $0xbc] sm:$0xf]
      %v589 = vld [vmem:[%s2 + $0xc0] sm:$0xff]
      %v590 = vld [vmem:[%s2 + $0xc8] sm:$0xf]
      %v591 = vld [vmem:[%s2 + $0xcc] sm:$0xff]
      %v592 = vld [vmem:[%s2 + $0xd4] sm:$0xf]
      %v593 = vld [vmem:[%s2 + $0xd8] sm:$0xff]
      %v594 = vld [vmem:[%s2 + $0xe0] sm:$0xf]
      %v595 = vld [vmem:[%s2 + $0xe4] sm:$0xff]
      %v596 = vld [vmem:[%s2 + $0xec] sm:$0xf]
      %v597 = vld [vmem:[%s2 + $0xf0] sm:$0xff]
      %v598 = vld [vmem:[%s2 + $0xf8] sm:$0xf]
      %v599 = vld [vmem:[%s2 + $0xfc] sm:$0xff]
      %v600 = vld [vmem:[%s2 + $0x104] sm:$0xf]
      %v601 = vld [vmem:[%s2 + $0x108] sm:$0xff]
      %v602 = vld [vmem:[%s2 + $0x110] sm:$0xf]
      %v603 = vld [vmem:[%s2 + $0x114] sm:$0xff]
      %v604 = vld [vmem:[%s2 + $0x11c] sm:$0xf]
      %v605 = vld [vmem:[%s2 + $0x120] sm:$0xff]
      %v606 = vld [vmem:[%s2 + $0x128] sm:$0xf]
      %v607 = vld [vmem:[%s2 + $0x12c] sm:$0xff]
      %v608 = vld [vmem:[%s2 + $0x134] sm:$0xf]
      %v609 = vld [vmem:[%s2 + $0x138] sm:$0xff]
      %v610 = vld [vmem:[%s2 + $0x140] sm:$0xf]
      %v611 = vld [vmem:[%s2 + $0x144] sm:$0xff]
      %v612 = vld [vmem:[%s2 + $0x14c] sm:$0xf]
      %v613 = vld [vmem:[%s2 + $0x150] sm:$0xff]
      %v614 = vld [vmem:[%s2 + $0x158] sm:$0xf]
      %v615 = vld [vmem:[%s2 + $0x15c] sm:$0xff]
      %v616 = vld [vmem:[%s2 + $0x164] sm:$0xf]
      %v617 = vld [vmem:[%s2 + $0x168] sm:$0xff]
      %v618 = vld [vmem:[%s2 + $0x170] sm:$0xf]
      %v619 = vld [vmem:[%s2 + $0x174] sm:$0xff]
      %v620 = vld [vmem:[%s2 + $0x17c] sm:$0xf]
      %v621 = vld [vmem:[%s2 + $0x180] sm:$0xff]
      %v622 = vld [vmem:[%s2 + $0x188] sm:$0xf]
      %v623 = vld [vmem:[%s2 + $0x18c] sm:$0xff]
      %v624 = vld [vmem:[%s2 + $0x194] sm:$0xf]
      %v625 = vld [vmem:[%s2 + $0x198] sm:$0xff]
      %v626 = vld [vmem:[%s2 + $0x1a0] sm:$0xf]
      %v627 = vld [vmem:[%s2 + $0x1a4] sm:$0xff]
      %v628 = vld [vmem:[%s2 + $0x1ac] sm:$0xf]
      %v629 = vld [vmem:[%s2 + $0x1b0] sm:$0xff]
      %v630 = vld [vmem:[%s2 + $0x1b8] sm:$0xf]
      %v631 = vld [vmem:[%s2 + $0x1bc] sm:$0xff]
      %v632 = vld [vmem:[%s2 + $0x1c4] sm:$0xf]
      %v633 = vld [vmem:[%s2 + $0x1c8] sm:$0xff]
      %v634 = vld [vmem:[%s2 + $0x1d0] sm:$0xf]
      %v635 = vld [vmem:[%s2 + $0x1d4] sm:$0xff]
      %v636 = vld [vmem:[%s2 + $0x1dc] sm:$0xf]
      %v637 = vld [vmem:[%s2 + $0x1e0] sm:$0xff]
      %v638 = vld [vmem:[%s2 + $0x1e8] sm:$0xf]
      %v639 = vld [vmem:[%s2 + $0x1ec] sm:$0xff]
      %v640 = vld [vmem:[%s2 + $0x1f4] sm:$0xf]
      %s641 = scalar_lea.vmem %s1, 12
      %v642 = vld [vmem:[%s641] sm:$0xf]
      %v643 = vld [vmem:[%s641 + $0x4] sm:$0xf]
      %v644 = vld [vmem:[%s641 + $0x8] sm:$0xf]
      %v648 = vunpack.c.l.b16 %v642
      %v649 = vunpack.c.l.b16 %v643
      %v650 = vunpack.c.l.b16 %v644
      %v651 = vpack.c.b16 %v649, %v648
      %v652 = vpack.c.b16 %v650, %v650
      %v654 = vsel %vm480, %v651, 0
      %v657 = vsel %vm480, %v652, 0
      %659 = vmatpush.bf16.msra.mxu0 0
      %660 = vmatpush.bf16.msra.mxu0 0
      %661 = vmatpush.bf16.msra.mxu0 %v489
      %662 = vmatpush.bf16.msra.mxu0 %v459
      %663 = vmatpush.bf16.msra.mxu0 %v456
      %664 = vmatpush.bf16.msra.mxu0 %v453
      %665 = vmatpush.bf16.msra.mxu0 %v450
      %666 = vmatpush.bf16.msra.mxu0 %v447
      %667 = vmatmul.bf16.gmra.mxu0 %v654
      %v668 = vpop.f32.mrf.mxu0
      %v669 = vadd.f32 0.0, %v668
      %v670 = vpop.f32.mrf.mxu0
      %v671 = vadd.f32 0.0, %v670
      %672 = vmatmul.bf16.gmra.mxu0 %v657
      %v673 = vpop.f32.mrf.mxu0
      %v674 = vadd.f32 0.0, %v673
      %v675 = vpop.f32.mrf.mxu0
      %676 = vdwg.mxu0
      %677 = vmatpush.bf16.msra.mxu0 0
      %678 = vmatpush.bf16.msra.mxu0 0
      %679 = vmatpush.bf16.msra.mxu0 %v492
      %680 = vmatpush.bf16.msra.mxu0 %v460
      %681 = vmatpush.bf16.msra.mxu0 %v457
      %682 = vmatpush.bf16.msra.mxu0 %v454
      %683 = vmatpush.bf16.msra.mxu0 %v451
      %684 = vmatpush.bf16.msra.mxu0 %v448
      %685 = vmatmul.bf16.gmra.mxu0 %v654
      %v686 = vpop.f32.mrf.mxu0
      %v687 = vadd.f32 0.0, %v686
      %v688 = vpop.f32.mrf.mxu0
      %v689 = vadd.f32 0.0, %v688
      %690 = vmatmul.bf16.gmra.mxu0 %v657
      %v691 = vpop.f32.mrf.mxu0
      %v692 = vadd.f32 0.0, %v691
      %v693 = vpop.f32.mrf.mxu0
      %694 = vdwg.mxu0
      %695 = vmatpush.bf16.msra.mxu0 0
      %696 = vmatpush.bf16.msra.mxu0 0
      %697 = vmatpush.bf16.msra.mxu0 %v495
      %698 = vmatpush.bf16.msra.mxu0 %v461
      %699 = vmatpush.bf16.msra.mxu0 %v458
      %700 = vmatpush.bf16.msra.mxu0 %v455
      %701 = vmatpush.bf16.msra.mxu0 %v452
      %702 = vmatpush.bf16.msra.mxu0 %v449
      %703 = vmatmul.bf16.gmra.mxu0 %v654
      %v704 = vpop.f32.mrf.mxu0
      %v705 = vadd.f32 0.0, %v704
      %v706 = vpop.f32.mrf.mxu0
      %v707 = vadd.f32 0.0, %v706
      %708 = vmatmul.bf16.gmra.mxu0 %v657
      %v709 = vpop.f32.mrf.mxu0
      %v710 = vadd.f32 0.0, %v709
      %v711 = vpop.f32.mrf.mxu0
      %712 = vdwg.mxu0
      %v713 = vpack.c.bf16 %v671, %v669
      %v714 = vpack.c.bf16 %v689, %v687
      %v715 = vpack.c.bf16 %v707, %v705
      %v716 = vpack.c.bf16 %v674, %v674
      %v717 = vpack.c.bf16 %v692, %v692
      %v718 = vpack.c.bf16 %v710, %v710
      %s719 = scalar_lea.vmem %s2, 504
      %v720 = vld [vmem:[%s719] sm:$0xff]
      %v721 = vld [vmem:[%s719 + $0x8] sm:$0xf]
      %v722 = vld [vmem:[%s719 + $0xc] sm:$0xff]
      %v723 = vld [vmem:[%s719 + $0x14] sm:$0xf]
      %v724 = vld [vmem:[%s719 + $0x18] sm:$0xff]
      %v725 = vld [vmem:[%s719 + $0x20] sm:$0xf]
      %v726 = vld [vmem:[%s719 + $0x24] sm:$0xff]
      %v727 = vld [vmem:[%s719 + $0x2c] sm:$0xf]
      %v728 = vld [vmem:[%s719 + $0x30] sm:$0xff]
      %v729 = vld [vmem:[%s719 + $0x38] sm:$0xf]
      %v730 = vld [vmem:[%s719 + $0x3c] sm:$0xff]
      %v731 = vld [vmem:[%s719 + $0x44] sm:$0xf]
      %v732 = vld [vmem:[%s719 + $0x48] sm:$0xff]
      %v733 = vld [vmem:[%s719 + $0x50] sm:$0xf]
      %v734 = vld [vmem:[%s719 + $0x54] sm:$0xff]
      %v735 = vld [vmem:[%s719 + $0x5c] sm:$0xf]
      %v736 = vld [vmem:[%s719 + $0x60] sm:$0xff]
      %v737 = vld [vmem:[%s719 + $0x68] sm:$0xf]
      %v738 = vld [vmem:[%s719 + $0x6c] sm:$0xff]
      %v739 = vld [vmem:[%s719 + $0x74] sm:$0xf]
      %v740 = vld [vmem:[%s719 + $0x78] sm:$0xff]
      %v741 = vld [vmem:[%s719 + $0x80] sm:$0xf]
      %v742 = vld [vmem:[%s719 + $0x84] sm:$0xff]
      %v743 = vld [vmem:[%s719 + $0x8c] sm:$0xf]
      %v744 = vld [vmem:[%s719 + $0x90] sm:$0xff]
      %v745 = vld [vmem:[%s719 + $0x98] sm:$0xf]
      %v746 = vld [vmem:[%s719 + $0x9c] sm:$0xff]
      %v747 = vld [vmem:[%s719 + $0xa4] sm:$0xf]
      %v748 = vld [vmem:[%s719 + $0xa8] sm:$0xff]
      %v749 = vld [vmem:[%s719 + $0xb0] sm:$0xf]
      %v750 = vld [vmem:[%s719 + $0xb4] sm:$0xff]
      %v751 = vld [vmem:[%s719 + $0xbc] sm:$0xf]
      %v752 = vld [vmem:[%s719 + $0xc0] sm:$0xff]
      %v753 = vld [vmem:[%s719 + $0xc8] sm:$0xf]
      %v754 = vld [vmem:[%s719 + $0xcc] sm:$0xff]
      %v755 = vld [vmem:[%s719 + $0xd4] sm:$0xf]
      %v756 = vld [vmem:[%s719 + $0xd8] sm:$0xff]
      %v757 = vld [vmem:[%s719 + $0xe0] sm:$0xf]
      %v758 = vld [vmem:[%s719 + $0xe4] sm:$0xff]
      %v759 = vld [vmem:[%s719 + $0xec] sm:$0xf]
      %v760 = vld [vmem:[%s719 + $0xf0] sm:$0xff]
      %v761 = vld [vmem:[%s719 + $0xf8] sm:$0xf]
      %v762 = vld [vmem:[%s719 + $0xfc] sm:$0xff]
      %v763 = vld [vmem:[%s719 + $0x104] sm:$0xf]
      %v764 = vld [vmem:[%s719 + $0x108] sm:$0xff]
      %v765 = vld [vmem:[%s719 + $0x110] sm:$0xf]
      %v766 = vld [vmem:[%s719 + $0x114] sm:$0xff]
      %v767 = vld [vmem:[%s719 + $0x11c] sm:$0xf]
      %v768 = vld [vmem:[%s719 + $0x120] sm:$0xff]
      %v769 = vld [vmem:[%s719 + $0x128] sm:$0xf]
      %v770 = vld [vmem:[%s719 + $0x12c] sm:$0xff]
      %v771 = vld [vmem:[%s719 + $0x134] sm:$0xf]
      %v772 = vld [vmem:[%s719 + $0x138] sm:$0xff]
      %v773 = vld [vmem:[%s719 + $0x140] sm:$0xf]
      %v774 = vld [vmem:[%s719 + $0x144] sm:$0xff]
      %v775 = vld [vmem:[%s719 + $0x14c] sm:$0xf]
      %v776 = vld [vmem:[%s719 + $0x150] sm:$0xff]
      %v777 = vld [vmem:[%s719 + $0x158] sm:$0xf]
      %v778 = vld [vmem:[%s719 + $0x15c] sm:$0xff]
      %v779 = vld [vmem:[%s719 + $0x164] sm:$0xf]
      %v780 = vld [vmem:[%s719 + $0x168] sm:$0xff]
      %v781 = vld [vmem:[%s719 + $0x170] sm:$0xf]
      %v782 = vld [vmem:[%s719 + $0x174] sm:$0xff]
      %v783 = vld [vmem:[%s719 + $0x17c] sm:$0xf]
      %v784 = vld [vmem:[%s719 + $0x180] sm:$0xff]
      %v785 = vld [vmem:[%s719 + $0x188] sm:$0xf]
      %v786 = vld [vmem:[%s719 + $0x18c] sm:$0xff]
      %v787 = vld [vmem:[%s719 + $0x194] sm:$0xf]
      %v788 = vld [vmem:[%s719 + $0x198] sm:$0xff]
      %v789 = vld [vmem:[%s719 + $0x1a0] sm:$0xf]
      %v790 = vld [vmem:[%s719 + $0x1a4] sm:$0xff]
      %v791 = vld [vmem:[%s719 + $0x1ac] sm:$0xf]
      %v792 = vld [vmem:[%s719 + $0x1b0] sm:$0xff]
      %v793 = vld [vmem:[%s719 + $0x1b8] sm:$0xf]
      %v794 = vld [vmem:[%s719 + $0x1bc] sm:$0xff]
      %v795 = vld [vmem:[%s719 + $0x1c4] sm:$0xf]
      %v796 = vld [vmem:[%s719 + $0x1c8] sm:$0xff]
      %v797 = vld [vmem:[%s719 + $0x1d0] sm:$0xf]
      %v798 = vld [vmem:[%s719 + $0x1d4] sm:$0xff]
      %v799 = vld [vmem:[%s719 + $0x1dc] sm:$0xf]
      %v800 = vld [vmem:[%s719 + $0x1e0] sm:$0xff]
      %v801 = vld [vmem:[%s719 + $0x1e8] sm:$0xf]
      %v802 = vld [vmem:[%s719 + $0x1ec] sm:$0xff]
      %v803 = vld [vmem:[%s719 + $0x1f4] sm:$0xf]
      %v888 = vunpack.c.l.b16 %v720
      %v889 = vunpack.c.h.b16 %v720
      %v890 = vunpack.c.l.b16 %v721
      %v891 = vunpack.c.l.b16 %v722
      %v892 = vunpack.c.h.b16 %v722
      %v893 = vunpack.c.l.b16 %v723
      %v894 = vunpack.c.l.b16 %v724
      %v895 = vunpack.c.h.b16 %v724
      %v896 = vunpack.c.l.b16 %v725
      %v897 = vunpack.c.l.b16 %v726
      %v898 = vunpack.c.h.b16 %v726
      %v899 = vunpack.c.l.b16 %v727
      %v900 = vunpack.c.l.b16 %v728
      %v901 = vunpack.c.h.b16 %v728
      %v902 = vunpack.c.l.b16 %v729
      %v903 = vunpack.c.l.b16 %v730
      %v904 = vunpack.c.h.b16 %v730
      %v905 = vunpack.c.l.b16 %v731
      %v906 = vunpack.c.l.b16 %v732
      %v907 = vunpack.c.h.b16 %v732
      %v908 = vunpack.c.l.b16 %v733
      %v909 = vunpack.c.l.b16 %v734
      %v910 = vunpack.c.h.b16 %v734
      %v911 = vunpack.c.l.b16 %v735
      %v912 = vunpack.c.l.b16 %v736
      %v913 = vunpack.c.h.b16 %v736
      %v914 = vunpack.c.l.b16 %v737
      %v915 = vunpack.c.l.b16 %v738
      %v916 = vunpack.c.h.b16 %v738
      %v917 = vunpack.c.l.b16 %v739
      %v918 = vunpack.c.l.b16 %v740
      %v919 = vunpack.c.h.b16 %v740
      %v920 = vunpack.c.l.b16 %v741
      %v921 = vunpack.c.l.b16 %v742
      %v922 = vunpack.c.h.b16 %v742
      %v923 = vunpack.c.l.b16 %v743
      %v924 = vunpack.c.l.b16 %v744
      %v925 = vunpack.c.h.b16 %v744
      %v926 = vunpack.c.l.b16 %v745
      %v927 = vunpack.c.l.b16 %v746
      %v928 = vunpack.c.h.b16 %v746
      %v929 = vunpack.c.l.b16 %v747
      %v930 = vunpack.c.l.b16 %v748
      %v931 = vunpack.c.h.b16 %v748
      %v932 = vunpack.c.l.b16 %v749
      %v933 = vunpack.c.l.b16 %v750
      %v934 = vunpack.c.h.b16 %v750
      %v935 = vunpack.c.l.b16 %v751
      %v936 = vunpack.c.l.b16 %v752
      %v937 = vunpack.c.h.b16 %v752
      %v938 = vunpack.c.l.b16 %v753
      %v939 = vunpack.c.l.b16 %v754
      %v940 = vunpack.c.h.b16 %v754
      %v941 = vunpack.c.l.b16 %v755
      %v942 = vunpack.c.l.b16 %v756
      %v943 = vunpack.c.h.b16 %v756
      %v944 = vunpack.c.l.b16 %v757
      %v945 = vunpack.c.l.b16 %v758
      %v946 = vunpack.c.h.b16 %v758
      %v947 = vunpack.c.l.b16 %v759
      %v948 = vunpack.c.l.b16 %v760
      %v949 = vunpack.c.h.b16 %v760
      %v950 = vunpack.c.l.b16 %v761
      %v951 = vunpack.c.l.b16 %v762
      %v952 = vunpack.c.h.b16 %v762
      %v953 = vunpack.c.l.b16 %v763
      %v954 = vunpack.c.l.b16 %v764
      %v955 = vunpack.c.h.b16 %v764
      %v956 = vunpack.c.l.b16 %v765
      %v957 = vunpack.c.l.b16 %v766
      %v958 = vunpack.c.h.b16 %v766
      %v959 = vunpack.c.l.b16 %v767
      %v960 = vunpack.c.l.b16 %v768
      %v961 = vunpack.c.h.b16 %v768
      %v962 = vunpack.c.l.b16 %v769
      %v963 = vunpack.c.l.b16 %v770
      %v964 = vunpack.c.h.b16 %v770
      %v965 = vunpack.c.l.b16 %v771
      %v966 = vunpack.c.l.b16 %v772
      %v967 = vunpack.c.h.b16 %v772
      %v968 = vunpack.c.l.b16 %v773
      %v969 = vunpack.c.l.b16 %v774
      %v970 = vunpack.c.h.b16 %v774
      %v971 = vunpack.c.l.b16 %v775
      %v972 = vunpack.c.l.b16 %v776
      %v973 = vunpack.c.h.b16 %v776
      %v974 = vunpack.c.l.b16 %v777
      %v975 = vunpack.c.l.b16 %v778
      %v976 = vunpack.c.h.b16 %v778
      %v977 = vunpack.c.l.b16 %v779
      %v978 = vunpack.c.l.b16 %v780
      %v979 = vunpack.c.h.b16 %v780
      %v980 = vunpack.c.l.b16 %v781
      %v981 = vunpack.c.l.b16 %v782
      %v982 = vunpack.c.h.b16 %v782
      %v983 = vunpack.c.l.b16 %v783
      %v984 = vunpack.c.l.b16 %v784
      %v985 = vunpack.c.h.b16 %v784
      %v986 = vunpack.c.l.b16 %v785
      %v987 = vunpack.c.l.b16 %v786
      %v988 = vunpack.c.h.b16 %v786
      %v989 = vunpack.c.l.b16 %v787
      %v990 = vunpack.c.l.b16 %v788
      %v991 = vunpack.c.h.b16 %v788
      %v992 = vunpack.c.l.b16 %v789
      %v993 = vunpack.c.l.b16 %v790
      %v994 = vunpack.c.h.b16 %v790
      %v995 = vunpack.c.l.b16 %v791
      %v996 = vunpack.c.l.b16 %v792
      %v997 = vunpack.c.h.b16 %v792
      %v998 = vunpack.c.l.b16 %v793
      %v999 = vunpack.c.l.b16 %v794
      %v1000 = vunpack.c.h.b16 %v794
      %v1001 = vunpack.c.l.b16 %v795
      %v1002 = vunpack.c.l.b16 %v796
      %v1003 = vunpack.c.h.b16 %v796
      %v1004 = vunpack.c.l.b16 %v797
      %v1005 = vunpack.c.l.b16 %v798
      %v1006 = vunpack.c.h.b16 %v798
      %v1007 = vunpack.c.l.b16 %v799
      %v1008 = vunpack.c.l.b16 %v800
      %v1009 = vunpack.c.h.b16 %v800
      %v1010 = vunpack.c.l.b16 %v801
      %v1011 = vunpack.c.l.b16 %v802
      %v1012 = vunpack.c.h.b16 %v802
      %v1013 = vunpack.c.l.b16 %v803
      %v1014 = vpack.c.b16 %v891, %v888
      %v1015 = vpack.c.b16 %v892, %v889
      %v1016 = vpack.c.b16 %v893, %v890
      %v1017 = vpack.c.b16 %v897, %v894
      %v1018 = vpack.c.b16 %v898, %v895
      %v1019 = vpack.c.b16 %v899, %v896
      %v1020 = vpack.c.b16 %v903, %v900
      %v1021 = vpack.c.b16 %v904, %v901
      %v1022 = vpack.c.b16 %v905, %v902
      %v1023 = vpack.c.b16 %v909, %v906
      %v1024 = vpack.c.b16 %v910, %v907
      %v1025 = vpack.c.b16 %v911, %v908
      %v1026 = vpack.c.b16 %v915, %v912
      %v1027 = vpack.c.b16 %v916, %v913
      %v1028 = vpack.c.b16 %v917, %v914
      %v1029 = vpack.c.b16 %v921, %v918
      %v1030 = vpack.c.b16 %v922, %v919
      %v1031 = vpack.c.b16 %v923, %v920
      %v1032 = vpack.c.b16 %v927, %v924
      %v1033 = vpack.c.b16 %v928, %v925
      %v1034 = vpack.c.b16 %v929, %v926
      %v1035 = vpack.c.b16 %v933, %v930
      %v1036 = vpack.c.b16 %v934, %v931
      %v1037 = vpack.c.b16 %v935, %v932
      %v1038 = vpack.c.b16 %v939, %v936
      %v1039 = vpack.c.b16 %v940, %v937
      %v1040 = vpack.c.b16 %v941, %v938
      %v1041 = vpack.c.b16 %v945, %v942
      %v1042 = vpack.c.b16 %v946, %v943
      %v1043 = vpack.c.b16 %v947, %v944
      %v1044 = vpack.c.b16 %v951, %v948
      %v1045 = vpack.c.b16 %v952, %v949
      %v1046 = vpack.c.b16 %v953, %v950
      %v1047 = vpack.c.b16 %v957, %v954
      %v1048 = vpack.c.b16 %v958, %v955
      %v1049 = vpack.c.b16 %v959, %v956
      %v1050 = vpack.c.b16 %v963, %v960
      %v1051 = vpack.c.b16 %v964, %v961
      %v1052 = vpack.c.b16 %v965, %v962
      %v1053 = vpack.c.b16 %v969, %v966
      %v1054 = vpack.c.b16 %v970, %v967
      %v1055 = vpack.c.b16 %v971, %v968
      %v1056 = vpack.c.b16 %v975, %v972
      %v1057 = vpack.c.b16 %v976, %v973
      %v1058 = vpack.c.b16 %v977, %v974
      %v1059 = vpack.c.b16 %v981, %v978
      %v1060 = vpack.c.b16 %v982, %v979
      %v1061 = vpack.c.b16 %v983, %v980
      %v1062 = vpack.c.b16 %v987, %v984
      %v1063 = vpack.c.b16 %v988, %v985
      %v1064 = vpack.c.b16 %v989, %v986
      %v1065 = vpack.c.b16 %v993, %v990
      %v1066 = vpack.c.b16 %v994, %v991
      %v1067 = vpack.c.b16 %v995, %v992
      %v1068 = vpack.c.b16 %v999, %v996
      %v1069 = vpack.c.b16 %v1000, %v997
      %v1070 = vpack.c.b16 %v1001, %v998
      %v1071 = vpack.c.b16 %v1005, %v1002
      %v1072 = vpack.c.b16 %v1006, %v1003
      %v1073 = vpack.c.b16 %v1007, %v1004
      %v1074 = vpack.c.b16 %v1011, %v1008
      %v1075 = vpack.c.b16 %v1012, %v1009
      %v1076 = vpack.c.b16 %v1013, %v1010
      %vm1140 = vcmask 654336
      %v1142 = vsel %vm1140, %v715, 0
      %v1145 = vsel %vm1140, %v718, 0
      %1147 = vmatpush.bf16.msra.mxu0 %v1035
      %1148 = vmatpush.bf16.msra.mxu0 %v1032
      %1149 = vmatpush.bf16.msra.mxu0 %v1029
      %1150 = vmatpush.bf16.msra.mxu0 %v1026
      %1151 = vmatpush.bf16.msra.mxu0 %v1023
      %1152 = vmatpush.bf16.msra.mxu0 %v1020
      %1153 = vmatpush.bf16.msra.mxu0 %v1017
      %1154 = vmatpush.bf16.msra.mxu0 %v1014
      %1155 = vmatmul.bf16.gmra.mxu0 %v713
      %v1156 = vpop.f32.mrf.mxu0
      %v1157 = vadd.f32 0.0, %v1156
      %v1158 = vpop.f32.mrf.mxu0
      %v1159 = vadd.f32 0.0, %v1158
      %1160 = vmatmul.bf16.gmra.mxu0 %v716
      %v1161 = vpop.f32.mrf.mxu0
      %v1162 = vadd.f32 0.0, %v1161
      %v1163 = vpop.f32.mrf.mxu0
      %1164 = vdwg.mxu0
      %1165 = vmatpush.bf16.msra.mxu0 %v1059
      %1166 = vmatpush.bf16.msra.mxu0 %v1056
      %1167 = vmatpush.bf16.msra.mxu0 %v1053
      %1168 = vmatpush.bf16.msra.mxu0 %v1050
      %1169 = vmatpush.bf16.msra.mxu0 %v1047
      %1170 = vmatpush.bf16.msra.mxu0 %v1044
      %1171 = vmatpush.bf16.msra.mxu0 %v1041
      %1172 = vmatpush.bf16.msra.mxu0 %v1038
      %1173 = vmatmul.bf16.gmra.mxu0 %v714
      %v1174 = vpop.f32.mrf.mxu0
      %v1175 = vadd.f32 %v1157, %v1174
      %v1176 = vpop.f32.mrf.mxu0
      %v1177 = vadd.f32 %v1159, %v1176
      %1178 = vmatmul.bf16.gmra.mxu0 %v717
      %v1179 = vpop.f32.mrf.mxu0
      %v1180 = vadd.f32 %v1162, %v1179
      %v1181 = vpop.f32.mrf.mxu0
      %1182 = vdwg.mxu0
      %1183 = vmatpush.bf16.msra.mxu0 0
      %1184 = vmatpush.bf16.msra.mxu0 0
      %1185 = vmatpush.bf16.msra.mxu0 0
      %1186 = vmatpush.bf16.msra.mxu0 %v1074
      %1187 = vmatpush.bf16.msra.mxu0 %v1071
      %1188 = vmatpush.bf16.msra.mxu0 %v1068
      %1189 = vmatpush.bf16.msra.mxu0 %v1065
      %1190 = vmatpush.bf16.msra.mxu0 %v1062
      %1191 = vmatmul.bf16.gmra.mxu0 %v1142
      %v1192 = vpop.f32.mrf.mxu0
      %v1193 = vadd.f32 %v1175, %v1192
      %v1194 = vpop.f32.mrf.mxu0
      %v1195 = vadd.f32 %v1177, %v1194
      %1196 = vmatmul.bf16.gmra.mxu0 %v1145
      %v1197 = vpop.f32.mrf.mxu0
      %v1198 = vadd.f32 %v1180, %v1197
      %v1199 = vpop.f32.mrf.mxu0
      %1200 = vdwg.mxu0
      %1201 = vmatpush.bf16.msra.mxu0 %v1036
      %1202 = vmatpush.bf16.msra.mxu0 %v1033
      %1203 = vmatpush.bf16.msra.mxu0 %v1030
      %1204 = vmatpush.bf16.msra.mxu0 %v1027
      %1205 = vmatpush.bf16.msra.mxu0 %v1024
      %1206 = vmatpush.bf16.msra.mxu0 %v1021
      %1207 = vmatpush.bf16.msra.mxu0 %v1018
      %1208 = vmatpush.bf16.msra.mxu0 %v1015
      %1209 = vmatmul.bf16.gmra.mxu0 %v713
      %v1210 = vpop.f32.mrf.mxu0
      %v1211 = vadd.f32 0.0, %v1210
      %v1212 = vpop.f32.mrf.mxu0
      %v1213 = vadd.f32 0.0, %v1212
      %1214 = vmatmul.bf16.gmra.mxu0 %v716
      %v1215 = vpop.f32.mrf.mxu0
      %v1216 = vadd.f32 0.0, %v1215
      %v1217 = vpop.f32.mrf.mxu0
      %1218 = vdwg.mxu0
      %1219 = vmatpush.bf16.msra.mxu0 %v1060
      %1220 = vmatpush.bf16.msra.mxu0 %v1057
      %1221 = vmatpush.bf16.msra.mxu0 %v1054
      %1222 = vmatpush.bf16.msra.mxu0 %v1051
      %1223 = vmatpush.bf16.msra.mxu0 %v1048
      %1224 = vmatpush.bf16.msra.mxu0 %v1045
      %1225 = vmatpush.bf16.msra.mxu0 %v1042
      %1226 = vmatpush.bf16.msra.mxu0 %v1039
      %1227 = vmatmul.bf16.gmra.mxu0 %v714
      %v1228 = vpop.f32.mrf.mxu0
      %v1229 = vadd.f32 %v1211, %v1228
      %v1230 = vpop.f32.mrf.mxu0
      %v1231 = vadd.f32 %v1213, %v1230
      %1232 = vmatmul.bf16.gmra.mxu0 %v717
      %v1233 = vpop.f32.mrf.mxu0
      %v1234 = vadd.f32 %v1216, %v1233
      %v1235 = vpop.f32.mrf.mxu0
      %1236 = vdwg.mxu0
      %1237 = vmatpush.bf16.msra.mxu0 0
      %1238 = vmatpush.bf16.msra.mxu0 0
      %1239 = vmatpush.bf16.msra.mxu0 0
      %1240 = vmatpush.bf16.msra.mxu0 %v1075
      %1241 = vmatpush.bf16.msra.mxu0 %v1072
      %1242 = vmatpush.bf16.msra.mxu0 %v1069
      %1243 = vmatpush.bf16.msra.mxu0 %v1066
      %1244 = vmatpush.bf16.msra.mxu0 %v1063
      %1245 = vmatmul.bf16.gmra.mxu0 %v1142
      %v1246 = vpop.f32.mrf.mxu0
      %v1247 = vadd.f32 %v1229, %v1246
      %v1248 = vpop.f32.mrf.mxu0
      %v1249 = vadd.f32 %v1231, %v1248
      %1250 = vmatmul.bf16.gmra.mxu0 %v1145
      %v1251 = vpop.f32.mrf.mxu0
      %v1252 = vadd.f32 %v1234, %v1251
      %v1253 = vpop.f32.mrf.mxu0
      %1254 = vdwg.mxu0
      %1255 = vmatpush.bf16.msra.mxu0 %v1037
      %1256 = vmatpush.bf16.msra.mxu0 %v1034
      %1257 = vmatpush.bf16.msra.mxu0 %v1031
      %1258 = vmatpush.bf16.msra.mxu0 %v1028
      %1259 = vmatpush.bf16.msra.mxu0 %v1025
      %1260 = vmatpush.bf16.msra.mxu0 %v1022
      %1261 = vmatpush.bf16.msra.mxu0 %v1019
      %1262 = vmatpush.bf16.msra.mxu0 %v1016
      %1263 = vmatmul.bf16.gmra.mxu0 %v713
      %v1264 = vpop.f32.mrf.mxu0
      %v1265 = vadd.f32 0.0, %v1264
      %v1266 = vpop.f32.mrf.mxu0
      %v1267 = vadd.f32 0.0, %v1266
      %1268 = vmatmul.bf16.gmra.mxu0 %v716
      %v1269 = vpop.f32.mrf.mxu0
      %v1270 = vadd.f32 0.0, %v1269
      %v1271 = vpop.f32.mrf.mxu0
      %1272 = vdwg.mxu0
      %1273 = vmatpush.bf16.msra.mxu0 %v1061
      %1274 = vmatpush.bf16.msra.mxu0 %v1058
      %1275 = vmatpush.bf16.msra.mxu0 %v1055
      %1276 = vmatpush.bf16.msra.mxu0 %v1052
      %1277 = vmatpush.bf16.msra.mxu0 %v1049
      %1278 = vmatpush.bf16.msra.mxu0 %v1046
      %1279 = vmatpush.bf16.msra.mxu0 %v1043
      %1280 = vmatpush.bf16.msra.mxu0 %v1040
      %1281 = vmatmul.bf16.gmra.mxu0 %v714
      %v1282 = vpop.f32.mrf.mxu0
      %v1283 = vadd.f32 %v1265, %v1282
      %v1284 = vpop.f32.mrf.mxu0
      %v1285 = vadd.f32 %v1267, %v1284
      %1286 = vmatmul.bf16.gmra.mxu0 %v717
      %v1287 = vpop.f32.mrf.mxu0
      %v1288 = vadd.f32 %v1270, %v1287
      %v1289 = vpop.f32.mrf.mxu0
      %1290 = vdwg.mxu0
      %1291 = vmatpush.bf16.msra.mxu0 0
      %1292 = vmatpush.bf16.msra.mxu0 0
      %1293 = vmatpush.bf16.msra.mxu0 0
      %1294 = vmatpush.bf16.msra.mxu0 %v1076
      %1295 = vmatpush.bf16.msra.mxu0 %v1073
      %1296 = vmatpush.bf16.msra.mxu0 %v1070
      %1297 = vmatpush.bf16.msra.mxu0 %v1067
      %1298 = vmatpush.bf16.msra.mxu0 %v1064
      %1299 = vmatmul.bf16.gmra.mxu0 %v1142
      %v1300 = vpop.f32.mrf.mxu0
      %v1301 = vadd.f32 %v1283, %v1300
      %v1302 = vpop.f32.mrf.mxu0
      %v1303 = vadd.f32 %v1285, %v1302
      %1304 = vmatmul.bf16.gmra.mxu0 %v1145
      %v1305 = vpop.f32.mrf.mxu0
      %v1306 = vadd.f32 %v1288, %v1305
      %v1307 = vpop.f32.mrf.mxu0
      %1308 = vdwg.mxu0
      %v1393 = vunpack.c.l.b16 %v557
      %v1394 = vunpack.c.h.b16 %v557
      %v1395 = vunpack.c.l.b16 %v558
      %v1396 = vunpack.c.l.b16 %v559
      %v1397 = vunpack.c.h.b16 %v559
      %v1398 = vunpack.c.l.b16 %v560
      %v1399 = vunpack.c.l.b16 %v561
      %v1400 = vunpack.c.h.b16 %v561
      %v1401 = vunpack.c.l.b16 %v562
      %v1402 = vunpack.c.l.b16 %v563
      %v1403 = vunpack.c.h.b16 %v563
      %v1404 = vunpack.c.l.b16 %v564
      %v1405 = vunpack.c.l.b16 %v565
      %v1406 = vunpack.c.h.b16 %v565
      %v1407 = vunpack.c.l.b16 %v566
      %v1408 = vunpack.c.l.b16 %v567
      %v1409 = vunpack.c.h.b16 %v567
      %v1410 = vunpack.c.l.b16 %v568
      %v1411 = vunpack.c.l.b16 %v569
      %v1412 = vunpack.c.h.b16 %v569
      %v1413 = vunpack.c.l.b16 %v570
      %v1414 = vunpack.c.l.b16 %v571
      %v1415 = vunpack.c.h.b16 %v571
      %v1416 = vunpack.c.l.b16 %v572
      %v1417 = vunpack.c.l.b16 %v573
      %v1418 = vunpack.c.h.b16 %v573
      %v1419 = vunpack.c.l.b16 %v574
      %v1420 = vunpack.c.l.b16 %v575
      %v1421 = vunpack.c.h.b16 %v575
      %v1422 = vunpack.c.l.b16 %v576
      %v1423 = vunpack.c.l.b16 %v577
      %v1424 = vunpack.c.h.b16 %v577
      %v1425 = vunpack.c.l.b16 %v578
      %v1426 = vunpack.c.l.b16 %v579
      %v1427 = vunpack.c.h.b16 %v579
      %v1428 = vunpack.c.l.b16 %v580
      %v1429 = vunpack.c.l.b16 %v581
      %v1430 = vunpack.c.h.b16 %v581
      %v1431 = vunpack.c.l.b16 %v582
      %v1432 = vunpack.c.l.b16 %v583
      %v1433 = vunpack.c.h.b16 %v583
      %v1434 = vunpack.c.l.b16 %v584
      %v1435 = vunpack.c.l.b16 %v585
      %v1436 = vunpack.c.h.b16 %v585
      %v1437 = vunpack.c.l.b16 %v586
      %v1438 = vunpack.c.l.b16 %v587
      %v1439 = vunpack.c.h.b16 %v587
      %v1440 = vunpack.c.l.b16 %v588
      %v1441 = vunpack.c.l.b16 %v589
      %v1442 = vunpack.c.h.b16 %v589
      %v1443 = vunpack.c.l.b16 %v590
      %v1444 = vunpack.c.l.b16 %v591
      %v1445 = vunpack.c.h.b16 %v591
      %v1446 = vunpack.c.l.b16 %v592
      %v1447 = vunpack.c.l.b16 %v593
      %v1448 = vunpack.c.h.b16 %v593
      %v1449 = vunpack.c.l.b16 %v594
      %v1450 = vunpack.c.l.b16 %v595
      %v1451 = vunpack.c.h.b16 %v595
      %v1452 = vunpack.c.l.b16 %v596
      %v1453 = vunpack.c.l.b16 %v597
      %v1454 = vunpack.c.h.b16 %v597
      %v1455 = vunpack.c.l.b16 %v598
      %v1456 = vunpack.c.l.b16 %v599
      %v1457 = vunpack.c.h.b16 %v599
      %v1458 = vunpack.c.l.b16 %v600
      %v1459 = vunpack.c.l.b16 %v601
      %v1460 = vunpack.c.h.b16 %v601
      %v1461 = vunpack.c.l.b16 %v602
      %v1462 = vunpack.c.l.b16 %v603
      %v1463 = vunpack.c.h.b16 %v603
      %v1464 = vunpack.c.l.b16 %v604
      %v1465 = vunpack.c.l.b16 %v605
      %v1466 = vunpack.c.h.b16 %v605
      %v1467 = vunpack.c.l.b16 %v606
      %v1468 = vunpack.c.l.b16 %v607
      %v1469 = vunpack.c.h.b16 %v607
      %v1470 = vunpack.c.l.b16 %v608
      %v1471 = vunpack.c.l.b16 %v609
      %v1472 = vunpack.c.h.b16 %v609
      %v1473 = vunpack.c.l.b16 %v610
      %v1474 = vunpack.c.l.b16 %v611
      %v1475 = vunpack.c.h.b16 %v611
      %v1476 = vunpack.c.l.b16 %v612
      %v1477 = vunpack.c.l.b16 %v613
      %v1478 = vunpack.c.h.b16 %v613
      %v1479 = vunpack.c.l.b16 %v614
      %v1480 = vunpack.c.l.b16 %v615
      %v1481 = vunpack.c.h.b16 %v615
      %v1482 = vunpack.c.l.b16 %v616
      %v1483 = vunpack.c.l.b16 %v617
      %v1484 = vunpack.c.h.b16 %v617
      %v1485 = vunpack.c.l.b16 %v618
      %v1486 = vunpack.c.l.b16 %v619
      %v1487 = vunpack.c.h.b16 %v619
      %v1488 = vunpack.c.l.b16 %v620
      %v1489 = vunpack.c.l.b16 %v621
      %v1490 = vunpack.c.h.b16 %v621
      %v1491 = vunpack.c.l.b16 %v622
      %v1492 = vunpack.c.l.b16 %v623
      %v1493 = vunpack.c.h.b16 %v623
      %v1494 = vunpack.c.l.b16 %v624
      %v1495 = vunpack.c.l.b16 %v625
      %v1496 = vunpack.c.h.b16 %v625
      %v1497 = vunpack.c.l.b16 %v626
      %v1498 = vunpack.c.l.b16 %v627
      %v1499 = vunpack.c.h.b16 %v627
      %v1500 = vunpack.c.l.b16 %v628
      %v1501 = vunpack.c.l.b16 %v629
      %v1502 = vunpack.c.h.b16 %v629
      %v1503 = vunpack.c.l.b16 %v630
      %v1504 = vunpack.c.l.b16 %v631
      %v1505 = vunpack.c.h.b16 %v631
      %v1506 = vunpack.c.l.b16 %v632
      %v1507 = vunpack.c.l.b16 %v633
      %v1508 = vunpack.c.h.b16 %v633
      %v1509 = vunpack.c.l.b16 %v634
      %v1510 = vunpack.c.l.b16 %v635
      %v1511 = vunpack.c.h.b16 %v635
      %v1512 = vunpack.c.l.b16 %v636
      %v1513 = vunpack.c.l.b16 %v637
      %v1514 = vunpack.c.h.b16 %v637
      %v1515 = vunpack.c.l.b16 %v638
      %v1516 = vunpack.c.l.b16 %v639
      %v1517 = vunpack.c.h.b16 %v639
      %v1518 = vunpack.c.l.b16 %v640
      %v1519 = vpack.c.b16 %v1396, %v1393
      %v1520 = vpack.c.b16 %v1397, %v1394
      %v1521 = vpack.c.b16 %v1398, %v1395
      %v1522 = vpack.c.b16 %v1402, %v1399
      %v1523 = vpack.c.b16 %v1403, %v1400
      %v1524 = vpack.c.b16 %v1404, %v1401
      %v1525 = vpack.c.b16 %v1408, %v1405
      %v1526 = vpack.c.b16 %v1409, %v1406
      %v1527 = vpack.c.b16 %v1410, %v1407
      %v1528 = vpack.c.b16 %v1414, %v1411
      %v1529 = vpack.c.b16 %v1415, %v1412
      %v1530 = vpack.c.b16 %v1416, %v1413
      %v1531 = vpack.c.b16 %v1420, %v1417
      %v1532 = vpack.c.b16 %v1421, %v1418
      %v1533 = vpack.c.b16 %v1422, %v1419
      %v1534 = vpack.c.b16 %v1426, %v1423
      %v1535 = vpack.c.b16 %v1427, %v1424
      %v1536 = vpack.c.b16 %v1428, %v1425
      %v1537 = vpack.c.b16 %v1432, %v1429
      %v1538 = vpack.c.b16 %v1433, %v1430
      %v1539 = vpack.c.b16 %v1434, %v1431
      %v1540 = vpack.c.b16 %v1438, %v1435
      %v1541 = vpack.c.b16 %v1439, %v1436
      %v1542 = vpack.c.b16 %v1440, %v1437
      %v1543 = vpack.c.b16 %v1444, %v1441
      %v1544 = vpack.c.b16 %v1445, %v1442
      %v1545 = vpack.c.b16 %v1446, %v1443
      %v1546 = vpack.c.b16 %v1450, %v1447
      %v1547 = vpack.c.b16 %v1451, %v1448
      %v1548 = vpack.c.b16 %v1452, %v1449
      %v1549 = vpack.c.b16 %v1456, %v1453
      %v1550 = vpack.c.b16 %v1457, %v1454
      %v1551 = vpack.c.b16 %v1458, %v1455
      %v1552 = vpack.c.b16 %v1462, %v1459
      %v1553 = vpack.c.b16 %v1463, %v1460
      %v1554 = vpack.c.b16 %v1464, %v1461
      %v1555 = vpack.c.b16 %v1468, %v1465
      %v1556 = vpack.c.b16 %v1469, %v1466
      %v1557 = vpack.c.b16 %v1470, %v1467
      %v1558 = vpack.c.b16 %v1474, %v1471
      %v1559 = vpack.c.b16 %v1475, %v1472
      %v1560 = vpack.c.b16 %v1476, %v1473
      %v1561 = vpack.c.b16 %v1480, %v1477
      %v1562 = vpack.c.b16 %v1481, %v1478
      %v1563 = vpack.c.b16 %v1482, %v1479
      %v1564 = vpack.c.b16 %v1486, %v1483
      %v1565 = vpack.c.b16 %v1487, %v1484
      %v1566 = vpack.c.b16 %v1488, %v1485
      %v1567 = vpack.c.b16 %v1492, %v1489
      %v1568 = vpack.c.b16 %v1493, %v1490
      %v1569 = vpack.c.b16 %v1494, %v1491
      %v1570 = vpack.c.b16 %v1498, %v1495
      %v1571 = vpack.c.b16 %v1499, %v1496
      %v1572 = vpack.c.b16 %v1500, %v1497
      %v1573 = vpack.c.b16 %v1504, %v1501
      %v1574 = vpack.c.b16 %v1505, %v1502
      %v1575 = vpack.c.b16 %v1506, %v1503
      %v1576 = vpack.c.b16 %v1510, %v1507
      %v1577 = vpack.c.b16 %v1511, %v1508
      %v1578 = vpack.c.b16 %v1512, %v1509
      %v1579 = vpack.c.b16 %v1516, %v1513
      %v1580 = vpack.c.b16 %v1517, %v1514
      %v1581 = vpack.c.b16 %v1518, %v1515
      %v1646 = vsel %vm1140, %v553, 0
      %v1649 = vsel %vm1140, %v556, 0
      %1651 = vmatpush.bf16.msra.mxu0 %v1540
      %1652 = vmatpush.bf16.msra.mxu0 %v1537
      %1653 = vmatpush.bf16.msra.mxu0 %v1534
      %1654 = vmatpush.bf16.msra.mxu0 %v1531
      %1655 = vmatpush.bf16.msra.mxu0 %v1528
      %1656 = vmatpush.bf16.msra.mxu0 %v1525
      %1657 = vmatpush.bf16.msra.mxu0 %v1522
      %1658 = vmatpush.bf16.msra.mxu0 %v1519
      %1659 = vmatmul.bf16.gmra.mxu0 %v551
      %v1660 = vpop.f32.mrf.mxu0
      %v1661 = vadd.f32 %v1193, %v1660
      %v1662 = vpop.f32.mrf.mxu0
      %v1663 = vadd.f32 %v1195, %v1662
      %1664 = vmatmul.bf16.gmra.mxu0 %v554
      %v1665 = vpop.f32.mrf.mxu0
      %v1666 = vadd.f32 %v1198, %v1665
      %v1667 = vpop.f32.mrf.mxu0
      %1668 = vdwg.mxu0
      %1669 = vmatpush.bf16.msra.mxu0 %v1564
      %1670 = vmatpush.bf16.msra.mxu0 %v1561
      %1671 = vmatpush.bf16.msra.mxu0 %v1558
      %1672 = vmatpush.bf16.msra.mxu0 %v1555
      %1673 = vmatpush.bf16.msra.mxu0 %v1552
      %1674 = vmatpush.bf16.msra.mxu0 %v1549
      %1675 = vmatpush.bf16.msra.mxu0 %v1546
      %1676 = vmatpush.bf16.msra.mxu0 %v1543
      %1677 = vmatmul.bf16.gmra.mxu0 %v552
      %v1678 = vpop.f32.mrf.mxu0
      %v1679 = vadd.f32 %v1661, %v1678
      %v1680 = vpop.f32.mrf.mxu0
      %v1681 = vadd.f32 %v1663, %v1680
      %1682 = vmatmul.bf16.gmra.mxu0 %v555
      %v1683 = vpop.f32.mrf.mxu0
      %v1684 = vadd.f32 %v1666, %v1683
      %v1685 = vpop.f32.mrf.mxu0
      %1686 = vdwg.mxu0
      %1687 = vmatpush.bf16.msra.mxu0 0
      %1688 = vmatpush.bf16.msra.mxu0 0
      %1689 = vmatpush.bf16.msra.mxu0 0
      %1690 = vmatpush.bf16.msra.mxu0 %v1579
      %1691 = vmatpush.bf16.msra.mxu0 %v1576
      %1692 = vmatpush.bf16.msra.mxu0 %v1573
      %1693 = vmatpush.bf16.msra.mxu0 %v1570
      %1694 = vmatpush.bf16.msra.mxu0 %v1567
      %1695 = vmatmul.bf16.gmra.mxu0 %v1646
      %v1696 = vpop.f32.mrf.mxu0
      %v1697 = vadd.f32 %v1679, %v1696
      %v1698 = vpop.f32.mrf.mxu0
      %v1699 = vadd.f32 %v1681, %v1698
      %1700 = vmatmul.bf16.gmra.mxu0 %v1649
      %v1701 = vpop.f32.mrf.mxu0
      %v1702 = vadd.f32 %v1684, %v1701
      %v1703 = vpop.f32.mrf.mxu0
      %1704 = vdwg.mxu0
      %1705 = vmatpush.bf16.msra.mxu0 %v1541
      %1706 = vmatpush.bf16.msra.mxu0 %v1538
      %1707 = vmatpush.bf16.msra.mxu0 %v1535
      %1708 = vmatpush.bf16.msra.mxu0 %v1532
      %1709 = vmatpush.bf16.msra.mxu0 %v1529
      %1710 = vmatpush.bf16.msra.mxu0 %v1526
      %1711 = vmatpush.bf16.msra.mxu0 %v1523
      %1712 = vmatpush.bf16.msra.mxu0 %v1520
      %1713 = vmatmul.bf16.gmra.mxu0 %v551
      %v1714 = vpop.f32.mrf.mxu0
      %v1715 = vadd.f32 %v1247, %v1714
      %v1716 = vpop.f32.mrf.mxu0
      %v1717 = vadd.f32 %v1249, %v1716
      %1718 = vmatmul.bf16.gmra.mxu0 %v554
      %v1719 = vpop.f32.mrf.mxu0
      %v1720 = vadd.f32 %v1252, %v1719
      %v1721 = vpop.f32.mrf.mxu0
      %1722 = vdwg.mxu0
      %1723 = vmatpush.bf16.msra.mxu0 %v1565
      %1724 = vmatpush.bf16.msra.mxu0 %v1562
      %1725 = vmatpush.bf16.msra.mxu0 %v1559
      %1726 = vmatpush.bf16.msra.mxu0 %v1556
      %1727 = vmatpush.bf16.msra.mxu0 %v1553
      %1728 = vmatpush.bf16.msra.mxu0 %v1550
      %1729 = vmatpush.bf16.msra.mxu0 %v1547
      %1730 = vmatpush.bf16.msra.mxu0 %v1544
      %1731 = vmatmul.bf16.gmra.mxu0 %v552
      %v1732 = vpop.f32.mrf.mxu0
      %v1733 = vadd.f32 %v1715, %v1732
      %v1734 = vpop.f32.mrf.mxu0
      %v1735 = vadd.f32 %v1717, %v1734
      %1736 = vmatmul.bf16.gmra.mxu0 %v555
      %v1737 = vpop.f32.mrf.mxu0
      %v1738 = vadd.f32 %v1720, %v1737
      %v1739 = vpop.f32.mrf.mxu0
      %1740 = vdwg.mxu0
      %1741 = vmatpush.bf16.msra.mxu0 0
      %1742 = vmatpush.bf16.msra.mxu0 0
      %1743 = vmatpush.bf16.msra.mxu0 0
      %1744 = vmatpush.bf16.msra.mxu0 %v1580
      %1745 = vmatpush.bf16.msra.mxu0 %v1577
      %1746 = vmatpush.bf16.msra.mxu0 %v1574
      %1747 = vmatpush.bf16.msra.mxu0 %v1571
      %1748 = vmatpush.bf16.msra.mxu0 %v1568
      %1749 = vmatmul.bf16.gmra.mxu0 %v1646
      %v1750 = vpop.f32.mrf.mxu0
      %v1751 = vadd.f32 %v1733, %v1750
      %v1752 = vpop.f32.mrf.mxu0
      %v1753 = vadd.f32 %v1735, %v1752
      %1754 = vmatmul.bf16.gmra.mxu0 %v1649
      %v1755 = vpop.f32.mrf.mxu0
      %v1756 = vadd.f32 %v1738, %v1755
      %v1757 = vpop.f32.mrf.mxu0
      %1758 = vdwg.mxu0
      %1759 = vmatpush.bf16.msra.mxu0 %v1542
      %1760 = vmatpush.bf16.msra.mxu0 %v1539
      %1761 = vmatpush.bf16.msra.mxu0 %v1536
      %1762 = vmatpush.bf16.msra.mxu0 %v1533
      %1763 = vmatpush.bf16.msra.mxu0 %v1530
      %1764 = vmatpush.bf16.msra.mxu0 %v1527
      %1765 = vmatpush.bf16.msra.mxu0 %v1524
      %1766 = vmatpush.bf16.msra.mxu0 %v1521
      %1767 = vmatmul.bf16.gmra.mxu0 %v551
      %v1768 = vpop.f32.mrf.mxu0
      %v1769 = vadd.f32 %v1301, %v1768
      %v1770 = vpop.f32.mrf.mxu0
      %v1771 = vadd.f32 %v1303, %v1770
      %1772 = vmatmul.bf16.gmra.mxu0 %v554
      %v1773 = vpop.f32.mrf.mxu0
      %v1774 = vadd.f32 %v1306, %v1773
      %v1775 = vpop.f32.mrf.mxu0
      %1776 = vdwg.mxu0
      %1777 = vmatpush.bf16.msra.mxu0 %v1566
      %1778 = vmatpush.bf16.msra.mxu0 %v1563
      %1779 = vmatpush.bf16.msra.mxu0 %v1560
      %1780 = vmatpush.bf16.msra.mxu0 %v1557
      %1781 = vmatpush.bf16.msra.mxu0 %v1554
      %1782 = vmatpush.bf16.msra.mxu0 %v1551
      %1783 = vmatpush.bf16.msra.mxu0 %v1548
      %1784 = vmatpush.bf16.msra.mxu0 %v1545
      %1785 = vmatmul.bf16.gmra.mxu0 %v552
      %v1786 = vpop.f32.mrf.mxu0
      %v1787 = vadd.f32 %v1769, %v1786
      %v1788 = vpop.f32.mrf.mxu0
      %v1789 = vadd.f32 %v1771, %v1788
      %1790 = vmatmul.bf16.gmra.mxu0 %v555
      %v1791 = vpop.f32.mrf.mxu0
      %v1792 = vadd.f32 %v1774, %v1791
      %v1793 = vpop.f32.mrf.mxu0
      %1794 = vdwg.mxu0
      %1795 = vmatpush.bf16.msra.mxu0 0
      %1796 = vmatpush.bf16.msra.mxu0 0
      %1797 = vmatpush.bf16.msra.mxu0 0
      %1798 = vmatpush.bf16.msra.mxu0 %v1581
      %1799 = vmatpush.bf16.msra.mxu0 %v1578
      %1800 = vmatpush.bf16.msra.mxu0 %v1575
      %1801 = vmatpush.bf16.msra.mxu0 %v1572
      %1802 = vmatpush.bf16.msra.mxu0 %v1569
      %1803 = vmatmul.bf16.gmra.mxu0 %v1646
      %v1804 = vpop.f32.mrf.mxu0
      %v1805 = vadd.f32 %v1787, %v1804
      %v1806 = vpop.f32.mrf.mxu0
      %v1807 = vadd.f32 %v1789, %v1806
      %1808 = vmatmul.bf16.gmra.mxu0 %v1649
      %v1809 = vpop.f32.mrf.mxu0
      %v1810 = vadd.f32 %v1792, %v1809
      %v1811 = vpop.f32.mrf.mxu0
      %1812 = vdwg.mxu0
      %s1813 = scalar_lea.vmem %s1, 24
      %v1814 = vld [vmem:[%s1813] sm:$0xf]
      %v1815 = vld [vmem:[%s1813 + $0x4] sm:$0xf]
      %v1816 = vld [vmem:[%s1813 + $0x8] sm:$0xf]
      %v1820 = vunpack.c.l.b16 %v1814
      %v1821 = vunpack.c.l.b16 %v1815
      %v1822 = vunpack.c.l.b16 %v1816
      %v1823 = vpack.c.b16 %v1821, %v1820
      %v1824 = vpack.c.b16 %v1822, %v1822
      %v1826 = vsel %vm480, %v1823, 0
      %v1829 = vsel %vm480, %v1824, 0
      %1831 = vmatpush.bf16.msra.mxu0 0
      %1832 = vmatpush.bf16.msra.mxu0 0
      %1833 = vmatpush.bf16.msra.mxu0 %v489
      %1834 = vmatpush.bf16.msra.mxu0 %v459
      %1835 = vmatpush.bf16.msra.mxu0 %v456
      %1836 = vmatpush.bf16.msra.mxu0 %v453
      %1837 = vmatpush.bf16.msra.mxu0 %v450
      %1838 = vmatpush.bf16.msra.mxu0 %v447
      %1839 = vmatmul.bf16.gmra.mxu0 %v1826
      %v1840 = vpop.f32.mrf.mxu0
      %v1841 = vadd.f32 0.0, %v1840
      %v1842 = vpop.f32.mrf.mxu0
      %v1843 = vadd.f32 0.0, %v1842
      %1844 = vmatmul.bf16.gmra.mxu0 %v1829
      %v1845 = vpop.f32.mrf.mxu0
      %v1846 = vadd.f32 0.0, %v1845
      %v1847 = vpop.f32.mrf.mxu0
      %1848 = vdwg.mxu0
      %1849 = vmatpush.bf16.msra.mxu0 0
      %1850 = vmatpush.bf16.msra.mxu0 0
      %1851 = vmatpush.bf16.msra.mxu0 %v492
      %1852 = vmatpush.bf16.msra.mxu0 %v460
      %1853 = vmatpush.bf16.msra.mxu0 %v457
      %1854 = vmatpush.bf16.msra.mxu0 %v454
      %1855 = vmatpush.bf16.msra.mxu0 %v451
      %1856 = vmatpush.bf16.msra.mxu0 %v448
      %1857 = vmatmul.bf16.gmra.mxu0 %v1826
      %v1858 = vpop.f32.mrf.mxu0
      %v1859 = vadd.f32 0.0, %v1858
      %v1860 = vpop.f32.mrf.mxu0
      %v1861 = vadd.f32 0.0, %v1860
      %1862 = vmatmul.bf16.gmra.mxu0 %v1829
      %v1863 = vpop.f32.mrf.mxu0
      %v1864 = vadd.f32 0.0, %v1863
      %v1865 = vpop.f32.mrf.mxu0
      %1866 = vdwg.mxu0
      %1867 = vmatpush.bf16.msra.mxu0 0
      %1868 = vmatpush.bf16.msra.mxu0 0
      %1869 = vmatpush.bf16.msra.mxu0 %v495
      %1870 = vmatpush.bf16.msra.mxu0 %v461
      %1871 = vmatpush.bf16.msra.mxu0 %v458
      %1872 = vmatpush.bf16.msra.mxu0 %v455
      %1873 = vmatpush.bf16.msra.mxu0 %v452
      %1874 = vmatpush.bf16.msra.mxu0 %v449
      %1875 = vmatmul.bf16.gmra.mxu0 %v1826
      %v1876 = vpop.f32.mrf.mxu0
      %v1877 = vadd.f32 0.0, %v1876
      %v1878 = vpop.f32.mrf.mxu0
      %v1879 = vadd.f32 0.0, %v1878
      %1880 = vmatmul.bf16.gmra.mxu0 %v1829
      %v1881 = vpop.f32.mrf.mxu0
      %v1882 = vadd.f32 0.0, %v1881
      %v1883 = vpop.f32.mrf.mxu0
      %1884 = vdwg.mxu0
      %v1885 = vpack.c.bf16 %v1843, %v1841
      %v1886 = vpack.c.bf16 %v1861, %v1859
      %v1887 = vpack.c.bf16 %v1879, %v1877
      %v1888 = vpack.c.bf16 %v1846, %v1846
      %v1889 = vpack.c.bf16 %v1864, %v1864
      %v1890 = vpack.c.bf16 %v1882, %v1882
      %s1891 = scalar_lea.vmem %s2, 1008
      %v1892 = vld [vmem:[%s1891] sm:$0xff]
      %v1893 = vld [vmem:[%s1891 + $0x8] sm:$0xf]
      %v1894 = vld [vmem:[%s1891 + $0xc] sm:$0xff]
      %v1895 = vld [vmem:[%s1891 + $0x14] sm:$0xf]
      %v1896 = vld [vmem:[%s1891 + $0x18] sm:$0xff]
      %v1897 = vld [vmem:[%s1891 + $0x20] sm:$0xf]
      %v1898 = vld [vmem:[%s1891 + $0x24] sm:$0xff]
      %v1899 = vld [vmem:[%s1891 + $0x2c] sm:$0xf]
      %v1900 = vld [vmem:[%s1891 + $0x30] sm:$0xff]
      %v1901 = vld [vmem:[%s1891 + $0x38] sm:$0xf]
      %v1902 = vld [vmem:[%s1891 + $0x3c] sm:$0xff]
      %v1903 = vld [vmem:[%s1891 + $0x44] sm:$0xf]
      %v1904 = vld [vmem:[%s1891 + $0x48] sm:$0xff]
      %v1905 = vld [vmem:[%s1891 + $0x50] sm:$0xf]
      %v1906 = vld [vmem:[%s1891 + $0x54] sm:$0xff]
      %v1907 = vld [vmem:[%s1891 + $0x5c] sm:$0xf]
      %v1908 = vld [vmem:[%s1891 + $0x60] sm:$0xff]
      %v1909 = vld [vmem:[%s1891 + $0x68] sm:$0xf]
      %v1910 = vld [vmem:[%s1891 + $0x6c] sm:$0xff]
      %v1911 = vld [vmem:[%s1891 + $0x74] sm:$0xf]
      %v1912 = vld [vmem:[%s1891 + $0x78] sm:$0xff]
      %v1913 = vld [vmem:[%s1891 + $0x80] sm:$0xf]
      %v1914 = vld [vmem:[%s1891 + $0x84] sm:$0xff]
      %v1915 = vld [vmem:[%s1891 + $0x8c] sm:$0xf]
      %v1916 = vld [vmem:[%s1891 + $0x90] sm:$0xff]
      %v1917 = vld [vmem:[%s1891 + $0x98] sm:$0xf]
      %v1918 = vld [vmem:[%s1891 + $0x9c] sm:$0xff]
      %v1919 = vld [vmem:[%s1891 + $0xa4] sm:$0xf]
      %v1920 = vld [vmem:[%s1891 + $0xa8] sm:$0xff]
      %v1921 = vld [vmem:[%s1891 + $0xb0] sm:$0xf]
      %v1922 = vld [vmem:[%s1891 + $0xb4] sm:$0xff]
      %v1923 = vld [vmem:[%s1891 + $0xbc] sm:$0xf]
      %v1924 = vld [vmem:[%s1891 + $0xc0] sm:$0xff]
      %v1925 = vld [vmem:[%s1891 + $0xc8] sm:$0xf]
      %v1926 = vld [vmem:[%s1891 + $0xcc] sm:$0xff]
      %v1927 = vld [vmem:[%s1891 + $0xd4] sm:$0xf]
      %v1928 = vld [vmem:[%s1891 + $0xd8] sm:$0xff]
      %v1929 = vld [vmem:[%s1891 + $0xe0] sm:$0xf]
      %v1930 = vld [vmem:[%s1891 + $0xe4] sm:$0xff]
      %v1931 = vld [vmem:[%s1891 + $0xec] sm:$0xf]
      %v1932 = vld [vmem:[%s1891 + $0xf0] sm:$0xff]
      %v1933 = vld [vmem:[%s1891 + $0xf8] sm:$0xf]
      %v1934 = vld [vmem:[%s1891 + $0xfc] sm:$0xff]
      %v1935 = vld [vmem:[%s1891 + $0x104] sm:$0xf]
      %v1936 = vld [vmem:[%s1891 + $0x108] sm:$0xff]
      %v1937 = vld [vmem:[%s1891 + $0x110] sm:$0xf]
      %v1938 = vld [vmem:[%s1891 + $0x114] sm:$0xff]
      %v1939 = vld [vmem:[%s1891 + $0x11c] sm:$0xf]
      %v1940 = vld [vmem:[%s1891 + $0x120] sm:$0xff]
      %v1941 = vld [vmem:[%s1891 + $0x128] sm:$0xf]
      %v1942 = vld [vmem:[%s1891 + $0x12c] sm:$0xff]
      %v1943 = vld [vmem:[%s1891 + $0x134] sm:$0xf]
      %v1944 = vld [vmem:[%s1891 + $0x138] sm:$0xff]
      %v1945 = vld [vmem:[%s1891 + $0x140] sm:$0xf]
      %v1946 = vld [vmem:[%s1891 + $0x144] sm:$0xff]
      %v1947 = vld [vmem:[%s1891 + $0x14c] sm:$0xf]
      %v1948 = vld [vmem:[%s1891 + $0x150] sm:$0xff]
      %v1949 = vld [vmem:[%s1891 + $0x158] sm:$0xf]
      %v1950 = vld [vmem:[%s1891 + $0x15c] sm:$0xff]
      %v1951 = vld [vmem:[%s1891 + $0x164] sm:$0xf]
      %v1952 = vld [vmem:[%s1891 + $0x168] sm:$0xff]
      %v1953 = vld [vmem:[%s1891 + $0x170] sm:$0xf]
      %v1954 = vld [vmem:[%s1891 + $0x174] sm:$0xff]
      %v1955 = vld [vmem:[%s1891 + $0x17c] sm:$0xf]
      %v1956 = vld [vmem:[%s1891 + $0x180] sm:$0xff]
      %v1957 = vld [vmem:[%s1891 + $0x188] sm:$0xf]
      %v1958 = vld [vmem:[%s1891 + $0x18c] sm:$0xff]
      %v1959 = vld [vmem:[%s1891 + $0x194] sm:$0xf]
      %v1960 = vld [vmem:[%s1891 + $0x198] sm:$0xff]
      %v1961 = vld [vmem:[%s1891 + $0x1a0] sm:$0xf]
      %v1962 = vld [vmem:[%s1891 + $0x1a4] sm:$0xff]
      %v1963 = vld [vmem:[%s1891 + $0x1ac] sm:$0xf]
      %v1964 = vld [vmem:[%s1891 + $0x1b0] sm:$0xff]
      %v1965 = vld [vmem:[%s1891 + $0x1b8] sm:$0xf]
      %v1966 = vld [vmem:[%s1891 + $0x1bc] sm:$0xff]
      %v1967 = vld [vmem:[%s1891 + $0x1c4] sm:$0xf]
      %v1968 = vld [vmem:[%s1891 + $0x1c8] sm:$0xff]
      %v1969 = vld [vmem:[%s1891 + $0x1d0] sm:$0xf]
      %v1970 = vld [vmem:[%s1891 + $0x1d4] sm:$0xff]
      %v1971 = vld [vmem:[%s1891 + $0x1dc] sm:$0xf]
      %v1972 = vld [vmem:[%s1891 + $0x1e0] sm:$0xff]
      %v1973 = vld [vmem:[%s1891 + $0x1e8] sm:$0xf]
      %v1974 = vld [vmem:[%s1891 + $0x1ec] sm:$0xff]
      %v1975 = vld [vmem:[%s1891 + $0x1f4] sm:$0xf]
      %v2060 = vunpack.c.l.b16 %v1892
      %v2061 = vunpack.c.h.b16 %v1892
      %v2062 = vunpack.c.l.b16 %v1893
      %v2063 = vunpack.c.l.b16 %v1894
      %v2064 = vunpack.c.h.b16 %v1894
      %v2065 = vunpack.c.l.b16 %v1895
      %v2066 = vunpack.c.l.b16 %v1896
      %v2067 = vunpack.c.h.b16 %v1896
      %v2068 = vunpack.c.l.b16 %v1897
      %v2069 = vunpack.c.l.b16 %v1898
      %v2070 = vunpack.c.h.b16 %v1898
      %v2071 = vunpack.c.l.b16 %v1899
      %v2072 = vunpack.c.l.b16 %v1900
      %v2073 = vunpack.c.h.b16 %v1900
      %v2074 = vunpack.c.l.b16 %v1901
      %v2075 = vunpack.c.l.b16 %v1902
      %v2076 = vunpack.c.h.b16 %v1902
      %v2077 = vunpack.c.l.b16 %v1903
      %v2078 = vunpack.c.l.b16 %v1904
      %v2079 = vunpack.c.h.b16 %v1904
      %v2080 = vunpack.c.l.b16 %v1905
      %v2081 = vunpack.c.l.b16 %v1906
      %v2082 = vunpack.c.h.b16 %v1906
      %v2083 = vunpack.c.l.b16 %v1907
      %v2084 = vunpack.c.l.b16 %v1908
      %v2085 = vunpack.c.h.b16 %v1908
      %v2086 = vunpack.c.l.b16 %v1909
      %v2087 = vunpack.c.l.b16 %v1910
      %v2088 = vunpack.c.h.b16 %v1910
      %v2089 = vunpack.c.l.b16 %v1911
      %v2090 = vunpack.c.l.b16 %v1912
      %v2091 = vunpack.c.h.b16 %v1912
      %v2092 = vunpack.c.l.b16 %v1913
      %v2093 = vunpack.c.l.b16 %v1914
      %v2094 = vunpack.c.h.b16 %v1914
      %v2095 = vunpack.c.l.b16 %v1915
      %v2096 = vunpack.c.l.b16 %v1916
      %v2097 = vunpack.c.h.b16 %v1916
      %v2098 = vunpack.c.l.b16 %v1917
      %v2099 = vunpack.c.l.b16 %v1918
      %v2100 = vunpack.c.h.b16 %v1918
      %v2101 = vunpack.c.l.b16 %v1919
      %v2102 = vunpack.c.l.b16 %v1920
      %v2103 = vunpack.c.h.b16 %v1920
      %v2104 = vunpack.c.l.b16 %v1921
      %v2105 = vunpack.c.l.b16 %v1922
      %v2106 = vunpack.c.h.b16 %v1922
      %v2107 = vunpack.c.l.b16 %v1923
      %v2108 = vunpack.c.l.b16 %v1924
      %v2109 = vunpack.c.h.b16 %v1924
      %v2110 = vunpack.c.l.b16 %v1925
      %v2111 = vunpack.c.l.b16 %v1926
      %v2112 = vunpack.c.h.b16 %v1926
      %v2113 = vunpack.c.l.b16 %v1927
      %v2114 = vunpack.c.l.b16 %v1928
      %v2115 = vunpack.c.h.b16 %v1928
      %v2116 = vunpack.c.l.b16 %v1929
      %v2117 = vunpack.c.l.b16 %v1930
      %v2118 = vunpack.c.h.b16 %v1930
      %v2119 = vunpack.c.l.b16 %v1931
      %v2120 = vunpack.c.l.b16 %v1932
      %v2121 = vunpack.c.h.b16 %v1932
      %v2122 = vunpack.c.l.b16 %v1933
      %v2123 = vunpack.c.l.b16 %v1934
      %v2124 = vunpack.c.h.b16 %v1934
      %v2125 = vunpack.c.l.b16 %v1935
      %v2126 = vunpack.c.l.b16 %v1936
      %v2127 = vunpack.c.h.b16 %v1936
      %v2128 = vunpack.c.l.b16 %v1937
      %v2129 = vunpack.c.l.b16 %v1938
      %v2130 = vunpack.c.h.b16 %v1938
      %v2131 = vunpack.c.l.b16 %v1939
      %v2132 = vunpack.c.l.b16 %v1940
      %v2133 = vunpack.c.h.b16 %v1940
      %v2134 = vunpack.c.l.b16 %v1941
      %v2135 = vunpack.c.l.b16 %v1942
      %v2136 = vunpack.c.h.b16 %v1942
      %v2137 = vunpack.c.l.b16 %v1943
      %v2138 = vunpack.c.l.b16 %v1944
      %v2139 = vunpack.c.h.b16 %v1944
      %v2140 = vunpack.c.l.b16 %v1945
      %v2141 = vunpack.c.l.b16 %v1946
      %v2142 = vunpack.c.h.b16 %v1946
      %v2143 = vunpack.c.l.b16 %v1947
      %v2144 = vunpack.c.l.b16 %v1948
      %v2145 = vunpack.c.h.b16 %v1948
      %v2146 = vunpack.c.l.b16 %v1949
      %v2147 = vunpack.c.l.b16 %v1950
      %v2148 = vunpack.c.h.b16 %v1950
      %v2149 = vunpack.c.l.b16 %v1951
      %v2150 = vunpack.c.l.b16 %v1952
      %v2151 = vunpack.c.h.b16 %v1952
      %v2152 = vunpack.c.l.b16 %v1953
      %v2153 = vunpack.c.l.b16 %v1954
      %v2154 = vunpack.c.h.b16 %v1954
      %v2155 = vunpack.c.l.b16 %v1955
      %v2156 = vunpack.c.l.b16 %v1956
      %v2157 = vunpack.c.h.b16 %v1956
      %v2158 = vunpack.c.l.b16 %v1957
      %v2159 = vunpack.c.l.b16 %v1958
      %v2160 = vunpack.c.h.b16 %v1958
      %v2161 = vunpack.c.l.b16 %v1959
      %v2162 = vunpack.c.l.b16 %v1960
      %v2163 = vunpack.c.h.b16 %v1960
      %v2164 = vunpack.c.l.b16 %v1961
      %v2165 = vunpack.c.l.b16 %v1962
      %v2166 = vunpack.c.h.b16 %v1962
      %v2167 = vunpack.c.l.b16 %v1963
      %v2168 = vunpack.c.l.b16 %v1964
      %v2169 = vunpack.c.h.b16 %v1964
      %v2170 = vunpack.c.l.b16 %v1965
      %v2171 = vunpack.c.l.b16 %v1966
      %v2172 = vunpack.c.h.b16 %v1966
      %v2173 = vunpack.c.l.b16 %v1967
      %v2174 = vunpack.c.l.b16 %v1968
      %v2175 = vunpack.c.h.b16 %v1968
      %v2176 = vunpack.c.l.b16 %v1969
      %v2177 = vunpack.c.l.b16 %v1970
      %v2178 = vunpack.c.h.b16 %v1970
      %v2179 = vunpack.c.l.b16 %v1971
      %v2180 = vunpack.c.l.b16 %v1972
      %v2181 = vunpack.c.h.b16 %v1972
      %v2182 = vunpack.c.l.b16 %v1973
      %v2183 = vunpack.c.l.b16 %v1974
      %v2184 = vunpack.c.h.b16 %v1974
      %v2185 = vunpack.c.l.b16 %v1975
      %v2186 = vpack.c.b16 %v2063, %v2060
      %v2187 = vpack.c.b16 %v2064, %v2061
      %v2188 = vpack.c.b16 %v2065, %v2062
      %v2189 = vpack.c.b16 %v2069, %v2066
      %v2190 = vpack.c.b16 %v2070, %v2067
      %v2191 = vpack.c.b16 %v2071, %v2068
      %v2192 = vpack.c.b16 %v2075, %v2072
      %v2193 = vpack.c.b16 %v2076, %v2073
      %v2194 = vpack.c.b16 %v2077, %v2074
      %v2195 = vpack.c.b16 %v2081, %v2078
      %v2196 = vpack.c.b16 %v2082, %v2079
      %v2197 = vpack.c.b16 %v2083, %v2080
      %v2198 = vpack.c.b16 %v2087, %v2084
      %v2199 = vpack.c.b16 %v2088, %v2085
      %v2200 = vpack.c.b16 %v2089, %v2086
      %v2201 = vpack.c.b16 %v2093, %v2090
      %v2202 = vpack.c.b16 %v2094, %v2091
      %v2203 = vpack.c.b16 %v2095, %v2092
      %v2204 = vpack.c.b16 %v2099, %v2096
      %v2205 = vpack.c.b16 %v2100, %v2097
      %v2206 = vpack.c.b16 %v2101, %v2098
      %v2207 = vpack.c.b16 %v2105, %v2102
      %v2208 = vpack.c.b16 %v2106, %v2103
      %v2209 = vpack.c.b16 %v2107, %v2104
      %v2210 = vpack.c.b16 %v2111, %v2108
      %v2211 = vpack.c.b16 %v2112, %v2109
      %v2212 = vpack.c.b16 %v2113, %v2110
      %v2213 = vpack.c.b16 %v2117, %v2114
      %v2214 = vpack.c.b16 %v2118, %v2115
      %v2215 = vpack.c.b16 %v2119, %v2116
      %v2216 = vpack.c.b16 %v2123, %v2120
      %v2217 = vpack.c.b16 %v2124, %v2121
      %v2218 = vpack.c.b16 %v2125, %v2122
      %v2219 = vpack.c.b16 %v2129, %v2126
      %v2220 = vpack.c.b16 %v2130, %v2127
      %v2221 = vpack.c.b16 %v2131, %v2128
      %v2222 = vpack.c.b16 %v2135, %v2132
      %v2223 = vpack.c.b16 %v2136, %v2133
      %v2224 = vpack.c.b16 %v2137, %v2134
      %v2225 = vpack.c.b16 %v2141, %v2138
      %v2226 = vpack.c.b16 %v2142, %v2139
      %v2227 = vpack.c.b16 %v2143, %v2140
      %v2228 = vpack.c.b16 %v2147, %v2144
      %v2229 = vpack.c.b16 %v2148, %v2145
      %v2230 = vpack.c.b16 %v2149, %v2146
      %v2231 = vpack.c.b16 %v2153, %v2150
      %v2232 = vpack.c.b16 %v2154, %v2151
      %v2233 = vpack.c.b16 %v2155, %v2152
      %v2234 = vpack.c.b16 %v2159, %v2156
      %v2235 = vpack.c.b16 %v2160, %v2157
      %v2236 = vpack.c.b16 %v2161, %v2158
      %v2237 = vpack.c.b16 %v2165, %v2162
      %v2238 = vpack.c.b16 %v2166, %v2163
      %v2239 = vpack.c.b16 %v2167, %v2164
      %v2240 = vpack.c.b16 %v2171, %v2168
      %v2241 = vpack.c.b16 %v2172, %v2169
      %v2242 = vpack.c.b16 %v2173, %v2170
      %v2243 = vpack.c.b16 %v2177, %v2174
      %v2244 = vpack.c.b16 %v2178, %v2175
      %v2245 = vpack.c.b16 %v2179, %v2176
      %v2246 = vpack.c.b16 %v2183, %v2180
      %v2247 = vpack.c.b16 %v2184, %v2181
      %v2248 = vpack.c.b16 %v2185, %v2182
      %v2313 = vsel %vm1140, %v1887, 0
      %v2316 = vsel %vm1140, %v1890, 0
      %2318 = vmatpush.bf16.msra.mxu0 %v2207
      %2319 = vmatpush.bf16.msra.mxu0 %v2204
      %2320 = vmatpush.bf16.msra.mxu0 %v2201
      %2321 = vmatpush.bf16.msra.mxu0 %v2198
      %2322 = vmatpush.bf16.msra.mxu0 %v2195
      %2323 = vmatpush.bf16.msra.mxu0 %v2192
      %2324 = vmatpush.bf16.msra.mxu0 %v2189
      %2325 = vmatpush.bf16.msra.mxu0 %v2186
      %2326 = vmatmul.bf16.gmra.mxu0 %v1885
      %v2327 = vpop.f32.mrf.mxu0
      %v2328 = vadd.f32 0.0, %v2327
      %v2329 = vpop.f32.mrf.mxu0
      %v2330 = vadd.f32 0.0, %v2329
      %2331 = vmatmul.bf16.gmra.mxu0 %v1888
      %v2332 = vpop.f32.mrf.mxu0
      %v2333 = vadd.f32 0.0, %v2332
      %v2334 = vpop.f32.mrf.mxu0
      %2335 = vdwg.mxu0
      %2336 = vmatpush.bf16.msra.mxu0 %v2231
      %2337 = vmatpush.bf16.msra.mxu0 %v2228
      %2338 = vmatpush.bf16.msra.mxu0 %v2225
      %2339 = vmatpush.bf16.msra.mxu0 %v2222
      %2340 = vmatpush.bf16.msra.mxu0 %v2219
      %2341 = vmatpush.bf16.msra.mxu0 %v2216
      %2342 = vmatpush.bf16.msra.mxu0 %v2213
      %2343 = vmatpush.bf16.msra.mxu0 %v2210
      %2344 = vmatmul.bf16.gmra.mxu0 %v1886
      %v2345 = vpop.f32.mrf.mxu0
      %v2346 = vadd.f32 %v2328, %v2345
      %v2347 = vpop.f32.mrf.mxu0
      %v2348 = vadd.f32 %v2330, %v2347
      %2349 = vmatmul.bf16.gmra.mxu0 %v1889
      %v2350 = vpop.f32.mrf.mxu0
      %v2351 = vadd.f32 %v2333, %v2350
      %v2352 = vpop.f32.mrf.mxu0
      %2353 = vdwg.mxu0
      %2354 = vmatpush.bf16.msra.mxu0 0
      %2355 = vmatpush.bf16.msra.mxu0 0
      %2356 = vmatpush.bf16.msra.mxu0 0
      %2357 = vmatpush.bf16.msra.mxu0 %v2246
      %2358 = vmatpush.bf16.msra.mxu0 %v2243
      %2359 = vmatpush.bf16.msra.mxu0 %v2240
      %2360 = vmatpush.bf16.msra.mxu0 %v2237
      %2361 = vmatpush.bf16.msra.mxu0 %v2234
      %2362 = vmatmul.bf16.gmra.mxu0 %v2313
      %v2363 = vpop.f32.mrf.mxu0
      %v2364 = vadd.f32 %v2346, %v2363
      %v2365 = vpop.f32.mrf.mxu0
      %v2366 = vadd.f32 %v2348, %v2365
      %2367 = vmatmul.bf16.gmra.mxu0 %v2316
      %v2368 = vpop.f32.mrf.mxu0
      %v2369 = vadd.f32 %v2351, %v2368
      %v2370 = vpop.f32.mrf.mxu0
      %2371 = vdwg.mxu0
      %2372 = vmatpush.bf16.msra.mxu0 %v2208
      %2373 = vmatpush.bf16.msra.mxu0 %v2205
      %2374 = vmatpush.bf16.msra.mxu0 %v2202
      %2375 = vmatpush.bf16.msra.mxu0 %v2199
      %2376 = vmatpush.bf16.msra.mxu0 %v2196
      %2377 = vmatpush.bf16.msra.mxu0 %v2193
      %2378 = vmatpush.bf16.msra.mxu0 %v2190
      %2379 = vmatpush.bf16.msra.mxu0 %v2187
      %2380 = vmatmul.bf16.gmra.mxu0 %v1885
      %v2381 = vpop.f32.mrf.mxu0
      %v2382 = vadd.f32 0.0, %v2381
      %v2383 = vpop.f32.mrf.mxu0
      %v2384 = vadd.f32 0.0, %v2383
      %2385 = vmatmul.bf16.gmra.mxu0 %v1888
      %v2386 = vpop.f32.mrf.mxu0
      %v2387 = vadd.f32 0.0, %v2386
      %v2388 = vpop.f32.mrf.mxu0
      %2389 = vdwg.mxu0
      %2390 = vmatpush.bf16.msra.mxu0 %v2232
      %2391 = vmatpush.bf16.msra.mxu0 %v2229
      %2392 = vmatpush.bf16.msra.mxu0 %v2226
      %2393 = vmatpush.bf16.msra.mxu0 %v2223
      %2394 = vmatpush.bf16.msra.mxu0 %v2220
      %2395 = vmatpush.bf16.msra.mxu0 %v2217
      %2396 = vmatpush.bf16.msra.mxu0 %v2214
      %2397 = vmatpush.bf16.msra.mxu0 %v2211
      %2398 = vmatmul.bf16.gmra.mxu0 %v1886
      %v2399 = vpop.f32.mrf.mxu0
      %v2400 = vadd.f32 %v2382, %v2399
      %v2401 = vpop.f32.mrf.mxu0
      %v2402 = vadd.f32 %v2384, %v2401
      %2403 = vmatmul.bf16.gmra.mxu0 %v1889
      %v2404 = vpop.f32.mrf.mxu0
      %v2405 = vadd.f32 %v2387, %v2404
      %v2406 = vpop.f32.mrf.mxu0
      %2407 = vdwg.mxu0
      %2408 = vmatpush.bf16.msra.mxu0 0
      %2409 = vmatpush.bf16.msra.mxu0 0
      %2410 = vmatpush.bf16.msra.mxu0 0
      %2411 = vmatpush.bf16.msra.mxu0 %v2247
      %2412 = vmatpush.bf16.msra.mxu0 %v2244
      %2413 = vmatpush.bf16.msra.mxu0 %v2241
      %2414 = vmatpush.bf16.msra.mxu0 %v2238
      %2415 = vmatpush.bf16.msra.mxu0 %v2235
      %2416 = vmatmul.bf16.gmra.mxu0 %v2313
      %v2417 = vpop.f32.mrf.mxu0
      %v2418 = vadd.f32 %v2400, %v2417
      %v2419 = vpop.f32.mrf.mxu0
      %v2420 = vadd.f32 %v2402, %v2419
      %2421 = vmatmul.bf16.gmra.mxu0 %v2316
      %v2422 = vpop.f32.mrf.mxu0
      %v2423 = vadd.f32 %v2405, %v2422
      %v2424 = vpop.f32.mrf.mxu0
      %2425 = vdwg.mxu0
      %2426 = vmatpush.bf16.msra.mxu0 %v2209
      %2427 = vmatpush.bf16.msra.mxu0 %v2206
      %2428 = vmatpush.bf16.msra.mxu0 %v2203
      %2429 = vmatpush.bf16.msra.mxu0 %v2200
      %2430 = vmatpush.bf16.msra.mxu0 %v2197
      %2431 = vmatpush.bf16.msra.mxu0 %v2194
      %2432 = vmatpush.bf16.msra.mxu0 %v2191
      %2433 = vmatpush.bf16.msra.mxu0 %v2188
      %2434 = vmatmul.bf16.gmra.mxu0 %v1885
      %v2435 = vpop.f32.mrf.mxu0
      %v2436 = vadd.f32 0.0, %v2435
      %v2437 = vpop.f32.mrf.mxu0
      %v2438 = vadd.f32 0.0, %v2437
      %2439 = vmatmul.bf16.gmra.mxu0 %v1888
      %v2440 = vpop.f32.mrf.mxu0
      %v2441 = vadd.f32 0.0, %v2440
      %v2442 = vpop.f32.mrf.mxu0
      %2443 = vdwg.mxu0
      %2444 = vmatpush.bf16.msra.mxu0 %v2233
      %2445 = vmatpush.bf16.msra.mxu0 %v2230
      %2446 = vmatpush.bf16.msra.mxu0 %v2227
      %2447 = vmatpush.bf16.msra.mxu0 %v2224
      %2448 = vmatpush.bf16.msra.mxu0 %v2221
      %2449 = vmatpush.bf16.msra.mxu0 %v2218
      %2450 = vmatpush.bf16.msra.mxu0 %v2215
      %2451 = vmatpush.bf16.msra.mxu0 %v2212
      %2452 = vmatmul.bf16.gmra.mxu0 %v1886
      %v2453 = vpop.f32.mrf.mxu0
      %v2454 = vadd.f32 %v2436, %v2453
      %v2455 = vpop.f32.mrf.mxu0
      %v2456 = vadd.f32 %v2438, %v2455
      %2457 = vmatmul.bf16.gmra.mxu0 %v1889
      %v2458 = vpop.f32.mrf.mxu0
      %v2459 = vadd.f32 %v2441, %v2458
      %v2460 = vpop.f32.mrf.mxu0
      %2461 = vdwg.mxu0
      %2462 = vmatpush.bf16.msra.mxu0 0
      %2463 = vmatpush.bf16.msra.mxu0 0
      %2464 = vmatpush.bf16.msra.mxu0 0
      %2465 = vmatpush.bf16.msra.mxu0 %v2248
      %2466 = vmatpush.bf16.msra.mxu0 %v2245
      %2467 = vmatpush.bf16.msra.mxu0 %v2242
      %2468 = vmatpush.bf16.msra.mxu0 %v2239
      %2469 = vmatpush.bf16.msra.mxu0 %v2236
      %2470 = vmatmul.bf16.gmra.mxu0 %v2313
      %v2471 = vpop.f32.mrf.mxu0
      %v2472 = vadd.f32 %v2454, %v2471
      %v2473 = vpop.f32.mrf.mxu0
      %v2474 = vadd.f32 %v2456, %v2473
      %2475 = vmatmul.bf16.gmra.mxu0 %v2316
      %v2476 = vpop.f32.mrf.mxu0
      %v2477 = vadd.f32 %v2459, %v2476
      %v2478 = vpop.f32.mrf.mxu0
      %2479 = vdwg.mxu0
      %v2480 = vadd.f32 %v1697, %v2364
      %v2481 = vadd.f32 %v1751, %v2418
      %v2482 = vadd.f32 %v1805, %v2472
      %v2483 = vadd.f32 %v1699, %v2366
      %v2484 = vadd.f32 %v1753, %v2420
      %v2485 = vadd.f32 %v1807, %v2474
      %v2486 = vadd.f32 %v1702, %v2369
      %v2487 = vadd.f32 %v1756, %v2423
      %v2488 = vadd.f32 %v1810, %v2477
      %s2489 = scalar_lea.vmem %s1, 36
      %v2490 = vld [vmem:[%s2489] sm:$0xf]
      %v2491 = vld [vmem:[%s2489 + $0x4] sm:$0xf]
      %v2492 = vld [vmem:[%s2489 + $0x8] sm:$0xf]
      %v2496 = vunpack.c.l.b16 %v2490
      %v2497 = vunpack.c.l.b16 %v2491
      %v2498 = vunpack.c.l.b16 %v2492
      %v2499 = vpack.c.b16 %v2497, %v2496
      %v2500 = vpack.c.b16 %v2498, %v2498
      %v2502 = vsel %vm480, %v2499, 0
      %v2505 = vsel %vm480, %v2500, 0
      %2507 = vmatpush.bf16.msra.mxu0 0
      %2508 = vmatpush.bf16.msra.mxu0 0
      %2509 = vmatpush.bf16.msra.mxu0 %v489
      %2510 = vmatpush.bf16.msra.mxu0 %v459
      %2511 = vmatpush.bf16.msra.mxu0 %v456
      %2512 = vmatpush.bf16.msra.mxu0 %v453
      %2513 = vmatpush.bf16.msra.mxu0 %v450
      %2514 = vmatpush.bf16.msra.mxu0 %v447
      %2515 = vmatmul.bf16.gmra.mxu0 %v2502
      %v2516 = vpop.f32.mrf.mxu0
      %v2517 = vadd.f32 0.0, %v2516
      %v2518 = vpop.f32.mrf.mxu0
      %v2519 = vadd.f32 0.0, %v2518
      %2520 = vmatmul.bf16.gmra.mxu0 %v2505
      %v2521 = vpop.f32.mrf.mxu0
      %v2522 = vadd.f32 0.0, %v2521
      %v2523 = vpop.f32.mrf.mxu0
      %2524 = vdwg.mxu0
      %2525 = vmatpush.bf16.msra.mxu0 0
      %2526 = vmatpush.bf16.msra.mxu0 0
      %2527 = vmatpush.bf16.msra.mxu0 %v492
      %2528 = vmatpush.bf16.msra.mxu0 %v460
      %2529 = vmatpush.bf16.msra.mxu0 %v457
      %2530 = vmatpush.bf16.msra.mxu0 %v454
      %2531 = vmatpush.bf16.msra.mxu0 %v451
      %2532 = vmatpush.bf16.msra.mxu0 %v448
      %2533 = vmatmul.bf16.gmra.mxu0 %v2502
      %v2534 = vpop.f32.mrf.mxu0
      %v2535 = vadd.f32 0.0, %v2534
      %v2536 = vpop.f32.mrf.mxu0
      %v2537 = vadd.f32 0.0, %v2536
      %2538 = vmatmul.bf16.gmra.mxu0 %v2505
      %v2539 = vpop.f32.mrf.mxu0
      %v2540 = vadd.f32 0.0, %v2539
      %v2541 = vpop.f32.mrf.mxu0
      %2542 = vdwg.mxu0
      %2543 = vmatpush.bf16.msra.mxu0 0
      %2544 = vmatpush.bf16.msra.mxu0 0
      %2545 = vmatpush.bf16.msra.mxu0 %v495
      %2546 = vmatpush.bf16.msra.mxu0 %v461
      %2547 = vmatpush.bf16.msra.mxu0 %v458
      %2548 = vmatpush.bf16.msra.mxu0 %v455
      %2549 = vmatpush.bf16.msra.mxu0 %v452
      %2550 = vmatpush.bf16.msra.mxu0 %v449
      %2551 = vmatmul.bf16.gmra.mxu0 %v2502
      %v2552 = vpop.f32.mrf.mxu0
      %v2553 = vadd.f32 0.0, %v2552
      %v2554 = vpop.f32.mrf.mxu0
      %v2555 = vadd.f32 0.0, %v2554
      %2556 = vmatmul.bf16.gmra.mxu0 %v2505
      %v2557 = vpop.f32.mrf.mxu0
      %v2558 = vadd.f32 0.0, %v2557
      %v2559 = vpop.f32.mrf.mxu0
      %2560 = vdwg.mxu0
      %v2561 = vpack.c.bf16 %v2519, %v2517
      %v2562 = vpack.c.bf16 %v2537, %v2535
      %v2563 = vpack.c.bf16 %v2555, %v2553
      %v2564 = vpack.c.bf16 %v2522, %v2522
      %v2565 = vpack.c.bf16 %v2540, %v2540
      %v2566 = vpack.c.bf16 %v2558, %v2558
      %s2567 = scalar_lea.vmem %s2, 1512
      %v2568 = vld [vmem:[%s2567] sm:$0xff]
      %v2569 = vld [vmem:[%s2567 + $0x8] sm:$0xf]
      %v2570 = vld [vmem:[%s2567 + $0xc] sm:$0xff]
      %v2571 = vld [vmem:[%s2567 + $0x14] sm:$0xf]
      %v2572 = vld [vmem:[%s2567 + $0x18] sm:$0xff]
      %v2573 = vld [vmem:[%s2567 + $0x20] sm:$0xf]
      %v2574 = vld [vmem:[%s2567 + $0x24] sm:$0xff]
      %v2575 = vld [vmem:[%s2567 + $0x2c] sm:$0xf]
      %v2576 = vld [vmem:[%s2567 + $0x30] sm:$0xff]
      %v2577 = vld [vmem:[%s2567 + $0x38] sm:$0xf]
      %v2578 = vld [vmem:[%s2567 + $0x3c] sm:$0xff]
      %v2579 = vld [vmem:[%s2567 + $0x44] sm:$0xf]
      %v2580 = vld [vmem:[%s2567 + $0x48] sm:$0xff]
      %v2581 = vld [vmem:[%s2567 + $0x50] sm:$0xf]
      %v2582 = vld [vmem:[%s2567 + $0x54] sm:$0xff]
      %v2583 = vld [vmem:[%s2567 + $0x5c] sm:$0xf]
      %v2584 = vld [vmem:[%s2567 + $0x60] sm:$0xff]
      %v2585 = vld [vmem:[%s2567 + $0x68] sm:$0xf]
      %v2586 = vld [vmem:[%s2567 + $0x6c] sm:$0xff]
      %v2587 = vld [vmem:[%s2567 + $0x74] sm:$0xf]
      %v2588 = vld [vmem:[%s2567 + $0x78] sm:$0xff]
      %v2589 = vld [vmem:[%s2567 + $0x80] sm:$0xf]
      %v2590 = vld [vmem:[%s2567 + $0x84] sm:$0xff]
      %v2591 = vld [vmem:[%s2567 + $0x8c] sm:$0xf]
      %v2592 = vld [vmem:[%s2567 + $0x90] sm:$0xff]
      %v2593 = vld [vmem:[%s2567 + $0x98] sm:$0xf]
      %v2594 = vld [vmem:[%s2567 + $0x9c] sm:$0xff]
      %v2595 = vld [vmem:[%s2567 + $0xa4] sm:$0xf]
      %v2596 = vld [vmem:[%s2567 + $0xa8] sm:$0xff]
      %v2597 = vld [vmem:[%s2567 + $0xb0] sm:$0xf]
      %v2598 = vld [vmem:[%s2567 + $0xb4] sm:$0xff]
      %v2599 = vld [vmem:[%s2567 + $0xbc] sm:$0xf]
      %v2600 = vld [vmem:[%s2567 + $0xc0] sm:$0xff]
      %v2601 = vld [vmem:[%s2567 + $0xc8] sm:$0xf]
      %v2602 = vld [vmem:[%s2567 + $0xcc] sm:$0xff]
      %v2603 = vld [vmem:[%s2567 + $0xd4] sm:$0xf]
      %v2604 = vld [vmem:[%s2567 + $0xd8] sm:$0xff]
      %v2605 = vld [vmem:[%s2567 + $0xe0] sm:$0xf]
      %v2606 = vld [vmem:[%s2567 + $0xe4] sm:$0xff]
      %v2607 = vld [vmem:[%s2567 + $0xec] sm:$0xf]
      %v2608 = vld [vmem:[%s2567 + $0xf0] sm:$0xff]
      %v2609 = vld [vmem:[%s2567 + $0xf8] sm:$0xf]
      %v2610 = vld [vmem:[%s2567 + $0xfc] sm:$0xff]
      %v2611 = vld [vmem:[%s2567 + $0x104] sm:$0xf]
      %v2612 = vld [vmem:[%s2567 + $0x108] sm:$0xff]
      %v2613 = vld [vmem:[%s2567 + $0x110] sm:$0xf]
      %v2614 = vld [vmem:[%s2567 + $0x114] sm:$0xff]
      %v2615 = vld [vmem:[%s2567 + $0x11c] sm:$0xf]
      %v2616 = vld [vmem:[%s2567 + $0x120] sm:$0xff]
      %v2617 = vld [vmem:[%s2567 + $0x128] sm:$0xf]
      %v2618 = vld [vmem:[%s2567 + $0x12c] sm:$0xff]
      %v2619 = vld [vmem:[%s2567 + $0x134] sm:$0xf]
      %v2620 = vld [vmem:[%s2567 + $0x138] sm:$0xff]
      %v2621 = vld [vmem:[%s2567 + $0x140] sm:$0xf]
      %v2622 = vld [vmem:[%s2567 + $0x144] sm:$0xff]
      %v2623 = vld [vmem:[%s2567 + $0x14c] sm:$0xf]
      %v2624 = vld [vmem:[%s2567 + $0x150] sm:$0xff]
      %v2625 = vld [vmem:[%s2567 + $0x158] sm:$0xf]
      %v2626 = vld [vmem:[%s2567 + $0x15c] sm:$0xff]
      %v2627 = vld [vmem:[%s2567 + $0x164] sm:$0xf]
      %v2628 = vld [vmem:[%s2567 + $0x168] sm:$0xff]
      %v2629 = vld [vmem:[%s2567 + $0x170] sm:$0xf]
      %v2630 = vld [vmem:[%s2567 + $0x174] sm:$0xff]
      %v2631 = vld [vmem:[%s2567 + $0x17c] sm:$0xf]
      %v2632 = vld [vmem:[%s2567 + $0x180] sm:$0xff]
      %v2633 = vld [vmem:[%s2567 + $0x188] sm:$0xf]
      %v2634 = vld [vmem:[%s2567 + $0x18c] sm:$0xff]
      %v2635 = vld [vmem:[%s2567 + $0x194] sm:$0xf]
      %v2636 = vld [vmem:[%s2567 + $0x198] sm:$0xff]
      %v2637 = vld [vmem:[%s2567 + $0x1a0] sm:$0xf]
      %v2638 = vld [vmem:[%s2567 + $0x1a4] sm:$0xff]
      %v2639 = vld [vmem:[%s2567 + $0x1ac] sm:$0xf]
      %v2640 = vld [vmem:[%s2567 + $0x1b0] sm:$0xff]
      %v2641 = vld [vmem:[%s2567 + $0x1b8] sm:$0xf]
      %v2642 = vld [vmem:[%s2567 + $0x1bc] sm:$0xff]
      %v2643 = vld [vmem:[%s2567 + $0x1c4] sm:$0xf]
      %v2644 = vld [vmem:[%s2567 + $0x1c8] sm:$0xff]
      %v2645 = vld [vmem:[%s2567 + $0x1d0] sm:$0xf]
      %v2646 = vld [vmem:[%s2567 + $0x1d4] sm:$0xff]
      %v2647 = vld [vmem:[%s2567 + $0x1dc] sm:$0xf]
      %v2648 = vld [vmem:[%s2567 + $0x1e0] sm:$0xff]
      %v2649 = vld [vmem:[%s2567 + $0x1e8] sm:$0xf]
      %v2650 = vld [vmem:[%s2567 + $0x1ec] sm:$0xff]
      %v2651 = vld [vmem:[%s2567 + $0x1f4] sm:$0xf]
      %v2736 = vunpack.c.l.b16 %v2568
      %v2737 = vunpack.c.h.b16 %v2568
      %v2738 = vunpack.c.l.b16 %v2569
      %v2739 = vunpack.c.l.b16 %v2570
      %v2740 = vunpack.c.h.b16 %v2570
      %v2741 = vunpack.c.l.b16 %v2571
      %v2742 = vunpack.c.l.b16 %v2572
      %v2743 = vunpack.c.h.b16 %v2572
      %v2744 = vunpack.c.l.b16 %v2573
      %v2745 = vunpack.c.l.b16 %v2574
      %v2746 = vunpack.c.h.b16 %v2574
      %v2747 = vunpack.c.l.b16 %v2575
      %v2748 = vunpack.c.l.b16 %v2576
      %v2749 = vunpack.c.h.b16 %v2576
      %v2750 = vunpack.c.l.b16 %v2577
      %v2751 = vunpack.c.l.b16 %v2578
      %v2752 = vunpack.c.h.b16 %v2578
      %v2753 = vunpack.c.l.b16 %v2579
      %v2754 = vunpack.c.l.b16 %v2580
      %v2755 = vunpack.c.h.b16 %v2580
      %v2756 = vunpack.c.l.b16 %v2581
      %v2757 = vunpack.c.l.b16 %v2582
      %v2758 = vunpack.c.h.b16 %v2582
      %v2759 = vunpack.c.l.b16 %v2583
      %v2760 = vunpack.c.l.b16 %v2584
      %v2761 = vunpack.c.h.b16 %v2584
      %v2762 = vunpack.c.l.b16 %v2585
      %v2763 = vunpack.c.l.b16 %v2586
      %v2764 = vunpack.c.h.b16 %v2586
      %v2765 = vunpack.c.l.b16 %v2587
      %v2766 = vunpack.c.l.b16 %v2588
      %v2767 = vunpack.c.h.b16 %v2588
      %v2768 = vunpack.c.l.b16 %v2589
      %v2769 = vunpack.c.l.b16 %v2590
      %v2770 = vunpack.c.h.b16 %v2590
      %v2771 = vunpack.c.l.b16 %v2591
      %v2772 = vunpack.c.l.b16 %v2592
      %v2773 = vunpack.c.h.b16 %v2592
      %v2774 = vunpack.c.l.b16 %v2593
      %v2775 = vunpack.c.l.b16 %v2594
      %v2776 = vunpack.c.h.b16 %v2594
      %v2777 = vunpack.c.l.b16 %v2595
      %v2778 = vunpack.c.l.b16 %v2596
      %v2779 = vunpack.c.h.b16 %v2596
      %v2780 = vunpack.c.l.b16 %v2597
      %v2781 = vunpack.c.l.b16 %v2598
      %v2782 = vunpack.c.h.b16 %v2598
      %v2783 = vunpack.c.l.b16 %v2599
      %v2784 = vunpack.c.l.b16 %v2600
      %v2785 = vunpack.c.h.b16 %v2600
      %v2786 = vunpack.c.l.b16 %v2601
      %v2787 = vunpack.c.l.b16 %v2602
      %v2788 = vunpack.c.h.b16 %v2602
      %v2789 = vunpack.c.l.b16 %v2603
      %v2790 = vunpack.c.l.b16 %v2604
      %v2791 = vunpack.c.h.b16 %v2604
      %v2792 = vunpack.c.l.b16 %v2605
      %v2793 = vunpack.c.l.b16 %v2606
      %v2794 = vunpack.c.h.b16 %v2606
      %v2795 = vunpack.c.l.b16 %v2607
      %v2796 = vunpack.c.l.b16 %v2608
      %v2797 = vunpack.c.h.b16 %v2608
      %v2798 = vunpack.c.l.b16 %v2609
      %v2799 = vunpack.c.l.b16 %v2610
      %v2800 = vunpack.c.h.b16 %v2610
      %v2801 = vunpack.c.l.b16 %v2611
      %v2802 = vunpack.c.l.b16 %v2612
      %v2803 = vunpack.c.h.b16 %v2612
      %v2804 = vunpack.c.l.b16 %v2613
      %v2805 = vunpack.c.l.b16 %v2614
      %v2806 = vunpack.c.h.b16 %v2614
      %v2807 = vunpack.c.l.b16 %v2615
      %v2808 = vunpack.c.l.b16 %v2616
      %v2809 = vunpack.c.h.b16 %v2616
      %v2810 = vunpack.c.l.b16 %v2617
      %v2811 = vunpack.c.l.b16 %v2618
      %v2812 = vunpack.c.h.b16 %v2618
      %v2813 = vunpack.c.l.b16 %v2619
      %v2814 = vunpack.c.l.b16 %v2620
      %v2815 = vunpack.c.h.b16 %v2620
      %v2816 = vunpack.c.l.b16 %v2621
      %v2817 = vunpack.c.l.b16 %v2622
      %v2818 = vunpack.c.h.b16 %v2622
      %v2819 = vunpack.c.l.b16 %v2623
      %v2820 = vunpack.c.l.b16 %v2624
      %v2821 = vunpack.c.h.b16 %v2624
      %v2822 = vunpack.c.l.b16 %v2625
      %v2823 = vunpack.c.l.b16 %v2626
      %v2824 = vunpack.c.h.b16 %v2626
      %v2825 = vunpack.c.l.b16 %v2627
      %v2826 = vunpack.c.l.b16 %v2628
      %v2827 = vunpack.c.h.b16 %v2628
      %v2828 = vunpack.c.l.b16 %v2629
      %v2829 = vunpack.c.l.b16 %v2630
      %v2830 = vunpack.c.h.b16 %v2630
      %v2831 = vunpack.c.l.b16 %v2631
      %v2832 = vunpack.c.l.b16 %v2632
      %v2833 = vunpack.c.h.b16 %v2632
      %v2834 = vunpack.c.l.b16 %v2633
      %v2835 = vunpack.c.l.b16 %v2634
      %v2836 = vunpack.c.h.b16 %v2634
      %v2837 = vunpack.c.l.b16 %v2635
      %v2838 = vunpack.c.l.b16 %v2636
      %v2839 = vunpack.c.h.b16 %v2636
      %v2840 = vunpack.c.l.b16 %v2637
      %v2841 = vunpack.c.l.b16 %v2638
      %v2842 = vunpack.c.h.b16 %v2638
      %v2843 = vunpack.c.l.b16 %v2639
      %v2844 = vunpack.c.l.b16 %v2640
      %v2845 = vunpack.c.h.b16 %v2640
      %v2846 = vunpack.c.l.b16 %v2641
      %v2847 = vunpack.c.l.b16 %v2642
      %v2848 = vunpack.c.h.b16 %v2642
      %v2849 = vunpack.c.l.b16 %v2643
      %v2850 = vunpack.c.l.b16 %v2644
      %v2851 = vunpack.c.h.b16 %v2644
      %v2852 = vunpack.c.l.b16 %v2645
      %v2853 = vunpack.c.l.b16 %v2646
      %v2854 = vunpack.c.h.b16 %v2646
      %v2855 = vunpack.c.l.b16 %v2647
      %v2856 = vunpack.c.l.b16 %v2648
      %v2857 = vunpack.c.h.b16 %v2648
      %v2858 = vunpack.c.l.b16 %v2649
      %v2859 = vunpack.c.l.b16 %v2650
      %v2860 = vunpack.c.h.b16 %v2650
      %v2861 = vunpack.c.l.b16 %v2651
      %v2862 = vpack.c.b16 %v2739, %v2736
      %v2863 = vpack.c.b16 %v2740, %v2737
      %v2864 = vpack.c.b16 %v2741, %v2738
      %v2865 = vpack.c.b16 %v2745, %v2742
      %v2866 = vpack.c.b16 %v2746, %v2743
      %v2867 = vpack.c.b16 %v2747, %v2744
      %v2868 = vpack.c.b16 %v2751, %v2748
      %v2869 = vpack.c.b16 %v2752, %v2749
      %v2870 = vpack.c.b16 %v2753, %v2750
      %v2871 = vpack.c.b16 %v2757, %v2754
      %v2872 = vpack.c.b16 %v2758, %v2755
      %v2873 = vpack.c.b16 %v2759, %v2756
      %v2874 = vpack.c.b16 %v2763, %v2760
      %v2875 = vpack.c.b16 %v2764, %v2761
      %v2876 = vpack.c.b16 %v2765, %v2762
      %v2877 = vpack.c.b16 %v2769, %v2766
      %v2878 = vpack.c.b16 %v2770, %v2767
      %v2879 = vpack.c.b16 %v2771, %v2768
      %v2880 = vpack.c.b16 %v2775, %v2772
      %v2881 = vpack.c.b16 %v2776, %v2773
      %v2882 = vpack.c.b16 %v2777, %v2774
      %v2883 = vpack.c.b16 %v2781, %v2778
      %v2884 = vpack.c.b16 %v2782, %v2779
      %v2885 = vpack.c.b16 %v2783, %v2780
      %v2886 = vpack.c.b16 %v2787, %v2784
      %v2887 = vpack.c.b16 %v2788, %v2785
      %v2888 = vpack.c.b16 %v2789, %v2786
      %v2889 = vpack.c.b16 %v2793, %v2790
      %v2890 = vpack.c.b16 %v2794, %v2791
      %v2891 = vpack.c.b16 %v2795, %v2792
      %v2892 = vpack.c.b16 %v2799, %v2796
      %v2893 = vpack.c.b16 %v2800, %v2797
      %v2894 = vpack.c.b16 %v2801, %v2798
      %v2895 = vpack.c.b16 %v2805, %v2802
      %v2896 = vpack.c.b16 %v2806, %v2803
      %v2897 = vpack.c.b16 %v2807, %v2804
      %v2898 = vpack.c.b16 %v2811, %v2808
      %v2899 = vpack.c.b16 %v2812, %v2809
      %v2900 = vpack.c.b16 %v2813, %v2810
      %v2901 = vpack.c.b16 %v2817, %v2814
      %v2902 = vpack.c.b16 %v2818, %v2815
      %v2903 = vpack.c.b16 %v2819, %v2816
      %v2904 = vpack.c.b16 %v2823, %v2820
      %v2905 = vpack.c.b16 %v2824, %v2821
      %v2906 = vpack.c.b16 %v2825, %v2822
      %v2907 = vpack.c.b16 %v2829, %v2826
      %v2908 = vpack.c.b16 %v2830, %v2827
      %v2909 = vpack.c.b16 %v2831, %v2828
      %v2910 = vpack.c.b16 %v2835, %v2832
      %v2911 = vpack.c.b16 %v2836, %v2833
      %v2912 = vpack.c.b16 %v2837, %v2834
      %v2913 = vpack.c.b16 %v2841, %v2838
      %v2914 = vpack.c.b16 %v2842, %v2839
      %v2915 = vpack.c.b16 %v2843, %v2840
      %v2916 = vpack.c.b16 %v2847, %v2844
      %v2917 = vpack.c.b16 %v2848, %v2845
      %v2918 = vpack.c.b16 %v2849, %v2846
      %v2919 = vpack.c.b16 %v2853, %v2850
      %v2920 = vpack.c.b16 %v2854, %v2851
      %v2921 = vpack.c.b16 %v2855, %v2852
      %v2922 = vpack.c.b16 %v2859, %v2856
      %v2923 = vpack.c.b16 %v2860, %v2857
      %v2924 = vpack.c.b16 %v2861, %v2858
      %v2989 = vsel %vm1140, %v2563, 0
      %v2992 = vsel %vm1140, %v2566, 0
      %2994 = vmatpush.bf16.msra.mxu0 %v2883
      %2995 = vmatpush.bf16.msra.mxu0 %v2880
      %2996 = vmatpush.bf16.msra.mxu0 %v2877
      %2997 = vmatpush.bf16.msra.mxu0 %v2874
      %2998 = vmatpush.bf16.msra.mxu0 %v2871
      %2999 = vmatpush.bf16.msra.mxu0 %v2868
      %3000 = vmatpush.bf16.msra.mxu0 %v2865
      %3001 = vmatpush.bf16.msra.mxu0 %v2862
      %3002 = vmatmul.bf16.gmra.mxu0 %v2561
      %v3003 = vpop.f32.mrf.mxu0
      %v3004 = vadd.f32 0.0, %v3003
      %v3005 = vpop.f32.mrf.mxu0
      %v3006 = vadd.f32 0.0, %v3005
      %3007 = vmatmul.bf16.gmra.mxu0 %v2564
      %v3008 = vpop.f32.mrf.mxu0
      %v3009 = vadd.f32 0.0, %v3008
      %v3010 = vpop.f32.mrf.mxu0
      %3011 = vdwg.mxu0
      %3012 = vmatpush.bf16.msra.mxu0 %v2907
      %3013 = vmatpush.bf16.msra.mxu0 %v2904
      %3014 = vmatpush.bf16.msra.mxu0 %v2901
      %3015 = vmatpush.bf16.msra.mxu0 %v2898
      %3016 = vmatpush.bf16.msra.mxu0 %v2895
      %3017 = vmatpush.bf16.msra.mxu0 %v2892
      %3018 = vmatpush.bf16.msra.mxu0 %v2889
      %3019 = vmatpush.bf16.msra.mxu0 %v2886
      %3020 = vmatmul.bf16.gmra.mxu0 %v2562
      %v3021 = vpop.f32.mrf.mxu0
      %v3022 = vadd.f32 %v3004, %v3021
      %v3023 = vpop.f32.mrf.mxu0
      %v3024 = vadd.f32 %v3006, %v3023
      %3025 = vmatmul.bf16.gmra.mxu0 %v2565
      %v3026 = vpop.f32.mrf.mxu0
      %v3027 = vadd.f32 %v3009, %v3026
      %v3028 = vpop.f32.mrf.mxu0
      %3029 = vdwg.mxu0
      %3030 = vmatpush.bf16.msra.mxu0 0
      %3031 = vmatpush.bf16.msra.mxu0 0
      %3032 = vmatpush.bf16.msra.mxu0 0
      %3033 = vmatpush.bf16.msra.mxu0 %v2922
      %3034 = vmatpush.bf16.msra.mxu0 %v2919
      %3035 = vmatpush.bf16.msra.mxu0 %v2916
      %3036 = vmatpush.bf16.msra.mxu0 %v2913
      %3037 = vmatpush.bf16.msra.mxu0 %v2910
      %3038 = vmatmul.bf16.gmra.mxu0 %v2989
      %v3039 = vpop.f32.mrf.mxu0
      %v3040 = vadd.f32 %v3022, %v3039
      %v3041 = vpop.f32.mrf.mxu0
      %v3042 = vadd.f32 %v3024, %v3041
      %3043 = vmatmul.bf16.gmra.mxu0 %v2992
      %v3044 = vpop.f32.mrf.mxu0
      %v3045 = vadd.f32 %v3027, %v3044
      %v3046 = vpop.f32.mrf.mxu0
      %3047 = vdwg.mxu0
      %3048 = vmatpush.bf16.msra.mxu0 %v2884
      %3049 = vmatpush.bf16.msra.mxu0 %v2881
      %3050 = vmatpush.bf16.msra.mxu0 %v2878
      %3051 = vmatpush.bf16.msra.mxu0 %v2875
      %3052 = vmatpush.bf16.msra.mxu0 %v2872
      %3053 = vmatpush.bf16.msra.mxu0 %v2869
      %3054 = vmatpush.bf16.msra.mxu0 %v2866
      %3055 = vmatpush.bf16.msra.mxu0 %v2863
      %3056 = vmatmul.bf16.gmra.mxu0 %v2561
      %v3057 = vpop.f32.mrf.mxu0
      %v3058 = vadd.f32 0.0, %v3057
      %v3059 = vpop.f32.mrf.mxu0
      %v3060 = vadd.f32 0.0, %v3059
      %3061 = vmatmul.bf16.gmra.mxu0 %v2564
      %v3062 = vpop.f32.mrf.mxu0
      %v3063 = vadd.f32 0.0, %v3062
      %v3064 = vpop.f32.mrf.mxu0
      %3065 = vdwg.mxu0
      %3066 = vmatpush.bf16.msra.mxu0 %v2908
      %3067 = vmatpush.bf16.msra.mxu0 %v2905
      %3068 = vmatpush.bf16.msra.mxu0 %v2902
      %3069 = vmatpush.bf16.msra.mxu0 %v2899
      %3070 = vmatpush.bf16.msra.mxu0 %v2896
      %3071 = vmatpush.bf16.msra.mxu0 %v2893
      %3072 = vmatpush.bf16.msra.mxu0 %v2890
      %3073 = vmatpush.bf16.msra.mxu0 %v2887
      %3074 = vmatmul.bf16.gmra.mxu0 %v2562
      %v3075 = vpop.f32.mrf.mxu0
      %v3076 = vadd.f32 %v3058, %v3075
      %v3077 = vpop.f32.mrf.mxu0
      %v3078 = vadd.f32 %v3060, %v3077
      %3079 = vmatmul.bf16.gmra.mxu0 %v2565
      %v3080 = vpop.f32.mrf.mxu0
      %v3081 = vadd.f32 %v3063, %v3080
      %v3082 = vpop.f32.mrf.mxu0
      %3083 = vdwg.mxu0
      %3084 = vmatpush.bf16.msra.mxu0 0
      %3085 = vmatpush.bf16.msra.mxu0 0
      %3086 = vmatpush.bf16.msra.mxu0 0
      %3087 = vmatpush.bf16.msra.mxu0 %v2923
      %3088 = vmatpush.bf16.msra.mxu0 %v2920
      %3089 = vmatpush.bf16.msra.mxu0 %v2917
      %3090 = vmatpush.bf16.msra.mxu0 %v2914
      %3091 = vmatpush.bf16.msra.mxu0 %v2911
      %3092 = vmatmul.bf16.gmra.mxu0 %v2989
      %v3093 = vpop.f32.mrf.mxu0
      %v3094 = vadd.f32 %v3076, %v3093
      %v3095 = vpop.f32.mrf.mxu0
      %v3096 = vadd.f32 %v3078, %v3095
      %3097 = vmatmul.bf16.gmra.mxu0 %v2992
      %v3098 = vpop.f32.mrf.mxu0
      %v3099 = vadd.f32 %v3081, %v3098
      %v3100 = vpop.f32.mrf.mxu0
      %3101 = vdwg.mxu0
      %3102 = vmatpush.bf16.msra.mxu0 %v2885
      %3103 = vmatpush.bf16.msra.mxu0 %v2882
      %3104 = vmatpush.bf16.msra.mxu0 %v2879
      %3105 = vmatpush.bf16.msra.mxu0 %v2876
      %3106 = vmatpush.bf16.msra.mxu0 %v2873
      %3107 = vmatpush.bf16.msra.mxu0 %v2870
      %3108 = vmatpush.bf16.msra.mxu0 %v2867
      %3109 = vmatpush.bf16.msra.mxu0 %v2864
      %3110 = vmatmul.bf16.gmra.mxu0 %v2561
      %v3111 = vpop.f32.mrf.mxu0
      %v3112 = vadd.f32 0.0, %v3111
      %v3113 = vpop.f32.mrf.mxu0
      %v3114 = vadd.f32 0.0, %v3113
      %3115 = vmatmul.bf16.gmra.mxu0 %v2564
      %v3116 = vpop.f32.mrf.mxu0
      %v3117 = vadd.f32 0.0, %v3116
      %v3118 = vpop.f32.mrf.mxu0
      %3119 = vdwg.mxu0
      %3120 = vmatpush.bf16.msra.mxu0 %v2909
      %3121 = vmatpush.bf16.msra.mxu0 %v2906
      %3122 = vmatpush.bf16.msra.mxu0 %v2903
      %3123 = vmatpush.bf16.msra.mxu0 %v2900
      %3124 = vmatpush.bf16.msra.mxu0 %v2897
      %3125 = vmatpush.bf16.msra.mxu0 %v2894
      %3126 = vmatpush.bf16.msra.mxu0 %v2891
      %3127 = vmatpush.bf16.msra.mxu0 %v2888
      %3128 = vmatmul.bf16.gmra.mxu0 %v2562
      %v3129 = vpop.f32.mrf.mxu0
      %v3130 = vadd.f32 %v3112, %v3129
      %v3131 = vpop.f32.mrf.mxu0
      %v3132 = vadd.f32 %v3114, %v3131
      %3133 = vmatmul.bf16.gmra.mxu0 %v2565
      %v3134 = vpop.f32.mrf.mxu0
      %v3135 = vadd.f32 %v3117, %v3134
      %v3136 = vpop.f32.mrf.mxu0
      %3137 = vdwg.mxu0
      %3138 = vmatpush.bf16.msra.mxu0 0
      %3139 = vmatpush.bf16.msra.mxu0 0
      %3140 = vmatpush.bf16.msra.mxu0 0
      %3141 = vmatpush.bf16.msra.mxu0 %v2924
      %3142 = vmatpush.bf16.msra.mxu0 %v2921
      %3143 = vmatpush.bf16.msra.mxu0 %v2918
      %3144 = vmatpush.bf16.msra.mxu0 %v2915
      %3145 = vmatpush.bf16.msra.mxu0 %v2912
      %3146 = vmatmul.bf16.gmra.mxu0 %v2989
      %v3147 = vpop.f32.mrf.mxu0
      %v3148 = vadd.f32 %v3130, %v3147
      %v3149 = vpop.f32.mrf.mxu0
      %v3150 = vadd.f32 %v3132, %v3149
      %3151 = vmatmul.bf16.gmra.mxu0 %v2992
      %v3152 = vpop.f32.mrf.mxu0
      %v3153 = vadd.f32 %v3135, %v3152
      %v3154 = vpop.f32.mrf.mxu0
      %3155 = vdwg.mxu0
      %v3156 = vadd.f32 %v2480, %v3040
      %v3157 = vadd.f32 %v2481, %v3094
      %v3158 = vadd.f32 %v2482, %v3148
      %v3159 = vadd.f32 %v2483, %v3042
      %v3160 = vadd.f32 %v2484, %v3096
      %v3161 = vadd.f32 %v2485, %v3150
      %v3162 = vadd.f32 %v2486, %v3045
      %v3163 = vadd.f32 %v2487, %v3099
      %v3164 = vadd.f32 %v2488, %v3153
      %s3165 = scalar_lea.vmem %s1, 48
      %v3166 = vld [vmem:[%s3165] sm:$0xf]
      %v3167 = vld [vmem:[%s3165 + $0x4] sm:$0xf]
      %v3168 = vld [vmem:[%s3165 + $0x8] sm:$0xf]
      %v3172 = vunpack.c.l.b16 %v3166
      %v3173 = vunpack.c.l.b16 %v3167
      %v3174 = vunpack.c.l.b16 %v3168
      %v3175 = vpack.c.b16 %v3173, %v3172
      %v3176 = vpack.c.b16 %v3174, %v3174
      %v3178 = vsel %vm480, %v3175, 0
      %v3181 = vsel %vm480, %v3176, 0
      %3183 = vmatpush.bf16.msra.mxu0 0
      %3184 = vmatpush.bf16.msra.mxu0 0
      %3185 = vmatpush.bf16.msra.mxu0 %v489
      %3186 = vmatpush.bf16.msra.mxu0 %v459
      %3187 = vmatpush.bf16.msra.mxu0 %v456
      %3188 = vmatpush.bf16.msra.mxu0 %v453
      %3189 = vmatpush.bf16.msra.mxu0 %v450
      %3190 = vmatpush.bf16.msra.mxu0 %v447
      %3191 = vmatmul.bf16.gmra.mxu0 %v3178
      %v3192 = vpop.f32.mrf.mxu0
      %v3193 = vadd.f32 0.0, %v3192
      %v3194 = vpop.f32.mrf.mxu0
      %v3195 = vadd.f32 0.0, %v3194
      %3196 = vmatmul.bf16.gmra.mxu0 %v3181
      %v3197 = vpop.f32.mrf.mxu0
      %v3198 = vadd.f32 0.0, %v3197
      %v3199 = vpop.f32.mrf.mxu0
      %3200 = vdwg.mxu0
      %3201 = vmatpush.bf16.msra.mxu0 0
      %3202 = vmatpush.bf16.msra.mxu0 0
      %3203 = vmatpush.bf16.msra.mxu0 %v492
      %3204 = vmatpush.bf16.msra.mxu0 %v460
      %3205 = vmatpush.bf16.msra.mxu0 %v457
      %3206 = vmatpush.bf16.msra.mxu0 %v454
      %3207 = vmatpush.bf16.msra.mxu0 %v451
      %3208 = vmatpush.bf16.msra.mxu0 %v448
      %3209 = vmatmul.bf16.gmra.mxu0 %v3178
      %v3210 = vpop.f32.mrf.mxu0
      %v3211 = vadd.f32 0.0, %v3210
      %v3212 = vpop.f32.mrf.mxu0
      %v3213 = vadd.f32 0.0, %v3212
      %3214 = vmatmul.bf16.gmra.mxu0 %v3181
      %v3215 = vpop.f32.mrf.mxu0
      %v3216 = vadd.f32 0.0, %v3215
      %v3217 = vpop.f32.mrf.mxu0
      %3218 = vdwg.mxu0
      %3219 = vmatpush.bf16.msra.mxu0 0
      %3220 = vmatpush.bf16.msra.mxu0 0
      %3221 = vmatpush.bf16.msra.mxu0 %v495
      %3222 = vmatpush.bf16.msra.mxu0 %v461
      %3223 = vmatpush.bf16.msra.mxu0 %v458
      %3224 = vmatpush.bf16.msra.mxu0 %v455
      %3225 = vmatpush.bf16.msra.mxu0 %v452
      %3226 = vmatpush.bf16.msra.mxu0 %v449
      %3227 = vmatmul.bf16.gmra.mxu0 %v3178
      %v3228 = vpop.f32.mrf.mxu0
      %v3229 = vadd.f32 0.0, %v3228
      %v3230 = vpop.f32.mrf.mxu0
      %v3231 = vadd.f32 0.0, %v3230
      %3232 = vmatmul.bf16.gmra.mxu0 %v3181
      %v3233 = vpop.f32.mrf.mxu0
      %v3234 = vadd.f32 0.0, %v3233
      %v3235 = vpop.f32.mrf.mxu0
      %3236 = vdwg.mxu0
      %v3237 = vpack.c.bf16 %v3195, %v3193
      %v3238 = vpack.c.bf16 %v3213, %v3211
      %v3239 = vpack.c.bf16 %v3231, %v3229
      %v3240 = vpack.c.bf16 %v3198, %v3198
      %v3241 = vpack.c.bf16 %v3216, %v3216
      %v3242 = vpack.c.bf16 %v3234, %v3234
      %s3243 = scalar_lea.vmem %s2, 2016
      %v3244 = vld [vmem:[%s3243] sm:$0xff]
      %v3245 = vld [vmem:[%s3243 + $0x8] sm:$0xf]
      %v3246 = vld [vmem:[%s3243 + $0xc] sm:$0xff]
      %v3247 = vld [vmem:[%s3243 + $0x14] sm:$0xf]
      %v3248 = vld [vmem:[%s3243 + $0x18] sm:$0xff]
      %v3249 = vld [vmem:[%s3243 + $0x20] sm:$0xf]
      %v3250 = vld [vmem:[%s3243 + $0x24] sm:$0xff]
      %v3251 = vld [vmem:[%s3243 + $0x2c] sm:$0xf]
      %v3252 = vld [vmem:[%s3243 + $0x30] sm:$0xff]
      %v3253 = vld [vmem:[%s3243 + $0x38] sm:$0xf]
      %v3254 = vld [vmem:[%s3243 + $0x3c] sm:$0xff]
      %v3255 = vld [vmem:[%s3243 + $0x44] sm:$0xf]
      %v3256 = vld [vmem:[%s3243 + $0x48] sm:$0xff]
      %v3257 = vld [vmem:[%s3243 + $0x50] sm:$0xf]
      %v3258 = vld [vmem:[%s3243 + $0x54] sm:$0xff]
      %v3259 = vld [vmem:[%s3243 + $0x5c] sm:$0xf]
      %v3260 = vld [vmem:[%s3243 + $0x60] sm:$0xff]
      %v3261 = vld [vmem:[%s3243 + $0x68] sm:$0xf]
      %v3262 = vld [vmem:[%s3243 + $0x6c] sm:$0xff]
      %v3263 = vld [vmem:[%s3243 + $0x74] sm:$0xf]
      %v3264 = vld [vmem:[%s3243 + $0x78] sm:$0xff]
      %v3265 = vld [vmem:[%s3243 + $0x80] sm:$0xf]
      %v3266 = vld [vmem:[%s3243 + $0x84] sm:$0xff]
      %v3267 = vld [vmem:[%s3243 + $0x8c] sm:$0xf]
      %v3268 = vld [vmem:[%s3243 + $0x90] sm:$0xff]
      %v3269 = vld [vmem:[%s3243 + $0x98] sm:$0xf]
      %v3270 = vld [vmem:[%s3243 + $0x9c] sm:$0xff]
      %v3271 = vld [vmem:[%s3243 + $0xa4] sm:$0xf]
      %v3272 = vld [vmem:[%s3243 + $0xa8] sm:$0xff]
      %v3273 = vld [vmem:[%s3243 + $0xb0] sm:$0xf]
      %v3274 = vld [vmem:[%s3243 + $0xb4] sm:$0xff]
      %v3275 = vld [vmem:[%s3243 + $0xbc] sm:$0xf]
      %v3276 = vld [vmem:[%s3243 + $0xc0] sm:$0xff]
      %v3277 = vld [vmem:[%s3243 + $0xc8] sm:$0xf]
      %v3278 = vld [vmem:[%s3243 + $0xcc] sm:$0xff]
      %v3279 = vld [vmem:[%s3243 + $0xd4] sm:$0xf]
      %v3280 = vld [vmem:[%s3243 + $0xd8] sm:$0xff]
      %v3281 = vld [vmem:[%s3243 + $0xe0] sm:$0xf]
      %v3282 = vld [vmem:[%s3243 + $0xe4] sm:$0xff]
      %v3283 = vld [vmem:[%s3243 + $0xec] sm:$0xf]
      %v3284 = vld [vmem:[%s3243 + $0xf0] sm:$0xff]
      %v3285 = vld [vmem:[%s3243 + $0xf8] sm:$0xf]
      %v3286 = vld [vmem:[%s3243 + $0xfc] sm:$0xff]
      %v3287 = vld [vmem:[%s3243 + $0x104] sm:$0xf]
      %v3288 = vld [vmem:[%s3243 + $0x108] sm:$0xff]
      %v3289 = vld [vmem:[%s3243 + $0x110] sm:$0xf]
      %v3290 = vld [vmem:[%s3243 + $0x114] sm:$0xff]
      %v3291 = vld [vmem:[%s3243 + $0x11c] sm:$0xf]
      %v3292 = vld [vmem:[%s3243 + $0x120] sm:$0xff]
      %v3293 = vld [vmem:[%s3243 + $0x128] sm:$0xf]
      %v3294 = vld [vmem:[%s3243 + $0x12c] sm:$0xff]
      %v3295 = vld [vmem:[%s3243 + $0x134] sm:$0xf]
      %v3296 = vld [vmem:[%s3243 + $0x138] sm:$0xff]
      %v3297 = vld [vmem:[%s3243 + $0x140] sm:$0xf]
      %v3298 = vld [vmem:[%s3243 + $0x144] sm:$0xff]
      %v3299 = vld [vmem:[%s3243 + $0x14c] sm:$0xf]
      %v3300 = vld [vmem:[%s3243 + $0x150] sm:$0xff]
      %v3301 = vld [vmem:[%s3243 + $0x158] sm:$0xf]
      %v3302 = vld [vmem:[%s3243 + $0x15c] sm:$0xff]
      %v3303 = vld [vmem:[%s3243 + $0x164] sm:$0xf]
      %v3304 = vld [vmem:[%s3243 + $0x168] sm:$0xff]
      %v3305 = vld [vmem:[%s3243 + $0x170] sm:$0xf]
      %v3306 = vld [vmem:[%s3243 + $0x174] sm:$0xff]
      %v3307 = vld [vmem:[%s3243 + $0x17c] sm:$0xf]
      %v3308 = vld [vmem:[%s3243 + $0x180] sm:$0xff]
      %v3309 = vld [vmem:[%s3243 + $0x188] sm:$0xf]
      %v3310 = vld [vmem:[%s3243 + $0x18c] sm:$0xff]
      %v3311 = vld [vmem:[%s3243 + $0x194] sm:$0xf]
      %v3312 = vld [vmem:[%s3243 + $0x198] sm:$0xff]
      %v3313 = vld [vmem:[%s3243 + $0x1a0] sm:$0xf]
      %v3314 = vld [vmem:[%s3243 + $0x1a4] sm:$0xff]
      %v3315 = vld [vmem:[%s3243 + $0x1ac] sm:$0xf]
      %v3316 = vld [vmem:[%s3243 + $0x1b0] sm:$0xff]
      %v3317 = vld [vmem:[%s3243 + $0x1b8] sm:$0xf]
      %v3318 = vld [vmem:[%s3243 + $0x1bc] sm:$0xff]
      %v3319 = vld [vmem:[%s3243 + $0x1c4] sm:$0xf]
      %v3320 = vld [vmem:[%s3243 + $0x1c8] sm:$0xff]
      %v3321 = vld [vmem:[%s3243 + $0x1d0] sm:$0xf]
      %v3322 = vld [vmem:[%s3243 + $0x1d4] sm:$0xff]
      %v3323 = vld [vmem:[%s3243 + $0x1dc] sm:$0xf]
      %v3324 = vld [vmem:[%s3243 + $0x1e0] sm:$0xff]
      %v3325 = vld [vmem:[%s3243 + $0x1e8] sm:$0xf]
      %v3326 = vld [vmem:[%s3243 + $0x1ec] sm:$0xff]
      %v3327 = vld [vmem:[%s3243 + $0x1f4] sm:$0xf]
      %v3412 = vunpack.c.l.b16 %v3244
      %v3413 = vunpack.c.h.b16 %v3244
      %v3414 = vunpack.c.l.b16 %v3245
      %v3415 = vunpack.c.l.b16 %v3246
      %v3416 = vunpack.c.h.b16 %v3246
      %v3417 = vunpack.c.l.b16 %v3247
      %v3418 = vunpack.c.l.b16 %v3248
      %v3419 = vunpack.c.h.b16 %v3248
      %v3420 = vunpack.c.l.b16 %v3249
      %v3421 = vunpack.c.l.b16 %v3250
      %v3422 = vunpack.c.h.b16 %v3250
      %v3423 = vunpack.c.l.b16 %v3251
      %v3424 = vunpack.c.l.b16 %v3252
      %v3425 = vunpack.c.h.b16 %v3252
      %v3426 = vunpack.c.l.b16 %v3253
      %v3427 = vunpack.c.l.b16 %v3254
      %v3428 = vunpack.c.h.b16 %v3254
      %v3429 = vunpack.c.l.b16 %v3255
      %v3430 = vunpack.c.l.b16 %v3256
      %v3431 = vunpack.c.h.b16 %v3256
      %v3432 = vunpack.c.l.b16 %v3257
      %v3433 = vunpack.c.l.b16 %v3258
      %v3434 = vunpack.c.h.b16 %v3258
      %v3435 = vunpack.c.l.b16 %v3259
      %v3436 = vunpack.c.l.b16 %v3260
      %v3437 = vunpack.c.h.b16 %v3260
      %v3438 = vunpack.c.l.b16 %v3261
      %v3439 = vunpack.c.l.b16 %v3262
      %v3440 = vunpack.c.h.b16 %v3262
      %v3441 = vunpack.c.l.b16 %v3263
      %v3442 = vunpack.c.l.b16 %v3264
      %v3443 = vunpack.c.h.b16 %v3264
      %v3444 = vunpack.c.l.b16 %v3265
      %v3445 = vunpack.c.l.b16 %v3266
      %v3446 = vunpack.c.h.b16 %v3266
      %v3447 = vunpack.c.l.b16 %v3267
      %v3448 = vunpack.c.l.b16 %v3268
      %v3449 = vunpack.c.h.b16 %v3268
      %v3450 = vunpack.c.l.b16 %v3269
      %v3451 = vunpack.c.l.b16 %v3270
      %v3452 = vunpack.c.h.b16 %v3270
      %v3453 = vunpack.c.l.b16 %v3271
      %v3454 = vunpack.c.l.b16 %v3272
      %v3455 = vunpack.c.h.b16 %v3272
      %v3456 = vunpack.c.l.b16 %v3273
      %v3457 = vunpack.c.l.b16 %v3274
      %v3458 = vunpack.c.h.b16 %v3274
      %v3459 = vunpack.c.l.b16 %v3275
      %v3460 = vunpack.c.l.b16 %v3276
      %v3461 = vunpack.c.h.b16 %v3276
      %v3462 = vunpack.c.l.b16 %v3277
      %v3463 = vunpack.c.l.b16 %v3278
      %v3464 = vunpack.c.h.b16 %v3278
      %v3465 = vunpack.c.l.b16 %v3279
      %v3466 = vunpack.c.l.b16 %v3280
      %v3467 = vunpack.c.h.b16 %v3280
      %v3468 = vunpack.c.l.b16 %v3281
      %v3469 = vunpack.c.l.b16 %v3282
      %v3470 = vunpack.c.h.b16 %v3282
      %v3471 = vunpack.c.l.b16 %v3283
      %v3472 = vunpack.c.l.b16 %v3284
      %v3473 = vunpack.c.h.b16 %v3284
      %v3474 = vunpack.c.l.b16 %v3285
      %v3475 = vunpack.c.l.b16 %v3286
      %v3476 = vunpack.c.h.b16 %v3286
      %v3477 = vunpack.c.l.b16 %v3287
      %v3478 = vunpack.c.l.b16 %v3288
      %v3479 = vunpack.c.h.b16 %v3288
      %v3480 = vunpack.c.l.b16 %v3289
      %v3481 = vunpack.c.l.b16 %v3290
      %v3482 = vunpack.c.h.b16 %v3290
      %v3483 = vunpack.c.l.b16 %v3291
      %v3484 = vunpack.c.l.b16 %v3292
      %v3485 = vunpack.c.h.b16 %v3292
      %v3486 = vunpack.c.l.b16 %v3293
      %v3487 = vunpack.c.l.b16 %v3294
      %v3488 = vunpack.c.h.b16 %v3294
      %v3489 = vunpack.c.l.b16 %v3295
      %v3490 = vunpack.c.l.b16 %v3296
      %v3491 = vunpack.c.h.b16 %v3296
      %v3492 = vunpack.c.l.b16 %v3297
      %v3493 = vunpack.c.l.b16 %v3298
      %v3494 = vunpack.c.h.b16 %v3298
      %v3495 = vunpack.c.l.b16 %v3299
      %v3496 = vunpack.c.l.b16 %v3300
      %v3497 = vunpack.c.h.b16 %v3300
      %v3498 = vunpack.c.l.b16 %v3301
      %v3499 = vunpack.c.l.b16 %v3302
      %v3500 = vunpack.c.h.b16 %v3302
      %v3501 = vunpack.c.l.b16 %v3303
      %v3502 = vunpack.c.l.b16 %v3304
      %v3503 = vunpack.c.h.b16 %v3304
      %v3504 = vunpack.c.l.b16 %v3305
      %v3505 = vunpack.c.l.b16 %v3306
      %v3506 = vunpack.c.h.b16 %v3306
      %v3507 = vunpack.c.l.b16 %v3307
      %v3508 = vunpack.c.l.b16 %v3308
      %v3509 = vunpack.c.h.b16 %v3308
      %v3510 = vunpack.c.l.b16 %v3309
      %v3511 = vunpack.c.l.b16 %v3310
      %v3512 = vunpack.c.h.b16 %v3310
      %v3513 = vunpack.c.l.b16 %v3311
      %v3514 = vunpack.c.l.b16 %v3312
      %v3515 = vunpack.c.h.b16 %v3312
      %v3516 = vunpack.c.l.b16 %v3313
      %v3517 = vunpack.c.l.b16 %v3314
      %v3518 = vunpack.c.h.b16 %v3314
      %v3519 = vunpack.c.l.b16 %v3315
      %v3520 = vunpack.c.l.b16 %v3316
      %v3521 = vunpack.c.h.b16 %v3316
      %v3522 = vunpack.c.l.b16 %v3317
      %v3523 = vunpack.c.l.b16 %v3318
      %v3524 = vunpack.c.h.b16 %v3318
      %v3525 = vunpack.c.l.b16 %v3319
      %v3526 = vunpack.c.l.b16 %v3320
      %v3527 = vunpack.c.h.b16 %v3320
      %v3528 = vunpack.c.l.b16 %v3321
      %v3529 = vunpack.c.l.b16 %v3322
      %v3530 = vunpack.c.h.b16 %v3322
      %v3531 = vunpack.c.l.b16 %v3323
      %v3532 = vunpack.c.l.b16 %v3324
      %v3533 = vunpack.c.h.b16 %v3324
      %v3534 = vunpack.c.l.b16 %v3325
      %v3535 = vunpack.c.l.b16 %v3326
      %v3536 = vunpack.c.h.b16 %v3326
      %v3537 = vunpack.c.l.b16 %v3327
      %v3538 = vpack.c.b16 %v3415, %v3412
      %v3539 = vpack.c.b16 %v3416, %v3413
      %v3540 = vpack.c.b16 %v3417, %v3414
      %v3541 = vpack.c.b16 %v3421, %v3418
      %v3542 = vpack.c.b16 %v3422, %v3419
      %v3543 = vpack.c.b16 %v3423, %v3420
      %v3544 = vpack.c.b16 %v3427, %v3424
      %v3545 = vpack.c.b16 %v3428, %v3425
      %v3546 = vpack.c.b16 %v3429, %v3426
      %v3547 = vpack.c.b16 %v3433, %v3430
      %v3548 = vpack.c.b16 %v3434, %v3431
      %v3549 = vpack.c.b16 %v3435, %v3432
      %v3550 = vpack.c.b16 %v3439, %v3436
      %v3551 = vpack.c.b16 %v3440, %v3437
      %v3552 = vpack.c.b16 %v3441, %v3438
      %v3553 = vpack.c.b16 %v3445, %v3442
      %v3554 = vpack.c.b16 %v3446, %v3443
      %v3555 = vpack.c.b16 %v3447, %v3444
      %v3556 = vpack.c.b16 %v3451, %v3448
      %v3557 = vpack.c.b16 %v3452, %v3449
      %v3558 = vpack.c.b16 %v3453, %v3450
      %v3559 = vpack.c.b16 %v3457, %v3454
      %v3560 = vpack.c.b16 %v3458, %v3455
      %v3561 = vpack.c.b16 %v3459, %v3456
      %v3562 = vpack.c.b16 %v3463, %v3460
      %v3563 = vpack.c.b16 %v3464, %v3461
      %v3564 = vpack.c.b16 %v3465, %v3462
      %v3565 = vpack.c.b16 %v3469, %v3466
      %v3566 = vpack.c.b16 %v3470, %v3467
      %v3567 = vpack.c.b16 %v3471, %v3468
      %v3568 = vpack.c.b16 %v3475, %v3472
      %v3569 = vpack.c.b16 %v3476, %v3473
      %v3570 = vpack.c.b16 %v3477, %v3474
      %v3571 = vpack.c.b16 %v3481, %v3478
      %v3572 = vpack.c.b16 %v3482, %v3479
      %v3573 = vpack.c.b16 %v3483, %v3480
      %v3574 = vpack.c.b16 %v3487, %v3484
      %v3575 = vpack.c.b16 %v3488, %v3485
      %v3576 = vpack.c.b16 %v3489, %v3486
      %v3577 = vpack.c.b16 %v3493, %v3490
      %v3578 = vpack.c.b16 %v3494, %v3491
      %v3579 = vpack.c.b16 %v3495, %v3492
      %v3580 = vpack.c.b16 %v3499, %v3496
      %v3581 = vpack.c.b16 %v3500, %v3497
      %v3582 = vpack.c.b16 %v3501, %v3498
      %v3583 = vpack.c.b16 %v3505, %v3502
      %v3584 = vpack.c.b16 %v3506, %v3503
      %v3585 = vpack.c.b16 %v3507, %v3504
      %v3586 = vpack.c.b16 %v3511, %v3508
      %v3587 = vpack.c.b16 %v3512, %v3509
      %v3588 = vpack.c.b16 %v3513, %v3510
      %v3589 = vpack.c.b16 %v3517, %v3514
      %v3590 = vpack.c.b16 %v3518, %v3515
      %v3591 = vpack.c.b16 %v3519, %v3516
      %v3592 = vpack.c.b16 %v3523, %v3520
      %v3593 = vpack.c.b16 %v3524, %v3521
      %v3594 = vpack.c.b16 %v3525, %v3522
      %v3595 = vpack.c.b16 %v3529, %v3526
      %v3596 = vpack.c.b16 %v3530, %v3527
      %v3597 = vpack.c.b16 %v3531, %v3528
      %v3598 = vpack.c.b16 %v3535, %v3532
      %v3599 = vpack.c.b16 %v3536, %v3533
      %v3600 = vpack.c.b16 %v3537, %v3534
      %v3665 = vsel %vm1140, %v3239, 0
      %v3668 = vsel %vm1140, %v3242, 0
      %3670 = vmatpush.bf16.msra.mxu0 %v3559
      %3671 = vmatpush.bf16.msra.mxu0 %v3556
      %3672 = vmatpush.bf16.msra.mxu0 %v3553
      %3673 = vmatpush.bf16.msra.mxu0 %v3550
      %3674 = vmatpush.bf16.msra.mxu0 %v3547
      %3675 = vmatpush.bf16.msra.mxu0 %v3544
      %3676 = vmatpush.bf16.msra.mxu0 %v3541
      %3677 = vmatpush.bf16.msra.mxu0 %v3538
      %3678 = vmatmul.bf16.gmra.mxu0 %v3237
      %v3679 = vpop.f32.mrf.mxu0
      %v3680 = vadd.f32 0.0, %v3679
      %v3681 = vpop.f32.mrf.mxu0
      %v3682 = vadd.f32 0.0, %v3681
      %3683 = vmatmul.bf16.gmra.mxu0 %v3240
      %v3684 = vpop.f32.mrf.mxu0
      %v3685 = vadd.f32 0.0, %v3684
      %v3686 = vpop.f32.mrf.mxu0
      %3687 = vdwg.mxu0
      %3688 = vmatpush.bf16.msra.mxu0 %v3583
      %3689 = vmatpush.bf16.msra.mxu0 %v3580
      %3690 = vmatpush.bf16.msra.mxu0 %v3577
      %3691 = vmatpush.bf16.msra.mxu0 %v3574
      %3692 = vmatpush.bf16.msra.mxu0 %v3571
      %3693 = vmatpush.bf16.msra.mxu0 %v3568
      %3694 = vmatpush.bf16.msra.mxu0 %v3565
      %3695 = vmatpush.bf16.msra.mxu0 %v3562
      %3696 = vmatmul.bf16.gmra.mxu0 %v3238
      %v3697 = vpop.f32.mrf.mxu0
      %v3698 = vadd.f32 %v3680, %v3697
      %v3699 = vpop.f32.mrf.mxu0
      %v3700 = vadd.f32 %v3682, %v3699
      %3701 = vmatmul.bf16.gmra.mxu0 %v3241
      %v3702 = vpop.f32.mrf.mxu0
      %v3703 = vadd.f32 %v3685, %v3702
      %v3704 = vpop.f32.mrf.mxu0
      %3705 = vdwg.mxu0
      %3706 = vmatpush.bf16.msra.mxu0 0
      %3707 = vmatpush.bf16.msra.mxu0 0
      %3708 = vmatpush.bf16.msra.mxu0 0
      %3709 = vmatpush.bf16.msra.mxu0 %v3598
      %3710 = vmatpush.bf16.msra.mxu0 %v3595
      %3711 = vmatpush.bf16.msra.mxu0 %v3592
      %3712 = vmatpush.bf16.msra.mxu0 %v3589
      %3713 = vmatpush.bf16.msra.mxu0 %v3586
      %3714 = vmatmul.bf16.gmra.mxu0 %v3665
      %v3715 = vpop.f32.mrf.mxu0
      %v3716 = vadd.f32 %v3698, %v3715
      %v3717 = vpop.f32.mrf.mxu0
      %v3718 = vadd.f32 %v3700, %v3717
      %3719 = vmatmul.bf16.gmra.mxu0 %v3668
      %v3720 = vpop.f32.mrf.mxu0
      %v3721 = vadd.f32 %v3703, %v3720
      %v3722 = vpop.f32.mrf.mxu0
      %3723 = vdwg.mxu0
      %3724 = vmatpush.bf16.msra.mxu0 %v3560
      %3725 = vmatpush.bf16.msra.mxu0 %v3557
      %3726 = vmatpush.bf16.msra.mxu0 %v3554
      %3727 = vmatpush.bf16.msra.mxu0 %v3551
      %3728 = vmatpush.bf16.msra.mxu0 %v3548
      %3729 = vmatpush.bf16.msra.mxu0 %v3545
      %3730 = vmatpush.bf16.msra.mxu0 %v3542
      %3731 = vmatpush.bf16.msra.mxu0 %v3539
      %3732 = vmatmul.bf16.gmra.mxu0 %v3237
      %v3733 = vpop.f32.mrf.mxu0
      %v3734 = vadd.f32 0.0, %v3733
      %v3735 = vpop.f32.mrf.mxu0
      %v3736 = vadd.f32 0.0, %v3735
      %3737 = vmatmul.bf16.gmra.mxu0 %v3240
      %v3738 = vpop.f32.mrf.mxu0
      %v3739 = vadd.f32 0.0, %v3738
      %v3740 = vpop.f32.mrf.mxu0
      %3741 = vdwg.mxu0
      %3742 = vmatpush.bf16.msra.mxu0 %v3584
      %3743 = vmatpush.bf16.msra.mxu0 %v3581
      %3744 = vmatpush.bf16.msra.mxu0 %v3578
      %3745 = vmatpush.bf16.msra.mxu0 %v3575
      %3746 = vmatpush.bf16.msra.mxu0 %v3572
      %3747 = vmatpush.bf16.msra.mxu0 %v3569
      %3748 = vmatpush.bf16.msra.mxu0 %v3566
      %3749 = vmatpush.bf16.msra.mxu0 %v3563
      %3750 = vmatmul.bf16.gmra.mxu0 %v3238
      %v3751 = vpop.f32.mrf.mxu0
      %v3752 = vadd.f32 %v3734, %v3751
      %v3753 = vpop.f32.mrf.mxu0
      %v3754 = vadd.f32 %v3736, %v3753
      %3755 = vmatmul.bf16.gmra.mxu0 %v3241
      %v3756 = vpop.f32.mrf.mxu0
      %v3757 = vadd.f32 %v3739, %v3756
      %v3758 = vpop.f32.mrf.mxu0
      %3759 = vdwg.mxu0
      %3760 = vmatpush.bf16.msra.mxu0 0
      %3761 = vmatpush.bf16.msra.mxu0 0
      %3762 = vmatpush.bf16.msra.mxu0 0
      %3763 = vmatpush.bf16.msra.mxu0 %v3599
      %3764 = vmatpush.bf16.msra.mxu0 %v3596
      %3765 = vmatpush.bf16.msra.mxu0 %v3593
      %3766 = vmatpush.bf16.msra.mxu0 %v3590
      %3767 = vmatpush.bf16.msra.mxu0 %v3587
      %3768 = vmatmul.bf16.gmra.mxu0 %v3665
      %v3769 = vpop.f32.mrf.mxu0
      %v3770 = vadd.f32 %v3752, %v3769
      %v3771 = vpop.f32.mrf.mxu0
      %v3772 = vadd.f32 %v3754, %v3771
      %3773 = vmatmul.bf16.gmra.mxu0 %v3668
      %v3774 = vpop.f32.mrf.mxu0
      %v3775 = vadd.f32 %v3757, %v3774
      %v3776 = vpop.f32.mrf.mxu0
      %3777 = vdwg.mxu0
      %3778 = vmatpush.bf16.msra.mxu0 %v3561
      %3779 = vmatpush.bf16.msra.mxu0 %v3558
      %3780 = vmatpush.bf16.msra.mxu0 %v3555
      %3781 = vmatpush.bf16.msra.mxu0 %v3552
      %3782 = vmatpush.bf16.msra.mxu0 %v3549
      %3783 = vmatpush.bf16.msra.mxu0 %v3546
      %3784 = vmatpush.bf16.msra.mxu0 %v3543
      %3785 = vmatpush.bf16.msra.mxu0 %v3540
      %3786 = vmatmul.bf16.gmra.mxu0 %v3237
      %v3787 = vpop.f32.mrf.mxu0
      %v3788 = vadd.f32 0.0, %v3787
      %v3789 = vpop.f32.mrf.mxu0
      %v3790 = vadd.f32 0.0, %v3789
      %3791 = vmatmul.bf16.gmra.mxu0 %v3240
      %v3792 = vpop.f32.mrf.mxu0
      %v3793 = vadd.f32 0.0, %v3792
      %v3794 = vpop.f32.mrf.mxu0
      %3795 = vdwg.mxu0
      %3796 = vmatpush.bf16.msra.mxu0 %v3585
      %3797 = vmatpush.bf16.msra.mxu0 %v3582
      %3798 = vmatpush.bf16.msra.mxu0 %v3579
      %3799 = vmatpush.bf16.msra.mxu0 %v3576
      %3800 = vmatpush.bf16.msra.mxu0 %v3573
      %3801 = vmatpush.bf16.msra.mxu0 %v3570
      %3802 = vmatpush.bf16.msra.mxu0 %v3567
      %3803 = vmatpush.bf16.msra.mxu0 %v3564
      %3804 = vmatmul.bf16.gmra.mxu0 %v3238
      %v3805 = vpop.f32.mrf.mxu0
      %v3806 = vadd.f32 %v3788, %v3805
      %v3807 = vpop.f32.mrf.mxu0
      %v3808 = vadd.f32 %v3790, %v3807
      %3809 = vmatmul.bf16.gmra.mxu0 %v3241
      %v3810 = vpop.f32.mrf.mxu0
      %v3811 = vadd.f32 %v3793, %v3810
      %v3812 = vpop.f32.mrf.mxu0
      %3813 = vdwg.mxu0
      %3814 = vmatpush.bf16.msra.mxu0 0
      %3815 = vmatpush.bf16.msra.mxu0 0
      %3816 = vmatpush.bf16.msra.mxu0 0
      %3817 = vmatpush.bf16.msra.mxu0 %v3600
      %3818 = vmatpush.bf16.msra.mxu0 %v3597
      %3819 = vmatpush.bf16.msra.mxu0 %v3594
      %3820 = vmatpush.bf16.msra.mxu0 %v3591
      %3821 = vmatpush.bf16.msra.mxu0 %v3588
      %3822 = vmatmul.bf16.gmra.mxu0 %v3665
      %v3823 = vpop.f32.mrf.mxu0
      %v3824 = vadd.f32 %v3806, %v3823
      %v3825 = vpop.f32.mrf.mxu0
      %v3826 = vadd.f32 %v3808, %v3825
      %3827 = vmatmul.bf16.gmra.mxu0 %v3668
      %v3828 = vpop.f32.mrf.mxu0
      %v3829 = vadd.f32 %v3811, %v3828
      %v3830 = vpop.f32.mrf.mxu0
      %3831 = vdwg.mxu0
      %v3832 = vadd.f32 %v3156, %v3716
      %v3833 = vadd.f32 %v3157, %v3770
      %v3834 = vadd.f32 %v3158, %v3824
      %v3835 = vadd.f32 %v3159, %v3718
      %v3836 = vadd.f32 %v3160, %v3772
      %v3837 = vadd.f32 %v3161, %v3826
      %v3838 = vadd.f32 %v3162, %v3721
      %v3839 = vadd.f32 %v3163, %v3775
      %v3840 = vadd.f32 %v3164, %v3829
      %s3841 = scalar_lea.vmem %s1, 60
      %v3842 = vld [vmem:[%s3841] sm:$0xf]
      %v3843 = vld [vmem:[%s3841 + $0x4] sm:$0xf]
      %v3844 = vld [vmem:[%s3841 + $0x8] sm:$0xf]
      %v3848 = vunpack.c.l.b16 %v3842
      %v3849 = vunpack.c.l.b16 %v3843
      %v3850 = vunpack.c.l.b16 %v3844
      %v3851 = vpack.c.b16 %v3849, %v3848
      %v3852 = vpack.c.b16 %v3850, %v3850
      %v3854 = vsel %vm480, %v3851, 0
      %v3857 = vsel %vm480, %v3852, 0
      %3859 = vmatpush.bf16.msra.mxu0 0
      %3860 = vmatpush.bf16.msra.mxu0 0
      %3861 = vmatpush.bf16.msra.mxu0 %v489
      %3862 = vmatpush.bf16.msra.mxu0 %v459
      %3863 = vmatpush.bf16.msra.mxu0 %v456
      %3864 = vmatpush.bf16.msra.mxu0 %v453
      %3865 = vmatpush.bf16.msra.mxu0 %v450
      %3866 = vmatpush.bf16.msra.mxu0 %v447
      %3867 = vmatmul.bf16.gmra.mxu0 %v3854
      %v3868 = vpop.f32.mrf.mxu0
      %v3869 = vadd.f32 0.0, %v3868
      %v3870 = vpop.f32.mrf.mxu0
      %v3871 = vadd.f32 0.0, %v3870
      %3872 = vmatmul.bf16.gmra.mxu0 %v3857
      %v3873 = vpop.f32.mrf.mxu0
      %v3874 = vadd.f32 0.0, %v3873
      %v3875 = vpop.f32.mrf.mxu0
      %3876 = vdwg.mxu0
      %3877 = vmatpush.bf16.msra.mxu0 0
      %3878 = vmatpush.bf16.msra.mxu0 0
      %3879 = vmatpush.bf16.msra.mxu0 %v492
      %3880 = vmatpush.bf16.msra.mxu0 %v460
      %3881 = vmatpush.bf16.msra.mxu0 %v457
      %3882 = vmatpush.bf16.msra.mxu0 %v454
      %3883 = vmatpush.bf16.msra.mxu0 %v451
      %3884 = vmatpush.bf16.msra.mxu0 %v448
      %3885 = vmatmul.bf16.gmra.mxu0 %v3854
      %v3886 = vpop.f32.mrf.mxu0
      %v3887 = vadd.f32 0.0, %v3886
      %v3888 = vpop.f32.mrf.mxu0
      %v3889 = vadd.f32 0.0, %v3888
      %3890 = vmatmul.bf16.gmra.mxu0 %v3857
      %v3891 = vpop.f32.mrf.mxu0
      %v3892 = vadd.f32 0.0, %v3891
      %v3893 = vpop.f32.mrf.mxu0
      %3894 = vdwg.mxu0
      %3895 = vmatpush.bf16.msra.mxu0 0
      %3896 = vmatpush.bf16.msra.mxu0 0
      %3897 = vmatpush.bf16.msra.mxu0 %v495
      %3898 = vmatpush.bf16.msra.mxu0 %v461
      %3899 = vmatpush.bf16.msra.mxu0 %v458
      %3900 = vmatpush.bf16.msra.mxu0 %v455
      %3901 = vmatpush.bf16.msra.mxu0 %v452
      %3902 = vmatpush.bf16.msra.mxu0 %v449
      %3903 = vmatmul.bf16.gmra.mxu0 %v3854
      %v3904 = vpop.f32.mrf.mxu0
      %v3905 = vadd.f32 0.0, %v3904
      %v3906 = vpop.f32.mrf.mxu0
      %v3907 = vadd.f32 0.0, %v3906
      %3908 = vmatmul.bf16.gmra.mxu0 %v3857
      %v3909 = vpop.f32.mrf.mxu0
      %v3910 = vadd.f32 0.0, %v3909
      %v3911 = vpop.f32.mrf.mxu0
      %3912 = vdwg.mxu0
      %v3913 = vpack.c.bf16 %v3871, %v3869
      %v3914 = vpack.c.bf16 %v3889, %v3887
      %v3915 = vpack.c.bf16 %v3907, %v3905
      %v3916 = vpack.c.bf16 %v3874, %v3874
      %v3917 = vpack.c.bf16 %v3892, %v3892
      %v3918 = vpack.c.bf16 %v3910, %v3910
      %s3919 = scalar_lea.vmem %s2, 2520
      %v3920 = vld [vmem:[%s3919] sm:$0xff]
      %v3921 = vld [vmem:[%s3919 + $0x8] sm:$0xf]
      %v3922 = vld [vmem:[%s3919 + $0xc] sm:$0xff]
      %v3923 = vld [vmem:[%s3919 + $0x14] sm:$0xf]
      %v3924 = vld [vmem:[%s3919 + $0x18] sm:$0xff]
      %v3925 = vld [vmem:[%s3919 + $0x20] sm:$0xf]
      %v3926 = vld [vmem:[%s3919 + $0x24] sm:$0xff]
      %v3927 = vld [vmem:[%s3919 + $0x2c] sm:$0xf]
      %v3928 = vld [vmem:[%s3919 + $0x30] sm:$0xff]
      %v3929 = vld [vmem:[%s3919 + $0x38] sm:$0xf]
      %v3930 = vld [vmem:[%s3919 + $0x3c] sm:$0xff]
      %v3931 = vld [vmem:[%s3919 + $0x44] sm:$0xf]
      %v3932 = vld [vmem:[%s3919 + $0x48] sm:$0xff]
      %v3933 = vld [vmem:[%s3919 + $0x50] sm:$0xf]
      %v3934 = vld [vmem:[%s3919 + $0x54] sm:$0xff]
      %v3935 = vld [vmem:[%s3919 + $0x5c] sm:$0xf]
      %v3936 = vld [vmem:[%s3919 + $0x60] sm:$0xff]
      %v3937 = vld [vmem:[%s3919 + $0x68] sm:$0xf]
      %v3938 = vld [vmem:[%s3919 + $0x6c] sm:$0xff]
      %v3939 = vld [vmem:[%s3919 + $0x74] sm:$0xf]
      %v3940 = vld [vmem:[%s3919 + $0x78] sm:$0xff]
      %v3941 = vld [vmem:[%s3919 + $0x80] sm:$0xf]
      %v3942 = vld [vmem:[%s3919 + $0x84] sm:$0xff]
      %v3943 = vld [vmem:[%s3919 + $0x8c] sm:$0xf]
      %v3944 = vld [vmem:[%s3919 + $0x90] sm:$0xff]
      %v3945 = vld [vmem:[%s3919 + $0x98] sm:$0xf]
      %v3946 = vld [vmem:[%s3919 + $0x9c] sm:$0xff]
      %v3947 = vld [vmem:[%s3919 + $0xa4] sm:$0xf]
      %v3948 = vld [vmem:[%s3919 + $0xa8] sm:$0xff]
      %v3949 = vld [vmem:[%s3919 + $0xb0] sm:$0xf]
      %v3950 = vld [vmem:[%s3919 + $0xb4] sm:$0xff]
      %v3951 = vld [vmem:[%s3919 + $0xbc] sm:$0xf]
      %v3952 = vld [vmem:[%s3919 + $0xc0] sm:$0xff]
      %v3953 = vld [vmem:[%s3919 + $0xc8] sm:$0xf]
      %v3954 = vld [vmem:[%s3919 + $0xcc] sm:$0xff]
      %v3955 = vld [vmem:[%s3919 + $0xd4] sm:$0xf]
      %v3956 = vld [vmem:[%s3919 + $0xd8] sm:$0xff]
      %v3957 = vld [vmem:[%s3919 + $0xe0] sm:$0xf]
      %v3958 = vld [vmem:[%s3919 + $0xe4] sm:$0xff]
      %v3959 = vld [vmem:[%s3919 + $0xec] sm:$0xf]
      %v3960 = vld [vmem:[%s3919 + $0xf0] sm:$0xff]
      %v3961 = vld [vmem:[%s3919 + $0xf8] sm:$0xf]
      %v3962 = vld [vmem:[%s3919 + $0xfc] sm:$0xff]
      %v3963 = vld [vmem:[%s3919 + $0x104] sm:$0xf]
      %v3964 = vld [vmem:[%s3919 + $0x108] sm:$0xff]
      %v3965 = vld [vmem:[%s3919 + $0x110] sm:$0xf]
      %v3966 = vld [vmem:[%s3919 + $0x114] sm:$0xff]
      %v3967 = vld [vmem:[%s3919 + $0x11c] sm:$0xf]
      %v3968 = vld [vmem:[%s3919 + $0x120] sm:$0xff]
      %v3969 = vld [vmem:[%s3919 + $0x128] sm:$0xf]
      %v3970 = vld [vmem:[%s3919 + $0x12c] sm:$0xff]
      %v3971 = vld [vmem:[%s3919 + $0x134] sm:$0xf]
      %v3972 = vld [vmem:[%s3919 + $0x138] sm:$0xff]
      %v3973 = vld [vmem:[%s3919 + $0x140] sm:$0xf]
      %v3974 = vld [vmem:[%s3919 + $0x144] sm:$0xff]
      %v3975 = vld [vmem:[%s3919 + $0x14c] sm:$0xf]
      %v3976 = vld [vmem:[%s3919 + $0x150] sm:$0xff]
      %v3977 = vld [vmem:[%s3919 + $0x158] sm:$0xf]
      %v3978 = vld [vmem:[%s3919 + $0x15c] sm:$0xff]
      %v3979 = vld [vmem:[%s3919 + $0x164] sm:$0xf]
      %v3980 = vld [vmem:[%s3919 + $0x168] sm:$0xff]
      %v3981 = vld [vmem:[%s3919 + $0x170] sm:$0xf]
      %v3982 = vld [vmem:[%s3919 + $0x174] sm:$0xff]
      %v3983 = vld [vmem:[%s3919 + $0x17c] sm:$0xf]
      %v3984 = vld [vmem:[%s3919 + $0x180] sm:$0xff]
      %v3985 = vld [vmem:[%s3919 + $0x188] sm:$0xf]
      %v3986 = vld [vmem:[%s3919 + $0x18c] sm:$0xff]
      %v3987 = vld [vmem:[%s3919 + $0x194] sm:$0xf]
      %v3988 = vld [vmem:[%s3919 + $0x198] sm:$0xff]
      %v3989 = vld [vmem:[%s3919 + $0x1a0] sm:$0xf]
      %v3990 = vld [vmem:[%s3919 + $0x1a4] sm:$0xff]
      %v3991 = vld [vmem:[%s3919 + $0x1ac] sm:$0xf]
      %v3992 = vld [vmem:[%s3919 + $0x1b0] sm:$0xff]
      %v3993 = vld [vmem:[%s3919 + $0x1b8] sm:$0xf]
      %v3994 = vld [vmem:[%s3919 + $0x1bc] sm:$0xff]
      %v3995 = vld [vmem:[%s3919 + $0x1c4] sm:$0xf]
      %v3996 = vld [vmem:[%s3919 + $0x1c8] sm:$0xff]
      %v3997 = vld [vmem:[%s3919 + $0x1d0] sm:$0xf]
      %v3998 = vld [vmem:[%s3919 + $0x1d4] sm:$0xff]
      %v3999 = vld [vmem:[%s3919 + $0x1dc] sm:$0xf]
      %v4000 = vld [vmem:[%s3919 + $0x1e0] sm:$0xff]
      %v4001 = vld [vmem:[%s3919 + $0x1e8] sm:$0xf]
      %v4002 = vld [vmem:[%s3919 + $0x1ec] sm:$0xff]
      %v4003 = vld [vmem:[%s3919 + $0x1f4] sm:$0xf]
      %v4088 = vunpack.c.l.b16 %v3920
      %v4089 = vunpack.c.h.b16 %v3920
      %v4090 = vunpack.c.l.b16 %v3921
      %v4091 = vunpack.c.l.b16 %v3922
      %v4092 = vunpack.c.h.b16 %v3922
      %v4093 = vunpack.c.l.b16 %v3923
      %v4094 = vunpack.c.l.b16 %v3924
      %v4095 = vunpack.c.h.b16 %v3924
      %v4096 = vunpack.c.l.b16 %v3925
      %v4097 = vunpack.c.l.b16 %v3926
      %v4098 = vunpack.c.h.b16 %v3926
      %v4099 = vunpack.c.l.b16 %v3927
      %v4100 = vunpack.c.l.b16 %v3928
      %v4101 = vunpack.c.h.b16 %v3928
      %v4102 = vunpack.c.l.b16 %v3929
      %v4103 = vunpack.c.l.b16 %v3930
      %v4104 = vunpack.c.h.b16 %v3930
      %v4105 = vunpack.c.l.b16 %v3931
      %v4106 = vunpack.c.l.b16 %v3932
      %v4107 = vunpack.c.h.b16 %v3932
      %v4108 = vunpack.c.l.b16 %v3933
      %v4109 = vunpack.c.l.b16 %v3934
      %v4110 = vunpack.c.h.b16 %v3934
      %v4111 = vunpack.c.l.b16 %v3935
      %v4112 = vunpack.c.l.b16 %v3936
      %v4113 = vunpack.c.h.b16 %v3936
      %v4114 = vunpack.c.l.b16 %v3937
      %v4115 = vunpack.c.l.b16 %v3938
      %v4116 = vunpack.c.h.b16 %v3938
      %v4117 = vunpack.c.l.b16 %v3939
      %v4118 = vunpack.c.l.b16 %v3940
      %v4119 = vunpack.c.h.b16 %v3940
      %v4120 = vunpack.c.l.b16 %v3941
      %v4121 = vunpack.c.l.b16 %v3942
      %v4122 = vunpack.c.h.b16 %v3942
      %v4123 = vunpack.c.l.b16 %v3943
      %v4124 = vunpack.c.l.b16 %v3944
      %v4125 = vunpack.c.h.b16 %v3944
      %v4126 = vunpack.c.l.b16 %v3945
      %v4127 = vunpack.c.l.b16 %v3946
      %v4128 = vunpack.c.h.b16 %v3946
      %v4129 = vunpack.c.l.b16 %v3947
      %v4130 = vunpack.c.l.b16 %v3948
      %v4131 = vunpack.c.h.b16 %v3948
      %v4132 = vunpack.c.l.b16 %v3949
      %v4133 = vunpack.c.l.b16 %v3950
      %v4134 = vunpack.c.h.b16 %v3950
      %v4135 = vunpack.c.l.b16 %v3951
      %v4136 = vunpack.c.l.b16 %v3952
      %v4137 = vunpack.c.h.b16 %v3952
      %v4138 = vunpack.c.l.b16 %v3953
      %v4139 = vunpack.c.l.b16 %v3954
      %v4140 = vunpack.c.h.b16 %v3954
      %v4141 = vunpack.c.l.b16 %v3955
      %v4142 = vunpack.c.l.b16 %v3956
      %v4143 = vunpack.c.h.b16 %v3956
      %v4144 = vunpack.c.l.b16 %v3957
      %v4145 = vunpack.c.l.b16 %v3958
      %v4146 = vunpack.c.h.b16 %v3958
      %v4147 = vunpack.c.l.b16 %v3959
      %v4148 = vunpack.c.l.b16 %v3960
      %v4149 = vunpack.c.h.b16 %v3960
      %v4150 = vunpack.c.l.b16 %v3961
      %v4151 = vunpack.c.l.b16 %v3962
      %v4152 = vunpack.c.h.b16 %v3962
      %v4153 = vunpack.c.l.b16 %v3963
      %v4154 = vunpack.c.l.b16 %v3964
      %v4155 = vunpack.c.h.b16 %v3964
      %v4156 = vunpack.c.l.b16 %v3965
      %v4157 = vunpack.c.l.b16 %v3966
      %v4158 = vunpack.c.h.b16 %v3966
      %v4159 = vunpack.c.l.b16 %v3967
      %v4160 = vunpack.c.l.b16 %v3968
      %v4161 = vunpack.c.h.b16 %v3968
      %v4162 = vunpack.c.l.b16 %v3969
      %v4163 = vunpack.c.l.b16 %v3970
      %v4164 = vunpack.c.h.b16 %v3970
      %v4165 = vunpack.c.l.b16 %v3971
      %v4166 = vunpack.c.l.b16 %v3972
      %v4167 = vunpack.c.h.b16 %v3972
      %v4168 = vunpack.c.l.b16 %v3973
      %v4169 = vunpack.c.l.b16 %v3974
      %v4170 = vunpack.c.h.b16 %v3974
      %v4171 = vunpack.c.l.b16 %v3975
      %v4172 = vunpack.c.l.b16 %v3976
      %v4173 = vunpack.c.h.b16 %v3976
      %v4174 = vunpack.c.l.b16 %v3977
      %v4175 = vunpack.c.l.b16 %v3978
      %v4176 = vunpack.c.h.b16 %v3978
      %v4177 = vunpack.c.l.b16 %v3979
      %v4178 = vunpack.c.l.b16 %v3980
      %v4179 = vunpack.c.h.b16 %v3980
      %v4180 = vunpack.c.l.b16 %v3981
      %v4181 = vunpack.c.l.b16 %v3982
      %v4182 = vunpack.c.h.b16 %v3982
      %v4183 = vunpack.c.l.b16 %v3983
      %v4184 = vunpack.c.l.b16 %v3984
      %v4185 = vunpack.c.h.b16 %v3984
      %v4186 = vunpack.c.l.b16 %v3985
      %v4187 = vunpack.c.l.b16 %v3986
      %v4188 = vunpack.c.h.b16 %v3986
      %v4189 = vunpack.c.l.b16 %v3987
      %v4190 = vunpack.c.l.b16 %v3988
      %v4191 = vunpack.c.h.b16 %v3988
      %v4192 = vunpack.c.l.b16 %v3989
      %v4193 = vunpack.c.l.b16 %v3990
      %v4194 = vunpack.c.h.b16 %v3990
      %v4195 = vunpack.c.l.b16 %v3991
      %v4196 = vunpack.c.l.b16 %v3992
      %v4197 = vunpack.c.h.b16 %v3992
      %v4198 = vunpack.c.l.b16 %v3993
      %v4199 = vunpack.c.l.b16 %v3994
      %v4200 = vunpack.c.h.b16 %v3994
      %v4201 = vunpack.c.l.b16 %v3995
      %v4202 = vunpack.c.l.b16 %v3996
      %v4203 = vunpack.c.h.b16 %v3996
      %v4204 = vunpack.c.l.b16 %v3997
      %v4205 = vunpack.c.l.b16 %v3998
      %v4206 = vunpack.c.h.b16 %v3998
      %v4207 = vunpack.c.l.b16 %v3999
      %v4208 = vunpack.c.l.b16 %v4000
      %v4209 = vunpack.c.h.b16 %v4000
      %v4210 = vunpack.c.l.b16 %v4001
      %v4211 = vunpack.c.l.b16 %v4002
      %v4212 = vunpack.c.h.b16 %v4002
      %v4213 = vunpack.c.l.b16 %v4003
      %v4214 = vpack.c.b16 %v4091, %v4088
      %v4215 = vpack.c.b16 %v4092, %v4089
      %v4216 = vpack.c.b16 %v4093, %v4090
      %v4217 = vpack.c.b16 %v4097, %v4094
      %v4218 = vpack.c.b16 %v4098, %v4095
      %v4219 = vpack.c.b16 %v4099, %v4096
      %v4220 = vpack.c.b16 %v4103, %v4100
      %v4221 = vpack.c.b16 %v4104, %v4101
      %v4222 = vpack.c.b16 %v4105, %v4102
      %v4223 = vpack.c.b16 %v4109, %v4106
      %v4224 = vpack.c.b16 %v4110, %v4107
      %v4225 = vpack.c.b16 %v4111, %v4108
      %v4226 = vpack.c.b16 %v4115, %v4112
      %v4227 = vpack.c.b16 %v4116, %v4113
      %v4228 = vpack.c.b16 %v4117, %v4114
      %v4229 = vpack.c.b16 %v4121, %v4118
      %v4230 = vpack.c.b16 %v4122, %v4119
      %v4231 = vpack.c.b16 %v4123, %v4120
      %v4232 = vpack.c.b16 %v4127, %v4124
      %v4233 = vpack.c.b16 %v4128, %v4125
      %v4234 = vpack.c.b16 %v4129, %v4126
      %v4235 = vpack.c.b16 %v4133, %v4130
      %v4236 = vpack.c.b16 %v4134, %v4131
      %v4237 = vpack.c.b16 %v4135, %v4132
      %v4238 = vpack.c.b16 %v4139, %v4136
      %v4239 = vpack.c.b16 %v4140, %v4137
      %v4240 = vpack.c.b16 %v4141, %v4138
      %v4241 = vpack.c.b16 %v4145, %v4142
      %v4242 = vpack.c.b16 %v4146, %v4143
      %v4243 = vpack.c.b16 %v4147, %v4144
      %v4244 = vpack.c.b16 %v4151, %v4148
      %v4245 = vpack.c.b16 %v4152, %v4149
      %v4246 = vpack.c.b16 %v4153, %v4150
      %v4247 = vpack.c.b16 %v4157, %v4154
      %v4248 = vpack.c.b16 %v4158, %v4155
      %v4249 = vpack.c.b16 %v4159, %v4156
      %v4250 = vpack.c.b16 %v4163, %v4160
      %v4251 = vpack.c.b16 %v4164, %v4161
      %v4252 = vpack.c.b16 %v4165, %v4162
      %v4253 = vpack.c.b16 %v4169, %v4166
      %v4254 = vpack.c.b16 %v4170, %v4167
      %v4255 = vpack.c.b16 %v4171, %v4168
      %v4256 = vpack.c.b16 %v4175, %v4172
      %v4257 = vpack.c.b16 %v4176, %v4173
      %v4258 = vpack.c.b16 %v4177, %v4174
      %v4259 = vpack.c.b16 %v4181, %v4178
      %v4260 = vpack.c.b16 %v4182, %v4179
      %v4261 = vpack.c.b16 %v4183, %v4180
      %v4262 = vpack.c.b16 %v4187, %v4184
      %v4263 = vpack.c.b16 %v4188, %v4185
      %v4264 = vpack.c.b16 %v4189, %v4186
      %v4265 = vpack.c.b16 %v4193, %v4190
      %v4266 = vpack.c.b16 %v4194, %v4191
      %v4267 = vpack.c.b16 %v4195, %v4192
      %v4268 = vpack.c.b16 %v4199, %v4196
      %v4269 = vpack.c.b16 %v4200, %v4197
      %v4270 = vpack.c.b16 %v4201, %v4198
      %v4271 = vpack.c.b16 %v4205, %v4202
      %v4272 = vpack.c.b16 %v4206, %v4203
      %v4273 = vpack.c.b16 %v4207, %v4204
      %v4274 = vpack.c.b16 %v4211, %v4208
      %v4275 = vpack.c.b16 %v4212, %v4209
      %v4276 = vpack.c.b16 %v4213, %v4210
      %v4341 = vsel %vm1140, %v3915, 0
      %v4344 = vsel %vm1140, %v3918, 0
      %4346 = vmatpush.bf16.msra.mxu0 %v4235
      %4347 = vmatpush.bf16.msra.mxu0 %v4232
      %4348 = vmatpush.bf16.msra.mxu0 %v4229
      %4349 = vmatpush.bf16.msra.mxu0 %v4226
      %4350 = vmatpush.bf16.msra.mxu0 %v4223
      %4351 = vmatpush.bf16.msra.mxu0 %v4220
      %4352 = vmatpush.bf16.msra.mxu0 %v4217
      %4353 = vmatpush.bf16.msra.mxu0 %v4214
      %4354 = vmatmul.bf16.gmra.mxu0 %v3913
      %v4355 = vpop.f32.mrf.mxu0
      %v4356 = vadd.f32 0.0, %v4355
      %v4357 = vpop.f32.mrf.mxu0
      %v4358 = vadd.f32 0.0, %v4357
      %4359 = vmatmul.bf16.gmra.mxu0 %v3916
      %v4360 = vpop.f32.mrf.mxu0
      %v4361 = vadd.f32 0.0, %v4360
      %v4362 = vpop.f32.mrf.mxu0
      %4363 = vdwg.mxu0
      %4364 = vmatpush.bf16.msra.mxu0 %v4259
      %4365 = vmatpush.bf16.msra.mxu0 %v4256
      %4366 = vmatpush.bf16.msra.mxu0 %v4253
      %4367 = vmatpush.bf16.msra.mxu0 %v4250
      %4368 = vmatpush.bf16.msra.mxu0 %v4247
      %4369 = vmatpush.bf16.msra.mxu0 %v4244
      %4370 = vmatpush.bf16.msra.mxu0 %v4241
      %4371 = vmatpush.bf16.msra.mxu0 %v4238
      %4372 = vmatmul.bf16.gmra.mxu0 %v3914
      %v4373 = vpop.f32.mrf.mxu0
      %v4374 = vadd.f32 %v4356, %v4373
      %v4375 = vpop.f32.mrf.mxu0
      %v4376 = vadd.f32 %v4358, %v4375
      %4377 = vmatmul.bf16.gmra.mxu0 %v3917
      %v4378 = vpop.f32.mrf.mxu0
      %v4379 = vadd.f32 %v4361, %v4378
      %v4380 = vpop.f32.mrf.mxu0
      %4381 = vdwg.mxu0
      %4382 = vmatpush.bf16.msra.mxu0 0
      %4383 = vmatpush.bf16.msra.mxu0 0
      %4384 = vmatpush.bf16.msra.mxu0 0
      %4385 = vmatpush.bf16.msra.mxu0 %v4274
      %4386 = vmatpush.bf16.msra.mxu0 %v4271
      %4387 = vmatpush.bf16.msra.mxu0 %v4268
      %4388 = vmatpush.bf16.msra.mxu0 %v4265
      %4389 = vmatpush.bf16.msra.mxu0 %v4262
      %4390 = vmatmul.bf16.gmra.mxu0 %v4341
      %v4391 = vpop.f32.mrf.mxu0
      %v4392 = vadd.f32 %v4374, %v4391
      %v4393 = vpop.f32.mrf.mxu0
      %v4394 = vadd.f32 %v4376, %v4393
      %4395 = vmatmul.bf16.gmra.mxu0 %v4344
      %v4396 = vpop.f32.mrf.mxu0
      %v4397 = vadd.f32 %v4379, %v4396
      %v4398 = vpop.f32.mrf.mxu0
      %4399 = vdwg.mxu0
      %4400 = vmatpush.bf16.msra.mxu0 %v4236
      %4401 = vmatpush.bf16.msra.mxu0 %v4233
      %4402 = vmatpush.bf16.msra.mxu0 %v4230
      %4403 = vmatpush.bf16.msra.mxu0 %v4227
      %4404 = vmatpush.bf16.msra.mxu0 %v4224
      %4405 = vmatpush.bf16.msra.mxu0 %v4221
      %4406 = vmatpush.bf16.msra.mxu0 %v4218
      %4407 = vmatpush.bf16.msra.mxu0 %v4215
      %4408 = vmatmul.bf16.gmra.mxu0 %v3913
      %v4409 = vpop.f32.mrf.mxu0
      %v4410 = vadd.f32 0.0, %v4409
      %v4411 = vpop.f32.mrf.mxu0
      %v4412 = vadd.f32 0.0, %v4411
      %4413 = vmatmul.bf16.gmra.mxu0 %v3916
      %v4414 = vpop.f32.mrf.mxu0
      %v4415 = vadd.f32 0.0, %v4414
      %v4416 = vpop.f32.mrf.mxu0
      %4417 = vdwg.mxu0
      %4418 = vmatpush.bf16.msra.mxu0 %v4260
      %4419 = vmatpush.bf16.msra.mxu0 %v4257
      %4420 = vmatpush.bf16.msra.mxu0 %v4254
      %4421 = vmatpush.bf16.msra.mxu0 %v4251
      %4422 = vmatpush.bf16.msra.mxu0 %v4248
      %4423 = vmatpush.bf16.msra.mxu0 %v4245
      %4424 = vmatpush.bf16.msra.mxu0 %v4242
      %4425 = vmatpush.bf16.msra.mxu0 %v4239
      %4426 = vmatmul.bf16.gmra.mxu0 %v3914
      %v4427 = vpop.f32.mrf.mxu0
      %v4428 = vadd.f32 %v4410, %v4427
      %v4429 = vpop.f32.mrf.mxu0
      %v4430 = vadd.f32 %v4412, %v4429
      %4431 = vmatmul.bf16.gmra.mxu0 %v3917
      %v4432 = vpop.f32.mrf.mxu0
      %v4433 = vadd.f32 %v4415, %v4432
      %v4434 = vpop.f32.mrf.mxu0
      %4435 = vdwg.mxu0
      %4436 = vmatpush.bf16.msra.mxu0 0
      %4437 = vmatpush.bf16.msra.mxu0 0
      %4438 = vmatpush.bf16.msra.mxu0 0
      %4439 = vmatpush.bf16.msra.mxu0 %v4275
      %4440 = vmatpush.bf16.msra.mxu0 %v4272
      %4441 = vmatpush.bf16.msra.mxu0 %v4269
      %4442 = vmatpush.bf16.msra.mxu0 %v4266
      %4443 = vmatpush.bf16.msra.mxu0 %v4263
      %4444 = vmatmul.bf16.gmra.mxu0 %v4341
      %v4445 = vpop.f32.mrf.mxu0
      %v4446 = vadd.f32 %v4428, %v4445
      %v4447 = vpop.f32.mrf.mxu0
      %v4448 = vadd.f32 %v4430, %v4447
      %4449 = vmatmul.bf16.gmra.mxu0 %v4344
      %v4450 = vpop.f32.mrf.mxu0
      %v4451 = vadd.f32 %v4433, %v4450
      %v4452 = vpop.f32.mrf.mxu0
      %4453 = vdwg.mxu0
      %4454 = vmatpush.bf16.msra.mxu0 %v4237
      %4455 = vmatpush.bf16.msra.mxu0 %v4234
      %4456 = vmatpush.bf16.msra.mxu0 %v4231
      %4457 = vmatpush.bf16.msra.mxu0 %v4228
      %4458 = vmatpush.bf16.msra.mxu0 %v4225
      %4459 = vmatpush.bf16.msra.mxu0 %v4222
      %4460 = vmatpush.bf16.msra.mxu0 %v4219
      %4461 = vmatpush.bf16.msra.mxu0 %v4216
      %4462 = vmatmul.bf16.gmra.mxu0 %v3913
      %v4463 = vpop.f32.mrf.mxu0
      %v4464 = vadd.f32 0.0, %v4463
      %v4465 = vpop.f32.mrf.mxu0
      %v4466 = vadd.f32 0.0, %v4465
      %4467 = vmatmul.bf16.gmra.mxu0 %v3916
      %v4468 = vpop.f32.mrf.mxu0
      %v4469 = vadd.f32 0.0, %v4468
      %v4470 = vpop.f32.mrf.mxu0
      %4471 = vdwg.mxu0
      %4472 = vmatpush.bf16.msra.mxu0 %v4261
      %4473 = vmatpush.bf16.msra.mxu0 %v4258
      %4474 = vmatpush.bf16.msra.mxu0 %v4255
      %4475 = vmatpush.bf16.msra.mxu0 %v4252
      %4476 = vmatpush.bf16.msra.mxu0 %v4249
      %4477 = vmatpush.bf16.msra.mxu0 %v4246
      %4478 = vmatpush.bf16.msra.mxu0 %v4243
      %4479 = vmatpush.bf16.msra.mxu0 %v4240
      %4480 = vmatmul.bf16.gmra.mxu0 %v3914
      %v4481 = vpop.f32.mrf.mxu0
      %v4482 = vadd.f32 %v4464, %v4481
      %v4483 = vpop.f32.mrf.mxu0
      %v4484 = vadd.f32 %v4466, %v4483
      %4485 = vmatmul.bf16.gmra.mxu0 %v3917
      %v4486 = vpop.f32.mrf.mxu0
      %v4487 = vadd.f32 %v4469, %v4486
      %v4488 = vpop.f32.mrf.mxu0
      %4489 = vdwg.mxu0
      %4490 = vmatpush.bf16.msra.mxu0 0
      %4491 = vmatpush.bf16.msra.mxu0 0
      %4492 = vmatpush.bf16.msra.mxu0 0
      %4493 = vmatpush.bf16.msra.mxu0 %v4276
      %4494 = vmatpush.bf16.msra.mxu0 %v4273
      %4495 = vmatpush.bf16.msra.mxu0 %v4270
      %4496 = vmatpush.bf16.msra.mxu0 %v4267
      %4497 = vmatpush.bf16.msra.mxu0 %v4264
      %4498 = vmatmul.bf16.gmra.mxu0 %v4341
      %v4499 = vpop.f32.mrf.mxu0
      %v4500 = vadd.f32 %v4482, %v4499
      %v4501 = vpop.f32.mrf.mxu0
      %v4502 = vadd.f32 %v4484, %v4501
      %4503 = vmatmul.bf16.gmra.mxu0 %v4344
      %v4504 = vpop.f32.mrf.mxu0
      %v4505 = vadd.f32 %v4487, %v4504
      %v4506 = vpop.f32.mrf.mxu0
      %4507 = vdwg.mxu0
      %v4508 = vadd.f32 %v3832, %v4392
      %v4509 = vadd.f32 %v3833, %v4446
      %v4510 = vadd.f32 %v3834, %v4500
      %v4511 = vadd.f32 %v3835, %v4394
      %v4512 = vadd.f32 %v3836, %v4448
      %v4513 = vadd.f32 %v3837, %v4502
      %v4514 = vadd.f32 %v3838, %v4397
      %v4515 = vadd.f32 %v3839, %v4451
      %v4516 = vadd.f32 %v3840, %v4505
      %s4517 = scalar_lea.vmem %s1, 72
      %v4518 = vld [vmem:[%s4517] sm:$0xf]
      %v4519 = vld [vmem:[%s4517 + $0x4] sm:$0xf]
      %v4520 = vld [vmem:[%s4517 + $0x8] sm:$0xf]
      %v4524 = vunpack.c.l.b16 %v4518
      %v4525 = vunpack.c.l.b16 %v4519
      %v4526 = vunpack.c.l.b16 %v4520
      %v4527 = vpack.c.b16 %v4525, %v4524
      %v4528 = vpack.c.b16 %v4526, %v4526
      %v4530 = vsel %vm480, %v4527, 0
      %v4533 = vsel %vm480, %v4528, 0
      %4535 = vmatpush.bf16.msra.mxu0 0
      %4536 = vmatpush.bf16.msra.mxu0 0
      %4537 = vmatpush.bf16.msra.mxu0 %v489
      %4538 = vmatpush.bf16.msra.mxu0 %v459
      %4539 = vmatpush.bf16.msra.mxu0 %v456
      %4540 = vmatpush.bf16.msra.mxu0 %v453
      %4541 = vmatpush.bf16.msra.mxu0 %v450
      %4542 = vmatpush.bf16.msra.mxu0 %v447
      %4543 = vmatmul.bf16.gmra.mxu0 %v4530
      %v4544 = vpop.f32.mrf.mxu0
      %v4545 = vadd.f32 0.0, %v4544
      %v4546 = vpop.f32.mrf.mxu0
      %v4547 = vadd.f32 0.0, %v4546
      %4548 = vmatmul.bf16.gmra.mxu0 %v4533
      %v4549 = vpop.f32.mrf.mxu0
      %v4550 = vadd.f32 0.0, %v4549
      %v4551 = vpop.f32.mrf.mxu0
      %4552 = vdwg.mxu0
      %4553 = vmatpush.bf16.msra.mxu0 0
      %4554 = vmatpush.bf16.msra.mxu0 0
      %4555 = vmatpush.bf16.msra.mxu0 %v492
      %4556 = vmatpush.bf16.msra.mxu0 %v460
      %4557 = vmatpush.bf16.msra.mxu0 %v457
      %4558 = vmatpush.bf16.msra.mxu0 %v454
      %4559 = vmatpush.bf16.msra.mxu0 %v451
      %4560 = vmatpush.bf16.msra.mxu0 %v448
      %4561 = vmatmul.bf16.gmra.mxu0 %v4530
      %v4562 = vpop.f32.mrf.mxu0
      %v4563 = vadd.f32 0.0, %v4562
      %v4564 = vpop.f32.mrf.mxu0
      %v4565 = vadd.f32 0.0, %v4564
      %4566 = vmatmul.bf16.gmra.mxu0 %v4533
      %v4567 = vpop.f32.mrf.mxu0
      %v4568 = vadd.f32 0.0, %v4567
      %v4569 = vpop.f32.mrf.mxu0
      %4570 = vdwg.mxu0
      %4571 = vmatpush.bf16.msra.mxu0 0
      %4572 = vmatpush.bf16.msra.mxu0 0
      %4573 = vmatpush.bf16.msra.mxu0 %v495
      %4574 = vmatpush.bf16.msra.mxu0 %v461
      %4575 = vmatpush.bf16.msra.mxu0 %v458
      %4576 = vmatpush.bf16.msra.mxu0 %v455
      %4577 = vmatpush.bf16.msra.mxu0 %v452
      %4578 = vmatpush.bf16.msra.mxu0 %v449
      %4579 = vmatmul.bf16.gmra.mxu0 %v4530
      %v4580 = vpop.f32.mrf.mxu0
      %v4581 = vadd.f32 0.0, %v4580
      %v4582 = vpop.f32.mrf.mxu0
      %v4583 = vadd.f32 0.0, %v4582
      %4584 = vmatmul.bf16.gmra.mxu0 %v4533
      %v4585 = vpop.f32.mrf.mxu0
      %v4586 = vadd.f32 0.0, %v4585
      %v4587 = vpop.f32.mrf.mxu0
      %4588 = vdwg.mxu0
      %v4589 = vpack.c.bf16 %v4547, %v4545
      %v4590 = vpack.c.bf16 %v4565, %v4563
      %v4591 = vpack.c.bf16 %v4583, %v4581
      %v4592 = vpack.c.bf16 %v4550, %v4550
      %v4593 = vpack.c.bf16 %v4568, %v4568
      %v4594 = vpack.c.bf16 %v4586, %v4586
      %s4595 = scalar_lea.vmem %s2, 3024
      %v4596 = vld [vmem:[%s4595] sm:$0xff]
      %v4597 = vld [vmem:[%s4595 + $0x8] sm:$0xf]
      %v4598 = vld [vmem:[%s4595 + $0xc] sm:$0xff]
      %v4599 = vld [vmem:[%s4595 + $0x14] sm:$0xf]
      %v4600 = vld [vmem:[%s4595 + $0x18] sm:$0xff]
      %v4601 = vld [vmem:[%s4595 + $0x20] sm:$0xf]
      %v4602 = vld [vmem:[%s4595 + $0x24] sm:$0xff]
      %v4603 = vld [vmem:[%s4595 + $0x2c] sm:$0xf]
      %v4604 = vld [vmem:[%s4595 + $0x30] sm:$0xff]
      %v4605 = vld [vmem:[%s4595 + $0x38] sm:$0xf]
      %v4606 = vld [vmem:[%s4595 + $0x3c] sm:$0xff]
      %v4607 = vld [vmem:[%s4595 + $0x44] sm:$0xf]
      %v4608 = vld [vmem:[%s4595 + $0x48] sm:$0xff]
      %v4609 = vld [vmem:[%s4595 + $0x50] sm:$0xf]
      %v4610 = vld [vmem:[%s4595 + $0x54] sm:$0xff]
      %v4611 = vld [vmem:[%s4595 + $0x5c] sm:$0xf]
      %v4612 = vld [vmem:[%s4595 + $0x60] sm:$0xff]
      %v4613 = vld [vmem:[%s4595 + $0x68] sm:$0xf]
      %v4614 = vld [vmem:[%s4595 + $0x6c] sm:$0xff]
      %v4615 = vld [vmem:[%s4595 + $0x74] sm:$0xf]
      %v4616 = vld [vmem:[%s4595 + $0x78] sm:$0xff]
      %v4617 = vld [vmem:[%s4595 + $0x80] sm:$0xf]
      %v4618 = vld [vmem:[%s4595 + $0x84] sm:$0xff]
      %v4619 = vld [vmem:[%s4595 + $0x8c] sm:$0xf]
      %v4620 = vld [vmem:[%s4595 + $0x90] sm:$0xff]
      %v4621 = vld [vmem:[%s4595 + $0x98] sm:$0xf]
      %v4622 = vld [vmem:[%s4595 + $0x9c] sm:$0xff]
      %v4623 = vld [vmem:[%s4595 + $0xa4] sm:$0xf]
      %v4624 = vld [vmem:[%s4595 + $0xa8] sm:$0xff]
      %v4625 = vld [vmem:[%s4595 + $0xb0] sm:$0xf]
      %v4626 = vld [vmem:[%s4595 + $0xb4] sm:$0xff]
      %v4627 = vld [vmem:[%s4595 + $0xbc] sm:$0xf]
      %v4628 = vld [vmem:[%s4595 + $0xc0] sm:$0xff]
      %v4629 = vld [vmem:[%s4595 + $0xc8] sm:$0xf]
      %v4630 = vld [vmem:[%s4595 + $0xcc] sm:$0xff]
      %v4631 = vld [vmem:[%s4595 + $0xd4] sm:$0xf]
      %v4632 = vld [vmem:[%s4595 + $0xd8] sm:$0xff]
      %v4633 = vld [vmem:[%s4595 + $0xe0] sm:$0xf]
      %v4634 = vld [vmem:[%s4595 + $0xe4] sm:$0xff]
      %v4635 = vld [vmem:[%s4595 + $0xec] sm:$0xf]
      %v4636 = vld [vmem:[%s4595 + $0xf0] sm:$0xff]
      %v4637 = vld [vmem:[%s4595 + $0xf8] sm:$0xf]
      %v4638 = vld [vmem:[%s4595 + $0xfc] sm:$0xff]
      %v4639 = vld [vmem:[%s4595 + $0x104] sm:$0xf]
      %v4640 = vld [vmem:[%s4595 + $0x108] sm:$0xff]
      %v4641 = vld [vmem:[%s4595 + $0x110] sm:$0xf]
      %v4642 = vld [vmem:[%s4595 + $0x114] sm:$0xff]
      %v4643 = vld [vmem:[%s4595 + $0x11c] sm:$0xf]
      %v4644 = vld [vmem:[%s4595 + $0x120] sm:$0xff]
      %v4645 = vld [vmem:[%s4595 + $0x128] sm:$0xf]
      %v4646 = vld [vmem:[%s4595 + $0x12c] sm:$0xff]
      %v4647 = vld [vmem:[%s4595 + $0x134] sm:$0xf]
      %v4648 = vld [vmem:[%s4595 + $0x138] sm:$0xff]
      %v4649 = vld [vmem:[%s4595 + $0x140] sm:$0xf]
      %v4650 = vld [vmem:[%s4595 + $0x144] sm:$0xff]
      %v4651 = vld [vmem:[%s4595 + $0x14c] sm:$0xf]
      %v4652 = vld [vmem:[%s4595 + $0x150] sm:$0xff]
      %v4653 = vld [vmem:[%s4595 + $0x158] sm:$0xf]
      %v4654 = vld [vmem:[%s4595 + $0x15c] sm:$0xff]
      %v4655 = vld [vmem:[%s4595 + $0x164] sm:$0xf]
      %v4656 = vld [vmem:[%s4595 + $0x168] sm:$0xff]
      %v4657 = vld [vmem:[%s4595 + $0x170] sm:$0xf]
      %v4658 = vld [vmem:[%s4595 + $0x174] sm:$0xff]
      %v4659 = vld [vmem:[%s4595 + $0x17c] sm:$0xf]
      %v4660 = vld [vmem:[%s4595 + $0x180] sm:$0xff]
      %v4661 = vld [vmem:[%s4595 + $0x188] sm:$0xf]
      %v4662 = vld [vmem:[%s4595 + $0x18c] sm:$0xff]
      %v4663 = vld [vmem:[%s4595 + $0x194] sm:$0xf]
      %v4664 = vld [vmem:[%s4595 + $0x198] sm:$0xff]
      %v4665 = vld [vmem:[%s4595 + $0x1a0] sm:$0xf]
      %v4666 = vld [vmem:[%s4595 + $0x1a4] sm:$0xff]
      %v4667 = vld [vmem:[%s4595 + $0x1ac] sm:$0xf]
      %v4668 = vld [vmem:[%s4595 + $0x1b0] sm:$0xff]
      %v4669 = vld [vmem:[%s4595 + $0x1b8] sm:$0xf]
      %v4670 = vld [vmem:[%s4595 + $0x1bc] sm:$0xff]
      %v4671 = vld [vmem:[%s4595 + $0x1c4] sm:$0xf]
      %v4672 = vld [vmem:[%s4595 + $0x1c8] sm:$0xff]
      %v4673 = vld [vmem:[%s4595 + $0x1d0] sm:$0xf]
      %v4674 = vld [vmem:[%s4595 + $0x1d4] sm:$0xff]
      %v4675 = vld [vmem:[%s4595 + $0x1dc] sm:$0xf]
      %v4676 = vld [vmem:[%s4595 + $0x1e0] sm:$0xff]
      %v4677 = vld [vmem:[%s4595 + $0x1e8] sm:$0xf]
      %v4678 = vld [vmem:[%s4595 + $0x1ec] sm:$0xff]
      %v4679 = vld [vmem:[%s4595 + $0x1f4] sm:$0xf]
      %v4764 = vunpack.c.l.b16 %v4596
      %v4765 = vunpack.c.h.b16 %v4596
      %v4766 = vunpack.c.l.b16 %v4597
      %v4767 = vunpack.c.l.b16 %v4598
      %v4768 = vunpack.c.h.b16 %v4598
      %v4769 = vunpack.c.l.b16 %v4599
      %v4770 = vunpack.c.l.b16 %v4600
      %v4771 = vunpack.c.h.b16 %v4600
      %v4772 = vunpack.c.l.b16 %v4601
      %v4773 = vunpack.c.l.b16 %v4602
      %v4774 = vunpack.c.h.b16 %v4602
      %v4775 = vunpack.c.l.b16 %v4603
      %v4776 = vunpack.c.l.b16 %v4604
      %v4777 = vunpack.c.h.b16 %v4604
      %v4778 = vunpack.c.l.b16 %v4605
      %v4779 = vunpack.c.l.b16 %v4606
      %v4780 = vunpack.c.h.b16 %v4606
      %v4781 = vunpack.c.l.b16 %v4607
      %v4782 = vunpack.c.l.b16 %v4608
      %v4783 = vunpack.c.h.b16 %v4608
      %v4784 = vunpack.c.l.b16 %v4609
      %v4785 = vunpack.c.l.b16 %v4610
      %v4786 = vunpack.c.h.b16 %v4610
      %v4787 = vunpack.c.l.b16 %v4611
      %v4788 = vunpack.c.l.b16 %v4612
      %v4789 = vunpack.c.h.b16 %v4612
      %v4790 = vunpack.c.l.b16 %v4613
      %v4791 = vunpack.c.l.b16 %v4614
      %v4792 = vunpack.c.h.b16 %v4614
      %v4793 = vunpack.c.l.b16 %v4615
      %v4794 = vunpack.c.l.b16 %v4616
      %v4795 = vunpack.c.h.b16 %v4616
      %v4796 = vunpack.c.l.b16 %v4617
      %v4797 = vunpack.c.l.b16 %v4618
      %v4798 = vunpack.c.h.b16 %v4618
      %v4799 = vunpack.c.l.b16 %v4619
      %v4800 = vunpack.c.l.b16 %v4620
      %v4801 = vunpack.c.h.b16 %v4620
      %v4802 = vunpack.c.l.b16 %v4621
      %v4803 = vunpack.c.l.b16 %v4622
      %v4804 = vunpack.c.h.b16 %v4622
      %v4805 = vunpack.c.l.b16 %v4623
      %v4806 = vunpack.c.l.b16 %v4624
      %v4807 = vunpack.c.h.b16 %v4624
      %v4808 = vunpack.c.l.b16 %v4625
      %v4809 = vunpack.c.l.b16 %v4626
      %v4810 = vunpack.c.h.b16 %v4626
      %v4811 = vunpack.c.l.b16 %v4627
      %v4812 = vunpack.c.l.b16 %v4628
      %v4813 = vunpack.c.h.b16 %v4628
      %v4814 = vunpack.c.l.b16 %v4629
      %v4815 = vunpack.c.l.b16 %v4630
      %v4816 = vunpack.c.h.b16 %v4630
      %v4817 = vunpack.c.l.b16 %v4631
      %v4818 = vunpack.c.l.b16 %v4632
      %v4819 = vunpack.c.h.b16 %v4632
      %v4820 = vunpack.c.l.b16 %v4633
      %v4821 = vunpack.c.l.b16 %v4634
      %v4822 = vunpack.c.h.b16 %v4634
      %v4823 = vunpack.c.l.b16 %v4635
      %v4824 = vunpack.c.l.b16 %v4636
      %v4825 = vunpack.c.h.b16 %v4636
      %v4826 = vunpack.c.l.b16 %v4637
      %v4827 = vunpack.c.l.b16 %v4638
      %v4828 = vunpack.c.h.b16 %v4638
      %v4829 = vunpack.c.l.b16 %v4639
      %v4830 = vunpack.c.l.b16 %v4640
      %v4831 = vunpack.c.h.b16 %v4640
      %v4832 = vunpack.c.l.b16 %v4641
      %v4833 = vunpack.c.l.b16 %v4642
      %v4834 = vunpack.c.h.b16 %v4642
      %v4835 = vunpack.c.l.b16 %v4643
      %v4836 = vunpack.c.l.b16 %v4644
      %v4837 = vunpack.c.h.b16 %v4644
      %v4838 = vunpack.c.l.b16 %v4645
      %v4839 = vunpack.c.l.b16 %v4646
      %v4840 = vunpack.c.h.b16 %v4646
      %v4841 = vunpack.c.l.b16 %v4647
      %v4842 = vunpack.c.l.b16 %v4648
      %v4843 = vunpack.c.h.b16 %v4648
      %v4844 = vunpack.c.l.b16 %v4649
      %v4845 = vunpack.c.l.b16 %v4650
      %v4846 = vunpack.c.h.b16 %v4650
      %v4847 = vunpack.c.l.b16 %v4651
      %v4848 = vunpack.c.l.b16 %v4652
      %v4849 = vunpack.c.h.b16 %v4652
      %v4850 = vunpack.c.l.b16 %v4653
      %v4851 = vunpack.c.l.b16 %v4654
      %v4852 = vunpack.c.h.b16 %v4654
      %v4853 = vunpack.c.l.b16 %v4655
      %v4854 = vunpack.c.l.b16 %v4656
      %v4855 = vunpack.c.h.b16 %v4656
      %v4856 = vunpack.c.l.b16 %v4657
      %v4857 = vunpack.c.l.b16 %v4658
      %v4858 = vunpack.c.h.b16 %v4658
      %v4859 = vunpack.c.l.b16 %v4659
      %v4860 = vunpack.c.l.b16 %v4660
      %v4861 = vunpack.c.h.b16 %v4660
      %v4862 = vunpack.c.l.b16 %v4661
      %v4863 = vunpack.c.l.b16 %v4662
      %v4864 = vunpack.c.h.b16 %v4662
      %v4865 = vunpack.c.l.b16 %v4663
      %v4866 = vunpack.c.l.b16 %v4664
      %v4867 = vunpack.c.h.b16 %v4664
      %v4868 = vunpack.c.l.b16 %v4665
      %v4869 = vunpack.c.l.b16 %v4666
      %v4870 = vunpack.c.h.b16 %v4666
      %v4871 = vunpack.c.l.b16 %v4667
      %v4872 = vunpack.c.l.b16 %v4668
      %v4873 = vunpack.c.h.b16 %v4668
      %v4874 = vunpack.c.l.b16 %v4669
      %v4875 = vunpack.c.l.b16 %v4670
      %v4876 = vunpack.c.h.b16 %v4670
      %v4877 = vunpack.c.l.b16 %v4671
      %v4878 = vunpack.c.l.b16 %v4672
      %v4879 = vunpack.c.h.b16 %v4672
      %v4880 = vunpack.c.l.b16 %v4673
      %v4881 = vunpack.c.l.b16 %v4674
      %v4882 = vunpack.c.h.b16 %v4674
      %v4883 = vunpack.c.l.b16 %v4675
      %v4884 = vunpack.c.l.b16 %v4676
      %v4885 = vunpack.c.h.b16 %v4676
      %v4886 = vunpack.c.l.b16 %v4677
      %v4887 = vunpack.c.l.b16 %v4678
      %v4888 = vunpack.c.h.b16 %v4678
      %v4889 = vunpack.c.l.b16 %v4679
      %v4890 = vpack.c.b16 %v4767, %v4764
      %v4891 = vpack.c.b16 %v4768, %v4765
      %v4892 = vpack.c.b16 %v4769, %v4766
      %v4893 = vpack.c.b16 %v4773, %v4770
      %v4894 = vpack.c.b16 %v4774, %v4771
      %v4895 = vpack.c.b16 %v4775, %v4772
      %v4896 = vpack.c.b16 %v4779, %v4776
      %v4897 = vpack.c.b16 %v4780, %v4777
      %v4898 = vpack.c.b16 %v4781, %v4778
      %v4899 = vpack.c.b16 %v4785, %v4782
      %v4900 = vpack.c.b16 %v4786, %v4783
      %v4901 = vpack.c.b16 %v4787, %v4784
      %v4902 = vpack.c.b16 %v4791, %v4788
      %v4903 = vpack.c.b16 %v4792, %v4789
      %v4904 = vpack.c.b16 %v4793, %v4790
      %v4905 = vpack.c.b16 %v4797, %v4794
      %v4906 = vpack.c.b16 %v4798, %v4795
      %v4907 = vpack.c.b16 %v4799, %v4796
      %v4908 = vpack.c.b16 %v4803, %v4800
      %v4909 = vpack.c.b16 %v4804, %v4801
      %v4910 = vpack.c.b16 %v4805, %v4802
      %v4911 = vpack.c.b16 %v4809, %v4806
      %v4912 = vpack.c.b16 %v4810, %v4807
      %v4913 = vpack.c.b16 %v4811, %v4808
      %v4914 = vpack.c.b16 %v4815, %v4812
      %v4915 = vpack.c.b16 %v4816, %v4813
      %v4916 = vpack.c.b16 %v4817, %v4814
      %v4917 = vpack.c.b16 %v4821, %v4818
      %v4918 = vpack.c.b16 %v4822, %v4819
      %v4919 = vpack.c.b16 %v4823, %v4820
      %v4920 = vpack.c.b16 %v4827, %v4824
      %v4921 = vpack.c.b16 %v4828, %v4825
      %v4922 = vpack.c.b16 %v4829, %v4826
      %v4923 = vpack.c.b16 %v4833, %v4830
      %v4924 = vpack.c.b16 %v4834, %v4831
      %v4925 = vpack.c.b16 %v4835, %v4832
      %v4926 = vpack.c.b16 %v4839, %v4836
      %v4927 = vpack.c.b16 %v4840, %v4837
      %v4928 = vpack.c.b16 %v4841, %v4838
      %v4929 = vpack.c.b16 %v4845, %v4842
      %v4930 = vpack.c.b16 %v4846, %v4843
      %v4931 = vpack.c.b16 %v4847, %v4844
      %v4932 = vpack.c.b16 %v4851, %v4848
      %v4933 = vpack.c.b16 %v4852, %v4849
      %v4934 = vpack.c.b16 %v4853, %v4850
      %v4935 = vpack.c.b16 %v4857, %v4854
      %v4936 = vpack.c.b16 %v4858, %v4855
      %v4937 = vpack.c.b16 %v4859, %v4856
      %v4938 = vpack.c.b16 %v4863, %v4860
      %v4939 = vpack.c.b16 %v4864, %v4861
      %v4940 = vpack.c.b16 %v4865, %v4862
      %v4941 = vpack.c.b16 %v4869, %v4866
      %v4942 = vpack.c.b16 %v4870, %v4867
      %v4943 = vpack.c.b16 %v4871, %v4868
      %v4944 = vpack.c.b16 %v4875, %v4872
      %v4945 = vpack.c.b16 %v4876, %v4873
      %v4946 = vpack.c.b16 %v4877, %v4874
      %v4947 = vpack.c.b16 %v4881, %v4878
      %v4948 = vpack.c.b16 %v4882, %v4879
      %v4949 = vpack.c.b16 %v4883, %v4880
      %v4950 = vpack.c.b16 %v4887, %v4884
      %v4951 = vpack.c.b16 %v4888, %v4885
      %v4952 = vpack.c.b16 %v4889, %v4886
      %v5017 = vsel %vm1140, %v4591, 0
      %v5020 = vsel %vm1140, %v4594, 0
      %5022 = vmatpush.bf16.msra.mxu0 %v4911
      %5023 = vmatpush.bf16.msra.mxu0 %v4908
      %5024 = vmatpush.bf16.msra.mxu0 %v4905
      %5025 = vmatpush.bf16.msra.mxu0 %v4902
      %5026 = vmatpush.bf16.msra.mxu0 %v4899
      %5027 = vmatpush.bf16.msra.mxu0 %v4896
      %5028 = vmatpush.bf16.msra.mxu0 %v4893
      %5029 = vmatpush.bf16.msra.mxu0 %v4890
      %5030 = vmatmul.bf16.gmra.mxu0 %v4589
      %v5031 = vpop.f32.mrf.mxu0
      %v5032 = vadd.f32 0.0, %v5031
      %v5033 = vpop.f32.mrf.mxu0
      %v5034 = vadd.f32 0.0, %v5033
      %5035 = vmatmul.bf16.gmra.mxu0 %v4592
      %v5036 = vpop.f32.mrf.mxu0
      %v5037 = vadd.f32 0.0, %v5036
      %v5038 = vpop.f32.mrf.mxu0
      %5039 = vdwg.mxu0
      %5040 = vmatpush.bf16.msra.mxu0 %v4935
      %5041 = vmatpush.bf16.msra.mxu0 %v4932
      %5042 = vmatpush.bf16.msra.mxu0 %v4929
      %5043 = vmatpush.bf16.msra.mxu0 %v4926
      %5044 = vmatpush.bf16.msra.mxu0 %v4923
      %5045 = vmatpush.bf16.msra.mxu0 %v4920
      %5046 = vmatpush.bf16.msra.mxu0 %v4917
      %5047 = vmatpush.bf16.msra.mxu0 %v4914
      %5048 = vmatmul.bf16.gmra.mxu0 %v4590
      %v5049 = vpop.f32.mrf.mxu0
      %v5050 = vadd.f32 %v5032, %v5049
      %v5051 = vpop.f32.mrf.mxu0
      %v5052 = vadd.f32 %v5034, %v5051
      %5053 = vmatmul.bf16.gmra.mxu0 %v4593
      %v5054 = vpop.f32.mrf.mxu0
      %v5055 = vadd.f32 %v5037, %v5054
      %v5056 = vpop.f32.mrf.mxu0
      %5057 = vdwg.mxu0
      %5058 = vmatpush.bf16.msra.mxu0 0
      %5059 = vmatpush.bf16.msra.mxu0 0
      %5060 = vmatpush.bf16.msra.mxu0 0
      %5061 = vmatpush.bf16.msra.mxu0 %v4950
      %5062 = vmatpush.bf16.msra.mxu0 %v4947
      %5063 = vmatpush.bf16.msra.mxu0 %v4944
      %5064 = vmatpush.bf16.msra.mxu0 %v4941
      %5065 = vmatpush.bf16.msra.mxu0 %v4938
      %5066 = vmatmul.bf16.gmra.mxu0 %v5017
      %v5067 = vpop.f32.mrf.mxu0
      %v5068 = vadd.f32 %v5050, %v5067
      %v5069 = vpop.f32.mrf.mxu0
      %v5070 = vadd.f32 %v5052, %v5069
      %5071 = vmatmul.bf16.gmra.mxu0 %v5020
      %v5072 = vpop.f32.mrf.mxu0
      %v5073 = vadd.f32 %v5055, %v5072
      %v5074 = vpop.f32.mrf.mxu0
      %5075 = vdwg.mxu0
      %5076 = vmatpush.bf16.msra.mxu0 %v4912
      %5077 = vmatpush.bf16.msra.mxu0 %v4909
      %5078 = vmatpush.bf16.msra.mxu0 %v4906
      %5079 = vmatpush.bf16.msra.mxu0 %v4903
      %5080 = vmatpush.bf16.msra.mxu0 %v4900
      %5081 = vmatpush.bf16.msra.mxu0 %v4897
      %5082 = vmatpush.bf16.msra.mxu0 %v4894
      %5083 = vmatpush.bf16.msra.mxu0 %v4891
      %5084 = vmatmul.bf16.gmra.mxu0 %v4589
      %v5085 = vpop.f32.mrf.mxu0
      %v5086 = vadd.f32 0.0, %v5085
      %v5087 = vpop.f32.mrf.mxu0
      %v5088 = vadd.f32 0.0, %v5087
      %5089 = vmatmul.bf16.gmra.mxu0 %v4592
      %v5090 = vpop.f32.mrf.mxu0
      %v5091 = vadd.f32 0.0, %v5090
      %v5092 = vpop.f32.mrf.mxu0
      %5093 = vdwg.mxu0
      %5094 = vmatpush.bf16.msra.mxu0 %v4936
      %5095 = vmatpush.bf16.msra.mxu0 %v4933
      %5096 = vmatpush.bf16.msra.mxu0 %v4930
      %5097 = vmatpush.bf16.msra.mxu0 %v4927
      %5098 = vmatpush.bf16.msra.mxu0 %v4924
      %5099 = vmatpush.bf16.msra.mxu0 %v4921
      %5100 = vmatpush.bf16.msra.mxu0 %v4918
      %5101 = vmatpush.bf16.msra.mxu0 %v4915
      %5102 = vmatmul.bf16.gmra.mxu0 %v4590
      %v5103 = vpop.f32.mrf.mxu0
      %v5104 = vadd.f32 %v5086, %v5103
      %v5105 = vpop.f32.mrf.mxu0
      %v5106 = vadd.f32 %v5088, %v5105
      %5107 = vmatmul.bf16.gmra.mxu0 %v4593
      %v5108 = vpop.f32.mrf.mxu0
      %v5109 = vadd.f32 %v5091, %v5108
      %v5110 = vpop.f32.mrf.mxu0
      %5111 = vdwg.mxu0
      %5112 = vmatpush.bf16.msra.mxu0 0
      %5113 = vmatpush.bf16.msra.mxu0 0
      %5114 = vmatpush.bf16.msra.mxu0 0
      %5115 = vmatpush.bf16.msra.mxu0 %v4951
      %5116 = vmatpush.bf16.msra.mxu0 %v4948
      %5117 = vmatpush.bf16.msra.mxu0 %v4945
      %5118 = vmatpush.bf16.msra.mxu0 %v4942
      %5119 = vmatpush.bf16.msra.mxu0 %v4939
      %5120 = vmatmul.bf16.gmra.mxu0 %v5017
      %v5121 = vpop.f32.mrf.mxu0
      %v5122 = vadd.f32 %v5104, %v5121
      %v5123 = vpop.f32.mrf.mxu0
      %v5124 = vadd.f32 %v5106, %v5123
      %5125 = vmatmul.bf16.gmra.mxu0 %v5020
      %v5126 = vpop.f32.mrf.mxu0
      %v5127 = vadd.f32 %v5109, %v5126
      %v5128 = vpop.f32.mrf.mxu0
      %5129 = vdwg.mxu0
      %5130 = vmatpush.bf16.msra.mxu0 %v4913
      %5131 = vmatpush.bf16.msra.mxu0 %v4910
      %5132 = vmatpush.bf16.msra.mxu0 %v4907
      %5133 = vmatpush.bf16.msra.mxu0 %v4904
      %5134 = vmatpush.bf16.msra.mxu0 %v4901
      %5135 = vmatpush.bf16.msra.mxu0 %v4898
      %5136 = vmatpush.bf16.msra.mxu0 %v4895
      %5137 = vmatpush.bf16.msra.mxu0 %v4892
      %5138 = vmatmul.bf16.gmra.mxu0 %v4589
      %v5139 = vpop.f32.mrf.mxu0
      %v5140 = vadd.f32 0.0, %v5139
      %v5141 = vpop.f32.mrf.mxu0
      %v5142 = vadd.f32 0.0, %v5141
      %5143 = vmatmul.bf16.gmra.mxu0 %v4592
      %v5144 = vpop.f32.mrf.mxu0
      %v5145 = vadd.f32 0.0, %v5144
      %v5146 = vpop.f32.mrf.mxu0
      %5147 = vdwg.mxu0
      %5148 = vmatpush.bf16.msra.mxu0 %v4937
      %5149 = vmatpush.bf16.msra.mxu0 %v4934
      %5150 = vmatpush.bf16.msra.mxu0 %v4931
      %5151 = vmatpush.bf16.msra.mxu0 %v4928
      %5152 = vmatpush.bf16.msra.mxu0 %v4925
      %5153 = vmatpush.bf16.msra.mxu0 %v4922
      %5154 = vmatpush.bf16.msra.mxu0 %v4919
      %5155 = vmatpush.bf16.msra.mxu0 %v4916
      %5156 = vmatmul.bf16.gmra.mxu0 %v4590
      %v5157 = vpop.f32.mrf.mxu0
      %v5158 = vadd.f32 %v5140, %v5157
      %v5159 = vpop.f32.mrf.mxu0
      %v5160 = vadd.f32 %v5142, %v5159
      %5161 = vmatmul.bf16.gmra.mxu0 %v4593
      %v5162 = vpop.f32.mrf.mxu0
      %v5163 = vadd.f32 %v5145, %v5162
      %v5164 = vpop.f32.mrf.mxu0
      %5165 = vdwg.mxu0
      %5166 = vmatpush.bf16.msra.mxu0 0
      %5167 = vmatpush.bf16.msra.mxu0 0
      %5168 = vmatpush.bf16.msra.mxu0 0
      %5169 = vmatpush.bf16.msra.mxu0 %v4952
      %5170 = vmatpush.bf16.msra.mxu0 %v4949
      %5171 = vmatpush.bf16.msra.mxu0 %v4946
      %5172 = vmatpush.bf16.msra.mxu0 %v4943
      %5173 = vmatpush.bf16.msra.mxu0 %v4940
      %5174 = vmatmul.bf16.gmra.mxu0 %v5017
      %v5175 = vpop.f32.mrf.mxu0
      %v5176 = vadd.f32 %v5158, %v5175
      %v5177 = vpop.f32.mrf.mxu0
      %v5178 = vadd.f32 %v5160, %v5177
      %5179 = vmatmul.bf16.gmra.mxu0 %v5020
      %v5180 = vpop.f32.mrf.mxu0
      %v5181 = vadd.f32 %v5163, %v5180
      %v5182 = vpop.f32.mrf.mxu0
      %5183 = vdwg.mxu0
      %v5184 = vadd.f32 %v4508, %v5068
      %v5185 = vadd.f32 %v4509, %v5122
      %v5186 = vadd.f32 %v4510, %v5176
      %v5187 = vadd.f32 %v4511, %v5070
      %v5188 = vadd.f32 %v4512, %v5124
      %v5189 = vadd.f32 %v4513, %v5178
      %v5190 = vadd.f32 %v4514, %v5073
      %v5191 = vadd.f32 %v4515, %v5127
      %v5192 = vadd.f32 %v4516, %v5181
      %s5193 = scalar_lea.vmem %s1, 84
      %v5194 = vld [vmem:[%s5193] sm:$0xf]
      %v5195 = vld [vmem:[%s5193 + $0x4] sm:$0xf]
      %v5196 = vld [vmem:[%s5193 + $0x8] sm:$0xf]
      %v5200 = vunpack.c.l.b16 %v5194
      %v5201 = vunpack.c.l.b16 %v5195
      %v5202 = vunpack.c.l.b16 %v5196
      %v5203 = vpack.c.b16 %v5201, %v5200
      %v5204 = vpack.c.b16 %v5202, %v5202
      %v5206 = vsel %vm480, %v5203, 0
      %v5209 = vsel %vm480, %v5204, 0
      %5211 = vmatpush.bf16.msra.mxu0 0
      %5212 = vmatpush.bf16.msra.mxu0 0
      %5213 = vmatpush.bf16.msra.mxu0 %v489
      %5214 = vmatpush.bf16.msra.mxu0 %v459
      %5215 = vmatpush.bf16.msra.mxu0 %v456
      %5216 = vmatpush.bf16.msra.mxu0 %v453
      %5217 = vmatpush.bf16.msra.mxu0 %v450
      %5218 = vmatpush.bf16.msra.mxu0 %v447
      %5219 = vmatmul.bf16.gmra.mxu0 %v5206
      %v5220 = vpop.f32.mrf.mxu0
      %v5221 = vadd.f32 0.0, %v5220
      %v5222 = vpop.f32.mrf.mxu0
      %v5223 = vadd.f32 0.0, %v5222
      %5224 = vmatmul.bf16.gmra.mxu0 %v5209
      %v5225 = vpop.f32.mrf.mxu0
      %v5226 = vadd.f32 0.0, %v5225
      %v5227 = vpop.f32.mrf.mxu0
      %5228 = vdwg.mxu0
      %5229 = vmatpush.bf16.msra.mxu0 0
      %5230 = vmatpush.bf16.msra.mxu0 0
      %5231 = vmatpush.bf16.msra.mxu0 %v492
      %5232 = vmatpush.bf16.msra.mxu0 %v460
      %5233 = vmatpush.bf16.msra.mxu0 %v457
      %5234 = vmatpush.bf16.msra.mxu0 %v454
      %5235 = vmatpush.bf16.msra.mxu0 %v451
      %5236 = vmatpush.bf16.msra.mxu0 %v448
      %5237 = vmatmul.bf16.gmra.mxu0 %v5206
      %v5238 = vpop.f32.mrf.mxu0
      %v5239 = vadd.f32 0.0, %v5238
      %v5240 = vpop.f32.mrf.mxu0
      %v5241 = vadd.f32 0.0, %v5240
      %5242 = vmatmul.bf16.gmra.mxu0 %v5209
      %v5243 = vpop.f32.mrf.mxu0
      %v5244 = vadd.f32 0.0, %v5243
      %v5245 = vpop.f32.mrf.mxu0
      %5246 = vdwg.mxu0
      %5247 = vmatpush.bf16.msra.mxu0 0
      %5248 = vmatpush.bf16.msra.mxu0 0
      %5249 = vmatpush.bf16.msra.mxu0 %v495
      %5250 = vmatpush.bf16.msra.mxu0 %v461
      %5251 = vmatpush.bf16.msra.mxu0 %v458
      %5252 = vmatpush.bf16.msra.mxu0 %v455
      %5253 = vmatpush.bf16.msra.mxu0 %v452
      %5254 = vmatpush.bf16.msra.mxu0 %v449
      %5255 = vmatmul.bf16.gmra.mxu0 %v5206
      %v5256 = vpop.f32.mrf.mxu0
      %v5257 = vadd.f32 0.0, %v5256
      %v5258 = vpop.f32.mrf.mxu0
      %v5259 = vadd.f32 0.0, %v5258
      %5260 = vmatmul.bf16.gmra.mxu0 %v5209
      %v5261 = vpop.f32.mrf.mxu0
      %v5262 = vadd.f32 0.0, %v5261
      %v5263 = vpop.f32.mrf.mxu0
      %5264 = vdwg.mxu0
      %v5265 = vpack.c.bf16 %v5223, %v5221
      %v5266 = vpack.c.bf16 %v5241, %v5239
      %v5267 = vpack.c.bf16 %v5259, %v5257
      %v5268 = vpack.c.bf16 %v5226, %v5226
      %v5269 = vpack.c.bf16 %v5244, %v5244
      %v5270 = vpack.c.bf16 %v5262, %v5262
      %s5271 = scalar_lea.vmem %s2, 3528
      %v5272 = vld [vmem:[%s5271] sm:$0xff]
      %v5273 = vld [vmem:[%s5271 + $0x8] sm:$0xf]
      %v5274 = vld [vmem:[%s5271 + $0xc] sm:$0xff]
      %v5275 = vld [vmem:[%s5271 + $0x14] sm:$0xf]
      %v5276 = vld [vmem:[%s5271 + $0x18] sm:$0xff]
      %v5277 = vld [vmem:[%s5271 + $0x20] sm:$0xf]
      %v5278 = vld [vmem:[%s5271 + $0x24] sm:$0xff]
      %v5279 = vld [vmem:[%s5271 + $0x2c] sm:$0xf]
      %v5280 = vld [vmem:[%s5271 + $0x30] sm:$0xff]
      %v5281 = vld [vmem:[%s5271 + $0x38] sm:$0xf]
      %v5282 = vld [vmem:[%s5271 + $0x3c] sm:$0xff]
      %v5283 = vld [vmem:[%s5271 + $0x44] sm:$0xf]
      %v5284 = vld [vmem:[%s5271 + $0x48] sm:$0xff]
      %v5285 = vld [vmem:[%s5271 + $0x50] sm:$0xf]
      %v5286 = vld [vmem:[%s5271 + $0x54] sm:$0xff]
      %v5287 = vld [vmem:[%s5271 + $0x5c] sm:$0xf]
      %v5288 = vld [vmem:[%s5271 + $0x60] sm:$0xff]
      %v5289 = vld [vmem:[%s5271 + $0x68] sm:$0xf]
      %v5290 = vld [vmem:[%s5271 + $0x6c] sm:$0xff]
      %v5291 = vld [vmem:[%s5271 + $0x74] sm:$0xf]
      %v5292 = vld [vmem:[%s5271 + $0x78] sm:$0xff]
      %v5293 = vld [vmem:[%s5271 + $0x80] sm:$0xf]
      %v5294 = vld [vmem:[%s5271 + $0x84] sm:$0xff]
      %v5295 = vld [vmem:[%s5271 + $0x8c] sm:$0xf]
      %v5296 = vld [vmem:[%s5271 + $0x90] sm:$0xff]
      %v5297 = vld [vmem:[%s5271 + $0x98] sm:$0xf]
      %v5298 = vld [vmem:[%s5271 + $0x9c] sm:$0xff]
      %v5299 = vld [vmem:[%s5271 + $0xa4] sm:$0xf]
      %v5300 = vld [vmem:[%s5271 + $0xa8] sm:$0xff]
      %v5301 = vld [vmem:[%s5271 + $0xb0] sm:$0xf]
      %v5302 = vld [vmem:[%s5271 + $0xb4] sm:$0xff]
      %v5303 = vld [vmem:[%s5271 + $0xbc] sm:$0xf]
      %v5304 = vld [vmem:[%s5271 + $0xc0] sm:$0xff]
      %v5305 = vld [vmem:[%s5271 + $0xc8] sm:$0xf]
      %v5306 = vld [vmem:[%s5271 + $0xcc] sm:$0xff]
      %v5307 = vld [vmem:[%s5271 + $0xd4] sm:$0xf]
      %v5308 = vld [vmem:[%s5271 + $0xd8] sm:$0xff]
      %v5309 = vld [vmem:[%s5271 + $0xe0] sm:$0xf]
      %v5310 = vld [vmem:[%s5271 + $0xe4] sm:$0xff]
      %v5311 = vld [vmem:[%s5271 + $0xec] sm:$0xf]
      %v5312 = vld [vmem:[%s5271 + $0xf0] sm:$0xff]
      %v5313 = vld [vmem:[%s5271 + $0xf8] sm:$0xf]
      %v5314 = vld [vmem:[%s5271 + $0xfc] sm:$0xff]
      %v5315 = vld [vmem:[%s5271 + $0x104] sm:$0xf]
      %v5316 = vld [vmem:[%s5271 + $0x108] sm:$0xff]
      %v5317 = vld [vmem:[%s5271 + $0x110] sm:$0xf]
      %v5318 = vld [vmem:[%s5271 + $0x114] sm:$0xff]
      %v5319 = vld [vmem:[%s5271 + $0x11c] sm:$0xf]
      %v5320 = vld [vmem:[%s5271 + $0x120] sm:$0xff]
      %v5321 = vld [vmem:[%s5271 + $0x128] sm:$0xf]
      %v5322 = vld [vmem:[%s5271 + $0x12c] sm:$0xff]
      %v5323 = vld [vmem:[%s5271 + $0x134] sm:$0xf]
      %v5324 = vld [vmem:[%s5271 + $0x138] sm:$0xff]
      %v5325 = vld [vmem:[%s5271 + $0x140] sm:$0xf]
      %v5326 = vld [vmem:[%s5271 + $0x144] sm:$0xff]
      %v5327 = vld [vmem:[%s5271 + $0x14c] sm:$0xf]
      %v5328 = vld [vmem:[%s5271 + $0x150] sm:$0xff]
      %v5329 = vld [vmem:[%s5271 + $0x158] sm:$0xf]
      %v5330 = vld [vmem:[%s5271 + $0x15c] sm:$0xff]
      %v5331 = vld [vmem:[%s5271 + $0x164] sm:$0xf]
      %v5332 = vld [vmem:[%s5271 + $0x168] sm:$0xff]
      %v5333 = vld [vmem:[%s5271 + $0x170] sm:$0xf]
      %v5334 = vld [vmem:[%s5271 + $0x174] sm:$0xff]
      %v5335 = vld [vmem:[%s5271 + $0x17c] sm:$0xf]
      %v5336 = vld [vmem:[%s5271 + $0x180] sm:$0xff]
      %v5337 = vld [vmem:[%s5271 + $0x188] sm:$0xf]
      %v5338 = vld [vmem:[%s5271 + $0x18c] sm:$0xff]
      %v5339 = vld [vmem:[%s5271 + $0x194] sm:$0xf]
      %v5340 = vld [vmem:[%s5271 + $0x198] sm:$0xff]
      %v5341 = vld [vmem:[%s5271 + $0x1a0] sm:$0xf]
      %v5342 = vld [vmem:[%s5271 + $0x1a4] sm:$0xff]
      %v5343 = vld [vmem:[%s5271 + $0x1ac] sm:$0xf]
      %v5344 = vld [vmem:[%s5271 + $0x1b0] sm:$0xff]
      %v5345 = vld [vmem:[%s5271 + $0x1b8] sm:$0xf]
      %v5346 = vld [vmem:[%s5271 + $0x1bc] sm:$0xff]
      %v5347 = vld [vmem:[%s5271 + $0x1c4] sm:$0xf]
      %v5348 = vld [vmem:[%s5271 + $0x1c8] sm:$0xff]
      %v5349 = vld [vmem:[%s5271 + $0x1d0] sm:$0xf]
      %v5350 = vld [vmem:[%s5271 + $0x1d4] sm:$0xff]
      %v5351 = vld [vmem:[%s5271 + $0x1dc] sm:$0xf]
      %v5352 = vld [vmem:[%s5271 + $0x1e0] sm:$0xff]
      %v5353 = vld [vmem:[%s5271 + $0x1e8] sm:$0xf]
      %v5354 = vld [vmem:[%s5271 + $0x1ec] sm:$0xff]
      %v5355 = vld [vmem:[%s5271 + $0x1f4] sm:$0xf]
      %v5440 = vunpack.c.l.b16 %v5272
      %v5441 = vunpack.c.h.b16 %v5272
      %v5442 = vunpack.c.l.b16 %v5273
      %v5443 = vunpack.c.l.b16 %v5274
      %v5444 = vunpack.c.h.b16 %v5274
      %v5445 = vunpack.c.l.b16 %v5275
      %v5446 = vunpack.c.l.b16 %v5276
      %v5447 = vunpack.c.h.b16 %v5276
      %v5448 = vunpack.c.l.b16 %v5277
      %v5449 = vunpack.c.l.b16 %v5278
      %v5450 = vunpack.c.h.b16 %v5278
      %v5451 = vunpack.c.l.b16 %v5279
      %v5452 = vunpack.c.l.b16 %v5280
      %v5453 = vunpack.c.h.b16 %v5280
      %v5454 = vunpack.c.l.b16 %v5281
      %v5455 = vunpack.c.l.b16 %v5282
      %v5456 = vunpack.c.h.b16 %v5282
      %v5457 = vunpack.c.l.b16 %v5283
      %v5458 = vunpack.c.l.b16 %v5284
      %v5459 = vunpack.c.h.b16 %v5284
      %v5460 = vunpack.c.l.b16 %v5285
      %v5461 = vunpack.c.l.b16 %v5286
      %v5462 = vunpack.c.h.b16 %v5286
      %v5463 = vunpack.c.l.b16 %v5287
      %v5464 = vunpack.c.l.b16 %v5288
      %v5465 = vunpack.c.h.b16 %v5288
      %v5466 = vunpack.c.l.b16 %v5289
      %v5467 = vunpack.c.l.b16 %v5290
      %v5468 = vunpack.c.h.b16 %v5290
      %v5469 = vunpack.c.l.b16 %v5291
      %v5470 = vunpack.c.l.b16 %v5292
      %v5471 = vunpack.c.h.b16 %v5292
      %v5472 = vunpack.c.l.b16 %v5293
      %v5473 = vunpack.c.l.b16 %v5294
      %v5474 = vunpack.c.h.b16 %v5294
      %v5475 = vunpack.c.l.b16 %v5295
      %v5476 = vunpack.c.l.b16 %v5296
      %v5477 = vunpack.c.h.b16 %v5296
      %v5478 = vunpack.c.l.b16 %v5297
      %v5479 = vunpack.c.l.b16 %v5298
      %v5480 = vunpack.c.h.b16 %v5298
      %v5481 = vunpack.c.l.b16 %v5299
      %v5482 = vunpack.c.l.b16 %v5300
      %v5483 = vunpack.c.h.b16 %v5300
      %v5484 = vunpack.c.l.b16 %v5301
      %v5485 = vunpack.c.l.b16 %v5302
      %v5486 = vunpack.c.h.b16 %v5302
      %v5487 = vunpack.c.l.b16 %v5303
      %v5488 = vunpack.c.l.b16 %v5304
      %v5489 = vunpack.c.h.b16 %v5304
      %v5490 = vunpack.c.l.b16 %v5305
      %v5491 = vunpack.c.l.b16 %v5306
      %v5492 = vunpack.c.h.b16 %v5306
      %v5493 = vunpack.c.l.b16 %v5307
      %v5494 = vunpack.c.l.b16 %v5308
      %v5495 = vunpack.c.h.b16 %v5308
      %v5496 = vunpack.c.l.b16 %v5309
      %v5497 = vunpack.c.l.b16 %v5310
      %v5498 = vunpack.c.h.b16 %v5310
      %v5499 = vunpack.c.l.b16 %v5311
      %v5500 = vunpack.c.l.b16 %v5312
      %v5501 = vunpack.c.h.b16 %v5312
      %v5502 = vunpack.c.l.b16 %v5313
      %v5503 = vunpack.c.l.b16 %v5314
      %v5504 = vunpack.c.h.b16 %v5314
      %v5505 = vunpack.c.l.b16 %v5315
      %v5506 = vunpack.c.l.b16 %v5316
      %v5507 = vunpack.c.h.b16 %v5316
      %v5508 = vunpack.c.l.b16 %v5317
      %v5509 = vunpack.c.l.b16 %v5318
      %v5510 = vunpack.c.h.b16 %v5318
      %v5511 = vunpack.c.l.b16 %v5319
      %v5512 = vunpack.c.l.b16 %v5320
      %v5513 = vunpack.c.h.b16 %v5320
      %v5514 = vunpack.c.l.b16 %v5321
      %v5515 = vunpack.c.l.b16 %v5322
      %v5516 = vunpack.c.h.b16 %v5322
      %v5517 = vunpack.c.l.b16 %v5323
      %v5518 = vunpack.c.l.b16 %v5324
      %v5519 = vunpack.c.h.b16 %v5324
      %v5520 = vunpack.c.l.b16 %v5325
      %v5521 = vunpack.c.l.b16 %v5326
      %v5522 = vunpack.c.h.b16 %v5326
      %v5523 = vunpack.c.l.b16 %v5327
      %v5524 = vunpack.c.l.b16 %v5328
      %v5525 = vunpack.c.h.b16 %v5328
      %v5526 = vunpack.c.l.b16 %v5329
      %v5527 = vunpack.c.l.b16 %v5330
      %v5528 = vunpack.c.h.b16 %v5330
      %v5529 = vunpack.c.l.b16 %v5331
      %v5530 = vunpack.c.l.b16 %v5332
      %v5531 = vunpack.c.h.b16 %v5332
      %v5532 = vunpack.c.l.b16 %v5333
      %v5533 = vunpack.c.l.b16 %v5334
      %v5534 = vunpack.c.h.b16 %v5334
      %v5535 = vunpack.c.l.b16 %v5335
      %v5536 = vunpack.c.l.b16 %v5336
      %v5537 = vunpack.c.h.b16 %v5336
      %v5538 = vunpack.c.l.b16 %v5337
      %v5539 = vunpack.c.l.b16 %v5338
      %v5540 = vunpack.c.h.b16 %v5338
      %v5541 = vunpack.c.l.b16 %v5339
      %v5542 = vunpack.c.l.b16 %v5340
      %v5543 = vunpack.c.h.b16 %v5340
      %v5544 = vunpack.c.l.b16 %v5341
      %v5545 = vunpack.c.l.b16 %v5342
      %v5546 = vunpack.c.h.b16 %v5342
      %v5547 = vunpack.c.l.b16 %v5343
      %v5548 = vunpack.c.l.b16 %v5344
      %v5549 = vunpack.c.h.b16 %v5344
      %v5550 = vunpack.c.l.b16 %v5345
      %v5551 = vunpack.c.l.b16 %v5346
      %v5552 = vunpack.c.h.b16 %v5346
      %v5553 = vunpack.c.l.b16 %v5347
      %v5554 = vunpack.c.l.b16 %v5348
      %v5555 = vunpack.c.h.b16 %v5348
      %v5556 = vunpack.c.l.b16 %v5349
      %v5557 = vunpack.c.l.b16 %v5350
      %v5558 = vunpack.c.h.b16 %v5350
      %v5559 = vunpack.c.l.b16 %v5351
      %v5560 = vunpack.c.l.b16 %v5352
      %v5561 = vunpack.c.h.b16 %v5352
      %v5562 = vunpack.c.l.b16 %v5353
      %v5563 = vunpack.c.l.b16 %v5354
      %v5564 = vunpack.c.h.b16 %v5354
      %v5565 = vunpack.c.l.b16 %v5355
      %v5566 = vpack.c.b16 %v5443, %v5440
      %v5567 = vpack.c.b16 %v5444, %v5441
      %v5568 = vpack.c.b16 %v5445, %v5442
      %v5569 = vpack.c.b16 %v5449, %v5446
      %v5570 = vpack.c.b16 %v5450, %v5447
      %v5571 = vpack.c.b16 %v5451, %v5448
      %v5572 = vpack.c.b16 %v5455, %v5452
      %v5573 = vpack.c.b16 %v5456, %v5453
      %v5574 = vpack.c.b16 %v5457, %v5454
      %v5575 = vpack.c.b16 %v5461, %v5458
      %v5576 = vpack.c.b16 %v5462, %v5459
      %v5577 = vpack.c.b16 %v5463, %v5460
      %v5578 = vpack.c.b16 %v5467, %v5464
      %v5579 = vpack.c.b16 %v5468, %v5465
      %v5580 = vpack.c.b16 %v5469, %v5466
      %v5581 = vpack.c.b16 %v5473, %v5470
      %v5582 = vpack.c.b16 %v5474, %v5471
      %v5583 = vpack.c.b16 %v5475, %v5472
      %v5584 = vpack.c.b16 %v5479, %v5476
      %v5585 = vpack.c.b16 %v5480, %v5477
      %v5586 = vpack.c.b16 %v5481, %v5478
      %v5587 = vpack.c.b16 %v5485, %v5482
      %v5588 = vpack.c.b16 %v5486, %v5483
      %v5589 = vpack.c.b16 %v5487, %v5484
      %v5590 = vpack.c.b16 %v5491, %v5488
      %v5591 = vpack.c.b16 %v5492, %v5489
      %v5592 = vpack.c.b16 %v5493, %v5490
      %v5593 = vpack.c.b16 %v5497, %v5494
      %v5594 = vpack.c.b16 %v5498, %v5495
      %v5595 = vpack.c.b16 %v5499, %v5496
      %v5596 = vpack.c.b16 %v5503, %v5500
      %v5597 = vpack.c.b16 %v5504, %v5501
      %v5598 = vpack.c.b16 %v5505, %v5502
      %v5599 = vpack.c.b16 %v5509, %v5506
      %v5600 = vpack.c.b16 %v5510, %v5507
      %v5601 = vpack.c.b16 %v5511, %v5508
      %v5602 = vpack.c.b16 %v5515, %v5512
      %v5603 = vpack.c.b16 %v5516, %v5513
      %v5604 = vpack.c.b16 %v5517, %v5514
      %v5605 = vpack.c.b16 %v5521, %v5518
      %v5606 = vpack.c.b16 %v5522, %v5519
      %v5607 = vpack.c.b16 %v5523, %v5520
      %v5608 = vpack.c.b16 %v5527, %v5524
      %v5609 = vpack.c.b16 %v5528, %v5525
      %v5610 = vpack.c.b16 %v5529, %v5526
      %v5611 = vpack.c.b16 %v5533, %v5530
      %v5612 = vpack.c.b16 %v5534, %v5531
      %v5613 = vpack.c.b16 %v5535, %v5532
      %v5614 = vpack.c.b16 %v5539, %v5536
      %v5615 = vpack.c.b16 %v5540, %v5537
      %v5616 = vpack.c.b16 %v5541, %v5538
      %v5617 = vpack.c.b16 %v5545, %v5542
      %v5618 = vpack.c.b16 %v5546, %v5543
      %v5619 = vpack.c.b16 %v5547, %v5544
      %v5620 = vpack.c.b16 %v5551, %v5548
      %v5621 = vpack.c.b16 %v5552, %v5549
      %v5622 = vpack.c.b16 %v5553, %v5550
      %v5623 = vpack.c.b16 %v5557, %v5554
      %v5624 = vpack.c.b16 %v5558, %v5555
      %v5625 = vpack.c.b16 %v5559, %v5556
      %v5626 = vpack.c.b16 %v5563, %v5560
      %v5627 = vpack.c.b16 %v5564, %v5561
      %v5628 = vpack.c.b16 %v5565, %v5562
      %v5693 = vsel %vm1140, %v5267, 0
      %v5696 = vsel %vm1140, %v5270, 0
      %5698 = vmatpush.bf16.msra.mxu0 %v5587
      %5699 = vmatpush.bf16.msra.mxu0 %v5584
      %5700 = vmatpush.bf16.msra.mxu0 %v5581
      %5701 = vmatpush.bf16.msra.mxu0 %v5578
      %5702 = vmatpush.bf16.msra.mxu0 %v5575
      %5703 = vmatpush.bf16.msra.mxu0 %v5572
      %5704 = vmatpush.bf16.msra.mxu0 %v5569
      %5705 = vmatpush.bf16.msra.mxu0 %v5566
      %5706 = vmatmul.bf16.gmra.mxu0 %v5265
      %v5707 = vpop.f32.mrf.mxu0
      %v5708 = vadd.f32 0.0, %v5707
      %v5709 = vpop.f32.mrf.mxu0
      %v5710 = vadd.f32 0.0, %v5709
      %5711 = vmatmul.bf16.gmra.mxu0 %v5268
      %v5712 = vpop.f32.mrf.mxu0
      %v5713 = vadd.f32 0.0, %v5712
      %v5714 = vpop.f32.mrf.mxu0
      %5715 = vdwg.mxu0
      %5716 = vmatpush.bf16.msra.mxu0 %v5611
      %5717 = vmatpush.bf16.msra.mxu0 %v5608
      %5718 = vmatpush.bf16.msra.mxu0 %v5605
      %5719 = vmatpush.bf16.msra.mxu0 %v5602
      %5720 = vmatpush.bf16.msra.mxu0 %v5599
      %5721 = vmatpush.bf16.msra.mxu0 %v5596
      %5722 = vmatpush.bf16.msra.mxu0 %v5593
      %5723 = vmatpush.bf16.msra.mxu0 %v5590
      %5724 = vmatmul.bf16.gmra.mxu0 %v5266
      %v5725 = vpop.f32.mrf.mxu0
      %v5726 = vadd.f32 %v5708, %v5725
      %v5727 = vpop.f32.mrf.mxu0
      %v5728 = vadd.f32 %v5710, %v5727
      %5729 = vmatmul.bf16.gmra.mxu0 %v5269
      %v5730 = vpop.f32.mrf.mxu0
      %v5731 = vadd.f32 %v5713, %v5730
      %v5732 = vpop.f32.mrf.mxu0
      %5733 = vdwg.mxu0
      %5734 = vmatpush.bf16.msra.mxu0 0
      %5735 = vmatpush.bf16.msra.mxu0 0
      %5736 = vmatpush.bf16.msra.mxu0 0
      %5737 = vmatpush.bf16.msra.mxu0 %v5626
      %5738 = vmatpush.bf16.msra.mxu0 %v5623
      %5739 = vmatpush.bf16.msra.mxu0 %v5620
      %5740 = vmatpush.bf16.msra.mxu0 %v5617
      %5741 = vmatpush.bf16.msra.mxu0 %v5614
      %5742 = vmatmul.bf16.gmra.mxu0 %v5693
      %v5743 = vpop.f32.mrf.mxu0
      %v5744 = vadd.f32 %v5726, %v5743
      %v5745 = vpop.f32.mrf.mxu0
      %v5746 = vadd.f32 %v5728, %v5745
      %5747 = vmatmul.bf16.gmra.mxu0 %v5696
      %v5748 = vpop.f32.mrf.mxu0
      %v5749 = vadd.f32 %v5731, %v5748
      %v5750 = vpop.f32.mrf.mxu0
      %5751 = vdwg.mxu0
      %5752 = vmatpush.bf16.msra.mxu0 %v5588
      %5753 = vmatpush.bf16.msra.mxu0 %v5585
      %5754 = vmatpush.bf16.msra.mxu0 %v5582
      %5755 = vmatpush.bf16.msra.mxu0 %v5579
      %5756 = vmatpush.bf16.msra.mxu0 %v5576
      %5757 = vmatpush.bf16.msra.mxu0 %v5573
      %5758 = vmatpush.bf16.msra.mxu0 %v5570
      %5759 = vmatpush.bf16.msra.mxu0 %v5567
      %5760 = vmatmul.bf16.gmra.mxu0 %v5265
      %v5761 = vpop.f32.mrf.mxu0
      %v5762 = vadd.f32 0.0, %v5761
      %v5763 = vpop.f32.mrf.mxu0
      %v5764 = vadd.f32 0.0, %v5763
      %5765 = vmatmul.bf16.gmra.mxu0 %v5268
      %v5766 = vpop.f32.mrf.mxu0
      %v5767 = vadd.f32 0.0, %v5766
      %v5768 = vpop.f32.mrf.mxu0
      %5769 = vdwg.mxu0
      %5770 = vmatpush.bf16.msra.mxu0 %v5612
      %5771 = vmatpush.bf16.msra.mxu0 %v5609
      %5772 = vmatpush.bf16.msra.mxu0 %v5606
      %5773 = vmatpush.bf16.msra.mxu0 %v5603
      %5774 = vmatpush.bf16.msra.mxu0 %v5600
      %5775 = vmatpush.bf16.msra.mxu0 %v5597
      %5776 = vmatpush.bf16.msra.mxu0 %v5594
      %5777 = vmatpush.bf16.msra.mxu0 %v5591
      %5778 = vmatmul.bf16.gmra.mxu0 %v5266
      %v5779 = vpop.f32.mrf.mxu0
      %v5780 = vadd.f32 %v5762, %v5779
      %v5781 = vpop.f32.mrf.mxu0
      %v5782 = vadd.f32 %v5764, %v5781
      %5783 = vmatmul.bf16.gmra.mxu0 %v5269
      %v5784 = vpop.f32.mrf.mxu0
      %v5785 = vadd.f32 %v5767, %v5784
      %v5786 = vpop.f32.mrf.mxu0
      %5787 = vdwg.mxu0
      %5788 = vmatpush.bf16.msra.mxu0 0
      %5789 = vmatpush.bf16.msra.mxu0 0
      %5790 = vmatpush.bf16.msra.mxu0 0
      %5791 = vmatpush.bf16.msra.mxu0 %v5627
      %5792 = vmatpush.bf16.msra.mxu0 %v5624
      %5793 = vmatpush.bf16.msra.mxu0 %v5621
      %5794 = vmatpush.bf16.msra.mxu0 %v5618
      %5795 = vmatpush.bf16.msra.mxu0 %v5615
      %5796 = vmatmul.bf16.gmra.mxu0 %v5693
      %v5797 = vpop.f32.mrf.mxu0
      %v5798 = vadd.f32 %v5780, %v5797
      %v5799 = vpop.f32.mrf.mxu0
      %v5800 = vadd.f32 %v5782, %v5799
      %5801 = vmatmul.bf16.gmra.mxu0 %v5696
      %v5802 = vpop.f32.mrf.mxu0
      %v5803 = vadd.f32 %v5785, %v5802
      %v5804 = vpop.f32.mrf.mxu0
      %5805 = vdwg.mxu0
      %5806 = vmatpush.bf16.msra.mxu0 %v5589
      %5807 = vmatpush.bf16.msra.mxu0 %v5586
      %5808 = vmatpush.bf16.msra.mxu0 %v5583
      %5809 = vmatpush.bf16.msra.mxu0 %v5580
      %5810 = vmatpush.bf16.msra.mxu0 %v5577
      %5811 = vmatpush.bf16.msra.mxu0 %v5574
      %5812 = vmatpush.bf16.msra.mxu0 %v5571
      %5813 = vmatpush.bf16.msra.mxu0 %v5568
      %5814 = vmatmul.bf16.gmra.mxu0 %v5265
      %v5815 = vpop.f32.mrf.mxu0
      %v5816 = vadd.f32 0.0, %v5815
      %v5817 = vpop.f32.mrf.mxu0
      %v5818 = vadd.f32 0.0, %v5817
      %5819 = vmatmul.bf16.gmra.mxu0 %v5268
      %v5820 = vpop.f32.mrf.mxu0
      %v5821 = vadd.f32 0.0, %v5820
      %v5822 = vpop.f32.mrf.mxu0
      %5823 = vdwg.mxu0
      %5824 = vmatpush.bf16.msra.mxu0 %v5613
      %5825 = vmatpush.bf16.msra.mxu0 %v5610
      %5826 = vmatpush.bf16.msra.mxu0 %v5607
      %5827 = vmatpush.bf16.msra.mxu0 %v5604
      %5828 = vmatpush.bf16.msra.mxu0 %v5601
      %5829 = vmatpush.bf16.msra.mxu0 %v5598
      %5830 = vmatpush.bf16.msra.mxu0 %v5595
      %5831 = vmatpush.bf16.msra.mxu0 %v5592
      %5832 = vmatmul.bf16.gmra.mxu0 %v5266
      %v5833 = vpop.f32.mrf.mxu0
      %v5834 = vadd.f32 %v5816, %v5833
      %v5835 = vpop.f32.mrf.mxu0
      %v5836 = vadd.f32 %v5818, %v5835
      %5837 = vmatmul.bf16.gmra.mxu0 %v5269
      %v5838 = vpop.f32.mrf.mxu0
      %v5839 = vadd.f32 %v5821, %v5838
      %v5840 = vpop.f32.mrf.mxu0
      %5841 = vdwg.mxu0
      %5842 = vmatpush.bf16.msra.mxu0 0
      %5843 = vmatpush.bf16.msra.mxu0 0
      %5844 = vmatpush.bf16.msra.mxu0 0
      %5845 = vmatpush.bf16.msra.mxu0 %v5628
      %5846 = vmatpush.bf16.msra.mxu0 %v5625
      %5847 = vmatpush.bf16.msra.mxu0 %v5622
      %5848 = vmatpush.bf16.msra.mxu0 %v5619
      %5849 = vmatpush.bf16.msra.mxu0 %v5616
      %5850 = vmatmul.bf16.gmra.mxu0 %v5693
      %v5851 = vpop.f32.mrf.mxu0
      %v5852 = vadd.f32 %v5834, %v5851
      %v5853 = vpop.f32.mrf.mxu0
      %v5854 = vadd.f32 %v5836, %v5853
      %5855 = vmatmul.bf16.gmra.mxu0 %v5696
      %v5856 = vpop.f32.mrf.mxu0
      %v5857 = vadd.f32 %v5839, %v5856
      %v5858 = vpop.f32.mrf.mxu0
      %5859 = vdwg.mxu0
      %v5860 = vadd.f32 %v5184, %v5744
      %v5861 = vadd.f32 %v5185, %v5798
      %v5862 = vadd.f32 %v5186, %v5852
      %v5863 = vadd.f32 %v5187, %v5746
      %v5864 = vadd.f32 %v5188, %v5800
      %v5865 = vadd.f32 %v5189, %v5854
      %v5866 = vadd.f32 %v5190, %v5749
      %v5867 = vadd.f32 %v5191, %v5803
      %v5868 = vadd.f32 %v5192, %v5857
      %v5869 = vld [vmem:[%s3] sm:$0x7]
      %v5871 = vperm.slane %v5869, 0
      %v5872 = vperm.slane %v5869, 1
      %v5873 = vperm.slane %v5869, 2
      %v5877 = vadd.f32 %v5860, %v5871
      %v5878 = vadd.f32 %v5861, %v5872
      %v5879 = vadd.f32 %v5862, %v5873
      %v5880 = vadd.f32 %v5863, %v5871
      %v5881 = vadd.f32 %v5864, %v5872
      %v5882 = vadd.f32 %v5865, %v5873
      %v5883 = vadd.f32 %v5866, %v5871
      %v5884 = vadd.f32 %v5867, %v5872
      %v5885 = vadd.f32 %v5868, %v5873
      %v5886 = vmax.f32 %v5877, 0.0
      %v5887 = vmax.f32 %v5878, 0.0
      %v5888 = vmax.f32 %v5879, 0.0
      %v5889 = vmax.f32 %v5880, 0.0
      %v5890 = vmax.f32 %v5881, 0.0
      %v5891 = vmax.f32 %v5882, 0.0
      %v5892 = vmax.f32 %v5883, 0.0
      %v5893 = vmax.f32 %v5884, 0.0
      %v5894 = vmax.f32 %v5885, 0.0
      %v5895 = vpack.c.bf16 %v5889, %v5886
      %v5896 = vpack.c.bf16 %v5890, %v5887
      %v5897 = vpack.c.bf16 %v5891, %v5888
      %v5898 = vpack.c.bf16 %v5892, %v5892
      %v5899 = vpack.c.bf16 %v5893, %v5893
      %v5900 = vpack.c.bf16 %v5894, %v5894
      %v5901 = vld [vmem:[%s4] sm:$0xf]
      %v5902 = vld [vmem:[%s4 + $0x4] sm:$0xf]
      %v5905 = vunpack.c.l.b16 %v5901
      %v5906 = vunpack.c.l.b16 %v5902
      %v5907 = vpack.c.b16 %v5906, %v5905
      %vm5908 = vcmask 195584
      %v5910 = vsel %vm5908, %v5907, 0
      %vm5912 = vcmask 1043456
      %v5914 = vsel %vm5912, %v5898, 0
      %v5917 = vsel %vm5912, %v5899, 0
      %v5920 = vsel %vm5912, %v5900, 0
      %5922 = vmatpush.bf16.msra.mxu0 0
      %5923 = vmatpush.bf16.msra.mxu0 0
      %5924 = vmatpush.bf16.msra.mxu0 0
      %5925 = vmatpush.bf16.msra.mxu0 0
      %5926 = vmatpush.bf16.msra.mxu0 0
      %5927 = vmatpush.bf16.msra.mxu0 0
      %5928 = vmatpush.bf16.msra.mxu0 %v5914
      %5929 = vmatpush.bf16.msra.mxu0 %v5895
      %5930 = vmatmul.bf16.gmra.mxu0 %v5910
      %v5931 = vpop.f32.mrf.mxu0
      %v5932 = vadd.f32 0.0, %v5931
      %v5933 = vpop.f32.mrf.mxu0
      %v5934 = vadd.f32 0.0, %v5933
      %5935 = vdwg.mxu0
      %5936 = vmatpush.bf16.msra.mxu0 0
      %5937 = vmatpush.bf16.msra.mxu0 0
      %5938 = vmatpush.bf16.msra.mxu0 0
      %5939 = vmatpush.bf16.msra.mxu0 0
      %5940 = vmatpush.bf16.msra.mxu0 0
      %5941 = vmatpush.bf16.msra.mxu0 0
      %5942 = vmatpush.bf16.msra.mxu0 %v5917
      %5943 = vmatpush.bf16.msra.mxu0 %v5896
      %5944 = vmatmul.bf16.gmra.mxu0 %v5910
      %v5945 = vpop.f32.mrf.mxu0
      %v5946 = vadd.f32 0.0, %v5945
      %v5947 = vpop.f32.mrf.mxu0
      %v5948 = vadd.f32 0.0, %v5947
      %5949 = vdwg.mxu0
      %5950 = vmatpush.bf16.msra.mxu0 0
      %5951 = vmatpush.bf16.msra.mxu0 0
      %5952 = vmatpush.bf16.msra.mxu0 0
      %5953 = vmatpush.bf16.msra.mxu0 0
      %5954 = vmatpush.bf16.msra.mxu0 0
      %5955 = vmatpush.bf16.msra.mxu0 0
      %5956 = vmatpush.bf16.msra.mxu0 %v5920
      %5957 = vmatpush.bf16.msra.mxu0 %v5897
      %5958 = vmatmul.bf16.gmra.mxu0 %v5910
      %v5959 = vpop.f32.mrf.mxu0
      %v5960 = vadd.f32 0.0, %v5959
      %v5961 = vpop.f32.mrf.mxu0
      %v5962 = vadd.f32 0.0, %v5961
      %5963 = vdwg.mxu0
      %v5964 = vpack.c.bf16 %v5934, %v5932
      %v5965 = vpack.c.bf16 %v5948, %v5946
      %v5966 = vpack.c.bf16 %v5962, %v5960
      %v5967 = vld [vmem:[%s5] sm:$0xff]
      %v5968 = vld [vmem:[%s5 + $0x8] sm:$0xf]
      %v5969 = vld [vmem:[%s5 + $0xc] sm:$0xff]
      %v5970 = vld [vmem:[%s5 + $0x14] sm:$0xf]
      %v5971 = vld [vmem:[%s5 + $0x18] sm:$0xff]
      %v5972 = vld [vmem:[%s5 + $0x20] sm:$0xf]
      %v5973 = vld [vmem:[%s5 + $0x24] sm:$0xff]
      %v5974 = vld [vmem:[%s5 + $0x2c] sm:$0xf]
      %v5975 = vld [vmem:[%s5 + $0x30] sm:$0xff]
      %v5976 = vld [vmem:[%s5 + $0x38] sm:$0xf]
      %v5977 = vld [vmem:[%s5 + $0x3c] sm:$0xff]
      %v5978 = vld [vmem:[%s5 + $0x44] sm:$0xf]
      %v5979 = vld [vmem:[%s5 + $0x48] sm:$0xff]
      %v5980 = vld [vmem:[%s5 + $0x50] sm:$0xf]
      %v5981 = vld [vmem:[%s5 + $0x54] sm:$0xff]
      %v5982 = vld [vmem:[%s5 + $0x5c] sm:$0xf]
      %v5983 = vld [vmem:[%s5 + $0x60] sm:$0xff]
      %v5984 = vld [vmem:[%s5 + $0x68] sm:$0xf]
      %v5985 = vld [vmem:[%s5 + $0x6c] sm:$0xff]
      %v5986 = vld [vmem:[%s5 + $0x74] sm:$0xf]
      %v5987 = vld [vmem:[%s5 + $0x78] sm:$0xff]
      %v5988 = vld [vmem:[%s5 + $0x80] sm:$0xf]
      %v5989 = vld [vmem:[%s5 + $0x84] sm:$0xff]
      %v5990 = vld [vmem:[%s5 + $0x8c] sm:$0xf]
      %v5991 = vld [vmem:[%s5 + $0x90] sm:$0xff]
      %v5992 = vld [vmem:[%s5 + $0x98] sm:$0xf]
      %v5993 = vld [vmem:[%s5 + $0x9c] sm:$0xff]
      %v5994 = vld [vmem:[%s5 + $0xa4] sm:$0xf]
      %v5995 = vld [vmem:[%s5 + $0xa8] sm:$0xff]
      %v5996 = vld [vmem:[%s5 + $0xb0] sm:$0xf]
      %v5997 = vld [vmem:[%s5 + $0xb4] sm:$0xff]
      %v5998 = vld [vmem:[%s5 + $0xbc] sm:$0xf]
      %v5999 = vld [vmem:[%s5 + $0xc0] sm:$0xff]
      %v6000 = vld [vmem:[%s5 + $0xc8] sm:$0xf]
      %v6001 = vld [vmem:[%s5 + $0xcc] sm:$0xff]
      %v6002 = vld [vmem:[%s5 + $0xd4] sm:$0xf]
      %v6003 = vld [vmem:[%s5 + $0xd8] sm:$0xff]
      %v6004 = vld [vmem:[%s5 + $0xe0] sm:$0xf]
      %v6005 = vld [vmem:[%s5 + $0xe4] sm:$0xff]
      %v6006 = vld [vmem:[%s5 + $0xec] sm:$0xf]
      %v6007 = vld [vmem:[%s5 + $0xf0] sm:$0xff]
      %v6008 = vld [vmem:[%s5 + $0xf8] sm:$0xf]
      %v6009 = vld [vmem:[%s5 + $0xfc] sm:$0xff]
      %v6010 = vld [vmem:[%s5 + $0x104] sm:$0xf]
      %v6011 = vld [vmem:[%s5 + $0x108] sm:$0xff]
      %v6012 = vld [vmem:[%s5 + $0x110] sm:$0xf]
      %v6013 = vld [vmem:[%s5 + $0x114] sm:$0xff]
      %v6014 = vld [vmem:[%s5 + $0x11c] sm:$0xf]
      %v6015 = vld [vmem:[%s5 + $0x120] sm:$0xff]
      %v6016 = vld [vmem:[%s5 + $0x128] sm:$0xf]
      %v6017 = vld [vmem:[%s5 + $0x12c] sm:$0xff]
      %v6018 = vld [vmem:[%s5 + $0x134] sm:$0xf]
      %v6019 = vld [vmem:[%s5 + $0x138] sm:$0xff]
      %v6020 = vld [vmem:[%s5 + $0x140] sm:$0xf]
      %v6021 = vld [vmem:[%s5 + $0x144] sm:$0xff]
      %v6022 = vld [vmem:[%s5 + $0x14c] sm:$0xf]
      %v6023 = vld [vmem:[%s5 + $0x150] sm:$0xff]
      %v6024 = vld [vmem:[%s5 + $0x158] sm:$0xf]
      %v6025 = vld [vmem:[%s5 + $0x15c] sm:$0xff]
      %v6026 = vld [vmem:[%s5 + $0x164] sm:$0xf]
      %v6027 = vld [vmem:[%s5 + $0x168] sm:$0xff]
      %v6028 = vld [vmem:[%s5 + $0x170] sm:$0xf]
      %v6029 = vld [vmem:[%s5 + $0x174] sm:$0xff]
      %v6030 = vld [vmem:[%s5 + $0x17c] sm:$0xf]
      %v6031 = vld [vmem:[%s5 + $0x180] sm:$0xff]
      %v6032 = vld [vmem:[%s5 + $0x188] sm:$0xf]
      %v6033 = vld [vmem:[%s5 + $0x18c] sm:$0xff]
      %v6034 = vld [vmem:[%s5 + $0x194] sm:$0xf]
      %v6035 = vld [vmem:[%s5 + $0x198] sm:$0xff]
      %v6036 = vld [vmem:[%s5 + $0x1a0] sm:$0xf]
      %v6037 = vld [vmem:[%s5 + $0x1a4] sm:$0xff]
      %v6038 = vld [vmem:[%s5 + $0x1ac] sm:$0xf]
      %v6039 = vld [vmem:[%s5 + $0x1b0] sm:$0xff]
      %v6040 = vld [vmem:[%s5 + $0x1b8] sm:$0xf]
      %v6041 = vld [vmem:[%s5 + $0x1bc] sm:$0xff]
      %v6042 = vld [vmem:[%s5 + $0x1c4] sm:$0xf]
      %v6043 = vld [vmem:[%s5 + $0x1c8] sm:$0xff]
      %v6044 = vld [vmem:[%s5 + $0x1d0] sm:$0xf]
      %v6045 = vld [vmem:[%s5 + $0x1d4] sm:$0xff]
      %v6046 = vld [vmem:[%s5 + $0x1dc] sm:$0xf]
      %s6047 = scalar_lea.vmem %s4, 8
      %v6048 = vld [vmem:[%s6047] sm:$0xf]
      %v6049 = vld [vmem:[%s6047 + $0x4] sm:$0xf]
      %v6052 = vunpack.c.l.b16 %v6048
      %v6053 = vunpack.c.l.b16 %v6049
      %v6054 = vpack.c.b16 %v6053, %v6052
      %v6056 = vsel %vm5908, %v6054, 0
      %6058 = vmatpush.bf16.msra.mxu0 0
      %6059 = vmatpush.bf16.msra.mxu0 0
      %6060 = vmatpush.bf16.msra.mxu0 0
      %6061 = vmatpush.bf16.msra.mxu0 0
      %6062 = vmatpush.bf16.msra.mxu0 0
      %6063 = vmatpush.bf16.msra.mxu0 0
      %6064 = vmatpush.bf16.msra.mxu0 %v5914
      %6065 = vmatpush.bf16.msra.mxu0 %v5895
      %6066 = vmatmul.bf16.gmra.mxu0 %v6056
      %v6067 = vpop.f32.mrf.mxu0
      %v6068 = vadd.f32 0.0, %v6067
      %v6069 = vpop.f32.mrf.mxu0
      %v6070 = vadd.f32 0.0, %v6069
      %6071 = vdwg.mxu0
      %6072 = vmatpush.bf16.msra.mxu0 0
      %6073 = vmatpush.bf16.msra.mxu0 0
      %6074 = vmatpush.bf16.msra.mxu0 0
      %6075 = vmatpush.bf16.msra.mxu0 0
      %6076 = vmatpush.bf16.msra.mxu0 0
      %6077 = vmatpush.bf16.msra.mxu0 0
      %6078 = vmatpush.bf16.msra.mxu0 %v5917
      %6079 = vmatpush.bf16.msra.mxu0 %v5896
      %6080 = vmatmul.bf16.gmra.mxu0 %v6056
      %v6081 = vpop.f32.mrf.mxu0
      %v6082 = vadd.f32 0.0, %v6081
      %v6083 = vpop.f32.mrf.mxu0
      %v6084 = vadd.f32 0.0, %v6083
      %6085 = vdwg.mxu0
      %6086 = vmatpush.bf16.msra.mxu0 0
      %6087 = vmatpush.bf16.msra.mxu0 0
      %6088 = vmatpush.bf16.msra.mxu0 0
      %6089 = vmatpush.bf16.msra.mxu0 0
      %6090 = vmatpush.bf16.msra.mxu0 0
      %6091 = vmatpush.bf16.msra.mxu0 0
      %6092 = vmatpush.bf16.msra.mxu0 %v5920
      %6093 = vmatpush.bf16.msra.mxu0 %v5897
      %6094 = vmatmul.bf16.gmra.mxu0 %v6056
      %v6095 = vpop.f32.mrf.mxu0
      %v6096 = vadd.f32 0.0, %v6095
      %v6097 = vpop.f32.mrf.mxu0
      %v6098 = vadd.f32 0.0, %v6097
      %6099 = vdwg.mxu0
      %v6100 = vpack.c.bf16 %v6070, %v6068
      %v6101 = vpack.c.bf16 %v6084, %v6082
      %v6102 = vpack.c.bf16 %v6098, %v6096
      %s6103 = scalar_lea.vmem %s5, 480
      %v6104 = vld [vmem:[%s6103] sm:$0xff]
      %v6105 = vld [vmem:[%s6103 + $0x8] sm:$0xf]
      %v6106 = vld [vmem:[%s6103 + $0xc] sm:$0xff]
      %v6107 = vld [vmem:[%s6103 + $0x14] sm:$0xf]
      %v6108 = vld [vmem:[%s6103 + $0x18] sm:$0xff]
      %v6109 = vld [vmem:[%s6103 + $0x20] sm:$0xf]
      %v6110 = vld [vmem:[%s6103 + $0x24] sm:$0xff]
      %v6111 = vld [vmem:[%s6103 + $0x2c] sm:$0xf]
      %v6112 = vld [vmem:[%s6103 + $0x30] sm:$0xff]
      %v6113 = vld [vmem:[%s6103 + $0x38] sm:$0xf]
      %v6114 = vld [vmem:[%s6103 + $0x3c] sm:$0xff]
      %v6115 = vld [vmem:[%s6103 + $0x44] sm:$0xf]
      %v6116 = vld [vmem:[%s6103 + $0x48] sm:$0xff]
      %v6117 = vld [vmem:[%s6103 + $0x50] sm:$0xf]
      %v6118 = vld [vmem:[%s6103 + $0x54] sm:$0xff]
      %v6119 = vld [vmem:[%s6103 + $0x5c] sm:$0xf]
      %v6120 = vld [vmem:[%s6103 + $0x60] sm:$0xff]
      %v6121 = vld [vmem:[%s6103 + $0x68] sm:$0xf]
      %v6122 = vld [vmem:[%s6103 + $0x6c] sm:$0xff]
      %v6123 = vld [vmem:[%s6103 + $0x74] sm:$0xf]
      %v6124 = vld [vmem:[%s6103 + $0x78] sm:$0xff]
      %v6125 = vld [vmem:[%s6103 + $0x80] sm:$0xf]
      %v6126 = vld [vmem:[%s6103 + $0x84] sm:$0xff]
      %v6127 = vld [vmem:[%s6103 + $0x8c] sm:$0xf]
      %v6128 = vld [vmem:[%s6103 + $0x90] sm:$0xff]
      %v6129 = vld [vmem:[%s6103 + $0x98] sm:$0xf]
      %v6130 = vld [vmem:[%s6103 + $0x9c] sm:$0xff]
      %v6131 = vld [vmem:[%s6103 + $0xa4] sm:$0xf]
      %v6132 = vld [vmem:[%s6103 + $0xa8] sm:$0xff]
      %v6133 = vld [vmem:[%s6103 + $0xb0] sm:$0xf]
      %v6134 = vld [vmem:[%s6103 + $0xb4] sm:$0xff]
      %v6135 = vld [vmem:[%s6103 + $0xbc] sm:$0xf]
      %v6136 = vld [vmem:[%s6103 + $0xc0] sm:$0xff]
      %v6137 = vld [vmem:[%s6103 + $0xc8] sm:$0xf]
      %v6138 = vld [vmem:[%s6103 + $0xcc] sm:$0xff]
      %v6139 = vld [vmem:[%s6103 + $0xd4] sm:$0xf]
      %v6140 = vld [vmem:[%s6103 + $0xd8] sm:$0xff]
      %v6141 = vld [vmem:[%s6103 + $0xe0] sm:$0xf]
      %v6142 = vld [vmem:[%s6103 + $0xe4] sm:$0xff]
      %v6143 = vld [vmem:[%s6103 + $0xec] sm:$0xf]
      %v6144 = vld [vmem:[%s6103 + $0xf0] sm:$0xff]
      %v6145 = vld [vmem:[%s6103 + $0xf8] sm:$0xf]
      %v6146 = vld [vmem:[%s6103 + $0xfc] sm:$0xff]
      %v6147 = vld [vmem:[%s6103 + $0x104] sm:$0xf]
      %v6148 = vld [vmem:[%s6103 + $0x108] sm:$0xff]
      %v6149 = vld [vmem:[%s6103 + $0x110] sm:$0xf]
      %v6150 = vld [vmem:[%s6103 + $0x114] sm:$0xff]
      %v6151 = vld [vmem:[%s6103 + $0x11c] sm:$0xf]
      %v6152 = vld [vmem:[%s6103 + $0x120] sm:$0xff]
      %v6153 = vld [vmem:[%s6103 + $0x128] sm:$0xf]
      %v6154 = vld [vmem:[%s6103 + $0x12c] sm:$0xff]
      %v6155 = vld [vmem:[%s6103 + $0x134] sm:$0xf]
      %v6156 = vld [vmem:[%s6103 + $0x138] sm:$0xff]
      %v6157 = vld [vmem:[%s6103 + $0x140] sm:$0xf]
      %v6158 = vld [vmem:[%s6103 + $0x144] sm:$0xff]
      %v6159 = vld [vmem:[%s6103 + $0x14c] sm:$0xf]
      %v6160 = vld [vmem:[%s6103 + $0x150] sm:$0xff]
      %v6161 = vld [vmem:[%s6103 + $0x158] sm:$0xf]
      %v6162 = vld [vmem:[%s6103 + $0x15c] sm:$0xff]
      %v6163 = vld [vmem:[%s6103 + $0x164] sm:$0xf]
      %v6164 = vld [vmem:[%s6103 + $0x168] sm:$0xff]
      %v6165 = vld [vmem:[%s6103 + $0x170] sm:$0xf]
      %v6166 = vld [vmem:[%s6103 + $0x174] sm:$0xff]
      %v6167 = vld [vmem:[%s6103 + $0x17c] sm:$0xf]
      %v6168 = vld [vmem:[%s6103 + $0x180] sm:$0xff]
      %v6169 = vld [vmem:[%s6103 + $0x188] sm:$0xf]
      %v6170 = vld [vmem:[%s6103 + $0x18c] sm:$0xff]
      %v6171 = vld [vmem:[%s6103 + $0x194] sm:$0xf]
      %v6172 = vld [vmem:[%s6103 + $0x198] sm:$0xff]
      %v6173 = vld [vmem:[%s6103 + $0x1a0] sm:$0xf]
      %v6174 = vld [vmem:[%s6103 + $0x1a4] sm:$0xff]
      %v6175 = vld [vmem:[%s6103 + $0x1ac] sm:$0xf]
      %v6176 = vld [vmem:[%s6103 + $0x1b0] sm:$0xff]
      %v6177 = vld [vmem:[%s6103 + $0x1b8] sm:$0xf]
      %v6178 = vld [vmem:[%s6103 + $0x1bc] sm:$0xff]
      %v6179 = vld [vmem:[%s6103 + $0x1c4] sm:$0xf]
      %v6180 = vld [vmem:[%s6103 + $0x1c8] sm:$0xff]
      %v6181 = vld [vmem:[%s6103 + $0x1d0] sm:$0xf]
      %v6182 = vld [vmem:[%s6103 + $0x1d4] sm:$0xff]
      %v6183 = vld [vmem:[%s6103 + $0x1dc] sm:$0xf]
      %v6264 = vunpack.c.l.b16 %v6104
      %v6265 = vunpack.c.h.b16 %v6104
      %v6266 = vunpack.c.l.b16 %v6105
      %v6267 = vunpack.c.l.b16 %v6106
      %v6268 = vunpack.c.h.b16 %v6106
      %v6269 = vunpack.c.l.b16 %v6107
      %v6270 = vunpack.c.l.b16 %v6108
      %v6271 = vunpack.c.h.b16 %v6108
      %v6272 = vunpack.c.l.b16 %v6109
      %v6273 = vunpack.c.l.b16 %v6110
      %v6274 = vunpack.c.h.b16 %v6110
      %v6275 = vunpack.c.l.b16 %v6111
      %v6276 = vunpack.c.l.b16 %v6112
      %v6277 = vunpack.c.h.b16 %v6112
      %v6278 = vunpack.c.l.b16 %v6113
      %v6279 = vunpack.c.l.b16 %v6114
      %v6280 = vunpack.c.h.b16 %v6114
      %v6281 = vunpack.c.l.b16 %v6115
      %v6282 = vunpack.c.l.b16 %v6116
      %v6283 = vunpack.c.h.b16 %v6116
      %v6284 = vunpack.c.l.b16 %v6117
      %v6285 = vunpack.c.l.b16 %v6118
      %v6286 = vunpack.c.h.b16 %v6118
      %v6287 = vunpack.c.l.b16 %v6119
      %v6288 = vunpack.c.l.b16 %v6120
      %v6289 = vunpack.c.h.b16 %v6120
      %v6290 = vunpack.c.l.b16 %v6121
      %v6291 = vunpack.c.l.b16 %v6122
      %v6292 = vunpack.c.h.b16 %v6122
      %v6293 = vunpack.c.l.b16 %v6123
      %v6294 = vunpack.c.l.b16 %v6124
      %v6295 = vunpack.c.h.b16 %v6124
      %v6296 = vunpack.c.l.b16 %v6125
      %v6297 = vunpack.c.l.b16 %v6126
      %v6298 = vunpack.c.h.b16 %v6126
      %v6299 = vunpack.c.l.b16 %v6127
      %v6300 = vunpack.c.l.b16 %v6128
      %v6301 = vunpack.c.h.b16 %v6128
      %v6302 = vunpack.c.l.b16 %v6129
      %v6303 = vunpack.c.l.b16 %v6130
      %v6304 = vunpack.c.h.b16 %v6130
      %v6305 = vunpack.c.l.b16 %v6131
      %v6306 = vunpack.c.l.b16 %v6132
      %v6307 = vunpack.c.h.b16 %v6132
      %v6308 = vunpack.c.l.b16 %v6133
      %v6309 = vunpack.c.l.b16 %v6134
      %v6310 = vunpack.c.h.b16 %v6134
      %v6311 = vunpack.c.l.b16 %v6135
      %v6312 = vunpack.c.l.b16 %v6136
      %v6313 = vunpack.c.h.b16 %v6136
      %v6314 = vunpack.c.l.b16 %v6137
      %v6315 = vunpack.c.l.b16 %v6138
      %v6316 = vunpack.c.h.b16 %v6138
      %v6317 = vunpack.c.l.b16 %v6139
      %v6318 = vunpack.c.l.b16 %v6140
      %v6319 = vunpack.c.h.b16 %v6140
      %v6320 = vunpack.c.l.b16 %v6141
      %v6321 = vunpack.c.l.b16 %v6142
      %v6322 = vunpack.c.h.b16 %v6142
      %v6323 = vunpack.c.l.b16 %v6143
      %v6324 = vunpack.c.l.b16 %v6144
      %v6325 = vunpack.c.h.b16 %v6144
      %v6326 = vunpack.c.l.b16 %v6145
      %v6327 = vunpack.c.l.b16 %v6146
      %v6328 = vunpack.c.h.b16 %v6146
      %v6329 = vunpack.c.l.b16 %v6147
      %v6330 = vunpack.c.l.b16 %v6148
      %v6331 = vunpack.c.h.b16 %v6148
      %v6332 = vunpack.c.l.b16 %v6149
      %v6333 = vunpack.c.l.b16 %v6150
      %v6334 = vunpack.c.h.b16 %v6150
      %v6335 = vunpack.c.l.b16 %v6151
      %v6336 = vunpack.c.l.b16 %v6152
      %v6337 = vunpack.c.h.b16 %v6152
      %v6338 = vunpack.c.l.b16 %v6153
      %v6339 = vunpack.c.l.b16 %v6154
      %v6340 = vunpack.c.h.b16 %v6154
      %v6341 = vunpack.c.l.b16 %v6155
      %v6342 = vunpack.c.l.b16 %v6156
      %v6343 = vunpack.c.h.b16 %v6156
      %v6344 = vunpack.c.l.b16 %v6157
      %v6345 = vunpack.c.l.b16 %v6158
      %v6346 = vunpack.c.h.b16 %v6158
      %v6347 = vunpack.c.l.b16 %v6159
      %v6348 = vunpack.c.l.b16 %v6160
      %v6349 = vunpack.c.h.b16 %v6160
      %v6350 = vunpack.c.l.b16 %v6161
      %v6351 = vunpack.c.l.b16 %v6162
      %v6352 = vunpack.c.h.b16 %v6162
      %v6353 = vunpack.c.l.b16 %v6163
      %v6354 = vunpack.c.l.b16 %v6164
      %v6355 = vunpack.c.h.b16 %v6164
      %v6356 = vunpack.c.l.b16 %v6165
      %v6357 = vunpack.c.l.b16 %v6166
      %v6358 = vunpack.c.h.b16 %v6166
      %v6359 = vunpack.c.l.b16 %v6167
      %v6360 = vunpack.c.l.b16 %v6168
      %v6361 = vunpack.c.h.b16 %v6168
      %v6362 = vunpack.c.l.b16 %v6169
      %v6363 = vunpack.c.l.b16 %v6170
      %v6364 = vunpack.c.h.b16 %v6170
      %v6365 = vunpack.c.l.b16 %v6171
      %v6366 = vunpack.c.l.b16 %v6172
      %v6367 = vunpack.c.h.b16 %v6172
      %v6368 = vunpack.c.l.b16 %v6173
      %v6369 = vunpack.c.l.b16 %v6174
      %v6370 = vunpack.c.h.b16 %v6174
      %v6371 = vunpack.c.l.b16 %v6175
      %v6372 = vunpack.c.l.b16 %v6176
      %v6373 = vunpack.c.h.b16 %v6176
      %v6374 = vunpack.c.l.b16 %v6177
      %v6375 = vunpack.c.l.b16 %v6178
      %v6376 = vunpack.c.h.b16 %v6178
      %v6377 = vunpack.c.l.b16 %v6179
      %v6378 = vunpack.c.l.b16 %v6180
      %v6379 = vunpack.c.h.b16 %v6180
      %v6380 = vunpack.c.l.b16 %v6181
      %v6381 = vunpack.c.l.b16 %v6182
      %v6382 = vunpack.c.h.b16 %v6182
      %v6383 = vunpack.c.l.b16 %v6183
      %v6384 = vpack.c.b16 %v6267, %v6264
      %v6385 = vpack.c.b16 %v6268, %v6265
      %v6386 = vpack.c.b16 %v6269, %v6266
      %v6387 = vpack.c.b16 %v6273, %v6270
      %v6388 = vpack.c.b16 %v6274, %v6271
      %v6389 = vpack.c.b16 %v6275, %v6272
      %v6390 = vpack.c.b16 %v6279, %v6276
      %v6391 = vpack.c.b16 %v6280, %v6277
      %v6392 = vpack.c.b16 %v6281, %v6278
      %v6393 = vpack.c.b16 %v6285, %v6282
      %v6394 = vpack.c.b16 %v6286, %v6283
      %v6395 = vpack.c.b16 %v6287, %v6284
      %v6396 = vpack.c.b16 %v6291, %v6288
      %v6397 = vpack.c.b16 %v6292, %v6289
      %v6398 = vpack.c.b16 %v6293, %v6290
      %v6399 = vpack.c.b16 %v6297, %v6294
      %v6400 = vpack.c.b16 %v6298, %v6295
      %v6401 = vpack.c.b16 %v6299, %v6296
      %v6402 = vpack.c.b16 %v6303, %v6300
      %v6403 = vpack.c.b16 %v6304, %v6301
      %v6404 = vpack.c.b16 %v6305, %v6302
      %v6405 = vpack.c.b16 %v6309, %v6306
      %v6406 = vpack.c.b16 %v6310, %v6307
      %v6407 = vpack.c.b16 %v6311, %v6308
      %v6408 = vpack.c.b16 %v6315, %v6312
      %v6409 = vpack.c.b16 %v6316, %v6313
      %v6410 = vpack.c.b16 %v6317, %v6314
      %v6411 = vpack.c.b16 %v6321, %v6318
      %v6412 = vpack.c.b16 %v6322, %v6319
      %v6413 = vpack.c.b16 %v6323, %v6320
      %v6414 = vpack.c.b16 %v6327, %v6324
      %v6415 = vpack.c.b16 %v6328, %v6325
      %v6416 = vpack.c.b16 %v6329, %v6326
      %v6417 = vpack.c.b16 %v6333, %v6330
      %v6418 = vpack.c.b16 %v6334, %v6331
      %v6419 = vpack.c.b16 %v6335, %v6332
      %v6420 = vpack.c.b16 %v6339, %v6336
      %v6421 = vpack.c.b16 %v6340, %v6337
      %v6422 = vpack.c.b16 %v6341, %v6338
      %v6423 = vpack.c.b16 %v6345, %v6342
      %v6424 = vpack.c.b16 %v6346, %v6343
      %v6425 = vpack.c.b16 %v6347, %v6344
      %v6426 = vpack.c.b16 %v6351, %v6348
      %v6427 = vpack.c.b16 %v6352, %v6349
      %v6428 = vpack.c.b16 %v6353, %v6350
      %v6429 = vpack.c.b16 %v6357, %v6354
      %v6430 = vpack.c.b16 %v6358, %v6355
      %v6431 = vpack.c.b16 %v6359, %v6356
      %v6432 = vpack.c.b16 %v6363, %v6360
      %v6433 = vpack.c.b16 %v6364, %v6361
      %v6434 = vpack.c.b16 %v6365, %v6362
      %v6435 = vpack.c.b16 %v6369, %v6366
      %v6436 = vpack.c.b16 %v6370, %v6367
      %v6437 = vpack.c.b16 %v6371, %v6368
      %v6438 = vpack.c.b16 %v6375, %v6372
      %v6439 = vpack.c.b16 %v6376, %v6373
      %v6440 = vpack.c.b16 %v6377, %v6374
      %v6441 = vpack.c.b16 %v6381, %v6378
      %v6442 = vpack.c.b16 %v6382, %v6379
      %v6443 = vpack.c.b16 %v6383, %v6380
      %vm6504 = vcmask 523264
      %v6506 = vsel %vm6504, %v6102, 0
      %6508 = vmatpush.bf16.msra.mxu0 %v6405
      %6509 = vmatpush.bf16.msra.mxu0 %v6402
      %6510 = vmatpush.bf16.msra.mxu0 %v6399
      %6511 = vmatpush.bf16.msra.mxu0 %v6396
      %6512 = vmatpush.bf16.msra.mxu0 %v6393
      %6513 = vmatpush.bf16.msra.mxu0 %v6390
      %6514 = vmatpush.bf16.msra.mxu0 %v6387
      %6515 = vmatpush.bf16.msra.mxu0 %v6384
      %6516 = vmatmul.bf16.gmra.mxu0 %v6100
      %v6517 = vpop.f32.mrf.mxu0
      %v6518 = vadd.f32 0.0, %v6517
      %v6519 = vpop.f32.mrf.mxu0
      %v6520 = vadd.f32 0.0, %v6519
      %6521 = vdwg.mxu0
      %6522 = vmatpush.bf16.msra.mxu0 %v6429
      %6523 = vmatpush.bf16.msra.mxu0 %v6426
      %6524 = vmatpush.bf16.msra.mxu0 %v6423
      %6525 = vmatpush.bf16.msra.mxu0 %v6420
      %6526 = vmatpush.bf16.msra.mxu0 %v6417
      %6527 = vmatpush.bf16.msra.mxu0 %v6414
      %6528 = vmatpush.bf16.msra.mxu0 %v6411
      %6529 = vmatpush.bf16.msra.mxu0 %v6408
      %6530 = vmatmul.bf16.gmra.mxu0 %v6101
      %v6531 = vpop.f32.mrf.mxu0
      %v6532 = vadd.f32 %v6518, %v6531
      %v6533 = vpop.f32.mrf.mxu0
      %v6534 = vadd.f32 %v6520, %v6533
      %6535 = vdwg.mxu0
      %6536 = vmatpush.bf16.msra.mxu0 0
      %6537 = vmatpush.bf16.msra.mxu0 0
      %6538 = vmatpush.bf16.msra.mxu0 0
      %6539 = vmatpush.bf16.msra.mxu0 0
      %6540 = vmatpush.bf16.msra.mxu0 %v6441
      %6541 = vmatpush.bf16.msra.mxu0 %v6438
      %6542 = vmatpush.bf16.msra.mxu0 %v6435
      %6543 = vmatpush.bf16.msra.mxu0 %v6432
      %6544 = vmatmul.bf16.gmra.mxu0 %v6506
      %v6545 = vpop.f32.mrf.mxu0
      %v6546 = vadd.f32 %v6532, %v6545
      %v6547 = vpop.f32.mrf.mxu0
      %v6548 = vadd.f32 %v6534, %v6547
      %6549 = vdwg.mxu0
      %6550 = vmatpush.bf16.msra.mxu0 %v6406
      %6551 = vmatpush.bf16.msra.mxu0 %v6403
      %6552 = vmatpush.bf16.msra.mxu0 %v6400
      %6553 = vmatpush.bf16.msra.mxu0 %v6397
      %6554 = vmatpush.bf16.msra.mxu0 %v6394
      %6555 = vmatpush.bf16.msra.mxu0 %v6391
      %6556 = vmatpush.bf16.msra.mxu0 %v6388
      %6557 = vmatpush.bf16.msra.mxu0 %v6385
      %6558 = vmatmul.bf16.gmra.mxu0 %v6100
      %v6559 = vpop.f32.mrf.mxu0
      %v6560 = vadd.f32 0.0, %v6559
      %v6561 = vpop.f32.mrf.mxu0
      %v6562 = vadd.f32 0.0, %v6561
      %6563 = vdwg.mxu0
      %6564 = vmatpush.bf16.msra.mxu0 %v6430
      %6565 = vmatpush.bf16.msra.mxu0 %v6427
      %6566 = vmatpush.bf16.msra.mxu0 %v6424
      %6567 = vmatpush.bf16.msra.mxu0 %v6421
      %6568 = vmatpush.bf16.msra.mxu0 %v6418
      %6569 = vmatpush.bf16.msra.mxu0 %v6415
      %6570 = vmatpush.bf16.msra.mxu0 %v6412
      %6571 = vmatpush.bf16.msra.mxu0 %v6409
      %6572 = vmatmul.bf16.gmra.mxu0 %v6101
      %v6573 = vpop.f32.mrf.mxu0
      %v6574 = vadd.f32 %v6560, %v6573
      %v6575 = vpop.f32.mrf.mxu0
      %v6576 = vadd.f32 %v6562, %v6575
      %6577 = vdwg.mxu0
      %6578 = vmatpush.bf16.msra.mxu0 0
      %6579 = vmatpush.bf16.msra.mxu0 0
      %6580 = vmatpush.bf16.msra.mxu0 0
      %6581 = vmatpush.bf16.msra.mxu0 0
      %6582 = vmatpush.bf16.msra.mxu0 %v6442
      %6583 = vmatpush.bf16.msra.mxu0 %v6439
      %6584 = vmatpush.bf16.msra.mxu0 %v6436
      %6585 = vmatpush.bf16.msra.mxu0 %v6433
      %6586 = vmatmul.bf16.gmra.mxu0 %v6506
      %v6587 = vpop.f32.mrf.mxu0
      %v6588 = vadd.f32 %v6574, %v6587
      %v6589 = vpop.f32.mrf.mxu0
      %v6590 = vadd.f32 %v6576, %v6589
      %6591 = vdwg.mxu0
      %6592 = vmatpush.bf16.msra.mxu0 %v6407
      %6593 = vmatpush.bf16.msra.mxu0 %v6404
      %6594 = vmatpush.bf16.msra.mxu0 %v6401
      %6595 = vmatpush.bf16.msra.mxu0 %v6398
      %6596 = vmatpush.bf16.msra.mxu0 %v6395
      %6597 = vmatpush.bf16.msra.mxu0 %v6392
      %6598 = vmatpush.bf16.msra.mxu0 %v6389
      %6599 = vmatpush.bf16.msra.mxu0 %v6386
      %6600 = vmatmul.bf16.gmra.mxu0 %v6100
      %v6601 = vpop.f32.mrf.mxu0
      %v6602 = vadd.f32 0.0, %v6601
      %v6603 = vpop.f32.mrf.mxu0
      %v6604 = vadd.f32 0.0, %v6603
      %6605 = vdwg.mxu0
      %6606 = vmatpush.bf16.msra.mxu0 %v6431
      %6607 = vmatpush.bf16.msra.mxu0 %v6428
      %6608 = vmatpush.bf16.msra.mxu0 %v6425
      %6609 = vmatpush.bf16.msra.mxu0 %v6422
      %6610 = vmatpush.bf16.msra.mxu0 %v6419
      %6611 = vmatpush.bf16.msra.mxu0 %v6416
      %6612 = vmatpush.bf16.msra.mxu0 %v6413
      %6613 = vmatpush.bf16.msra.mxu0 %v6410
      %6614 = vmatmul.bf16.gmra.mxu0 %v6101
      %v6615 = vpop.f32.mrf.mxu0
      %v6616 = vadd.f32 %v6602, %v6615
      %v6617 = vpop.f32.mrf.mxu0
      %v6618 = vadd.f32 %v6604, %v6617
      %6619 = vdwg.mxu0
      %6620 = vmatpush.bf16.msra.mxu0 0
      %6621 = vmatpush.bf16.msra.mxu0 0
      %6622 = vmatpush.bf16.msra.mxu0 0
      %6623 = vmatpush.bf16.msra.mxu0 0
      %6624 = vmatpush.bf16.msra.mxu0 %v6443
      %6625 = vmatpush.bf16.msra.mxu0 %v6440
      %6626 = vmatpush.bf16.msra.mxu0 %v6437
      %6627 = vmatpush.bf16.msra.mxu0 %v6434
      %6628 = vmatmul.bf16.gmra.mxu0 %v6506
      %v6629 = vpop.f32.mrf.mxu0
      %v6630 = vadd.f32 %v6616, %v6629
      %v6631 = vpop.f32.mrf.mxu0
      %v6632 = vadd.f32 %v6618, %v6631
      %6633 = vdwg.mxu0
      %v6714 = vunpack.c.l.b16 %v5967
      %v6715 = vunpack.c.h.b16 %v5967
      %v6716 = vunpack.c.l.b16 %v5968
      %v6717 = vunpack.c.l.b16 %v5969
      %v6718 = vunpack.c.h.b16 %v5969
      %v6719 = vunpack.c.l.b16 %v5970
      %v6720 = vunpack.c.l.b16 %v5971
      %v6721 = vunpack.c.h.b16 %v5971
      %v6722 = vunpack.c.l.b16 %v5972
      %v6723 = vunpack.c.l.b16 %v5973
      %v6724 = vunpack.c.h.b16 %v5973
      %v6725 = vunpack.c.l.b16 %v5974
      %v6726 = vunpack.c.l.b16 %v5975
      %v6727 = vunpack.c.h.b16 %v5975
      %v6728 = vunpack.c.l.b16 %v5976
      %v6729 = vunpack.c.l.b16 %v5977
      %v6730 = vunpack.c.h.b16 %v5977
      %v6731 = vunpack.c.l.b16 %v5978
      %v6732 = vunpack.c.l.b16 %v5979
      %v6733 = vunpack.c.h.b16 %v5979
      %v6734 = vunpack.c.l.b16 %v5980
      %v6735 = vunpack.c.l.b16 %v5981
      %v6736 = vunpack.c.h.b16 %v5981
      %v6737 = vunpack.c.l.b16 %v5982
      %v6738 = vunpack.c.l.b16 %v5983
      %v6739 = vunpack.c.h.b16 %v5983
      %v6740 = vunpack.c.l.b16 %v5984
      %v6741 = vunpack.c.l.b16 %v5985
      %v6742 = vunpack.c.h.b16 %v5985
      %v6743 = vunpack.c.l.b16 %v5986
      %v6744 = vunpack.c.l.b16 %v5987
      %v6745 = vunpack.c.h.b16 %v5987
      %v6746 = vunpack.c.l.b16 %v5988
      %v6747 = vunpack.c.l.b16 %v5989
      %v6748 = vunpack.c.h.b16 %v5989
      %v6749 = vunpack.c.l.b16 %v5990
      %v6750 = vunpack.c.l.b16 %v5991
      %v6751 = vunpack.c.h.b16 %v5991
      %v6752 = vunpack.c.l.b16 %v5992
      %v6753 = vunpack.c.l.b16 %v5993
      %v6754 = vunpack.c.h.b16 %v5993
      %v6755 = vunpack.c.l.b16 %v5994
      %v6756 = vunpack.c.l.b16 %v5995
      %v6757 = vunpack.c.h.b16 %v5995
      %v6758 = vunpack.c.l.b16 %v5996
      %v6759 = vunpack.c.l.b16 %v5997
      %v6760 = vunpack.c.h.b16 %v5997
      %v6761 = vunpack.c.l.b16 %v5998
      %v6762 = vunpack.c.l.b16 %v5999
      %v6763 = vunpack.c.h.b16 %v5999
      %v6764 = vunpack.c.l.b16 %v6000
      %v6765 = vunpack.c.l.b16 %v6001
      %v6766 = vunpack.c.h.b16 %v6001
      %v6767 = vunpack.c.l.b16 %v6002
      %v6768 = vunpack.c.l.b16 %v6003
      %v6769 = vunpack.c.h.b16 %v6003
      %v6770 = vunpack.c.l.b16 %v6004
      %v6771 = vunpack.c.l.b16 %v6005
      %v6772 = vunpack.c.h.b16 %v6005
      %v6773 = vunpack.c.l.b16 %v6006
      %v6774 = vunpack.c.l.b16 %v6007
      %v6775 = vunpack.c.h.b16 %v6007
      %v6776 = vunpack.c.l.b16 %v6008
      %v6777 = vunpack.c.l.b16 %v6009
      %v6778 = vunpack.c.h.b16 %v6009
      %v6779 = vunpack.c.l.b16 %v6010
      %v6780 = vunpack.c.l.b16 %v6011
      %v6781 = vunpack.c.h.b16 %v6011
      %v6782 = vunpack.c.l.b16 %v6012
      %v6783 = vunpack.c.l.b16 %v6013
      %v6784 = vunpack.c.h.b16 %v6013
      %v6785 = vunpack.c.l.b16 %v6014
      %v6786 = vunpack.c.l.b16 %v6015
      %v6787 = vunpack.c.h.b16 %v6015
      %v6788 = vunpack.c.l.b16 %v6016
      %v6789 = vunpack.c.l.b16 %v6017
      %v6790 = vunpack.c.h.b16 %v6017
      %v6791 = vunpack.c.l.b16 %v6018
      %v6792 = vunpack.c.l.b16 %v6019
      %v6793 = vunpack.c.h.b16 %v6019
      %v6794 = vunpack.c.l.b16 %v6020
      %v6795 = vunpack.c.l.b16 %v6021
      %v6796 = vunpack.c.h.b16 %v6021
      %v6797 = vunpack.c.l.b16 %v6022
      %v6798 = vunpack.c.l.b16 %v6023
      %v6799 = vunpack.c.h.b16 %v6023
      %v6800 = vunpack.c.l.b16 %v6024
      %v6801 = vunpack.c.l.b16 %v6025
      %v6802 = vunpack.c.h.b16 %v6025
      %v6803 = vunpack.c.l.b16 %v6026
      %v6804 = vunpack.c.l.b16 %v6027
      %v6805 = vunpack.c.h.b16 %v6027
      %v6806 = vunpack.c.l.b16 %v6028
      %v6807 = vunpack.c.l.b16 %v6029
      %v6808 = vunpack.c.h.b16 %v6029
      %v6809 = vunpack.c.l.b16 %v6030
      %v6810 = vunpack.c.l.b16 %v6031
      %v6811 = vunpack.c.h.b16 %v6031
      %v6812 = vunpack.c.l.b16 %v6032
      %v6813 = vunpack.c.l.b16 %v6033
      %v6814 = vunpack.c.h.b16 %v6033
      %v6815 = vunpack.c.l.b16 %v6034
      %v6816 = vunpack.c.l.b16 %v6035
      %v6817 = vunpack.c.h.b16 %v6035
      %v6818 = vunpack.c.l.b16 %v6036
      %v6819 = vunpack.c.l.b16 %v6037
      %v6820 = vunpack.c.h.b16 %v6037
      %v6821 = vunpack.c.l.b16 %v6038
      %v6822 = vunpack.c.l.b16 %v6039
      %v6823 = vunpack.c.h.b16 %v6039
      %v6824 = vunpack.c.l.b16 %v6040
      %v6825 = vunpack.c.l.b16 %v6041
      %v6826 = vunpack.c.h.b16 %v6041
      %v6827 = vunpack.c.l.b16 %v6042
      %v6828 = vunpack.c.l.b16 %v6043
      %v6829 = vunpack.c.h.b16 %v6043
      %v6830 = vunpack.c.l.b16 %v6044
      %v6831 = vunpack.c.l.b16 %v6045
      %v6832 = vunpack.c.h.b16 %v6045
      %v6833 = vunpack.c.l.b16 %v6046
      %v6834 = vpack.c.b16 %v6717, %v6714
      %v6835 = vpack.c.b16 %v6718, %v6715
      %v6836 = vpack.c.b16 %v6719, %v6716
      %v6837 = vpack.c.b16 %v6723, %v6720
      %v6838 = vpack.c.b16 %v6724, %v6721
      %v6839 = vpack.c.b16 %v6725, %v6722
      %v6840 = vpack.c.b16 %v6729, %v6726
      %v6841 = vpack.c.b16 %v6730, %v6727
      %v6842 = vpack.c.b16 %v6731, %v6728
      %v6843 = vpack.c.b16 %v6735, %v6732
      %v6844 = vpack.c.b16 %v6736, %v6733
      %v6845 = vpack.c.b16 %v6737, %v6734
      %v6846 = vpack.c.b16 %v6741, %v6738
      %v6847 = vpack.c.b16 %v6742, %v6739
      %v6848 = vpack.c.b16 %v6743, %v6740
      %v6849 = vpack.c.b16 %v6747, %v6744
      %v6850 = vpack.c.b16 %v6748, %v6745
      %v6851 = vpack.c.b16 %v6749, %v6746
      %v6852 = vpack.c.b16 %v6753, %v6750
      %v6853 = vpack.c.b16 %v6754, %v6751
      %v6854 = vpack.c.b16 %v6755, %v6752
      %v6855 = vpack.c.b16 %v6759, %v6756
      %v6856 = vpack.c.b16 %v6760, %v6757
      %v6857 = vpack.c.b16 %v6761, %v6758
      %v6858 = vpack.c.b16 %v6765, %v6762
      %v6859 = vpack.c.b16 %v6766, %v6763
      %v6860 = vpack.c.b16 %v6767, %v6764
      %v6861 = vpack.c.b16 %v6771, %v6768
      %v6862 = vpack.c.b16 %v6772, %v6769
      %v6863 = vpack.c.b16 %v6773, %v6770
      %v6864 = vpack.c.b16 %v6777, %v6774
      %v6865 = vpack.c.b16 %v6778, %v6775
      %v6866 = vpack.c.b16 %v6779, %v6776
      %v6867 = vpack.c.b16 %v6783, %v6780
      %v6868 = vpack.c.b16 %v6784, %v6781
      %v6869 = vpack.c.b16 %v6785, %v6782
      %v6870 = vpack.c.b16 %v6789, %v6786
      %v6871 = vpack.c.b16 %v6790, %v6787
      %v6872 = vpack.c.b16 %v6791, %v6788
      %v6873 = vpack.c.b16 %v6795, %v6792
      %v6874 = vpack.c.b16 %v6796, %v6793
      %v6875 = vpack.c.b16 %v6797, %v6794
      %v6876 = vpack.c.b16 %v6801, %v6798
      %v6877 = vpack.c.b16 %v6802, %v6799
      %v6878 = vpack.c.b16 %v6803, %v6800
      %v6879 = vpack.c.b16 %v6807, %v6804
      %v6880 = vpack.c.b16 %v6808, %v6805
      %v6881 = vpack.c.b16 %v6809, %v6806
      %v6882 = vpack.c.b16 %v6813, %v6810
      %v6883 = vpack.c.b16 %v6814, %v6811
      %v6884 = vpack.c.b16 %v6815, %v6812
      %v6885 = vpack.c.b16 %v6819, %v6816
      %v6886 = vpack.c.b16 %v6820, %v6817
      %v6887 = vpack.c.b16 %v6821, %v6818
      %v6888 = vpack.c.b16 %v6825, %v6822
      %v6889 = vpack.c.b16 %v6826, %v6823
      %v6890 = vpack.c.b16 %v6827, %v6824
      %v6891 = vpack.c.b16 %v6831, %v6828
      %v6892 = vpack.c.b16 %v6832, %v6829
      %v6893 = vpack.c.b16 %v6833, %v6830
      %v6955 = vsel %vm6504, %v5966, 0
      %6957 = vmatpush.bf16.msra.mxu0 %v6855
      %6958 = vmatpush.bf16.msra.mxu0 %v6852
      %6959 = vmatpush.bf16.msra.mxu0 %v6849
      %6960 = vmatpush.bf16.msra.mxu0 %v6846
      %6961 = vmatpush.bf16.msra.mxu0 %v6843
      %6962 = vmatpush.bf16.msra.mxu0 %v6840
      %6963 = vmatpush.bf16.msra.mxu0 %v6837
      %6964 = vmatpush.bf16.msra.mxu0 %v6834
      %6965 = vmatmul.bf16.gmra.mxu0 %v5964
      %v6966 = vpop.f32.mrf.mxu0
      %v6967 = vadd.f32 %v6546, %v6966
      %v6968 = vpop.f32.mrf.mxu0
      %v6969 = vadd.f32 %v6548, %v6968
      %6970 = vdwg.mxu0
      %6971 = vmatpush.bf16.msra.mxu0 %v6879
      %6972 = vmatpush.bf16.msra.mxu0 %v6876
      %6973 = vmatpush.bf16.msra.mxu0 %v6873
      %6974 = vmatpush.bf16.msra.mxu0 %v6870
      %6975 = vmatpush.bf16.msra.mxu0 %v6867
      %6976 = vmatpush.bf16.msra.mxu0 %v6864
      %6977 = vmatpush.bf16.msra.mxu0 %v6861
      %6978 = vmatpush.bf16.msra.mxu0 %v6858
      %6979 = vmatmul.bf16.gmra.mxu0 %v5965
      %v6980 = vpop.f32.mrf.mxu0
      %v6981 = vadd.f32 %v6967, %v6980
      %v6982 = vpop.f32.mrf.mxu0
      %v6983 = vadd.f32 %v6969, %v6982
      %6984 = vdwg.mxu0
      %6985 = vmatpush.bf16.msra.mxu0 0
      %6986 = vmatpush.bf16.msra.mxu0 0
      %6987 = vmatpush.bf16.msra.mxu0 0
      %6988 = vmatpush.bf16.msra.mxu0 0
      %6989 = vmatpush.bf16.msra.mxu0 %v6891
      %6990 = vmatpush.bf16.msra.mxu0 %v6888
      %6991 = vmatpush.bf16.msra.mxu0 %v6885
      %6992 = vmatpush.bf16.msra.mxu0 %v6882
      %6993 = vmatmul.bf16.gmra.mxu0 %v6955
      %v6994 = vpop.f32.mrf.mxu0
      %v6995 = vadd.f32 %v6981, %v6994
      %v6996 = vpop.f32.mrf.mxu0
      %v6997 = vadd.f32 %v6983, %v6996
      %6998 = vdwg.mxu0
      %6999 = vmatpush.bf16.msra.mxu0 %v6856
      %7000 = vmatpush.bf16.msra.mxu0 %v6853
      %7001 = vmatpush.bf16.msra.mxu0 %v6850
      %7002 = vmatpush.bf16.msra.mxu0 %v6847
      %7003 = vmatpush.bf16.msra.mxu0 %v6844
      %7004 = vmatpush.bf16.msra.mxu0 %v6841
      %7005 = vmatpush.bf16.msra.mxu0 %v6838
      %7006 = vmatpush.bf16.msra.mxu0 %v6835
      %7007 = vmatmul.bf16.gmra.mxu0 %v5964
      %v7008 = vpop.f32.mrf.mxu0
      %v7009 = vadd.f32 %v6588, %v7008
      %v7010 = vpop.f32.mrf.mxu0
      %v7011 = vadd.f32 %v6590, %v7010
      %7012 = vdwg.mxu0
      %7013 = vmatpush.bf16.msra.mxu0 %v6880
      %7014 = vmatpush.bf16.msra.mxu0 %v6877
      %7015 = vmatpush.bf16.msra.mxu0 %v6874
      %7016 = vmatpush.bf16.msra.mxu0 %v6871
      %7017 = vmatpush.bf16.msra.mxu0 %v6868
      %7018 = vmatpush.bf16.msra.mxu0 %v6865
      %7019 = vmatpush.bf16.msra.mxu0 %v6862
      %7020 = vmatpush.bf16.msra.mxu0 %v6859
      %7021 = vmatmul.bf16.gmra.mxu0 %v5965
      %v7022 = vpop.f32.mrf.mxu0
      %v7023 = vadd.f32 %v7009, %v7022
      %v7024 = vpop.f32.mrf.mxu0
      %v7025 = vadd.f32 %v7011, %v7024
      %7026 = vdwg.mxu0
      %7027 = vmatpush.bf16.msra.mxu0 0
      %7028 = vmatpush.bf16.msra.mxu0 0
      %7029 = vmatpush.bf16.msra.mxu0 0
      %7030 = vmatpush.bf16.msra.mxu0 0
      %7031 = vmatpush.bf16.msra.mxu0 %v6892
      %7032 = vmatpush.bf16.msra.mxu0 %v6889
      %7033 = vmatpush.bf16.msra.mxu0 %v6886
      %7034 = vmatpush.bf16.msra.mxu0 %v6883
      %7035 = vmatmul.bf16.gmra.mxu0 %v6955
      %v7036 = vpop.f32.mrf.mxu0
      %v7037 = vadd.f32 %v7023, %v7036
      %v7038 = vpop.f32.mrf.mxu0
      %v7039 = vadd.f32 %v7025, %v7038
      %7040 = vdwg.mxu0
      %7041 = vmatpush.bf16.msra.mxu0 %v6857
      %7042 = vmatpush.bf16.msra.mxu0 %v6854
      %7043 = vmatpush.bf16.msra.mxu0 %v6851
      %7044 = vmatpush.bf16.msra.mxu0 %v6848
      %7045 = vmatpush.bf16.msra.mxu0 %v6845
      %7046 = vmatpush.bf16.msra.mxu0 %v6842
      %7047 = vmatpush.bf16.msra.mxu0 %v6839
      %7048 = vmatpush.bf16.msra.mxu0 %v6836
      %7049 = vmatmul.bf16.gmra.mxu0 %v5964
      %v7050 = vpop.f32.mrf.mxu0
      %v7051 = vadd.f32 %v6630, %v7050
      %v7052 = vpop.f32.mrf.mxu0
      %v7053 = vadd.f32 %v6632, %v7052
      %7054 = vdwg.mxu0
      %7055 = vmatpush.bf16.msra.mxu0 %v6881
      %7056 = vmatpush.bf16.msra.mxu0 %v6878
      %7057 = vmatpush.bf16.msra.mxu0 %v6875
      %7058 = vmatpush.bf16.msra.mxu0 %v6872
      %7059 = vmatpush.bf16.msra.mxu0 %v6869
      %7060 = vmatpush.bf16.msra.mxu0 %v6866
      %7061 = vmatpush.bf16.msra.mxu0 %v6863
      %7062 = vmatpush.bf16.msra.mxu0 %v6860
      %7063 = vmatmul.bf16.gmra.mxu0 %v5965
      %v7064 = vpop.f32.mrf.mxu0
      %v7065 = vadd.f32 %v7051, %v7064
      %v7066 = vpop.f32.mrf.mxu0
      %v7067 = vadd.f32 %v7053, %v7066
      %7068 = vdwg.mxu0
      %7069 = vmatpush.bf16.msra.mxu0 0
      %7070 = vmatpush.bf16.msra.mxu0 0
      %7071 = vmatpush.bf16.msra.mxu0 0
      %7072 = vmatpush.bf16.msra.mxu0 0
      %7073 = vmatpush.bf16.msra.mxu0 %v6893
      %7074 = vmatpush.bf16.msra.mxu0 %v6890
      %7075 = vmatpush.bf16.msra.mxu0 %v6887
      %7076 = vmatpush.bf16.msra.mxu0 %v6884
      %7077 = vmatmul.bf16.gmra.mxu0 %v6955
      %v7078 = vpop.f32.mrf.mxu0
      %v7079 = vadd.f32 %v7065, %v7078
      %v7080 = vpop.f32.mrf.mxu0
      %v7081 = vadd.f32 %v7067, %v7080
      %7082 = vdwg.mxu0
      %s7083 = scalar_lea.vmem %s4, 16
      %v7084 = vld [vmem:[%s7083] sm:$0xf]
      %v7085 = vld [vmem:[%s7083 + $0x4] sm:$0xf]
      %v7088 = vunpack.c.l.b16 %v7084
      %v7089 = vunpack.c.l.b16 %v7085
      %v7090 = vpack.c.b16 %v7089, %v7088
      %v7092 = vsel %vm5908, %v7090, 0
      %7094 = vmatpush.bf16.msra.mxu0 0
      %7095 = vmatpush.bf16.msra.mxu0 0
      %7096 = vmatpush.bf16.msra.mxu0 0
      %7097 = vmatpush.bf16.msra.mxu0 0
      %7098 = vmatpush.bf16.msra.mxu0 0
      %7099 = vmatpush.bf16.msra.mxu0 0
      %7100 = vmatpush.bf16.msra.mxu0 %v5914
      %7101 = vmatpush.bf16.msra.mxu0 %v5895
      %7102 = vmatmul.bf16.gmra.mxu0 %v7092
      %v7103 = vpop.f32.mrf.mxu0
      %v7104 = vadd.f32 0.0, %v7103
      %v7105 = vpop.f32.mrf.mxu0
      %v7106 = vadd.f32 0.0, %v7105
      %7107 = vdwg.mxu0
      %7108 = vmatpush.bf16.msra.mxu0 0
      %7109 = vmatpush.bf16.msra.mxu0 0
      %7110 = vmatpush.bf16.msra.mxu0 0
      %7111 = vmatpush.bf16.msra.mxu0 0
      %7112 = vmatpush.bf16.msra.mxu0 0
      %7113 = vmatpush.bf16.msra.mxu0 0
      %7114 = vmatpush.bf16.msra.mxu0 %v5917
      %7115 = vmatpush.bf16.msra.mxu0 %v5896
      %7116 = vmatmul.bf16.gmra.mxu0 %v7092
      %v7117 = vpop.f32.mrf.mxu0
      %v7118 = vadd.f32 0.0, %v7117
      %v7119 = vpop.f32.mrf.mxu0
      %v7120 = vadd.f32 0.0, %v7119
      %7121 = vdwg.mxu0
      %7122 = vmatpush.bf16.msra.mxu0 0
      %7123 = vmatpush.bf16.msra.mxu0 0
      %7124 = vmatpush.bf16.msra.mxu0 0
      %7125 = vmatpush.bf16.msra.mxu0 0
      %7126 = vmatpush.bf16.msra.mxu0 0
      %7127 = vmatpush.bf16.msra.mxu0 0
      %7128 = vmatpush.bf16.msra.mxu0 %v5920
      %7129 = vmatpush.bf16.msra.mxu0 %v5897
      %7130 = vmatmul.bf16.gmra.mxu0 %v7092
      %v7131 = vpop.f32.mrf.mxu0
      %v7132 = vadd.f32 0.0, %v7131
      %v7133 = vpop.f32.mrf.mxu0
      %v7134 = vadd.f32 0.0, %v7133
      %7135 = vdwg.mxu0
      %v7136 = vpack.c.bf16 %v7106, %v7104
      %v7137 = vpack.c.bf16 %v7120, %v7118
      %v7138 = vpack.c.bf16 %v7134, %v7132
      %s7139 = scalar_lea.vmem %s5, 960
      %v7140 = vld [vmem:[%s7139] sm:$0xff]
      %v7141 = vld [vmem:[%s7139 + $0x8] sm:$0xf]
      %v7142 = vld [vmem:[%s7139 + $0xc] sm:$0xff]
      %v7143 = vld [vmem:[%s7139 + $0x14] sm:$0xf]
      %v7144 = vld [vmem:[%s7139 + $0x18] sm:$0xff]
      %v7145 = vld [vmem:[%s7139 + $0x20] sm:$0xf]
      %v7146 = vld [vmem:[%s7139 + $0x24] sm:$0xff]
      %v7147 = vld [vmem:[%s7139 + $0x2c] sm:$0xf]
      %v7148 = vld [vmem:[%s7139 + $0x30] sm:$0xff]
      %v7149 = vld [vmem:[%s7139 + $0x38] sm:$0xf]
      %v7150 = vld [vmem:[%s7139 + $0x3c] sm:$0xff]
      %v7151 = vld [vmem:[%s7139 + $0x44] sm:$0xf]
      %v7152 = vld [vmem:[%s7139 + $0x48] sm:$0xff]
      %v7153 = vld [vmem:[%s7139 + $0x50] sm:$0xf]
      %v7154 = vld [vmem:[%s7139 + $0x54] sm:$0xff]
      %v7155 = vld [vmem:[%s7139 + $0x5c] sm:$0xf]
      %v7156 = vld [vmem:[%s7139 + $0x60] sm:$0xff]
      %v7157 = vld [vmem:[%s7139 + $0x68] sm:$0xf]
      %v7158 = vld [vmem:[%s7139 + $0x6c] sm:$0xff]
      %v7159 = vld [vmem:[%s7139 + $0x74] sm:$0xf]
      %v7160 = vld [vmem:[%s7139 + $0x78] sm:$0xff]
      %v7161 = vld [vmem:[%s7139 + $0x80] sm:$0xf]
      %v7162 = vld [vmem:[%s7139 + $0x84] sm:$0xff]
      %v7163 = vld [vmem:[%s7139 + $0x8c] sm:$0xf]
      %v7164 = vld [vmem:[%s7139 + $0x90] sm:$0xff]
      %v7165 = vld [vmem:[%s7139 + $0x98] sm:$0xf]
      %v7166 = vld [vmem:[%s7139 + $0x9c] sm:$0xff]
      %v7167 = vld [vmem:[%s7139 + $0xa4] sm:$0xf]
      %v7168 = vld [vmem:[%s7139 + $0xa8] sm:$0xff]
      %v7169 = vld [vmem:[%s7139 + $0xb0] sm:$0xf]
      %v7170 = vld [vmem:[%s7139 + $0xb4] sm:$0xff]
      %v7171 = vld [vmem:[%s7139 + $0xbc] sm:$0xf]
      %v7172 = vld [vmem:[%s7139 + $0xc0] sm:$0xff]
      %v7173 = vld [vmem:[%s7139 + $0xc8] sm:$0xf]
      %v7174 = vld [vmem:[%s7139 + $0xcc] sm:$0xff]
      %v7175 = vld [vmem:[%s7139 + $0xd4] sm:$0xf]
      %v7176 = vld [vmem:[%s7139 + $0xd8] sm:$0xff]
      %v7177 = vld [vmem:[%s7139 + $0xe0] sm:$0xf]
      %v7178 = vld [vmem:[%s7139 + $0xe4] sm:$0xff]
      %v7179 = vld [vmem:[%s7139 + $0xec] sm:$0xf]
      %v7180 = vld [vmem:[%s7139 + $0xf0] sm:$0xff]
      %v7181 = vld [vmem:[%s7139 + $0xf8] sm:$0xf]
      %v7182 = vld [vmem:[%s7139 + $0xfc] sm:$0xff]
      %v7183 = vld [vmem:[%s7139 + $0x104] sm:$0xf]
      %v7184 = vld [vmem:[%s7139 + $0x108] sm:$0xff]
      %v7185 = vld [vmem:[%s7139 + $0x110] sm:$0xf]
      %v7186 = vld [vmem:[%s7139 + $0x114] sm:$0xff]
      %v7187 = vld [vmem:[%s7139 + $0x11c] sm:$0xf]
      %v7188 = vld [vmem:[%s7139 + $0x120] sm:$0xff]
      %v7189 = vld [vmem:[%s7139 + $0x128] sm:$0xf]
      %v7190 = vld [vmem:[%s7139 + $0x12c] sm:$0xff]
      %v7191 = vld [vmem:[%s7139 + $0x134] sm:$0xf]
      %v7192 = vld [vmem:[%s7139 + $0x138] sm:$0xff]
      %v7193 = vld [vmem:[%s7139 + $0x140] sm:$0xf]
      %v7194 = vld [vmem:[%s7139 + $0x144] sm:$0xff]
      %v7195 = vld [vmem:[%s7139 + $0x14c] sm:$0xf]
      %v7196 = vld [vmem:[%s7139 + $0x150] sm:$0xff]
      %v7197 = vld [vmem:[%s7139 + $0x158] sm:$0xf]
      %v7198 = vld [vmem:[%s7139 + $0x15c] sm:$0xff]
      %v7199 = vld [vmem:[%s7139 + $0x164] sm:$0xf]
      %v7200 = vld [vmem:[%s7139 + $0x168] sm:$0xff]
      %v7201 = vld [vmem:[%s7139 + $0x170] sm:$0xf]
      %v7202 = vld [vmem:[%s7139 + $0x174] sm:$0xff]
      %v7203 = vld [vmem:[%s7139 + $0x17c] sm:$0xf]
      %v7204 = vld [vmem:[%s7139 + $0x180] sm:$0xff]
      %v7205 = vld [vmem:[%s7139 + $0x188] sm:$0xf]
      %v7206 = vld [vmem:[%s7139 + $0x18c] sm:$0xff]
      %v7207 = vld [vmem:[%s7139 + $0x194] sm:$0xf]
      %v7208 = vld [vmem:[%s7139 + $0x198] sm:$0xff]
      %v7209 = vld [vmem:[%s7139 + $0x1a0] sm:$0xf]
      %v7210 = vld [vmem:[%s7139 + $0x1a4] sm:$0xff]
      %v7211 = vld [vmem:[%s7139 + $0x1ac] sm:$0xf]
      %v7212 = vld [vmem:[%s7139 + $0x1b0] sm:$0xff]
      %v7213 = vld [vmem:[%s7139 + $0x1b8] sm:$0xf]
      %v7214 = vld [vmem:[%s7139 + $0x1bc] sm:$0xff]
      %v7215 = vld [vmem:[%s7139 + $0x1c4] sm:$0xf]
      %v7216 = vld [vmem:[%s7139 + $0x1c8] sm:$0xff]
      %v7217 = vld [vmem:[%s7139 + $0x1d0] sm:$0xf]
      %v7218 = vld [vmem:[%s7139 + $0x1d4] sm:$0xff]
      %v7219 = vld [vmem:[%s7139 + $0x1dc] sm:$0xf]
      %v7300 = vunpack.c.l.b16 %v7140
      %v7301 = vunpack.c.h.b16 %v7140
      %v7302 = vunpack.c.l.b16 %v7141
      %v7303 = vunpack.c.l.b16 %v7142
      %v7304 = vunpack.c.h.b16 %v7142
      %v7305 = vunpack.c.l.b16 %v7143
      %v7306 = vunpack.c.l.b16 %v7144
      %v7307 = vunpack.c.h.b16 %v7144
      %v7308 = vunpack.c.l.b16 %v7145
      %v7309 = vunpack.c.l.b16 %v7146
      %v7310 = vunpack.c.h.b16 %v7146
      %v7311 = vunpack.c.l.b16 %v7147
      %v7312 = vunpack.c.l.b16 %v7148
      %v7313 = vunpack.c.h.b16 %v7148
      %v7314 = vunpack.c.l.b16 %v7149
      %v7315 = vunpack.c.l.b16 %v7150
      %v7316 = vunpack.c.h.b16 %v7150
      %v7317 = vunpack.c.l.b16 %v7151
      %v7318 = vunpack.c.l.b16 %v7152
      %v7319 = vunpack.c.h.b16 %v7152
      %v7320 = vunpack.c.l.b16 %v7153
      %v7321 = vunpack.c.l.b16 %v7154
      %v7322 = vunpack.c.h.b16 %v7154
      %v7323 = vunpack.c.l.b16 %v7155
      %v7324 = vunpack.c.l.b16 %v7156
      %v7325 = vunpack.c.h.b16 %v7156
      %v7326 = vunpack.c.l.b16 %v7157
      %v7327 = vunpack.c.l.b16 %v7158
      %v7328 = vunpack.c.h.b16 %v7158
      %v7329 = vunpack.c.l.b16 %v7159
      %v7330 = vunpack.c.l.b16 %v7160
      %v7331 = vunpack.c.h.b16 %v7160
      %v7332 = vunpack.c.l.b16 %v7161
      %v7333 = vunpack.c.l.b16 %v7162
      %v7334 = vunpack.c.h.b16 %v7162
      %v7335 = vunpack.c.l.b16 %v7163
      %v7336 = vunpack.c.l.b16 %v7164
      %v7337 = vunpack.c.h.b16 %v7164
      %v7338 = vunpack.c.l.b16 %v7165
      %v7339 = vunpack.c.l.b16 %v7166
      %v7340 = vunpack.c.h.b16 %v7166
      %v7341 = vunpack.c.l.b16 %v7167
      %v7342 = vunpack.c.l.b16 %v7168
      %v7343 = vunpack.c.h.b16 %v7168
      %v7344 = vunpack.c.l.b16 %v7169
      %v7345 = vunpack.c.l.b16 %v7170
      %v7346 = vunpack.c.h.b16 %v7170
      %v7347 = vunpack.c.l.b16 %v7171
      %v7348 = vunpack.c.l.b16 %v7172
      %v7349 = vunpack.c.h.b16 %v7172
      %v7350 = vunpack.c.l.b16 %v7173
      %v7351 = vunpack.c.l.b16 %v7174
      %v7352 = vunpack.c.h.b16 %v7174
      %v7353 = vunpack.c.l.b16 %v7175
      %v7354 = vunpack.c.l.b16 %v7176
      %v7355 = vunpack.c.h.b16 %v7176
      %v7356 = vunpack.c.l.b16 %v7177
      %v7357 = vunpack.c.l.b16 %v7178
      %v7358 = vunpack.c.h.b16 %v7178
      %v7359 = vunpack.c.l.b16 %v7179
      %v7360 = vunpack.c.l.b16 %v7180
      %v7361 = vunpack.c.h.b16 %v7180
      %v7362 = vunpack.c.l.b16 %v7181
      %v7363 = vunpack.c.l.b16 %v7182
      %v7364 = vunpack.c.h.b16 %v7182
      %v7365 = vunpack.c.l.b16 %v7183
      %v7366 = vunpack.c.l.b16 %v7184
      %v7367 = vunpack.c.h.b16 %v7184
      %v7368 = vunpack.c.l.b16 %v7185
      %v7369 = vunpack.c.l.b16 %v7186
      %v7370 = vunpack.c.h.b16 %v7186
      %v7371 = vunpack.c.l.b16 %v7187
      %v7372 = vunpack.c.l.b16 %v7188
      %v7373 = vunpack.c.h.b16 %v7188
      %v7374 = vunpack.c.l.b16 %v7189
      %v7375 = vunpack.c.l.b16 %v7190
      %v7376 = vunpack.c.h.b16 %v7190
      %v7377 = vunpack.c.l.b16 %v7191
      %v7378 = vunpack.c.l.b16 %v7192
      %v7379 = vunpack.c.h.b16 %v7192
      %v7380 = vunpack.c.l.b16 %v7193
      %v7381 = vunpack.c.l.b16 %v7194
      %v7382 = vunpack.c.h.b16 %v7194
      %v7383 = vunpack.c.l.b16 %v7195
      %v7384 = vunpack.c.l.b16 %v7196
      %v7385 = vunpack.c.h.b16 %v7196
      %v7386 = vunpack.c.l.b16 %v7197
      %v7387 = vunpack.c.l.b16 %v7198
      %v7388 = vunpack.c.h.b16 %v7198
      %v7389 = vunpack.c.l.b16 %v7199
      %v7390 = vunpack.c.l.b16 %v7200
      %v7391 = vunpack.c.h.b16 %v7200
      %v7392 = vunpack.c.l.b16 %v7201
      %v7393 = vunpack.c.l.b16 %v7202
      %v7394 = vunpack.c.h.b16 %v7202
      %v7395 = vunpack.c.l.b16 %v7203
      %v7396 = vunpack.c.l.b16 %v7204
      %v7397 = vunpack.c.h.b16 %v7204
      %v7398 = vunpack.c.l.b16 %v7205
      %v7399 = vunpack.c.l.b16 %v7206
      %v7400 = vunpack.c.h.b16 %v7206
      %v7401 = vunpack.c.l.b16 %v7207
      %v7402 = vunpack.c.l.b16 %v7208
      %v7403 = vunpack.c.h.b16 %v7208
      %v7404 = vunpack.c.l.b16 %v7209
      %v7405 = vunpack.c.l.b16 %v7210
      %v7406 = vunpack.c.h.b16 %v7210
      %v7407 = vunpack.c.l.b16 %v7211
      %v7408 = vunpack.c.l.b16 %v7212
      %v7409 = vunpack.c.h.b16 %v7212
      %v7410 = vunpack.c.l.b16 %v7213
      %v7411 = vunpack.c.l.b16 %v7214
      %v7412 = vunpack.c.h.b16 %v7214
      %v7413 = vunpack.c.l.b16 %v7215
      %v7414 = vunpack.c.l.b16 %v7216
      %v7415 = vunpack.c.h.b16 %v7216
      %v7416 = vunpack.c.l.b16 %v7217
      %v7417 = vunpack.c.l.b16 %v7218
      %v7418 = vunpack.c.h.b16 %v7218
      %v7419 = vunpack.c.l.b16 %v7219
      %v7420 = vpack.c.b16 %v7303, %v7300
      %v7421 = vpack.c.b16 %v7304, %v7301
      %v7422 = vpack.c.b16 %v7305, %v7302
      %v7423 = vpack.c.b16 %v7309, %v7306
      %v7424 = vpack.c.b16 %v7310, %v7307
      %v7425 = vpack.c.b16 %v7311, %v7308
      %v7426 = vpack.c.b16 %v7315, %v7312
      %v7427 = vpack.c.b16 %v7316, %v7313
      %v7428 = vpack.c.b16 %v7317, %v7314
      %v7429 = vpack.c.b16 %v7321, %v7318
      %v7430 = vpack.c.b16 %v7322, %v7319
      %v7431 = vpack.c.b16 %v7323, %v7320
      %v7432 = vpack.c.b16 %v7327, %v7324
      %v7433 = vpack.c.b16 %v7328, %v7325
      %v7434 = vpack.c.b16 %v7329, %v7326
      %v7435 = vpack.c.b16 %v7333, %v7330
      %v7436 = vpack.c.b16 %v7334, %v7331
      %v7437 = vpack.c.b16 %v7335, %v7332
      %v7438 = vpack.c.b16 %v7339, %v7336
      %v7439 = vpack.c.b16 %v7340, %v7337
      %v7440 = vpack.c.b16 %v7341, %v7338
      %v7441 = vpack.c.b16 %v7345, %v7342
      %v7442 = vpack.c.b16 %v7346, %v7343
      %v7443 = vpack.c.b16 %v7347, %v7344
      %v7444 = vpack.c.b16 %v7351, %v7348
      %v7445 = vpack.c.b16 %v7352, %v7349
      %v7446 = vpack.c.b16 %v7353, %v7350
      %v7447 = vpack.c.b16 %v7357, %v7354
      %v7448 = vpack.c.b16 %v7358, %v7355
      %v7449 = vpack.c.b16 %v7359, %v7356
      %v7450 = vpack.c.b16 %v7363, %v7360
      %v7451 = vpack.c.b16 %v7364, %v7361
      %v7452 = vpack.c.b16 %v7365, %v7362
      %v7453 = vpack.c.b16 %v7369, %v7366
      %v7454 = vpack.c.b16 %v7370, %v7367
      %v7455 = vpack.c.b16 %v7371, %v7368
      %v7456 = vpack.c.b16 %v7375, %v7372
      %v7457 = vpack.c.b16 %v7376, %v7373
      %v7458 = vpack.c.b16 %v7377, %v7374
      %v7459 = vpack.c.b16 %v7381, %v7378
      %v7460 = vpack.c.b16 %v7382, %v7379
      %v7461 = vpack.c.b16 %v7383, %v7380
      %v7462 = vpack.c.b16 %v7387, %v7384
      %v7463 = vpack.c.b16 %v7388, %v7385
      %v7464 = vpack.c.b16 %v7389, %v7386
      %v7465 = vpack.c.b16 %v7393, %v7390
      %v7466 = vpack.c.b16 %v7394, %v7391
      %v7467 = vpack.c.b16 %v7395, %v7392
      %v7468 = vpack.c.b16 %v7399, %v7396
      %v7469 = vpack.c.b16 %v7400, %v7397
      %v7470 = vpack.c.b16 %v7401, %v7398
      %v7471 = vpack.c.b16 %v7405, %v7402
      %v7472 = vpack.c.b16 %v7406, %v7403
      %v7473 = vpack.c.b16 %v7407, %v7404
      %v7474 = vpack.c.b16 %v7411, %v7408
      %v7475 = vpack.c.b16 %v7412, %v7409
      %v7476 = vpack.c.b16 %v7413, %v7410
      %v7477 = vpack.c.b16 %v7417, %v7414
      %v7478 = vpack.c.b16 %v7418, %v7415
      %v7479 = vpack.c.b16 %v7419, %v7416
      %v7541 = vsel %vm6504, %v7138, 0
      %7543 = vmatpush.bf16.msra.mxu0 %v7441
      %7544 = vmatpush.bf16.msra.mxu0 %v7438
      %7545 = vmatpush.bf16.msra.mxu0 %v7435
      %7546 = vmatpush.bf16.msra.mxu0 %v7432
      %7547 = vmatpush.bf16.msra.mxu0 %v7429
      %7548 = vmatpush.bf16.msra.mxu0 %v7426
      %7549 = vmatpush.bf16.msra.mxu0 %v7423
      %7550 = vmatpush.bf16.msra.mxu0 %v7420
      %7551 = vmatmul.bf16.gmra.mxu0 %v7136
      %v7552 = vpop.f32.mrf.mxu0
      %v7553 = vadd.f32 0.0, %v7552
      %v7554 = vpop.f32.mrf.mxu0
      %v7555 = vadd.f32 0.0, %v7554
      %7556 = vdwg.mxu0
      %7557 = vmatpush.bf16.msra.mxu0 %v7465
      %7558 = vmatpush.bf16.msra.mxu0 %v7462
      %7559 = vmatpush.bf16.msra.mxu0 %v7459
      %7560 = vmatpush.bf16.msra.mxu0 %v7456
      %7561 = vmatpush.bf16.msra.mxu0 %v7453
      %7562 = vmatpush.bf16.msra.mxu0 %v7450
      %7563 = vmatpush.bf16.msra.mxu0 %v7447
      %7564 = vmatpush.bf16.msra.mxu0 %v7444
      %7565 = vmatmul.bf16.gmra.mxu0 %v7137
      %v7566 = vpop.f32.mrf.mxu0
      %v7567 = vadd.f32 %v7553, %v7566
      %v7568 = vpop.f32.mrf.mxu0
      %v7569 = vadd.f32 %v7555, %v7568
      %7570 = vdwg.mxu0
      %7571 = vmatpush.bf16.msra.mxu0 0
      %7572 = vmatpush.bf16.msra.mxu0 0
      %7573 = vmatpush.bf16.msra.mxu0 0
      %7574 = vmatpush.bf16.msra.mxu0 0
      %7575 = vmatpush.bf16.msra.mxu0 %v7477
      %7576 = vmatpush.bf16.msra.mxu0 %v7474
      %7577 = vmatpush.bf16.msra.mxu0 %v7471
      %7578 = vmatpush.bf16.msra.mxu0 %v7468
      %7579 = vmatmul.bf16.gmra.mxu0 %v7541
      %v7580 = vpop.f32.mrf.mxu0
      %v7581 = vadd.f32 %v7567, %v7580
      %v7582 = vpop.f32.mrf.mxu0
      %v7583 = vadd.f32 %v7569, %v7582
      %7584 = vdwg.mxu0
      %7585 = vmatpush.bf16.msra.mxu0 %v7442
      %7586 = vmatpush.bf16.msra.mxu0 %v7439
      %7587 = vmatpush.bf16.msra.mxu0 %v7436
      %7588 = vmatpush.bf16.msra.mxu0 %v7433
      %7589 = vmatpush.bf16.msra.mxu0 %v7430
      %7590 = vmatpush.bf16.msra.mxu0 %v7427
      %7591 = vmatpush.bf16.msra.mxu0 %v7424
      %7592 = vmatpush.bf16.msra.mxu0 %v7421
      %7593 = vmatmul.bf16.gmra.mxu0 %v7136
      %v7594 = vpop.f32.mrf.mxu0
      %v7595 = vadd.f32 0.0, %v7594
      %v7596 = vpop.f32.mrf.mxu0
      %v7597 = vadd.f32 0.0, %v7596
      %7598 = vdwg.mxu0
      %7599 = vmatpush.bf16.msra.mxu0 %v7466
      %7600 = vmatpush.bf16.msra.mxu0 %v7463
      %7601 = vmatpush.bf16.msra.mxu0 %v7460
      %7602 = vmatpush.bf16.msra.mxu0 %v7457
      %7603 = vmatpush.bf16.msra.mxu0 %v7454
      %7604 = vmatpush.bf16.msra.mxu0 %v7451
      %7605 = vmatpush.bf16.msra.mxu0 %v7448
      %7606 = vmatpush.bf16.msra.mxu0 %v7445
      %7607 = vmatmul.bf16.gmra.mxu0 %v7137
      %v7608 = vpop.f32.mrf.mxu0
      %v7609 = vadd.f32 %v7595, %v7608
      %v7610 = vpop.f32.mrf.mxu0
      %v7611 = vadd.f32 %v7597, %v7610
      %7612 = vdwg.mxu0
      %7613 = vmatpush.bf16.msra.mxu0 0
      %7614 = vmatpush.bf16.msra.mxu0 0
      %7615 = vmatpush.bf16.msra.mxu0 0
      %7616 = vmatpush.bf16.msra.mxu0 0
      %7617 = vmatpush.bf16.msra.mxu0 %v7478
      %7618 = vmatpush.bf16.msra.mxu0 %v7475
      %7619 = vmatpush.bf16.msra.mxu0 %v7472
      %7620 = vmatpush.bf16.msra.mxu0 %v7469
      %7621 = vmatmul.bf16.gmra.mxu0 %v7541
      %v7622 = vpop.f32.mrf.mxu0
      %v7623 = vadd.f32 %v7609, %v7622
      %v7624 = vpop.f32.mrf.mxu0
      %v7625 = vadd.f32 %v7611, %v7624
      %7626 = vdwg.mxu0
      %7627 = vmatpush.bf16.msra.mxu0 %v7443
      %7628 = vmatpush.bf16.msra.mxu0 %v7440
      %7629 = vmatpush.bf16.msra.mxu0 %v7437
      %7630 = vmatpush.bf16.msra.mxu0 %v7434
      %7631 = vmatpush.bf16.msra.mxu0 %v7431
      %7632 = vmatpush.bf16.msra.mxu0 %v7428
      %7633 = vmatpush.bf16.msra.mxu0 %v7425
      %7634 = vmatpush.bf16.msra.mxu0 %v7422
      %7635 = vmatmul.bf16.gmra.mxu0 %v7136
      %v7636 = vpop.f32.mrf.mxu0
      %v7637 = vadd.f32 0.0, %v7636
      %v7638 = vpop.f32.mrf.mxu0
      %v7639 = vadd.f32 0.0, %v7638
      %7640 = vdwg.mxu0
      %7641 = vmatpush.bf16.msra.mxu0 %v7467
      %7642 = vmatpush.bf16.msra.mxu0 %v7464
      %7643 = vmatpush.bf16.msra.mxu0 %v7461
      %7644 = vmatpush.bf16.msra.mxu0 %v7458
      %7645 = vmatpush.bf16.msra.mxu0 %v7455
      %7646 = vmatpush.bf16.msra.mxu0 %v7452
      %7647 = vmatpush.bf16.msra.mxu0 %v7449
      %7648 = vmatpush.bf16.msra.mxu0 %v7446
      %7649 = vmatmul.bf16.gmra.mxu0 %v7137
      %v7650 = vpop.f32.mrf.mxu0
      %v7651 = vadd.f32 %v7637, %v7650
      %v7652 = vpop.f32.mrf.mxu0
      %v7653 = vadd.f32 %v7639, %v7652
      %7654 = vdwg.mxu0
      %7655 = vmatpush.bf16.msra.mxu0 0
      %7656 = vmatpush.bf16.msra.mxu0 0
      %7657 = vmatpush.bf16.msra.mxu0 0
      %7658 = vmatpush.bf16.msra.mxu0 0
      %7659 = vmatpush.bf16.msra.mxu0 %v7479
      %7660 = vmatpush.bf16.msra.mxu0 %v7476
      %7661 = vmatpush.bf16.msra.mxu0 %v7473
      %7662 = vmatpush.bf16.msra.mxu0 %v7470
      %7663 = vmatmul.bf16.gmra.mxu0 %v7541
      %v7664 = vpop.f32.mrf.mxu0
      %v7665 = vadd.f32 %v7651, %v7664
      %v7666 = vpop.f32.mrf.mxu0
      %v7667 = vadd.f32 %v7653, %v7666
      %7668 = vdwg.mxu0
      %v7669 = vadd.f32 %v6995, %v7581
      %v7670 = vadd.f32 %v7037, %v7623
      %v7671 = vadd.f32 %v7079, %v7665
      %v7672 = vadd.f32 %v6997, %v7583
      %v7673 = vadd.f32 %v7039, %v7625
      %v7674 = vadd.f32 %v7081, %v7667
      %s7675 = scalar_lea.vmem %s4, 24
      %v7676 = vld [vmem:[%s7675] sm:$0xf]
      %v7677 = vld [vmem:[%s7675 + $0x4] sm:$0xf]
      %v7680 = vunpack.c.l.b16 %v7676
      %v7681 = vunpack.c.l.b16 %v7677
      %v7682 = vpack.c.b16 %v7681, %v7680
      %v7684 = vsel %vm5908, %v7682, 0
      %7686 = vmatpush.bf16.msra.mxu0 0
      %7687 = vmatpush.bf16.msra.mxu0 0
      %7688 = vmatpush.bf16.msra.mxu0 0
      %7689 = vmatpush.bf16.msra.mxu0 0
      %7690 = vmatpush.bf16.msra.mxu0 0
      %7691 = vmatpush.bf16.msra.mxu0 0
      %7692 = vmatpush.bf16.msra.mxu0 %v5914
      %7693 = vmatpush.bf16.msra.mxu0 %v5895
      %7694 = vmatmul.bf16.gmra.mxu0 %v7684
      %v7695 = vpop.f32.mrf.mxu0
      %v7696 = vadd.f32 0.0, %v7695
      %v7697 = vpop.f32.mrf.mxu0
      %v7698 = vadd.f32 0.0, %v7697
      %7699 = vdwg.mxu0
      %7700 = vmatpush.bf16.msra.mxu0 0
      %7701 = vmatpush.bf16.msra.mxu0 0
      %7702 = vmatpush.bf16.msra.mxu0 0
      %7703 = vmatpush.bf16.msra.mxu0 0
      %7704 = vmatpush.bf16.msra.mxu0 0
      %7705 = vmatpush.bf16.msra.mxu0 0
      %7706 = vmatpush.bf16.msra.mxu0 %v5917
      %7707 = vmatpush.bf16.msra.mxu0 %v5896
      %7708 = vmatmul.bf16.gmra.mxu0 %v7684
      %v7709 = vpop.f32.mrf.mxu0
      %v7710 = vadd.f32 0.0, %v7709
      %v7711 = vpop.f32.mrf.mxu0
      %v7712 = vadd.f32 0.0, %v7711
      %7713 = vdwg.mxu0
      %7714 = vmatpush.bf16.msra.mxu0 0
      %7715 = vmatpush.bf16.msra.mxu0 0
      %7716 = vmatpush.bf16.msra.mxu0 0
      %7717 = vmatpush.bf16.msra.mxu0 0
      %7718 = vmatpush.bf16.msra.mxu0 0
      %7719 = vmatpush.bf16.msra.mxu0 0
      %7720 = vmatpush.bf16.msra.mxu0 %v5920
      %7721 = vmatpush.bf16.msra.mxu0 %v5897
      %7722 = vmatmul.bf16.gmra.mxu0 %v7684
      %v7723 = vpop.f32.mrf.mxu0
      %v7724 = vadd.f32 0.0, %v7723
      %v7725 = vpop.f32.mrf.mxu0
      %v7726 = vadd.f32 0.0, %v7725
      %7727 = vdwg.mxu0
      %v7728 = vpack.c.bf16 %v7698, %v7696
      %v7729 = vpack.c.bf16 %v7712, %v7710
      %v7730 = vpack.c.bf16 %v7726, %v7724
      %s7731 = scalar_lea.vmem %s5, 1440
      %v7732 = vld [vmem:[%s7731] sm:$0xff]
      %v7733 = vld [vmem:[%s7731 + $0x8] sm:$0xf]
      %v7734 = vld [vmem:[%s7731 + $0xc] sm:$0xff]
      %v7735 = vld [vmem:[%s7731 + $0x14] sm:$0xf]
      %v7736 = vld [vmem:[%s7731 + $0x18] sm:$0xff]
      %v7737 = vld [vmem:[%s7731 + $0x20] sm:$0xf]
      %v7738 = vld [vmem:[%s7731 + $0x24] sm:$0xff]
      %v7739 = vld [vmem:[%s7731 + $0x2c] sm:$0xf]
      %v7740 = vld [vmem:[%s7731 + $0x30] sm:$0xff]
      %v7741 = vld [vmem:[%s7731 + $0x38] sm:$0xf]
      %v7742 = vld [vmem:[%s7731 + $0x3c] sm:$0xff]
      %v7743 = vld [vmem:[%s7731 + $0x44] sm:$0xf]
      %v7744 = vld [vmem:[%s7731 + $0x48] sm:$0xff]
      %v7745 = vld [vmem:[%s7731 + $0x50] sm:$0xf]
      %v7746 = vld [vmem:[%s7731 + $0x54] sm:$0xff]
      %v7747 = vld [vmem:[%s7731 + $0x5c] sm:$0xf]
      %v7748 = vld [vmem:[%s7731 + $0x60] sm:$0xff]
      %v7749 = vld [vmem:[%s7731 + $0x68] sm:$0xf]
      %v7750 = vld [vmem:[%s7731 + $0x6c] sm:$0xff]
      %v7751 = vld [vmem:[%s7731 + $0x74] sm:$0xf]
      %v7752 = vld [vmem:[%s7731 + $0x78] sm:$0xff]
      %v7753 = vld [vmem:[%s7731 + $0x80] sm:$0xf]
      %v7754 = vld [vmem:[%s7731 + $0x84] sm:$0xff]
      %v7755 = vld [vmem:[%s7731 + $0x8c] sm:$0xf]
      %v7756 = vld [vmem:[%s7731 + $0x90] sm:$0xff]
      %v7757 = vld [vmem:[%s7731 + $0x98] sm:$0xf]
      %v7758 = vld [vmem:[%s7731 + $0x9c] sm:$0xff]
      %v7759 = vld [vmem:[%s7731 + $0xa4] sm:$0xf]
      %v7760 = vld [vmem:[%s7731 + $0xa8] sm:$0xff]
      %v7761 = vld [vmem:[%s7731 + $0xb0] sm:$0xf]
      %v7762 = vld [vmem:[%s7731 + $0xb4] sm:$0xff]
      %v7763 = vld [vmem:[%s7731 + $0xbc] sm:$0xf]
      %v7764 = vld [vmem:[%s7731 + $0xc0] sm:$0xff]
      %v7765 = vld [vmem:[%s7731 + $0xc8] sm:$0xf]
      %v7766 = vld [vmem:[%s7731 + $0xcc] sm:$0xff]
      %v7767 = vld [vmem:[%s7731 + $0xd4] sm:$0xf]
      %v7768 = vld [vmem:[%s7731 + $0xd8] sm:$0xff]
      %v7769 = vld [vmem:[%s7731 + $0xe0] sm:$0xf]
      %v7770 = vld [vmem:[%s7731 + $0xe4] sm:$0xff]
      %v7771 = vld [vmem:[%s7731 + $0xec] sm:$0xf]
      %v7772 = vld [vmem:[%s7731 + $0xf0] sm:$0xff]
      %v7773 = vld [vmem:[%s7731 + $0xf8] sm:$0xf]
      %v7774 = vld [vmem:[%s7731 + $0xfc] sm:$0xff]
      %v7775 = vld [vmem:[%s7731 + $0x104] sm:$0xf]
      %v7776 = vld [vmem:[%s7731 + $0x108] sm:$0xff]
      %v7777 = vld [vmem:[%s7731 + $0x110] sm:$0xf]
      %v7778 = vld [vmem:[%s7731 + $0x114] sm:$0xff]
      %v7779 = vld [vmem:[%s7731 + $0x11c] sm:$0xf]
      %v7780 = vld [vmem:[%s7731 + $0x120] sm:$0xff]
      %v7781 = vld [vmem:[%s7731 + $0x128] sm:$0xf]
      %v7782 = vld [vmem:[%s7731 + $0x12c] sm:$0xff]
      %v7783 = vld [vmem:[%s7731 + $0x134] sm:$0xf]
      %v7784 = vld [vmem:[%s7731 + $0x138] sm:$0xff]
      %v7785 = vld [vmem:[%s7731 + $0x140] sm:$0xf]
      %v7786 = vld [vmem:[%s7731 + $0x144] sm:$0xff]
      %v7787 = vld [vmem:[%s7731 + $0x14c] sm:$0xf]
      %v7788 = vld [vmem:[%s7731 + $0x150] sm:$0xff]
      %v7789 = vld [vmem:[%s7731 + $0x158] sm:$0xf]
      %v7790 = vld [vmem:[%s7731 + $0x15c] sm:$0xff]
      %v7791 = vld [vmem:[%s7731 + $0x164] sm:$0xf]
      %v7792 = vld [vmem:[%s7731 + $0x168] sm:$0xff]
      %v7793 = vld [vmem:[%s7731 + $0x170] sm:$0xf]
      %v7794 = vld [vmem:[%s7731 + $0x174] sm:$0xff]
      %v7795 = vld [vmem:[%s7731 + $0x17c] sm:$0xf]
      %v7796 = vld [vmem:[%s7731 + $0x180] sm:$0xff]
      %v7797 = vld [vmem:[%s7731 + $0x188] sm:$0xf]
      %v7798 = vld [vmem:[%s7731 + $0x18c] sm:$0xff]
      %v7799 = vld [vmem:[%s7731 + $0x194] sm:$0xf]
      %v7800 = vld [vmem:[%s7731 + $0x198] sm:$0xff]
      %v7801 = vld [vmem:[%s7731 + $0x1a0] sm:$0xf]
      %v7802 = vld [vmem:[%s7731 + $0x1a4] sm:$0xff]
      %v7803 = vld [vmem:[%s7731 + $0x1ac] sm:$0xf]
      %v7804 = vld [vmem:[%s7731 + $0x1b0] sm:$0xff]
      %v7805 = vld [vmem:[%s7731 + $0x1b8] sm:$0xf]
      %v7806 = vld [vmem:[%s7731 + $0x1bc] sm:$0xff]
      %v7807 = vld [vmem:[%s7731 + $0x1c4] sm:$0xf]
      %v7808 = vld [vmem:[%s7731 + $0x1c8] sm:$0xff]
      %v7809 = vld [vmem:[%s7731 + $0x1d0] sm:$0xf]
      %v7810 = vld [vmem:[%s7731 + $0x1d4] sm:$0xff]
      %v7811 = vld [vmem:[%s7731 + $0x1dc] sm:$0xf]
      %v7892 = vunpack.c.l.b16 %v7732
      %v7893 = vunpack.c.h.b16 %v7732
      %v7894 = vunpack.c.l.b16 %v7733
      %v7895 = vunpack.c.l.b16 %v7734
      %v7896 = vunpack.c.h.b16 %v7734
      %v7897 = vunpack.c.l.b16 %v7735
      %v7898 = vunpack.c.l.b16 %v7736
      %v7899 = vunpack.c.h.b16 %v7736
      %v7900 = vunpack.c.l.b16 %v7737
      %v7901 = vunpack.c.l.b16 %v7738
      %v7902 = vunpack.c.h.b16 %v7738
      %v7903 = vunpack.c.l.b16 %v7739
      %v7904 = vunpack.c.l.b16 %v7740
      %v7905 = vunpack.c.h.b16 %v7740
      %v7906 = vunpack.c.l.b16 %v7741
      %v7907 = vunpack.c.l.b16 %v7742
      %v7908 = vunpack.c.h.b16 %v7742
      %v7909 = vunpack.c.l.b16 %v7743
      %v7910 = vunpack.c.l.b16 %v7744
      %v7911 = vunpack.c.h.b16 %v7744
      %v7912 = vunpack.c.l.b16 %v7745
      %v7913 = vunpack.c.l.b16 %v7746
      %v7914 = vunpack.c.h.b16 %v7746
      %v7915 = vunpack.c.l.b16 %v7747
      %v7916 = vunpack.c.l.b16 %v7748
      %v7917 = vunpack.c.h.b16 %v7748
      %v7918 = vunpack.c.l.b16 %v7749
      %v7919 = vunpack.c.l.b16 %v7750
      %v7920 = vunpack.c.h.b16 %v7750
      %v7921 = vunpack.c.l.b16 %v7751
      %v7922 = vunpack.c.l.b16 %v7752
      %v7923 = vunpack.c.h.b16 %v7752
      %v7924 = vunpack.c.l.b16 %v7753
      %v7925 = vunpack.c.l.b16 %v7754
      %v7926 = vunpack.c.h.b16 %v7754
      %v7927 = vunpack.c.l.b16 %v7755
      %v7928 = vunpack.c.l.b16 %v7756
      %v7929 = vunpack.c.h.b16 %v7756
      %v7930 = vunpack.c.l.b16 %v7757
      %v7931 = vunpack.c.l.b16 %v7758
      %v7932 = vunpack.c.h.b16 %v7758
      %v7933 = vunpack.c.l.b16 %v7759
      %v7934 = vunpack.c.l.b16 %v7760
      %v7935 = vunpack.c.h.b16 %v7760
      %v7936 = vunpack.c.l.b16 %v7761
      %v7937 = vunpack.c.l.b16 %v7762
      %v7938 = vunpack.c.h.b16 %v7762
      %v7939 = vunpack.c.l.b16 %v7763
      %v7940 = vunpack.c.l.b16 %v7764
      %v7941 = vunpack.c.h.b16 %v7764
      %v7942 = vunpack.c.l.b16 %v7765
      %v7943 = vunpack.c.l.b16 %v7766
      %v7944 = vunpack.c.h.b16 %v7766
      %v7945 = vunpack.c.l.b16 %v7767
      %v7946 = vunpack.c.l.b16 %v7768
      %v7947 = vunpack.c.h.b16 %v7768
      %v7948 = vunpack.c.l.b16 %v7769
      %v7949 = vunpack.c.l.b16 %v7770
      %v7950 = vunpack.c.h.b16 %v7770
      %v7951 = vunpack.c.l.b16 %v7771
      %v7952 = vunpack.c.l.b16 %v7772
      %v7953 = vunpack.c.h.b16 %v7772
      %v7954 = vunpack.c.l.b16 %v7773
      %v7955 = vunpack.c.l.b16 %v7774
      %v7956 = vunpack.c.h.b16 %v7774
      %v7957 = vunpack.c.l.b16 %v7775
      %v7958 = vunpack.c.l.b16 %v7776
      %v7959 = vunpack.c.h.b16 %v7776
      %v7960 = vunpack.c.l.b16 %v7777
      %v7961 = vunpack.c.l.b16 %v7778
      %v7962 = vunpack.c.h.b16 %v7778
      %v7963 = vunpack.c.l.b16 %v7779
      %v7964 = vunpack.c.l.b16 %v7780
      %v7965 = vunpack.c.h.b16 %v7780
      %v7966 = vunpack.c.l.b16 %v7781
      %v7967 = vunpack.c.l.b16 %v7782
      %v7968 = vunpack.c.h.b16 %v7782
      %v7969 = vunpack.c.l.b16 %v7783
      %v7970 = vunpack.c.l.b16 %v7784
      %v7971 = vunpack.c.h.b16 %v7784
      %v7972 = vunpack.c.l.b16 %v7785
      %v7973 = vunpack.c.l.b16 %v7786
      %v7974 = vunpack.c.h.b16 %v7786
      %v7975 = vunpack.c.l.b16 %v7787
      %v7976 = vunpack.c.l.b16 %v7788
      %v7977 = vunpack.c.h.b16 %v7788
      %v7978 = vunpack.c.l.b16 %v7789
      %v7979 = vunpack.c.l.b16 %v7790
      %v7980 = vunpack.c.h.b16 %v7790
      %v7981 = vunpack.c.l.b16 %v7791
      %v7982 = vunpack.c.l.b16 %v7792
      %v7983 = vunpack.c.h.b16 %v7792
      %v7984 = vunpack.c.l.b16 %v7793
      %v7985 = vunpack.c.l.b16 %v7794
      %v7986 = vunpack.c.h.b16 %v7794
      %v7987 = vunpack.c.l.b16 %v7795
      %v7988 = vunpack.c.l.b16 %v7796
      %v7989 = vunpack.c.h.b16 %v7796
      %v7990 = vunpack.c.l.b16 %v7797
      %v7991 = vunpack.c.l.b16 %v7798
      %v7992 = vunpack.c.h.b16 %v7798
      %v7993 = vunpack.c.l.b16 %v7799
      %v7994 = vunpack.c.l.b16 %v7800
      %v7995 = vunpack.c.h.b16 %v7800
      %v7996 = vunpack.c.l.b16 %v7801
      %v7997 = vunpack.c.l.b16 %v7802
      %v7998 = vunpack.c.h.b16 %v7802
      %v7999 = vunpack.c.l.b16 %v7803
      %v8000 = vunpack.c.l.b16 %v7804
      %v8001 = vunpack.c.h.b16 %v7804
      %v8002 = vunpack.c.l.b16 %v7805
      %v8003 = vunpack.c.l.b16 %v7806
      %v8004 = vunpack.c.h.b16 %v7806
      %v8005 = vunpack.c.l.b16 %v7807
      %v8006 = vunpack.c.l.b16 %v7808
      %v8007 = vunpack.c.h.b16 %v7808
      %v8008 = vunpack.c.l.b16 %v7809
      %v8009 = vunpack.c.l.b16 %v7810
      %v8010 = vunpack.c.h.b16 %v7810
      %v8011 = vunpack.c.l.b16 %v7811
      %v8012 = vpack.c.b16 %v7895, %v7892
      %v8013 = vpack.c.b16 %v7896, %v7893
      %v8014 = vpack.c.b16 %v7897, %v7894
      %v8015 = vpack.c.b16 %v7901, %v7898
      %v8016 = vpack.c.b16 %v7902, %v7899
      %v8017 = vpack.c.b16 %v7903, %v7900
      %v8018 = vpack.c.b16 %v7907, %v7904
      %v8019 = vpack.c.b16 %v7908, %v7905
      %v8020 = vpack.c.b16 %v7909, %v7906
      %v8021 = vpack.c.b16 %v7913, %v7910
      %v8022 = vpack.c.b16 %v7914, %v7911
      %v8023 = vpack.c.b16 %v7915, %v7912
      %v8024 = vpack.c.b16 %v7919, %v7916
      %v8025 = vpack.c.b16 %v7920, %v7917
      %v8026 = vpack.c.b16 %v7921, %v7918
      %v8027 = vpack.c.b16 %v7925, %v7922
      %v8028 = vpack.c.b16 %v7926, %v7923
      %v8029 = vpack.c.b16 %v7927, %v7924
      %v8030 = vpack.c.b16 %v7931, %v7928
      %v8031 = vpack.c.b16 %v7932, %v7929
      %v8032 = vpack.c.b16 %v7933, %v7930
      %v8033 = vpack.c.b16 %v7937, %v7934
      %v8034 = vpack.c.b16 %v7938, %v7935
      %v8035 = vpack.c.b16 %v7939, %v7936
      %v8036 = vpack.c.b16 %v7943, %v7940
      %v8037 = vpack.c.b16 %v7944, %v7941
      %v8038 = vpack.c.b16 %v7945, %v7942
      %v8039 = vpack.c.b16 %v7949, %v7946
      %v8040 = vpack.c.b16 %v7950, %v7947
      %v8041 = vpack.c.b16 %v7951, %v7948
      %v8042 = vpack.c.b16 %v7955, %v7952
      %v8043 = vpack.c.b16 %v7956, %v7953
      %v8044 = vpack.c.b16 %v7957, %v7954
      %v8045 = vpack.c.b16 %v7961, %v7958
      %v8046 = vpack.c.b16 %v7962, %v7959
      %v8047 = vpack.c.b16 %v7963, %v7960
      %v8048 = vpack.c.b16 %v7967, %v7964
      %v8049 = vpack.c.b16 %v7968, %v7965
      %v8050 = vpack.c.b16 %v7969, %v7966
      %v8051 = vpack.c.b16 %v7973, %v7970
      %v8052 = vpack.c.b16 %v7974, %v7971
      %v8053 = vpack.c.b16 %v7975, %v7972
      %v8054 = vpack.c.b16 %v7979, %v7976
      %v8055 = vpack.c.b16 %v7980, %v7977
      %v8056 = vpack.c.b16 %v7981, %v7978
      %v8057 = vpack.c.b16 %v7985, %v7982
      %v8058 = vpack.c.b16 %v7986, %v7983
      %v8059 = vpack.c.b16 %v7987, %v7984
      %v8060 = vpack.c.b16 %v7991, %v7988
      %v8061 = vpack.c.b16 %v7992, %v7989
      %v8062 = vpack.c.b16 %v7993, %v7990
      %v8063 = vpack.c.b16 %v7997, %v7994
      %v8064 = vpack.c.b16 %v7998, %v7995
      %v8065 = vpack.c.b16 %v7999, %v7996
      %v8066 = vpack.c.b16 %v8003, %v8000
      %v8067 = vpack.c.b16 %v8004, %v8001
      %v8068 = vpack.c.b16 %v8005, %v8002
      %v8069 = vpack.c.b16 %v8009, %v8006
      %v8070 = vpack.c.b16 %v8010, %v8007
      %v8071 = vpack.c.b16 %v8011, %v8008
      %v8133 = vsel %vm6504, %v7730, 0
      %8135 = vmatpush.bf16.msra.mxu0 %v8033
      %8136 = vmatpush.bf16.msra.mxu0 %v8030
      %8137 = vmatpush.bf16.msra.mxu0 %v8027
      %8138 = vmatpush.bf16.msra.mxu0 %v8024
      %8139 = vmatpush.bf16.msra.mxu0 %v8021
      %8140 = vmatpush.bf16.msra.mxu0 %v8018
      %8141 = vmatpush.bf16.msra.mxu0 %v8015
      %8142 = vmatpush.bf16.msra.mxu0 %v8012
      %8143 = vmatmul.bf16.gmra.mxu0 %v7728
      %v8144 = vpop.f32.mrf.mxu0
      %v8145 = vadd.f32 0.0, %v8144
      %v8146 = vpop.f32.mrf.mxu0
      %v8147 = vadd.f32 0.0, %v8146
      %8148 = vdwg.mxu0
      %8149 = vmatpush.bf16.msra.mxu0 %v8057
      %8150 = vmatpush.bf16.msra.mxu0 %v8054
      %8151 = vmatpush.bf16.msra.mxu0 %v8051
      %8152 = vmatpush.bf16.msra.mxu0 %v8048
      %8153 = vmatpush.bf16.msra.mxu0 %v8045
      %8154 = vmatpush.bf16.msra.mxu0 %v8042
      %8155 = vmatpush.bf16.msra.mxu0 %v8039
      %8156 = vmatpush.bf16.msra.mxu0 %v8036
      %8157 = vmatmul.bf16.gmra.mxu0 %v7729
      %v8158 = vpop.f32.mrf.mxu0
      %v8159 = vadd.f32 %v8145, %v8158
      %v8160 = vpop.f32.mrf.mxu0
      %v8161 = vadd.f32 %v8147, %v8160
      %8162 = vdwg.mxu0
      %8163 = vmatpush.bf16.msra.mxu0 0
      %8164 = vmatpush.bf16.msra.mxu0 0
      %8165 = vmatpush.bf16.msra.mxu0 0
      %8166 = vmatpush.bf16.msra.mxu0 0
      %8167 = vmatpush.bf16.msra.mxu0 %v8069
      %8168 = vmatpush.bf16.msra.mxu0 %v8066
      %8169 = vmatpush.bf16.msra.mxu0 %v8063
      %8170 = vmatpush.bf16.msra.mxu0 %v8060
      %8171 = vmatmul.bf16.gmra.mxu0 %v8133
      %v8172 = vpop.f32.mrf.mxu0
      %v8173 = vadd.f32 %v8159, %v8172
      %v8174 = vpop.f32.mrf.mxu0
      %v8175 = vadd.f32 %v8161, %v8174
      %8176 = vdwg.mxu0
      %8177 = vmatpush.bf16.msra.mxu0 %v8034
      %8178 = vmatpush.bf16.msra.mxu0 %v8031
      %8179 = vmatpush.bf16.msra.mxu0 %v8028
      %8180 = vmatpush.bf16.msra.mxu0 %v8025
      %8181 = vmatpush.bf16.msra.mxu0 %v8022
      %8182 = vmatpush.bf16.msra.mxu0 %v8019
      %8183 = vmatpush.bf16.msra.mxu0 %v8016
      %8184 = vmatpush.bf16.msra.mxu0 %v8013
      %8185 = vmatmul.bf16.gmra.mxu0 %v7728
      %v8186 = vpop.f32.mrf.mxu0
      %v8187 = vadd.f32 0.0, %v8186
      %v8188 = vpop.f32.mrf.mxu0
      %v8189 = vadd.f32 0.0, %v8188
      %8190 = vdwg.mxu0
      %8191 = vmatpush.bf16.msra.mxu0 %v8058
      %8192 = vmatpush.bf16.msra.mxu0 %v8055
      %8193 = vmatpush.bf16.msra.mxu0 %v8052
      %8194 = vmatpush.bf16.msra.mxu0 %v8049
      %8195 = vmatpush.bf16.msra.mxu0 %v8046
      %8196 = vmatpush.bf16.msra.mxu0 %v8043
      %8197 = vmatpush.bf16.msra.mxu0 %v8040
      %8198 = vmatpush.bf16.msra.mxu0 %v8037
      %8199 = vmatmul.bf16.gmra.mxu0 %v7729
      %v8200 = vpop.f32.mrf.mxu0
      %v8201 = vadd.f32 %v8187, %v8200
      %v8202 = vpop.f32.mrf.mxu0
      %v8203 = vadd.f32 %v8189, %v8202
      %8204 = vdwg.mxu0
      %8205 = vmatpush.bf16.msra.mxu0 0
      %8206 = vmatpush.bf16.msra.mxu0 0
      %8207 = vmatpush.bf16.msra.mxu0 0
      %8208 = vmatpush.bf16.msra.mxu0 0
      %8209 = vmatpush.bf16.msra.mxu0 %v8070
      %8210 = vmatpush.bf16.msra.mxu0 %v8067
      %8211 = vmatpush.bf16.msra.mxu0 %v8064
      %8212 = vmatpush.bf16.msra.mxu0 %v8061
      %8213 = vmatmul.bf16.gmra.mxu0 %v8133
      %v8214 = vpop.f32.mrf.mxu0
      %v8215 = vadd.f32 %v8201, %v8214
      %v8216 = vpop.f32.mrf.mxu0
      %v8217 = vadd.f32 %v8203, %v8216
      %8218 = vdwg.mxu0
      %8219 = vmatpush.bf16.msra.mxu0 %v8035
      %8220 = vmatpush.bf16.msra.mxu0 %v8032
      %8221 = vmatpush.bf16.msra.mxu0 %v8029
      %8222 = vmatpush.bf16.msra.mxu0 %v8026
      %8223 = vmatpush.bf16.msra.mxu0 %v8023
      %8224 = vmatpush.bf16.msra.mxu0 %v8020
      %8225 = vmatpush.bf16.msra.mxu0 %v8017
      %8226 = vmatpush.bf16.msra.mxu0 %v8014
      %8227 = vmatmul.bf16.gmra.mxu0 %v7728
      %v8228 = vpop.f32.mrf.mxu0
      %v8229 = vadd.f32 0.0, %v8228
      %v8230 = vpop.f32.mrf.mxu0
      %v8231 = vadd.f32 0.0, %v8230
      %8232 = vdwg.mxu0
      %8233 = vmatpush.bf16.msra.mxu0 %v8059
      %8234 = vmatpush.bf16.msra.mxu0 %v8056
      %8235 = vmatpush.bf16.msra.mxu0 %v8053
      %8236 = vmatpush.bf16.msra.mxu0 %v8050
      %8237 = vmatpush.bf16.msra.mxu0 %v8047
      %8238 = vmatpush.bf16.msra.mxu0 %v8044
      %8239 = vmatpush.bf16.msra.mxu0 %v8041
      %8240 = vmatpush.bf16.msra.mxu0 %v8038
      %8241 = vmatmul.bf16.gmra.mxu0 %v7729
      %v8242 = vpop.f32.mrf.mxu0
      %v8243 = vadd.f32 %v8229, %v8242
      %v8244 = vpop.f32.mrf.mxu0
      %v8245 = vadd.f32 %v8231, %v8244
      %8246 = vdwg.mxu0
      %8247 = vmatpush.bf16.msra.mxu0 0
      %8248 = vmatpush.bf16.msra.mxu0 0
      %8249 = vmatpush.bf16.msra.mxu0 0
      %8250 = vmatpush.bf16.msra.mxu0 0
      %8251 = vmatpush.bf16.msra.mxu0 %v8071
      %8252 = vmatpush.bf16.msra.mxu0 %v8068
      %8253 = vmatpush.bf16.msra.mxu0 %v8065
      %8254 = vmatpush.bf16.msra.mxu0 %v8062
      %8255 = vmatmul.bf16.gmra.mxu0 %v8133
      %v8256 = vpop.f32.mrf.mxu0
      %v8257 = vadd.f32 %v8243, %v8256
      %v8258 = vpop.f32.mrf.mxu0
      %v8259 = vadd.f32 %v8245, %v8258
      %8260 = vdwg.mxu0
      %v8261 = vadd.f32 %v7669, %v8173
      %v8262 = vadd.f32 %v7670, %v8215
      %v8263 = vadd.f32 %v7671, %v8257
      %v8264 = vadd.f32 %v7672, %v8175
      %v8265 = vadd.f32 %v7673, %v8217
      %v8266 = vadd.f32 %v7674, %v8259
      %v8267 = vld [vmem:[%s6] sm:$0x7]
      %v8269 = vperm.slane %v8267, 0
      %v8270 = vperm.slane %v8267, 1
      %v8271 = vperm.slane %v8267, 2
      %v8275 = vadd.f32 %v8261, %v8269
      %v8276 = vadd.f32 %v8262, %v8270
      %v8277 = vadd.f32 %v8263, %v8271
      %v8278 = vadd.f32 %v8264, %v8269
      %v8279 = vadd.f32 %v8265, %v8270
      %v8280 = vadd.f32 %v8266, %v8271
      %v8281 = vmax.f32 %v8275, 0.0
      %v8282 = vmax.f32 %v8276, 0.0
      %v8283 = vmax.f32 %v8277, 0.0
      %v8284 = vmax.f32 %v8278, 0.0
      %v8285 = vmax.f32 %v8279, 0.0
      %v8286 = vmax.f32 %v8280, 0.0
      %v8287 = vpack.c.bf16 %v8284, %v8281
      %v8288 = vpack.c.bf16 %v8285, %v8282
      %v8289 = vpack.c.bf16 %v8286, %v8283
      %v8290 = vld [vmem:[%s7] sm:$0xf]
      %vm8291 = vcmask 130048
      %v8293 = vsel %vm8291, %v8290, 0
      %8295 = vmatpush.bf16.msra.mxu0 0
      %8296 = vmatpush.bf16.msra.mxu0 0
      %8297 = vmatpush.bf16.msra.mxu0 0
      %8298 = vmatpush.bf16.msra.mxu0 0
      %8299 = vmatpush.bf16.msra.mxu0 0
      %8300 = vmatpush.bf16.msra.mxu0 0
      %8301 = vmatpush.bf16.msra.mxu0 0
      %8302 = vmatpush.bf16.msra.mxu0 %v8287
      %8303 = vmatmul.bf16.gmra.mxu0 %v8293
      %v8304 = vpop.f32.mrf.mxu0
      %v8305 = vadd.f32 0.0, %v8304
      %v8306 = vpop.f32.mrf.mxu0
      %8307 = vdwg.mxu0
      %8308 = vmatpush.bf16.msra.mxu0 0
      %8309 = vmatpush.bf16.msra.mxu0 0
      %8310 = vmatpush.bf16.msra.mxu0 0
      %8311 = vmatpush.bf16.msra.mxu0 0
      %8312 = vmatpush.bf16.msra.mxu0 0
      %8313 = vmatpush.bf16.msra.mxu0 0
      %8314 = vmatpush.bf16.msra.mxu0 0
      %8315 = vmatpush.bf16.msra.mxu0 %v8288
      %8316 = vmatmul.bf16.gmra.mxu0 %v8293
      %v8317 = vpop.f32.mrf.mxu0
      %v8318 = vadd.f32 0.0, %v8317
      %v8319 = vpop.f32.mrf.mxu0
      %8320 = vdwg.mxu0
      %8321 = vmatpush.bf16.msra.mxu0 0
      %8322 = vmatpush.bf16.msra.mxu0 0
      %8323 = vmatpush.bf16.msra.mxu0 0
      %8324 = vmatpush.bf16.msra.mxu0 0
      %8325 = vmatpush.bf16.msra.mxu0 0
      %8326 = vmatpush.bf16.msra.mxu0 0
      %8327 = vmatpush.bf16.msra.mxu0 0
      %8328 = vmatpush.bf16.msra.mxu0 %v8289
      %8329 = vmatmul.bf16.gmra.mxu0 %v8293
      %v8330 = vpop.f32.mrf.mxu0
      %v8331 = vadd.f32 0.0, %v8330
      %v8332 = vpop.f32.mrf.mxu0
      %8333 = vdwg.mxu0
      %v8334 = vpack.c.bf16 %v8305, %v8305
      %v8335 = vpack.c.bf16 %v8318, %v8318
      %v8336 = vpack.c.bf16 %v8331, %v8331
      %v8337 = vld [vmem:[%s8] sm:$0xf]
      %v8338 = vld [vmem:[%s8 + $0x4] sm:$0xf]
      %v8339 = vld [vmem:[%s8 + $0x8] sm:$0xf]
      %v8340 = vld [vmem:[%s8 + $0xc] sm:$0xf]
      %v8341 = vld [vmem:[%s8 + $0x10] sm:$0xf]
      %v8342 = vld [vmem:[%s8 + $0x14] sm:$0xf]
      %v8343 = vld [vmem:[%s8 + $0x18] sm:$0xf]
      %v8344 = vld [vmem:[%s8 + $0x1c] sm:$0xf]
      %v8345 = vld [vmem:[%s8 + $0x20] sm:$0xf]
      %v8346 = vld [vmem:[%s8 + $0x24] sm:$0xf]
      %v8347 = vld [vmem:[%s8 + $0x28] sm:$0xf]
      %v8348 = vld [vmem:[%s8 + $0x2c] sm:$0xf]
      %v8349 = vld [vmem:[%s8 + $0x30] sm:$0xf]
      %v8350 = vld [vmem:[%s8 + $0x34] sm:$0xf]
      %v8351 = vld [vmem:[%s8 + $0x38] sm:$0xf]
      %v8352 = vld [vmem:[%s8 + $0x3c] sm:$0xf]
      %v8353 = vld [vmem:[%s8 + $0x40] sm:$0xf]
      %v8354 = vld [vmem:[%s8 + $0x44] sm:$0xf]
      %v8355 = vld [vmem:[%s8 + $0x48] sm:$0xf]
      %v8356 = vld [vmem:[%s8 + $0x4c] sm:$0xf]
      %v8357 = vld [vmem:[%s8 + $0x50] sm:$0xf]
      %v8358 = vld [vmem:[%s8 + $0x54] sm:$0xf]
      %v8359 = vld [vmem:[%s8 + $0x58] sm:$0xf]
      %v8360 = vld [vmem:[%s8 + $0x5c] sm:$0xf]
      %v8361 = vld [vmem:[%s8 + $0x60] sm:$0xf]
      %v8362 = vld [vmem:[%s8 + $0x64] sm:$0xf]
      %v8363 = vld [vmem:[%s8 + $0x68] sm:$0xf]
      %v8364 = vld [vmem:[%s8 + $0x6c] sm:$0xf]
      %v8365 = vld [vmem:[%s8 + $0x70] sm:$0xf]
      %v8366 = vld [vmem:[%s8 + $0x74] sm:$0xf]
      %v8367 = vld [vmem:[%s8 + $0x78] sm:$0xf]
      %v8368 = vld [vmem:[%s8 + $0x7c] sm:$0xf]
      %v8369 = vld [vmem:[%s8 + $0x80] sm:$0xf]
      %v8370 = vld [vmem:[%s8 + $0x84] sm:$0xf]
      %v8371 = vld [vmem:[%s8 + $0x88] sm:$0xf]
      %v8372 = vld [vmem:[%s8 + $0x8c] sm:$0xf]
      %s8373 = scalar_lea.vmem %s7, 4
      %v8374 = vld [vmem:[%s8373] sm:$0xf]
      %v8376 = vsel %vm8291, %v8374, 0
      %8378 = vmatpush.bf16.msra.mxu0 0
      %8379 = vmatpush.bf16.msra.mxu0 0
      %8380 = vmatpush.bf16.msra.mxu0 0
      %8381 = vmatpush.bf16.msra.mxu0 0
      %8382 = vmatpush.bf16.msra.mxu0 0
      %8383 = vmatpush.bf16.msra.mxu0 0
      %8384 = vmatpush.bf16.msra.mxu0 0
      %8385 = vmatpush.bf16.msra.mxu0 %v8287
      %8386 = vmatmul.bf16.gmra.mxu0 %v8376
      %v8387 = vpop.f32.mrf.mxu0
      %v8388 = vadd.f32 0.0, %v8387
      %v8389 = vpop.f32.mrf.mxu0
      %8390 = vdwg.mxu0
      %8391 = vmatpush.bf16.msra.mxu0 0
      %8392 = vmatpush.bf16.msra.mxu0 0
      %8393 = vmatpush.bf16.msra.mxu0 0
      %8394 = vmatpush.bf16.msra.mxu0 0
      %8395 = vmatpush.bf16.msra.mxu0 0
      %8396 = vmatpush.bf16.msra.mxu0 0
      %8397 = vmatpush.bf16.msra.mxu0 0
      %8398 = vmatpush.bf16.msra.mxu0 %v8288
      %8399 = vmatmul.bf16.gmra.mxu0 %v8376
      %v8400 = vpop.f32.mrf.mxu0
      %v8401 = vadd.f32 0.0, %v8400
      %v8402 = vpop.f32.mrf.mxu0
      %8403 = vdwg.mxu0
      %8404 = vmatpush.bf16.msra.mxu0 0
      %8405 = vmatpush.bf16.msra.mxu0 0
      %8406 = vmatpush.bf16.msra.mxu0 0
      %8407 = vmatpush.bf16.msra.mxu0 0
      %8408 = vmatpush.bf16.msra.mxu0 0
      %8409 = vmatpush.bf16.msra.mxu0 0
      %8410 = vmatpush.bf16.msra.mxu0 0
      %8411 = vmatpush.bf16.msra.mxu0 %v8289
      %8412 = vmatmul.bf16.gmra.mxu0 %v8376
      %v8413 = vpop.f32.mrf.mxu0
      %v8414 = vadd.f32 0.0, %v8413
      %v8415 = vpop.f32.mrf.mxu0
      %8416 = vdwg.mxu0
      %v8417 = vpack.c.bf16 %v8388, %v8388
      %v8418 = vpack.c.bf16 %v8401, %v8401
      %v8419 = vpack.c.bf16 %v8414, %v8414
      %s8420 = scalar_lea.vmem %s8, 144
      %v8421 = vld [vmem:[%s8420] sm:$0xf]
      %v8422 = vld [vmem:[%s8420 + $0x4] sm:$0xf]
      %v8423 = vld [vmem:[%s8420 + $0x8] sm:$0xf]
      %v8424 = vld [vmem:[%s8420 + $0xc] sm:$0xf]
      %v8425 = vld [vmem:[%s8420 + $0x10] sm:$0xf]
      %v8426 = vld [vmem:[%s8420 + $0x14] sm:$0xf]
      %v8427 = vld [vmem:[%s8420 + $0x18] sm:$0xf]
      %v8428 = vld [vmem:[%s8420 + $0x1c] sm:$0xf]
      %v8429 = vld [vmem:[%s8420 + $0x20] sm:$0xf]
      %v8430 = vld [vmem:[%s8420 + $0x24] sm:$0xf]
      %v8431 = vld [vmem:[%s8420 + $0x28] sm:$0xf]
      %v8432 = vld [vmem:[%s8420 + $0x2c] sm:$0xf]
      %v8433 = vld [vmem:[%s8420 + $0x30] sm:$0xf]
      %v8434 = vld [vmem:[%s8420 + $0x34] sm:$0xf]
      %v8435 = vld [vmem:[%s8420 + $0x38] sm:$0xf]
      %v8436 = vld [vmem:[%s8420 + $0x3c] sm:$0xf]
      %v8437 = vld [vmem:[%s8420 + $0x40] sm:$0xf]
      %v8438 = vld [vmem:[%s8420 + $0x44] sm:$0xf]
      %v8439 = vld [vmem:[%s8420 + $0x48] sm:$0xf]
      %v8440 = vld [vmem:[%s8420 + $0x4c] sm:$0xf]
      %v8441 = vld [vmem:[%s8420 + $0x50] sm:$0xf]
      %v8442 = vld [vmem:[%s8420 + $0x54] sm:$0xf]
      %v8443 = vld [vmem:[%s8420 + $0x58] sm:$0xf]
      %v8444 = vld [vmem:[%s8420 + $0x5c] sm:$0xf]
      %v8445 = vld [vmem:[%s8420 + $0x60] sm:$0xf]
      %v8446 = vld [vmem:[%s8420 + $0x64] sm:$0xf]
      %v8447 = vld [vmem:[%s8420 + $0x68] sm:$0xf]
      %v8448 = vld [vmem:[%s8420 + $0x6c] sm:$0xf]
      %v8449 = vld [vmem:[%s8420 + $0x70] sm:$0xf]
      %v8450 = vld [vmem:[%s8420 + $0x74] sm:$0xf]
      %v8451 = vld [vmem:[%s8420 + $0x78] sm:$0xf]
      %v8452 = vld [vmem:[%s8420 + $0x7c] sm:$0xf]
      %v8453 = vld [vmem:[%s8420 + $0x80] sm:$0xf]
      %v8454 = vld [vmem:[%s8420 + $0x84] sm:$0xf]
      %v8455 = vld [vmem:[%s8420 + $0x88] sm:$0xf]
      %v8456 = vld [vmem:[%s8420 + $0x8c] sm:$0xf]
      %v8493 = vunpack.c.l.b16 %v8421
      %v8494 = vunpack.c.l.b16 %v8422
      %v8495 = vunpack.c.l.b16 %v8423
      %v8496 = vunpack.c.l.b16 %v8424
      %v8497 = vunpack.c.l.b16 %v8425
      %v8498 = vunpack.c.l.b16 %v8426
      %v8499 = vunpack.c.l.b16 %v8427
      %v8500 = vunpack.c.l.b16 %v8428
      %v8501 = vunpack.c.l.b16 %v8429
      %v8502 = vunpack.c.l.b16 %v8430
      %v8503 = vunpack.c.l.b16 %v8431
      %v8504 = vunpack.c.l.b16 %v8432
      %v8505 = vunpack.c.l.b16 %v8433
      %v8506 = vunpack.c.l.b16 %v8434
      %v8507 = vunpack.c.l.b16 %v8435
      %v8508 = vunpack.c.l.b16 %v8436
      %v8509 = vunpack.c.l.b16 %v8437
      %v8510 = vunpack.c.l.b16 %v8438
      %v8511 = vunpack.c.l.b16 %v8439
      %v8512 = vunpack.c.l.b16 %v8440
      %v8513 = vunpack.c.l.b16 %v8441
      %v8514 = vunpack.c.l.b16 %v8442
      %v8515 = vunpack.c.l.b16 %v8443
      %v8516 = vunpack.c.l.b16 %v8444
      %v8517 = vunpack.c.l.b16 %v8445
      %v8518 = vunpack.c.l.b16 %v8446
      %v8519 = vunpack.c.l.b16 %v8447
      %v8520 = vunpack.c.l.b16 %v8448
      %v8521 = vunpack.c.l.b16 %v8449
      %v8522 = vunpack.c.l.b16 %v8450
      %v8523 = vunpack.c.l.b16 %v8451
      %v8524 = vunpack.c.l.b16 %v8452
      %v8525 = vunpack.c.l.b16 %v8453
      %v8526 = vunpack.c.l.b16 %v8454
      %v8527 = vunpack.c.l.b16 %v8455
      %v8528 = vunpack.c.l.b16 %v8456
      %v8529 = vpack.c.b16 %v8494, %v8493
      %v8530 = vpack.c.b16 %v8496, %v8495
      %v8531 = vpack.c.b16 %v8498, %v8497
      %v8532 = vpack.c.b16 %v8500, %v8499
      %v8533 = vpack.c.b16 %v8502, %v8501
      %v8534 = vpack.c.b16 %v8504, %v8503
      %v8535 = vpack.c.b16 %v8506, %v8505
      %v8536 = vpack.c.b16 %v8508, %v8507
      %v8537 = vpack.c.b16 %v8510, %v8509
      %v8538 = vpack.c.b16 %v8512, %v8511
      %v8539 = vpack.c.b16 %v8514, %v8513
      %v8540 = vpack.c.b16 %v8516, %v8515
      %v8541 = vpack.c.b16 %v8518, %v8517
      %v8542 = vpack.c.b16 %v8520, %v8519
      %v8543 = vpack.c.b16 %v8522, %v8521
      %v8544 = vpack.c.b16 %v8524, %v8523
      %v8545 = vpack.c.b16 %v8526, %v8525
      %v8546 = vpack.c.b16 %v8528, %v8527
      %vm8565 = vcmask 261120
      %v8567 = vsel %vm8565, %v8419, 0
      %8569 = vmatpush.bf16.msra.mxu0 %v8536
      %8570 = vmatpush.bf16.msra.mxu0 %v8535
      %8571 = vmatpush.bf16.msra.mxu0 %v8534
      %8572 = vmatpush.bf16.msra.mxu0 %v8533
      %8573 = vmatpush.bf16.msra.mxu0 %v8532
      %8574 = vmatpush.bf16.msra.mxu0 %v8531
      %8575 = vmatpush.bf16.msra.mxu0 %v8530
      %8576 = vmatpush.bf16.msra.mxu0 %v8529
      %8577 = vmatmul.bf16.gmra.mxu0 %v8417
      %v8578 = vpop.f32.mrf.mxu0
      %v8579 = vadd.f32 0.0, %v8578
      %v8580 = vpop.f32.mrf.mxu0
      %8581 = vdwg.mxu0
      %8582 = vmatpush.bf16.msra.mxu0 %v8544
      %8583 = vmatpush.bf16.msra.mxu0 %v8543
      %8584 = vmatpush.bf16.msra.mxu0 %v8542
      %8585 = vmatpush.bf16.msra.mxu0 %v8541
      %8586 = vmatpush.bf16.msra.mxu0 %v8540
      %8587 = vmatpush.bf16.msra.mxu0 %v8539
      %8588 = vmatpush.bf16.msra.mxu0 %v8538
      %8589 = vmatpush.bf16.msra.mxu0 %v8537
      %8590 = vmatmul.bf16.gmra.mxu0 %v8418
      %v8591 = vpop.f32.mrf.mxu0
      %v8592 = vadd.f32 %v8579, %v8591
      %v8593 = vpop.f32.mrf.mxu0
      %8594 = vdwg.mxu0
      %8595 = vmatpush.bf16.msra.mxu0 0
      %8596 = vmatpush.bf16.msra.mxu0 0
      %8597 = vmatpush.bf16.msra.mxu0 0
      %8598 = vmatpush.bf16.msra.mxu0 0
      %8599 = vmatpush.bf16.msra.mxu0 0
      %8600 = vmatpush.bf16.msra.mxu0 0
      %8601 = vmatpush.bf16.msra.mxu0 %v8546
      %8602 = vmatpush.bf16.msra.mxu0 %v8545
      %8603 = vmatmul.bf16.gmra.mxu0 %v8567
      %v8604 = vpop.f32.mrf.mxu0
      %v8605 = vadd.f32 %v8592, %v8604
      %v8606 = vpop.f32.mrf.mxu0
      %8607 = vdwg.mxu0
      %v8644 = vunpack.c.l.b16 %v8337
      %v8645 = vunpack.c.l.b16 %v8338
      %v8646 = vunpack.c.l.b16 %v8339
      %v8647 = vunpack.c.l.b16 %v8340
      %v8648 = vunpack.c.l.b16 %v8341
      %v8649 = vunpack.c.l.b16 %v8342
      %v8650 = vunpack.c.l.b16 %v8343
      %v8651 = vunpack.c.l.b16 %v8344
      %v8652 = vunpack.c.l.b16 %v8345
      %v8653 = vunpack.c.l.b16 %v8346
      %v8654 = vunpack.c.l.b16 %v8347
      %v8655 = vunpack.c.l.b16 %v8348
      %v8656 = vunpack.c.l.b16 %v8349
      %v8657 = vunpack.c.l.b16 %v8350
      %v8658 = vunpack.c.l.b16 %v8351
      %v8659 = vunpack.c.l.b16 %v8352
      %v8660 = vunpack.c.l.b16 %v8353
      %v8661 = vunpack.c.l.b16 %v8354
      %v8662 = vunpack.c.l.b16 %v8355
      %v8663 = vunpack.c.l.b16 %v8356
      %v8664 = vunpack.c.l.b16 %v8357
      %v8665 = vunpack.c.l.b16 %v8358
      %v8666 = vunpack.c.l.b16 %v8359
      %v8667 = vunpack.c.l.b16 %v8360
      %v8668 = vunpack.c.l.b16 %v8361
      %v8669 = vunpack.c.l.b16 %v8362
      %v8670 = vunpack.c.l.b16 %v8363
      %v8671 = vunpack.c.l.b16 %v8364
      %v8672 = vunpack.c.l.b16 %v8365
      %v8673 = vunpack.c.l.b16 %v8366
      %v8674 = vunpack.c.l.b16 %v8367
      %v8675 = vunpack.c.l.b16 %v8368
      %v8676 = vunpack.c.l.b16 %v8369
      %v8677 = vunpack.c.l.b16 %v8370
      %v8678 = vunpack.c.l.b16 %v8371
      %v8679 = vunpack.c.l.b16 %v8372
      %v8680 = vpack.c.b16 %v8645, %v8644
      %v8681 = vpack.c.b16 %v8647, %v8646
      %v8682 = vpack.c.b16 %v8649, %v8648
      %v8683 = vpack.c.b16 %v8651, %v8650
      %v8684 = vpack.c.b16 %v8653, %v8652
      %v8685 = vpack.c.b16 %v8655, %v8654
      %v8686 = vpack.c.b16 %v8657, %v8656
      %v8687 = vpack.c.b16 %v8659, %v8658
      %v8688 = vpack.c.b16 %v8661, %v8660
      %v8689 = vpack.c.b16 %v8663, %v8662
      %v8690 = vpack.c.b16 %v8665, %v8664
      %v8691 = vpack.c.b16 %v8667, %v8666
      %v8692 = vpack.c.b16 %v8669, %v8668
      %v8693 = vpack.c.b16 %v8671, %v8670
      %v8694 = vpack.c.b16 %v8673, %v8672
      %v8695 = vpack.c.b16 %v8675, %v8674
      %v8696 = vpack.c.b16 %v8677, %v8676
      %v8697 = vpack.c.b16 %v8679, %v8678
      %v8717 = vsel %vm8565, %v8336, 0
      %8719 = vmatpush.bf16.msra.mxu0 %v8687
      %8720 = vmatpush.bf16.msra.mxu0 %v8686
      %8721 = vmatpush.bf16.msra.mxu0 %v8685
      %8722 = vmatpush.bf16.msra.mxu0 %v8684
      %8723 = vmatpush.bf16.msra.mxu0 %v8683
      %8724 = vmatpush.bf16.msra.mxu0 %v8682
      %8725 = vmatpush.bf16.msra.mxu0 %v8681
      %8726 = vmatpush.bf16.msra.mxu0 %v8680
      %8727 = vmatmul.bf16.gmra.mxu0 %v8334
      %v8728 = vpop.f32.mrf.mxu0
      %v8729 = vadd.f32 %v8605, %v8728
      %v8730 = vpop.f32.mrf.mxu0
      %8731 = vdwg.mxu0
      %8732 = vmatpush.bf16.msra.mxu0 %v8695
      %8733 = vmatpush.bf16.msra.mxu0 %v8694
      %8734 = vmatpush.bf16.msra.mxu0 %v8693
      %8735 = vmatpush.bf16.msra.mxu0 %v8692
      %8736 = vmatpush.bf16.msra.mxu0 %v8691
      %8737 = vmatpush.bf16.msra.mxu0 %v8690
      %8738 = vmatpush.bf16.msra.mxu0 %v8689
      %8739 = vmatpush.bf16.msra.mxu0 %v8688
      %8740 = vmatmul.bf16.gmra.mxu0 %v8335
      %v8741 = vpop.f32.mrf.mxu0
      %v8742 = vadd.f32 %v8729, %v8741
      %v8743 = vpop.f32.mrf.mxu0
      %8744 = vdwg.mxu0
      %8745 = vmatpush.bf16.msra.mxu0 0
      %8746 = vmatpush.bf16.msra.mxu0 0
      %8747 = vmatpush.bf16.msra.mxu0 0
      %8748 = vmatpush.bf16.msra.mxu0 0
      %8749 = vmatpush.bf16.msra.mxu0 0
      %8750 = vmatpush.bf16.msra.mxu0 0
      %8751 = vmatpush.bf16.msra.mxu0 %v8697
      %8752 = vmatpush.bf16.msra.mxu0 %v8696
      %8753 = vmatmul.bf16.gmra.mxu0 %v8717
      %v8754 = vpop.f32.mrf.mxu0
      %v8755 = vadd.f32 %v8742, %v8754
      %v8756 = vpop.f32.mrf.mxu0
      %8757 = vdwg.mxu0
      %s8758 = scalar_lea.vmem %s7, 8
      %v8759 = vld [vmem:[%s8758] sm:$0xf]
      %v8761 = vsel %vm8291, %v8759, 0
      %8763 = vmatpush.bf16.msra.mxu0 0
      %8764 = vmatpush.bf16.msra.mxu0 0
      %8765 = vmatpush.bf16.msra.mxu0 0
      %8766 = vmatpush.bf16.msra.mxu0 0
      %8767 = vmatpush.bf16.msra.mxu0 0
      %8768 = vmatpush.bf16.msra.mxu0 0
      %8769 = vmatpush.bf16.msra.mxu0 0
      %8770 = vmatpush.bf16.msra.mxu0 %v8287
      %8771 = vmatmul.bf16.gmra.mxu0 %v8761
      %v8772 = vpop.f32.mrf.mxu0
      %v8773 = vadd.f32 0.0, %v8772
      %v8774 = vpop.f32.mrf.mxu0
      %8775 = vdwg.mxu0
      %8776 = vmatpush.bf16.msra.mxu0 0
      %8777 = vmatpush.bf16.msra.mxu0 0
      %8778 = vmatpush.bf16.msra.mxu0 0
      %8779 = vmatpush.bf16.msra.mxu0 0
      %8780 = vmatpush.bf16.msra.mxu0 0
      %8781 = vmatpush.bf16.msra.mxu0 0
      %8782 = vmatpush.bf16.msra.mxu0 0
      %8783 = vmatpush.bf16.msra.mxu0 %v8288
      %8784 = vmatmul.bf16.gmra.mxu0 %v8761
      %v8785 = vpop.f32.mrf.mxu0
      %v8786 = vadd.f32 0.0, %v8785
      %v8787 = vpop.f32.mrf.mxu0
      %8788 = vdwg.mxu0
      %8789 = vmatpush.bf16.msra.mxu0 0
      %8790 = vmatpush.bf16.msra.mxu0 0
      %8791 = vmatpush.bf16.msra.mxu0 0
      %8792 = vmatpush.bf16.msra.mxu0 0
      %8793 = vmatpush.bf16.msra.mxu0 0
      %8794 = vmatpush.bf16.msra.mxu0 0
      %8795 = vmatpush.bf16.msra.mxu0 0
      %8796 = vmatpush.bf16.msra.mxu0 %v8289
      %8797 = vmatmul.bf16.gmra.mxu0 %v8761
      %v8798 = vpop.f32.mrf.mxu0
      %v8799 = vadd.f32 0.0, %v8798
      %v8800 = vpop.f32.mrf.mxu0
      %8801 = vdwg.mxu0
      %v8802 = vpack.c.bf16 %v8773, %v8773
      %v8803 = vpack.c.bf16 %v8786, %v8786
      %v8804 = vpack.c.bf16 %v8799, %v8799
      %s8805 = scalar_lea.vmem %s8, 288
      %v8806 = vld [vmem:[%s8805] sm:$0xf]
      %v8807 = vld [vmem:[%s8805 + $0x4] sm:$0xf]
      %v8808 = vld [vmem:[%s8805 + $0x8] sm:$0xf]
      %v8809 = vld [vmem:[%s8805 + $0xc] sm:$0xf]
      %v8810 = vld [vmem:[%s8805 + $0x10] sm:$0xf]
      %v8811 = vld [vmem:[%s8805 + $0x14] sm:$0xf]
      %v8812 = vld [vmem:[%s8805 + $0x18] sm:$0xf]
      %v8813 = vld [vmem:[%s8805 + $0x1c] sm:$0xf]
      %v8814 = vld [vmem:[%s8805 + $0x20] sm:$0xf]
      %v8815 = vld [vmem:[%s8805 + $0x24] sm:$0xf]
      %v8816 = vld [vmem:[%s8805 + $0x28] sm:$0xf]
      %v8817 = vld [vmem:[%s8805 + $0x2c] sm:$0xf]
      %v8818 = vld [vmem:[%s8805 + $0x30] sm:$0xf]
      %v8819 = vld [vmem:[%s8805 + $0x34] sm:$0xf]
      %v8820 = vld [vmem:[%s8805 + $0x38] sm:$0xf]
      %v8821 = vld [vmem:[%s8805 + $0x3c] sm:$0xf]
      %v8822 = vld [vmem:[%s8805 + $0x40] sm:$0xf]
      %v8823 = vld [vmem:[%s8805 + $0x44] sm:$0xf]
      %v8824 = vld [vmem:[%s8805 + $0x48] sm:$0xf]
      %v8825 = vld [vmem:[%s8805 + $0x4c] sm:$0xf]
      %v8826 = vld [vmem:[%s8805 + $0x50] sm:$0xf]
      %v8827 = vld [vmem:[%s8805 + $0x54] sm:$0xf]
      %v8828 = vld [vmem:[%s8805 + $0x58] sm:$0xf]
      %v8829 = vld [vmem:[%s8805 + $0x5c] sm:$0xf]
      %v8830 = vld [vmem:[%s8805 + $0x60] sm:$0xf]
      %v8831 = vld [vmem:[%s8805 + $0x64] sm:$0xf]
      %v8832 = vld [vmem:[%s8805 + $0x68] sm:$0xf]
      %v8833 = vld [vmem:[%s8805 + $0x6c] sm:$0xf]
      %v8834 = vld [vmem:[%s8805 + $0x70] sm:$0xf]
      %v8835 = vld [vmem:[%s8805 + $0x74] sm:$0xf]
      %v8836 = vld [vmem:[%s8805 + $0x78] sm:$0xf]
      %v8837 = vld [vmem:[%s8805 + $0x7c] sm:$0xf]
      %v8838 = vld [vmem:[%s8805 + $0x80] sm:$0xf]
      %v8839 = vld [vmem:[%s8805 + $0x84] sm:$0xf]
      %v8840 = vld [vmem:[%s8805 + $0x88] sm:$0xf]
      %v8841 = vld [vmem:[%s8805 + $0x8c] sm:$0xf]
      %v8878 = vunpack.c.l.b16 %v8806
      %v8879 = vunpack.c.l.b16 %v8807
      %v8880 = vunpack.c.l.b16 %v8808
      %v8881 = vunpack.c.l.b16 %v8809
      %v8882 = vunpack.c.l.b16 %v8810
      %v8883 = vunpack.c.l.b16 %v8811
      %v8884 = vunpack.c.l.b16 %v8812
      %v8885 = vunpack.c.l.b16 %v8813
      %v8886 = vunpack.c.l.b16 %v8814
      %v8887 = vunpack.c.l.b16 %v8815
      %v8888 = vunpack.c.l.b16 %v8816
      %v8889 = vunpack.c.l.b16 %v8817
      %v8890 = vunpack.c.l.b16 %v8818
      %v8891 = vunpack.c.l.b16 %v8819
      %v8892 = vunpack.c.l.b16 %v8820
      %v8893 = vunpack.c.l.b16 %v8821
      %v8894 = vunpack.c.l.b16 %v8822
      %v8895 = vunpack.c.l.b16 %v8823
      %v8896 = vunpack.c.l.b16 %v8824
      %v8897 = vunpack.c.l.b16 %v8825
      %v8898 = vunpack.c.l.b16 %v8826
      %v8899 = vunpack.c.l.b16 %v8827
      %v8900 = vunpack.c.l.b16 %v8828
      %v8901 = vunpack.c.l.b16 %v8829
      %v8902 = vunpack.c.l.b16 %v8830
      %v8903 = vunpack.c.l.b16 %v8831
      %v8904 = vunpack.c.l.b16 %v8832
      %v8905 = vunpack.c.l.b16 %v8833
      %v8906 = vunpack.c.l.b16 %v8834
      %v8907 = vunpack.c.l.b16 %v8835
      %v8908 = vunpack.c.l.b16 %v8836
      %v8909 = vunpack.c.l.b16 %v8837
      %v8910 = vunpack.c.l.b16 %v8838
      %v8911 = vunpack.c.l.b16 %v8839
      %v8912 = vunpack.c.l.b16 %v8840
      %v8913 = vunpack.c.l.b16 %v8841
      %v8914 = vpack.c.b16 %v8879, %v8878
      %v8915 = vpack.c.b16 %v8881, %v8880
      %v8916 = vpack.c.b16 %v8883, %v8882
      %v8917 = vpack.c.b16 %v8885, %v8884
      %v8918 = vpack.c.b16 %v8887, %v8886
      %v8919 = vpack.c.b16 %v8889, %v8888
      %v8920 = vpack.c.b16 %v8891, %v8890
      %v8921 = vpack.c.b16 %v8893, %v8892
      %v8922 = vpack.c.b16 %v8895, %v8894
      %v8923 = vpack.c.b16 %v8897, %v8896
      %v8924 = vpack.c.b16 %v8899, %v8898
      %v8925 = vpack.c.b16 %v8901, %v8900
      %v8926 = vpack.c.b16 %v8903, %v8902
      %v8927 = vpack.c.b16 %v8905, %v8904
      %v8928 = vpack.c.b16 %v8907, %v8906
      %v8929 = vpack.c.b16 %v8909, %v8908
      %v8930 = vpack.c.b16 %v8911, %v8910
      %v8931 = vpack.c.b16 %v8913, %v8912
      %v8951 = vsel %vm8565, %v8804, 0
      %8953 = vmatpush.bf16.msra.mxu0 %v8921
      %8954 = vmatpush.bf16.msra.mxu0 %v8920
      %8955 = vmatpush.bf16.msra.mxu0 %v8919
      %8956 = vmatpush.bf16.msra.mxu0 %v8918
      %8957 = vmatpush.bf16.msra.mxu0 %v8917
      %8958 = vmatpush.bf16.msra.mxu0 %v8916
      %8959 = vmatpush.bf16.msra.mxu0 %v8915
      %8960 = vmatpush.bf16.msra.mxu0 %v8914
      %8961 = vmatmul.bf16.gmra.mxu0 %v8802
      %v8962 = vpop.f32.mrf.mxu0
      %v8963 = vadd.f32 0.0, %v8962
      %v8964 = vpop.f32.mrf.mxu0
      %8965 = vdwg.mxu0
      %8966 = vmatpush.bf16.msra.mxu0 %v8929
      %8967 = vmatpush.bf16.msra.mxu0 %v8928
      %8968 = vmatpush.bf16.msra.mxu0 %v8927
      %8969 = vmatpush.bf16.msra.mxu0 %v8926
      %8970 = vmatpush.bf16.msra.mxu0 %v8925
      %8971 = vmatpush.bf16.msra.mxu0 %v8924
      %8972 = vmatpush.bf16.msra.mxu0 %v8923
      %8973 = vmatpush.bf16.msra.mxu0 %v8922
      %8974 = vmatmul.bf16.gmra.mxu0 %v8803
      %v8975 = vpop.f32.mrf.mxu0
      %v8976 = vadd.f32 %v8963, %v8975
      %v8977 = vpop.f32.mrf.mxu0
      %8978 = vdwg.mxu0
      %8979 = vmatpush.bf16.msra.mxu0 0
      %8980 = vmatpush.bf16.msra.mxu0 0
      %8981 = vmatpush.bf16.msra.mxu0 0
      %8982 = vmatpush.bf16.msra.mxu0 0
      %8983 = vmatpush.bf16.msra.mxu0 0
      %8984 = vmatpush.bf16.msra.mxu0 0
      %8985 = vmatpush.bf16.msra.mxu0 %v8931
      %8986 = vmatpush.bf16.msra.mxu0 %v8930
      %8987 = vmatmul.bf16.gmra.mxu0 %v8951
      %v8988 = vpop.f32.mrf.mxu0
      %v8989 = vadd.f32 %v8976, %v8988
      %v8990 = vpop.f32.mrf.mxu0
      %8991 = vdwg.mxu0
      %v8992 = vadd.f32 %v8755, %v8989
      %s8993 = scalar_lea.vmem %s7, 12
      %v8994 = vld [vmem:[%s8993] sm:$0xf]
      %v8996 = vsel %vm8291, %v8994, 0
      %8998 = vmatpush.bf16.msra.mxu0 0
      %8999 = vmatpush.bf16.msra.mxu0 0
      %9000 = vmatpush.bf16.msra.mxu0 0
      %9001 = vmatpush.bf16.msra.mxu0 0
      %9002 = vmatpush.bf16.msra.mxu0 0
      %9003 = vmatpush.bf16.msra.mxu0 0
      %9004 = vmatpush.bf16.msra.mxu0 0
      %9005 = vmatpush.bf16.msra.mxu0 %v8287
      %9006 = vmatmul.bf16.gmra.mxu0 %v8996
      %v9007 = vpop.f32.mrf.mxu0
      %v9008 = vadd.f32 0.0, %v9007
      %v9009 = vpop.f32.mrf.mxu0
      %9010 = vdwg.mxu0
      %9011 = vmatpush.bf16.msra.mxu0 0
      %9012 = vmatpush.bf16.msra.mxu0 0
      %9013 = vmatpush.bf16.msra.mxu0 0
      %9014 = vmatpush.bf16.msra.mxu0 0
      %9015 = vmatpush.bf16.msra.mxu0 0
      %9016 = vmatpush.bf16.msra.mxu0 0
      %9017 = vmatpush.bf16.msra.mxu0 0
      %9018 = vmatpush.bf16.msra.mxu0 %v8288
      %9019 = vmatmul.bf16.gmra.mxu0 %v8996
      %v9020 = vpop.f32.mrf.mxu0
      %v9021 = vadd.f32 0.0, %v9020
      %v9022 = vpop.f32.mrf.mxu0
      %9023 = vdwg.mxu0
      %9024 = vmatpush.bf16.msra.mxu0 0
      %9025 = vmatpush.bf16.msra.mxu0 0
      %9026 = vmatpush.bf16.msra.mxu0 0
      %9027 = vmatpush.bf16.msra.mxu0 0
      %9028 = vmatpush.bf16.msra.mxu0 0
      %9029 = vmatpush.bf16.msra.mxu0 0
      %9030 = vmatpush.bf16.msra.mxu0 0
      %9031 = vmatpush.bf16.msra.mxu0 %v8289
      %9032 = vmatmul.bf16.gmra.mxu0 %v8996
      %v9033 = vpop.f32.mrf.mxu0
      %v9034 = vadd.f32 0.0, %v9033
      %v9035 = vpop.f32.mrf.mxu0
      %9036 = vdwg.mxu0
      %v9037 = vpack.c.bf16 %v9008, %v9008
      %v9038 = vpack.c.bf16 %v9021, %v9021
      %v9039 = vpack.c.bf16 %v9034, %v9034
      %s9040 = scalar_lea.vmem %s8, 432
      %v9041 = vld [vmem:[%s9040] sm:$0xf]
      %v9042 = vld [vmem:[%s9040 + $0x4] sm:$0xf]
      %v9043 = vld [vmem:[%s9040 + $0x8] sm:$0xf]
      %v9044 = vld [vmem:[%s9040 + $0xc] sm:$0xf]
      %v9045 = vld [vmem:[%s9040 + $0x10] sm:$0xf]
      %v9046 = vld [vmem:[%s9040 + $0x14] sm:$0xf]
      %v9047 = vld [vmem:[%s9040 + $0x18] sm:$0xf]
      %v9048 = vld [vmem:[%s9040 + $0x1c] sm:$0xf]
      %v9049 = vld [vmem:[%s9040 + $0x20] sm:$0xf]
      %v9050 = vld [vmem:[%s9040 + $0x24] sm:$0xf]
      %v9051 = vld [vmem:[%s9040 + $0x28] sm:$0xf]
      %v9052 = vld [vmem:[%s9040 + $0x2c] sm:$0xf]
      %v9053 = vld [vmem:[%s9040 + $0x30] sm:$0xf]
      %v9054 = vld [vmem:[%s9040 + $0x34] sm:$0xf]
      %v9055 = vld [vmem:[%s9040 + $0x38] sm:$0xf]
      %v9056 = vld [vmem:[%s9040 + $0x3c] sm:$0xf]
      %v9057 = vld [vmem:[%s9040 + $0x40] sm:$0xf]
      %v9058 = vld [vmem:[%s9040 + $0x44] sm:$0xf]
      %v9059 = vld [vmem:[%s9040 + $0x48] sm:$0xf]
      %v9060 = vld [vmem:[%s9040 + $0x4c] sm:$0xf]
      %v9061 = vld [vmem:[%s9040 + $0x50] sm:$0xf]
      %v9062 = vld [vmem:[%s9040 + $0x54] sm:$0xf]
      %v9063 = vld [vmem:[%s9040 + $0x58] sm:$0xf]
      %v9064 = vld [vmem:[%s9040 + $0x5c] sm:$0xf]
      %v9065 = vld [vmem:[%s9040 + $0x60] sm:$0xf]
      %v9066 = vld [vmem:[%s9040 + $0x64] sm:$0xf]
      %v9067 = vld [vmem:[%s9040 + $0x68] sm:$0xf]
      %v9068 = vld [vmem:[%s9040 + $0x6c] sm:$0xf]
      %v9069 = vld [vmem:[%s9040 + $0x70] sm:$0xf]
      %v9070 = vld [vmem:[%s9040 + $0x74] sm:$0xf]
      %v9071 = vld [vmem:[%s9040 + $0x78] sm:$0xf]
      %v9072 = vld [vmem:[%s9040 + $0x7c] sm:$0xf]
      %v9073 = vld [vmem:[%s9040 + $0x80] sm:$0xf]
      %v9074 = vld [vmem:[%s9040 + $0x84] sm:$0xf]
      %v9075 = vld [vmem:[%s9040 + $0x88] sm:$0xf]
      %v9076 = vld [vmem:[%s9040 + $0x8c] sm:$0xf]
      %v9113 = vunpack.c.l.b16 %v9041
      %v9114 = vunpack.c.l.b16 %v9042
      %v9115 = vunpack.c.l.b16 %v9043
      %v9116 = vunpack.c.l.b16 %v9044
      %v9117 = vunpack.c.l.b16 %v9045
      %v9118 = vunpack.c.l.b16 %v9046
      %v9119 = vunpack.c.l.b16 %v9047
      %v9120 = vunpack.c.l.b16 %v9048
      %v9121 = vunpack.c.l.b16 %v9049
      %v9122 = vunpack.c.l.b16 %v9050
      %v9123 = vunpack.c.l.b16 %v9051
      %v9124 = vunpack.c.l.b16 %v9052
      %v9125 = vunpack.c.l.b16 %v9053
      %v9126 = vunpack.c.l.b16 %v9054
      %v9127 = vunpack.c.l.b16 %v9055
      %v9128 = vunpack.c.l.b16 %v9056
      %v9129 = vunpack.c.l.b16 %v9057
      %v9130 = vunpack.c.l.b16 %v9058
      %v9131 = vunpack.c.l.b16 %v9059
      %v9132 = vunpack.c.l.b16 %v9060
      %v9133 = vunpack.c.l.b16 %v9061
      %v9134 = vunpack.c.l.b16 %v9062
      %v9135 = vunpack.c.l.b16 %v9063
      %v9136 = vunpack.c.l.b16 %v9064
      %v9137 = vunpack.c.l.b16 %v9065
      %v9138 = vunpack.c.l.b16 %v9066
      %v9139 = vunpack.c.l.b16 %v9067
      %v9140 = vunpack.c.l.b16 %v9068
      %v9141 = vunpack.c.l.b16 %v9069
      %v9142 = vunpack.c.l.b16 %v9070
      %v9143 = vunpack.c.l.b16 %v9071
      %v9144 = vunpack.c.l.b16 %v9072
      %v9145 = vunpack.c.l.b16 %v9073
      %v9146 = vunpack.c.l.b16 %v9074
      %v9147 = vunpack.c.l.b16 %v9075
      %v9148 = vunpack.c.l.b16 %v9076
      %v9149 = vpack.c.b16 %v9114, %v9113
      %v9150 = vpack.c.b16 %v9116, %v9115
      %v9151 = vpack.c.b16 %v9118, %v9117
      %v9152 = vpack.c.b16 %v9120, %v9119
      %v9153 = vpack.c.b16 %v9122, %v9121
      %v9154 = vpack.c.b16 %v9124, %v9123
      %v9155 = vpack.c.b16 %v9126, %v9125
      %v9156 = vpack.c.b16 %v9128, %v9127
      %v9157 = vpack.c.b16 %v9130, %v9129
      %v9158 = vpack.c.b16 %v9132, %v9131
      %v9159 = vpack.c.b16 %v9134, %v9133
      %v9160 = vpack.c.b16 %v9136, %v9135
      %v9161 = vpack.c.b16 %v9138, %v9137
      %v9162 = vpack.c.b16 %v9140, %v9139
      %v9163 = vpack.c.b16 %v9142, %v9141
      %v9164 = vpack.c.b16 %v9144, %v9143
      %v9165 = vpack.c.b16 %v9146, %v9145
      %v9166 = vpack.c.b16 %v9148, %v9147
      %v9186 = vsel %vm8565, %v9039, 0
      %9188 = vmatpush.bf16.msra.mxu0 %v9156
      %9189 = vmatpush.bf16.msra.mxu0 %v9155
      %9190 = vmatpush.bf16.msra.mxu0 %v9154
      %9191 = vmatpush.bf16.msra.mxu0 %v9153
      %9192 = vmatpush.bf16.msra.mxu0 %v9152
      %9193 = vmatpush.bf16.msra.mxu0 %v9151
      %9194 = vmatpush.bf16.msra.mxu0 %v9150
      %9195 = vmatpush.bf16.msra.mxu0 %v9149
      %9196 = vmatmul.bf16.gmra.mxu0 %v9037
      %v9197 = vpop.f32.mrf.mxu0
      %v9198 = vadd.f32 0.0, %v9197
      %v9199 = vpop.f32.mrf.mxu0
      %9200 = vdwg.mxu0
      %9201 = vmatpush.bf16.msra.mxu0 %v9164
      %9202 = vmatpush.bf16.msra.mxu0 %v9163
      %9203 = vmatpush.bf16.msra.mxu0 %v9162
      %9204 = vmatpush.bf16.msra.mxu0 %v9161
      %9205 = vmatpush.bf16.msra.mxu0 %v9160
      %9206 = vmatpush.bf16.msra.mxu0 %v9159
      %9207 = vmatpush.bf16.msra.mxu0 %v9158
      %9208 = vmatpush.bf16.msra.mxu0 %v9157
      %9209 = vmatmul.bf16.gmra.mxu0 %v9038
      %v9210 = vpop.f32.mrf.mxu0
      %v9211 = vadd.f32 %v9198, %v9210
      %v9212 = vpop.f32.mrf.mxu0
      %9213 = vdwg.mxu0
      %9214 = vmatpush.bf16.msra.mxu0 0
      %9215 = vmatpush.bf16.msra.mxu0 0
      %9216 = vmatpush.bf16.msra.mxu0 0
      %9217 = vmatpush.bf16.msra.mxu0 0
      %9218 = vmatpush.bf16.msra.mxu0 0
      %9219 = vmatpush.bf16.msra.mxu0 0
      %9220 = vmatpush.bf16.msra.mxu0 %v9166
      %9221 = vmatpush.bf16.msra.mxu0 %v9165
      %9222 = vmatmul.bf16.gmra.mxu0 %v9186
      %v9223 = vpop.f32.mrf.mxu0
      %v9224 = vadd.f32 %v9211, %v9223
      %v9225 = vpop.f32.mrf.mxu0
      %9226 = vdwg.mxu0
      %v9227 = vadd.f32 %v8992, %v9224
      %v9228 = vld [vmem:[%s9] sm:$0x1]
      %v9230 = vperm.slane %v9228, 0
      %v9232 = vadd.f32 %v9227, %v9230
      %v9233 = vmax.f32 %v9232, 0.0
      %9234 = vst [vmem:[%s357] sm:$0xff] %v9233
      %p9235 = scmp.lt.s32.totalorder %s21, 1
      %s9236 = scalar_select %p9235, %s21, 1
      %s9237 = smul.addr %s9236, 8
      %s9238 = scalar_lea.vmem %s10, %s9237
      // Predicated region
      $region61: #{breakout_img_encoder.1} parent=59 // pred_check
        %p9239 = pneg %p254
      $region62: #{breakout_img_encoder.1} parent=59 // pred_check_branch
        %9241 = sbr.rel (%p9239) target = $region64
      $region63: #{breakout_img_encoder.1} parent=59 // pred_region
        _
      $region64: #{breakout_img_encoder.1} parent=59 // pred_fallthru
        _
    $region60: #{breakout_img_encoder.1} parent=5 // pred_fallthru
      _
    %p9242 = scmp.le.s32.totalorder 2, %s16
    // Predicated region
    $region65: #{breakout_img_encoder.1} parent=5 // pred_check
      %p9243 = pneg %p9242
    $region66: #{breakout_img_encoder.1} parent=5 // pred_check_branch
      %9245 = sbr.rel (%p9243) target = $region68
    $region67: #{breakout_img_encoder.1} parent=5 // pred_region
      %s9246 = ssub.s32 %s16, 2
      // Predicated region
      $region69: #{breakout_img_encoder.1} parent=67 // pred_check
        %p9247 = pneg %p260
      $region70: #{breakout_img_encoder.1} parent=67 // pred_check_branch
        %9249 = sbr.rel (%p9247) target = $region72
      $region71: #{breakout_img_encoder.1} parent=67 // pred_region
        %p9250 = scmp.lt.s32.totalorder %s22, 1
        %s9251 = scalar_select %p9250, %s22, 1
        %s9252 = smul.addr %s9251, 8
        %s9253 = scalar_lea.vmem %s10, %s9252
      $region72: #{breakout_img_encoder.1} parent=67 // pred_fallthru
        _
    $region68: #{breakout_img_encoder.1} parent=5 // pred_fallthru
      _
  $region6: #{breakout_img_encoder.1} parent=0 // loop_footer
    %s20 = sadd.s32 1, %s16
  $region7: #{breakout_img_encoder.1} parent=0 // loop_footer_branch
    %15 = sbr.rel target = $region3
  $region8: #{breakout_img_encoder.1} parent=0 // loop_exit
    _

</llo_original>
